<compile_context>
chip_gen: v5e
topology: v5e:2x2
jax: 0.10.0
libtpu: 0.0.40
codegen_flags: <defaults>
</compile_context>

<pallas_src>
import functools

import jax
import jax.numpy as jnp
from jax.experimental import pallas as pl
from jax.experimental.pallas import tpu as pltpu


# ---------------------------------------------------------------------------
# In-kernel helper
# ---------------------------------------------------------------------------
def _conv_all_oc(src_ref, w_ref, b_ref, *, cout, cin, kh, kw, dil, h_out,
                 w_out, tanh):
    """Dilated stride-1 conv reading from a zero-halo padded VMEM scratch ref.

    All `cout` output channels are produced at once.  Chomp1d is fused by
    producing only `h_out` output rows.  ONE (cin, h_out, w_out) slab is
    sliced per (kh, kw) tap and reused across the cin x cout FMAs (slab[c]
    is free leading-dim vreg selection).  Accumulators are initialised from
    the first tap product; the bias is added once at the end (no zero-init).
    Weights/biases are SMEM scalars, broadcast at the FMA."""
    accs = [None] * cout
    for ih in range(kh):
        for iw in range(kw):
            h0 = ih * dil
            w0 = iw * dil
            slab = src_ref[:, h0:h0 + h_out, w0:w0 + w_out]   # (cin,h_out,w_out)
            for c in range(cin):
                xs = slab[c]                                  # free vreg select
                for o in range(cout):
                    widx = ((o * cin + c) * kh + ih) * kw + iw
                    t = w_ref[widx] * xs
                    accs[o] = t if accs[o] is None else accs[o] + t
    accs = [accs[o] + b_ref[o] for o in range(cout)]
    if tanh:
        accs = [jnp.tanh(a) for a in accs]
    return jnp.concatenate([a[None] for a in accs], axis=0)   # (cout,h_out,w_out)


# ---------------------------------------------------------------------------
# Fused TemporalBlock kernel: one grid step == one batch block (1 or N elems)
# ---------------------------------------------------------------------------
def _temporal_block_kernel(x_ref, w1_ref, b1_ref, w2_ref, b2_ref,
                           wds_ref, bds_ref, o_ref, xp_ref, h1p_ref,
                           *, C, H, W, k, d, p):
    # Zero the padding halos once per invocation; the interiors are fully
    # overwritten for every batch element below, so the halos stay zero.
    xp_ref[...] = jnp.zeros_like(xp_ref)
    h1p_ref[...] = jnp.zeros_like(h1p_ref)

    w1_out = W + p            # conv1 width after fusing the H-row chomp
    w2_out = W + 2 * p        # conv2 / downsample / output width

    # TODO(synk): nn.Dropout train-mode stochastic masking not implemented;
    #             eval-mode identity.
    for b in range(x_ref.shape[0]):          # unrolled batch-block loop
        # Pad x by p on H and W: one interior store into the zero-halo scratch.
        xp_ref[:, p:p + H, p:p + W] = x_ref[b]

        # Residual first (right after xp is built, before conv2's working set
        # peaks): downsample = Conv2d(C, C, kernel=(2p+1, 1), padding=p).
        res = _conv_all_oc(xp_ref, wds_ref, bds_ref, cout=C, cin=C,
                           kh=2 * p + 1, kw=1, dil=1,
                           h_out=H, w_out=w2_out, tanh=False)

        # conv1 -> chomp1 (fused: only H output rows) -> tanh
        h1 = _conv_all_oc(xp_ref, w1_ref, b1_ref, cout=C, cin=C,
                          kh=k, kw=k, dil=d,
                          h_out=H, w_out=w1_out, tanh=True)

        # Re-pad h1 into the second zero-halo scratch; h1's vregs die here.
        h1p_ref[:, p:p + H, p:p + w1_out] = h1

        # conv2 -> chomp2 -> tanh
        h2 = _conv_all_oc(h1p_ref, w2_ref, b2_ref, cout=C, cin=C,
                          kh=k, kw=k, dil=d,
                          h_out=H, w_out=w2_out, tanh=True)

        # Fused add + relu epilogue, single store of the block output.
        o_ref[b] = jnp.maximum(h2 + res, 0.0)


# ---------------------------------------------------------------------------
# Glue (weight_norm folding + generation-dispatched pallas_call)
# ---------------------------------------------------------------------------
def weight_norm(v, g):
    """torch.nn.utils.weight_norm, dim=0: w = g * v / ||v|| per out channel."""
    norm = jnp.sqrt(jnp.sum(v * v, axis=(1, 2, 3), keepdims=True))
    return (g.reshape(-1, 1, 1, 1) / norm) * v


def _use_parallel_batch_grid(n):
    """True only on multi-TensorCore chips (v7x) with n>=2: there a grid=(N,)
    'parallel' batch axis keeps both cores busy.  On single-TC v5e/v6e one big
    grid step avoids the ~0.35us/step fixed overhead (the per-element compute
    is sub-microsecond)."""
    if n < 2:
        return False
    try:
        kind = jax.devices()[0].device_kind.lower()
    except Exception:
        return False
    return "v7" in kind


def temporal_block_forward(x, params, *, kernel_size, dilation, padding):
    n, c, h, w = x.shape
    k, d, p = kernel_size, dilation, padding
    # Residual add only shape-checks when padding == dilation*(kernel_size-1)
    # (standard TCN setting), same constraint as the PyTorch module.
    assert p == d * (k - 1), "padding must equal dilation*(kernel_size-1)"
    wf = w + 2 * p

    w1 = weight_norm(params["v1"], params["g1"]).astype(jnp.float32).reshape(-1)
    w2 = weight_norm(params["v2"], params["g2"]).astype(jnp.float32).reshape(-1)
    wds = params["w_ds"].astype(jnp.float32).reshape(-1)
    b1 = params["b1"].astype(jnp.float32)
    b2 = params["b2"].astype(jnp.float32)
    bds = params["b_ds"].astype(jnp.float32)

    if _use_parallel_batch_grid(n):
        bn, grid_len, sem = 1, n, ("parallel",)     # v7x: batch over 2 TCs
    else:
        bn, grid_len, sem = n, 1, ("arbitrary",)    # v5e/v6e: single grid step
    # TODO(synk): when stacking multiple TemporalBlocks into a full TCN, fuse
    # consecutive blocks into one pallas_call so intermediate activations
    # never round-trip through HBM (biggest win on v5e).

    kernel = functools.partial(_temporal_block_kernel,
                               C=c, H=h, W=w, k=k, d=d, p=p)
    smem = pl.BlockSpec(memory_space=pltpu.MemorySpace.SMEM)
    return pl.pallas_call(
        kernel,
        out_shape=jax.ShapeDtypeStruct((n, c, h, wf), jnp.float32),
        grid=(grid_len,),
        in_specs=[pl.BlockSpec((bn, c, h, w), lambda i: (i, 0, 0, 0)),
                  smem, smem, smem, smem, smem, smem],
        out_specs=pl.BlockSpec((bn, c, h, wf), lambda i: (i, 0, 0, 0)),
        scratch_shapes=[
            pltpu.VMEM((c, h + 2 * p, w + 2 * p), jnp.float32),   # padded x
            pltpu.VMEM((c, h + 2 * p, w + 3 * p), jnp.float32),   # padded h1
        ],
        compiler_params=pltpu.CompilerParams(dimension_semantics=sem),
    )(x.astype(jnp.float32), w1, b1, w2, b2, wds, bds)


# ---------------------------------------------------------------------------
if __name__ == "__main__":
    key = jax.random.PRNGKey(0)
    ks = jax.random.split(key, 8)

    # Module hyperparameters (module hardcodes in_channels=5 on every conv).
    n_channels = 5
    kernel_size = 2
    dilation = 2
    padding = (kernel_size - 1) * dilation          # = 2
    N, H, W = 2, 12, 12

    x = jax.random.normal(ks[0], (N, n_channels, H, W), jnp.float32)

    # Deterministic synthetic parameters (weight_norm v/g, biases, downsample).
    v1 = 0.05 * jax.random.normal(ks[1], (5, 5, kernel_size, kernel_size), jnp.float32)
    g1 = jnp.sqrt(jnp.sum(v1 * v1, axis=(1, 2, 3)))     # weight_norm init: g=||v||
    b1 = 0.01 * jax.random.normal(ks[2], (5,), jnp.float32)
    v2 = 0.05 * jax.random.normal(ks[3], (5, 5, kernel_size, kernel_size), jnp.float32)
    g2 = jnp.sqrt(jnp.sum(v2 * v2, axis=(1, 2, 3)))
    b2 = 0.01 * jax.random.normal(ks[4], (5,), jnp.float32)
    w_ds = 0.01 * jax.random.normal(ks[5], (5, 5, 2 * padding + 1, 1), jnp.float32)
    b_ds = 0.01 * jax.random.normal(ks[6], (5,), jnp.float32)
    params = dict(v1=v1, g1=g1, b1=b1, v2=v2, g2=g2, b2=b2, w_ds=w_ds, b_ds=b_ds)

    fwd = jax.jit(functools.partial(temporal_block_forward,
                                    kernel_size=kernel_size,
                                    dilation=dilation, padding=padding))
    out = jax.block_until_ready(fwd(x, params))
    assert out.shape == (N, n_channels, H, W + 2 * padding), out.shape

    # Pure-XLA reference of the same forward pass (correctness check).
    def conv_ref(xx, ww, bb, pad, dil):
        y = jax.lax.conv_general_dilated(
            xx, ww, window_strides=(1, 1),
            padding=((pad, pad), (pad, pad)), rhs_dilation=(dil, dil),
            dimension_numbers=("NCHW", "OIHW", "NCHW"),
            precision=jax.lax.Precision.HIGHEST)
        return y + bb.reshape(1, -1, 1, 1)

    w1m = weight_norm(v1, g1)
    w2m = weight_norm(v2, g2)
    r1 = jnp.tanh(conv_ref(x, w1m, b1, padding, dilation)[:, :, :-padding, :])
    r2 = jnp.tanh(conv_ref(r1, w2m, b2, padding, dilation)[:, :, :-padding, :])
    rres = conv_ref(x, w_ds, b_ds, padding, 1)
    ref = jnp.maximum(r2 + rres, 0.0)
    err = float(jnp.max(jnp.abs(out - ref)))
    # All-f32 path: tight tolerance (catches any dtype/layout regression);
    # margin only for XLA's bf16x3 f32-conv decomposition and tanh ULP diffs.
    assert err < 3e-5, f"max abs err vs reference: {err}"

    print("KERNEL_OK")
</pallas_src>

<mosaic_0001>
module attributes {stable_mosaic.version = 11 : i64} {
  func.func @_temporal_block_kernel(%arg0: i32, %arg1: memref<2x5x12x12xf32, #tpu.memory_space<vmem>>, %arg2: memref<100xf32, #tpu.memory_space<smem>>, %arg3: memref<5xf32, #tpu.memory_space<smem>>, %arg4: memref<100xf32, #tpu.memory_space<smem>>, %arg5: memref<5xf32, #tpu.memory_space<smem>>, %arg6: memref<125xf32, #tpu.memory_space<smem>>, %arg7: memref<5xf32, #tpu.memory_space<smem>>, %arg8: memref<2x5x12x16xf32, #tpu.memory_space<vmem>>, %arg9: memref<5x16x16xf32, #tpu.memory_space<vmem>>, %arg10: memref<5x16x18xf32, #tpu.memory_space<vmem>>) attributes {dimension_semantics = [#tpu.dimension_semantics<arbitrary>], iteration_bounds = array<i64: 1>, scalar_prefetch = 0 : i64, scratch_operands = 2 : i64, tpu.core_type = #tpu.core_type<tc>, window_params = [{transform_indices = @transform_0, window_bounds = array<i64: 2, 5, 12, 12>}, {transform_indices = @transform_1, window_bounds = array<i64: 100>}, {transform_indices = @transform_2, window_bounds = array<i64: 5>}, {transform_indices = @transform_3, window_bounds = array<i64: 100>}, {transform_indices = @transform_4, window_bounds = array<i64: 5>}, {transform_indices = @transform_5, window_bounds = array<i64: 125>}, {transform_indices = @transform_6, window_bounds = array<i64: 5>}, {transform_indices = @transform_7, window_bounds = array<i64: 2, 5, 12, 16>}]} {
    %cst = arith.constant 0.000000e+00 : f32
    %0 = vector.broadcast %cst : f32 to vector<5x16x16xf32>
    %c0 = arith.constant 0 : index
    %c0_0 = arith.constant 0 : index
    %c0_1 = arith.constant 0 : index
    %1 = vector.load %arg9[%c0, %c0_0, %c0_1] : memref<5x16x16xf32, #tpu.memory_space<vmem>>, vector<5x16x16xf32>
    tpu.vector_store %arg9[%c0, %c0_0, %c0_1], %0 {strides = array<i32>} : memref<5x16x16xf32, #tpu.memory_space<vmem>>, vector<5x16x16xf32>,
    %cst_2 = arith.constant 0.000000e+00 : f32
    %2 = vector.broadcast %cst_2 : f32 to vector<5x16x18xf32>
    %c0_3 = arith.constant 0 : index
    %c0_4 = arith.constant 0 : index
    %c0_5 = arith.constant 0 : index
    %3 = vector.load %arg10[%c0_3, %c0_4, %c0_5] : memref<5x16x18xf32, #tpu.memory_space<vmem>>, vector<5x16x18xf32>
    tpu.vector_store %arg10[%c0_3, %c0_4, %c0_5], %2 {strides = array<i32>} : memref<5x16x18xf32, #tpu.memory_space<vmem>>, vector<5x16x18xf32>,
    %c0_6 = arith.constant 0 : index
    %c0_7 = arith.constant 0 : index
    %c0_8 = arith.constant 0 : index
    %c0_9 = arith.constant 0 : index
    %4 = vector.load %arg1[%c0_6, %c0_7, %c0_8, %c0_9] : memref<2x5x12x12xf32, #tpu.memory_space<vmem>>, vector<1x5x12x12xf32>
    %5 = vector.shape_cast %4 : vector<1x5x12x12xf32> to vector<5x12x12xf32>
    %c0_10 = arith.constant 0 : index
    %c2 = arith.constant 2 : index
    %c2_11 = arith.constant 2 : index
    %6 = vector.load %arg9[%c0_10, %c2, %c2_11] : memref<5x16x16xf32, #tpu.memory_space<vmem>>, vector<5x12x12xf32>
    tpu.vector_store %arg9[%c0_10, %c2, %c2_11], %5 {strides = array<i32>} : memref<5x16x16xf32, #tpu.memory_space<vmem>>, vector<5x12x12xf32>,
    %c0_12 = arith.constant 0 : index
    %c0_13 = arith.constant 0 : index
    %c0_14 = arith.constant 0 : index
    %7 = vector.load %arg9[%c0_12, %c0_13, %c0_14] : memref<5x16x16xf32, #tpu.memory_space<vmem>>, vector<5x12x16xf32>
    %8 = vector.extract_strided_slice %7 {offsets = [0, 0, 0], sizes = [1, 12, 16], strides = [1, 1, 1]} : vector<5x12x16xf32> to vector<1x12x16xf32>
    %9 = vector.shape_cast %8 : vector<1x12x16xf32> to vector<12x16xf32>
    %c0_15 = arith.constant 0 : index
    %10 = memref.load %arg6[%c0_15] : memref<125xf32, #tpu.memory_space<smem>>
    %11 = vector.broadcast %10 : f32 to vector<12x16xf32>
    %12 = arith.mulf %11, %9 : vector<12x16xf32>
    %c25 = arith.constant 25 : index
    %13 = memref.load %arg6[%c25] : memref<125xf32, #tpu.memory_space<smem>>
    %14 = vector.broadcast %13 : f32 to vector<12x16xf32>
    %15 = arith.mulf %14, %9 : vector<12x16xf32>
    %c50 = arith.constant 50 : index
    %16 = memref.load %arg6[%c50] : memref<125xf32, #tpu.memory_space<smem>>
    %17 = vector.broadcast %16 : f32 to vector<12x16xf32>
    %18 = arith.mulf %17, %9 : vector<12x16xf32>
    %c75 = arith.constant 75 : index
    %19 = memref.load %arg6[%c75] : memref<125xf32, #tpu.memory_space<smem>>
    %20 = vector.broadcast %19 : f32 to vector<12x16xf32>
    %21 = arith.mulf %20, %9 : vector<12x16xf32>
    %c100 = arith.constant 100 : index
    %22 = memref.load %arg6[%c100] : memref<125xf32, #tpu.memory_space<smem>>
    %23 = vector.broadcast %22 : f32 to vector<12x16xf32>
    %24 = arith.mulf %23, %9 : vector<12x16xf32>
    %25 = vector.extract_strided_slice %7 {offsets = [1, 0, 0], sizes = [1, 12, 16], strides = [1, 1, 1]} : vector<5x12x16xf32> to vector<1x12x16xf32>
    %26 = vector.shape_cast %25 : vector<1x12x16xf32> to vector<12x16xf32>
    %c5 = arith.constant 5 : index
    %27 = memref.load %arg6[%c5] : memref<125xf32, #tpu.memory_space<smem>>
    %28 = vector.broadcast %27 : f32 to vector<12x16xf32>
    %29 = arith.mulf %28, %26 : vector<12x16xf32>
    %30 = arith.addf %12, %29 : vector<12x16xf32>
    %c30 = arith.constant 30 : index
    %31 = memref.load %arg6[%c30] : memref<125xf32, #tpu.memory_space<smem>>
    %32 = vector.broadcast %31 : f32 to vector<12x16xf32>
    %33 = arith.mulf %32, %26 : vector<12x16xf32>
    %34 = arith.addf %15, %33 : vector<12x16xf32>
    %c55 = arith.constant 55 : index
    %35 = memref.load %arg6[%c55] : memref<125xf32, #tpu.memory_space<smem>>
    %36 = vector.broadcast %35 : f32 to vector<12x16xf32>
    %37 = arith.mulf %36, %26 : vector<12x16xf32>
    %38 = arith.addf %18, %37 : vector<12x16xf32>
    %c80 = arith.constant 80 : index
    %39 = memref.load %arg6[%c80] : memref<125xf32, #tpu.memory_space<smem>>
    %40 = vector.broadcast %39 : f32 to vector<12x16xf32>
    %41 = arith.mulf %40, %26 : vector<12x16xf32>
    %42 = arith.addf %21, %41 : vector<12x16xf32>
    %c105 = arith.constant 105 : index
    %43 = memref.load %arg6[%c105] : memref<125xf32, #tpu.memory_space<smem>>
    %44 = vector.broadcast %43 : f32 to vector<12x16xf32>
    %45 = arith.mulf %44, %26 : vector<12x16xf32>
    %46 = arith.addf %24, %45 : vector<12x16xf32>
    %47 = vector.extract_strided_slice %7 {offsets = [2, 0, 0], sizes = [1, 12, 16], strides = [1, 1, 1]} : vector<5x12x16xf32> to vector<1x12x16xf32>
    %48 = vector.shape_cast %47 : vector<1x12x16xf32> to vector<12x16xf32>
    %c10 = arith.constant 10 : index
    %49 = memref.load %arg6[%c10] : memref<125xf32, #tpu.memory_space<smem>>
    %50 = vector.broadcast %49 : f32 to vector<12x16xf32>
    %51 = arith.mulf %50, %48 : vector<12x16xf32>
    %52 = arith.addf %30, %51 : vector<12x16xf32>
    %c35 = arith.constant 35 : index
    %53 = memref.load %arg6[%c35] : memref<125xf32, #tpu.memory_space<smem>>
    %54 = vector.broadcast %53 : f32 to vector<12x16xf32>
    %55 = arith.mulf %54, %48 : vector<12x16xf32>
    %56 = arith.addf %34, %55 : vector<12x16xf32>
    %c60 = arith.constant 60 : index
    %57 = memref.load %arg6[%c60] : memref<125xf32, #tpu.memory_space<smem>>
    %58 = vector.broadcast %57 : f32 to vector<12x16xf32>
    %59 = arith.mulf %58, %48 : vector<12x16xf32>
    %60 = arith.addf %38, %59 : vector<12x16xf32>
    %c85 = arith.constant 85 : index
    %61 = memref.load %arg6[%c85] : memref<125xf32, #tpu.memory_space<smem>>
    %62 = vector.broadcast %61 : f32 to vector<12x16xf32>
    %63 = arith.mulf %62, %48 : vector<12x16xf32>
    %64 = arith.addf %42, %63 : vector<12x16xf32>
    %c110 = arith.constant 110 : index
    %65 = memref.load %arg6[%c110] : memref<125xf32, #tpu.memory_space<smem>>
    %66 = vector.broadcast %65 : f32 to vector<12x16xf32>
    %67 = arith.mulf %66, %48 : vector<12x16xf32>
    %68 = arith.addf %46, %67 : vector<12x16xf32>
    %69 = vector.extract_strided_slice %7 {offsets = [3, 0, 0], sizes = [1, 12, 16], strides = [1, 1, 1]} : vector<5x12x16xf32> to vector<1x12x16xf32>
    %70 = vector.shape_cast %69 : vector<1x12x16xf32> to vector<12x16xf32>
    %c15 = arith.constant 15 : index
    %71 = memref.load %arg6[%c15] : memref<125xf32, #tpu.memory_space<smem>>
    %72 = vector.broadcast %71 : f32 to vector<12x16xf32>
    %73 = arith.mulf %72, %70 : vector<12x16xf32>
    %74 = arith.addf %52, %73 : vector<12x16xf32>
    %c40 = arith.constant 40 : index
    %75 = memref.load %arg6[%c40] : memref<125xf32, #tpu.memory_space<smem>>
    %76 = vector.broadcast %75 : f32 to vector<12x16xf32>
    %77 = arith.mulf %76, %70 : vector<12x16xf32>
    %78 = arith.addf %56, %77 : vector<12x16xf32>
    %c65 = arith.constant 65 : index
    %79 = memref.load %arg6[%c65] : memref<125xf32, #tpu.memory_space<smem>>
    %80 = vector.broadcast %79 : f32 to vector<12x16xf32>
    %81 = arith.mulf %80, %70 : vector<12x16xf32>
    %82 = arith.addf %60, %81 : vector<12x16xf32>
    %c90 = arith.constant 90 : index
    %83 = memref.load %arg6[%c90] : memref<125xf32, #tpu.memory_space<smem>>
    %84 = vector.broadcast %83 : f32 to vector<12x16xf32>
    %85 = arith.mulf %84, %70 : vector<12x16xf32>
    %86 = arith.addf %64, %85 : vector<12x16xf32>
    %c115 = arith.constant 115 : index
    %87 = memref.load %arg6[%c115] : memref<125xf32, #tpu.memory_space<smem>>
    %88 = vector.broadcast %87 : f32 to vector<12x16xf32>
    %89 = arith.mulf %88, %70 : vector<12x16xf32>
    %90 = arith.addf %68, %89 : vector<12x16xf32>
    %91 = vector.extract_strided_slice %7 {offsets = [4, 0, 0], sizes = [1, 12, 16], strides = [1, 1, 1]} : vector<5x12x16xf32> to vector<1x12x16xf32>
    %92 = vector.shape_cast %91 : vector<1x12x16xf32> to vector<12x16xf32>
    %c20 = arith.constant 20 : index
    %93 = memref.load %arg6[%c20] : memref<125xf32, #tpu.memory_space<smem>>
    %94 = vector.broadcast %93 : f32 to vector<12x16xf32>
    %95 = arith.mulf %94, %92 : vector<12x16xf32>
    %96 = arith.addf %74, %95 : vector<12x16xf32>
    %c45 = arith.constant 45 : index
    %97 = memref.load %arg6[%c45] : memref<125xf32, #tpu.memory_space<smem>>
    %98 = vector.broadcast %97 : f32 to vector<12x16xf32>
    %99 = arith.mulf %98, %92 : vector<12x16xf32>
    %100 = arith.addf %78, %99 : vector<12x16xf32>
    %c70 = arith.constant 70 : index
    %101 = memref.load %arg6[%c70] : memref<125xf32, #tpu.memory_space<smem>>
    %102 = vector.broadcast %101 : f32 to vector<12x16xf32>
    %103 = arith.mulf %102, %92 : vector<12x16xf32>
    %104 = arith.addf %82, %103 : vector<12x16xf32>
    %c95 = arith.constant 95 : index
    %105 = memref.load %arg6[%c95] : memref<125xf32, #tpu.memory_space<smem>>
    %106 = vector.broadcast %105 : f32 to vector<12x16xf32>
    %107 = arith.mulf %106, %92 : vector<12x16xf32>
    %108 = arith.addf %86, %107 : vector<12x16xf32>
    %c120 = arith.constant 120 : index
    %109 = memref.load %arg6[%c120] : memref<125xf32, #tpu.memory_space<smem>>
    %110 = vector.broadcast %109 : f32 to vector<12x16xf32>
    %111 = arith.mulf %110, %92 : vector<12x16xf32>
    %112 = arith.addf %90, %111 : vector<12x16xf32>
    %c0_16 = arith.constant 0 : index
    %c1 = arith.constant 1 : index
    %c0_17 = arith.constant 0 : index
    %113 = vector.load %arg9[%c0_16, %c1, %c0_17] : memref<5x16x16xf32, #tpu.memory_space<vmem>>, vector<5x12x16xf32>
    %114 = vector.extract_strided_slice %113 {offsets = [0, 0, 0], sizes = [1, 12, 16], strides = [1, 1, 1]} : vector<5x12x16xf32> to vector<1x12x16xf32>
    %115 = vector.shape_cast %114 : vector<1x12x16xf32> to vector<12x16xf32>
    %c1_18 = arith.constant 1 : index
    %116 = memref.load %arg6[%c1_18] : memref<125xf32, #tpu.memory_space<smem>>
    %117 = vector.broadcast %116 : f32 to vector<12x16xf32>
    %118 = arith.mulf %117, %115 : vector<12x16xf32>
    %119 = arith.addf %96, %118 : vector<12x16xf32>
    %c26 = arith.constant 26 : index
    %120 = memref.load %arg6[%c26] : memref<125xf32, #tpu.memory_space<smem>>
    %121 = vector.broadcast %120 : f32 to vector<12x16xf32>
    %122 = arith.mulf %121, %115 : vector<12x16xf32>
    %123 = arith.addf %100, %122 : vector<12x16xf32>
    %c51 = arith.constant 51 : index
    %124 = memref.load %arg6[%c51] : memref<125xf32, #tpu.memory_space<smem>>
    %125 = vector.broadcast %124 : f32 to vector<12x16xf32>
    %126 = arith.mulf %125, %115 : vector<12x16xf32>
    %127 = arith.addf %104, %126 : vector<12x16xf32>
    %c76 = arith.constant 76 : index
    %128 = memref.load %arg6[%c76] : memref<125xf32, #tpu.memory_space<smem>>
    %129 = vector.broadcast %128 : f32 to vector<12x16xf32>
    %130 = arith.mulf %129, %115 : vector<12x16xf32>
    %131 = arith.addf %108, %130 : vector<12x16xf32>
    %c101 = arith.constant 101 : index
    %132 = memref.load %arg6[%c101] : memref<125xf32, #tpu.memory_space<smem>>
    %133 = vector.broadcast %132 : f32 to vector<12x16xf32>
    %134 = arith.mulf %133, %115 : vector<12x16xf32>
    %135 = arith.addf %112, %134 : vector<12x16xf32>
    %136 = vector.extract_strided_slice %113 {offsets = [1, 0, 0], sizes = [1, 12, 16], strides = [1, 1, 1]} : vector<5x12x16xf32> to vector<1x12x16xf32>
    %137 = vector.shape_cast %136 : vector<1x12x16xf32> to vector<12x16xf32>
    %c6 = arith.constant 6 : index
    %138 = memref.load %arg6[%c6] : memref<125xf32, #tpu.memory_space<smem>>
    %139 = vector.broadcast %138 : f32 to vector<12x16xf32>
    %140 = arith.mulf %139, %137 : vector<12x16xf32>
    %141 = arith.addf %119, %140 : vector<12x16xf32>
    %c31 = arith.constant 31 : index
    %142 = memref.load %arg6[%c31] : memref<125xf32, #tpu.memory_space<smem>>
    %143 = vector.broadcast %142 : f32 to vector<12x16xf32>
    %144 = arith.mulf %143, %137 : vector<12x16xf32>
    %145 = arith.addf %123, %144 : vector<12x16xf32>
    %c56 = arith.constant 56 : index
    %146 = memref.load %arg6[%c56] : memref<125xf32, #tpu.memory_space<smem>>
    %147 = vector.broadcast %146 : f32 to vector<12x16xf32>
    %148 = arith.mulf %147, %137 : vector<12x16xf32>
    %149 = arith.addf %127, %148 : vector<12x16xf32>
    %c81 = arith.constant 81 : index
    %150 = memref.load %arg6[%c81] : memref<125xf32, #tpu.memory_space<smem>>
    %151 = vector.broadcast %150 : f32 to vector<12x16xf32>
    %152 = arith.mulf %151, %137 : vector<12x16xf32>
    %153 = arith.addf %131, %152 : vector<12x16xf32>
    %c106 = arith.constant 106 : index
    %154 = memref.load %arg6[%c106] : memref<125xf32, #tpu.memory_space<smem>>
    %155 = vector.broadcast %154 : f32 to vector<12x16xf32>
    %156 = arith.mulf %155, %137 : vector<12x16xf32>
    %157 = arith.addf %135, %156 : vector<12x16xf32>
    %158 = vector.extract_strided_slice %113 {offsets = [2, 0, 0], sizes = [1, 12, 16], strides = [1, 1, 1]} : vector<5x12x16xf32> to vector<1x12x16xf32>
    %159 = vector.shape_cast %158 : vector<1x12x16xf32> to vector<12x16xf32>
    %c11 = arith.constant 11 : index
    %160 = memref.load %arg6[%c11] : memref<125xf32, #tpu.memory_space<smem>>
    %161 = vector.broadcast %160 : f32 to vector<12x16xf32>
    %162 = arith.mulf %161, %159 : vector<12x16xf32>
    %163 = arith.addf %141, %162 : vector<12x16xf32>
    %c36 = arith.constant 36 : index
    %164 = memref.load %arg6[%c36] : memref<125xf32, #tpu.memory_space<smem>>
    %165 = vector.broadcast %164 : f32 to vector<12x16xf32>
    %166 = arith.mulf %165, %159 : vector<12x16xf32>
    %167 = arith.addf %145, %166 : vector<12x16xf32>
    %c61 = arith.constant 61 : index
    %168 = memref.load %arg6[%c61] : memref<125xf32, #tpu.memory_space<smem>>
    %169 = vector.broadcast %168 : f32 to vector<12x16xf32>
    %170 = arith.mulf %169, %159 : vector<12x16xf32>
    %171 = arith.addf %149, %170 : vector<12x16xf32>
    %c86 = arith.constant 86 : index
    %172 = memref.load %arg6[%c86] : memref<125xf32, #tpu.memory_space<smem>>
    %173 = vector.broadcast %172 : f32 to vector<12x16xf32>
    %174 = arith.mulf %173, %159 : vector<12x16xf32>
    %175 = arith.addf %153, %174 : vector<12x16xf32>
    %c111 = arith.constant 111 : index
    %176 = memref.load %arg6[%c111] : memref<125xf32, #tpu.memory_space<smem>>
    %177 = vector.broadcast %176 : f32 to vector<12x16xf32>
    %178 = arith.mulf %177, %159 : vector<12x16xf32>
    %179 = arith.addf %157, %178 : vector<12x16xf32>
    %180 = vector.extract_strided_slice %113 {offsets = [3, 0, 0], sizes = [1, 12, 16], strides = [1, 1, 1]} : vector<5x12x16xf32> to vector<1x12x16xf32>
    %181 = vector.shape_cast %180 : vector<1x12x16xf32> to vector<12x16xf32>
    %c16 = arith.constant 16 : index
    %182 = memref.load %arg6[%c16] : memref<125xf32, #tpu.memory_space<smem>>
    %183 = vector.broadcast %182 : f32 to vector<12x16xf32>
    %184 = arith.mulf %183, %181 : vector<12x16xf32>
    %185 = arith.addf %163, %184 : vector<12x16xf32>
    %c41 = arith.constant 41 : index
    %186 = memref.load %arg6[%c41] : memref<125xf32, #tpu.memory_space<smem>>
    %187 = vector.broadcast %186 : f32 to vector<12x16xf32>
    %188 = arith.mulf %187, %181 : vector<12x16xf32>
    %189 = arith.addf %167, %188 : vector<12x16xf32>
    %c66 = arith.constant 66 : index
    %190 = memref.load %arg6[%c66] : memref<125xf32, #tpu.memory_space<smem>>
    %191 = vector.broadcast %190 : f32 to vector<12x16xf32>
    %192 = arith.mulf %191, %181 : vector<12x16xf32>
    %193 = arith.addf %171, %192 : vector<12x16xf32>
    %c91 = arith.constant 91 : index
    %194 = memref.load %arg6[%c91] : memref<125xf32, #tpu.memory_space<smem>>
    %195 = vector.broadcast %194 : f32 to vector<12x16xf32>
    %196 = arith.mulf %195, %181 : vector<12x16xf32>
    %197 = arith.addf %175, %196 : vector<12x16xf32>
    %c116 = arith.constant 116 : index
    %198 = memref.load %arg6[%c116] : memref<125xf32, #tpu.memory_space<smem>>
    %199 = vector.broadcast %198 : f32 to vector<12x16xf32>
    %200 = arith.mulf %199, %181 : vector<12x16xf32>
    %201 = arith.addf %179, %200 : vector<12x16xf32>
    %202 = vector.extract_strided_slice %113 {offsets = [4, 0, 0], sizes = [1, 12, 16], strides = [1, 1, 1]} : vector<5x12x16xf32> to vector<1x12x16xf32>
    %203 = vector.shape_cast %202 : vector<1x12x16xf32> to vector<12x16xf32>
    %c21 = arith.constant 21 : index
    %204 = memref.load %arg6[%c21] : memref<125xf32, #tpu.memory_space<smem>>
    %205 = vector.broadcast %204 : f32 to vector<12x16xf32>
    %206 = arith.mulf %205, %203 : vector<12x16xf32>
    %207 = arith.addf %185, %206 : vector<12x16xf32>
    %c46 = arith.constant 46 : index
    %208 = memref.load %arg6[%c46] : memref<125xf32, #tpu.memory_space<smem>>
    %209 = vector.broadcast %208 : f32 to vector<12x16xf32>
    %210 = arith.mulf %209, %203 : vector<12x16xf32>
    %211 = arith.addf %189, %210 : vector<12x16xf32>
    %c71 = arith.constant 71 : index
    %212 = memref.load %arg6[%c71] : memref<125xf32, #tpu.memory_space<smem>>
    %213 = vector.broadcast %212 : f32 to vector<12x16xf32>
    %214 = arith.mulf %213, %203 : vector<12x16xf32>
    %215 = arith.addf %193, %214 : vector<12x16xf32>
    %c96 = arith.constant 96 : index
    %216 = memref.load %arg6[%c96] : memref<125xf32, #tpu.memory_space<smem>>
    %217 = vector.broadcast %216 : f32 to vector<12x16xf32>
    %218 = arith.mulf %217, %203 : vector<12x16xf32>
    %219 = arith.addf %197, %218 : vector<12x16xf32>
    %c121 = arith.constant 121 : index
    %220 = memref.load %arg6[%c121] : memref<125xf32, #tpu.memory_space<smem>>
    %221 = vector.broadcast %220 : f32 to vector<12x16xf32>
    %222 = arith.mulf %221, %203 : vector<12x16xf32>
    %223 = arith.addf %201, %222 : vector<12x16xf32>
    %c0_19 = arith.constant 0 : index
    %c2_20 = arith.constant 2 : index
    %c0_21 = arith.constant 0 : index
    %224 = vector.load %arg9[%c0_19, %c2_20, %c0_21] : memref<5x16x16xf32, #tpu.memory_space<vmem>>, vector<5x12x16xf32>
    %225 = vector.extract_strided_slice %224 {offsets = [0, 0, 0], sizes = [1, 12, 16], strides = [1, 1, 1]} : vector<5x12x16xf32> to vector<1x12x16xf32>
    %226 = vector.shape_cast %225 : vector<1x12x16xf32> to vector<12x16xf32>
    %c2_22 = arith.constant 2 : index
    %227 = memref.load %arg6[%c2_22] : memref<125xf32, #tpu.memory_space<smem>>
    %228 = vector.broadcast %227 : f32 to vector<12x16xf32>
    %229 = arith.mulf %228, %226 : vector<12x16xf32>
    %230 = arith.addf %207, %229 : vector<12x16xf32>
    %c27 = arith.constant 27 : index
    %231 = memref.load %arg6[%c27] : memref<125xf32, #tpu.memory_space<smem>>
    %232 = vector.broadcast %231 : f32 to vector<12x16xf32>
    %233 = arith.mulf %232, %226 : vector<12x16xf32>
    %234 = arith.addf %211, %233 : vector<12x16xf32>
    %c52 = arith.constant 52 : index
    %235 = memref.load %arg6[%c52] : memref<125xf32, #tpu.memory_space<smem>>
    %236 = vector.broadcast %235 : f32 to vector<12x16xf32>
    %237 = arith.mulf %236, %226 : vector<12x16xf32>
    %238 = arith.addf %215, %237 : vector<12x16xf32>
    %c77 = arith.constant 77 : index
    %239 = memref.load %arg6[%c77] : memref<125xf32, #tpu.memory_space<smem>>
    %240 = vector.broadcast %239 : f32 to vector<12x16xf32>
    %241 = arith.mulf %240, %226 : vector<12x16xf32>
    %242 = arith.addf %219, %241 : vector<12x16xf32>
    %c102 = arith.constant 102 : index
    %243 = memref.load %arg6[%c102] : memref<125xf32, #tpu.memory_space<smem>>
    %244 = vector.broadcast %243 : f32 to vector<12x16xf32>
    %245 = arith.mulf %244, %226 : vector<12x16xf32>
    %246 = arith.addf %223, %245 : vector<12x16xf32>
    %247 = vector.extract_strided_slice %224 {offsets = [1, 0, 0], sizes = [1, 12, 16], strides = [1, 1, 1]} : vector<5x12x16xf32> to vector<1x12x16xf32>
    %248 = vector.shape_cast %247 : vector<1x12x16xf32> to vector<12x16xf32>
    %c7 = arith.constant 7 : index
    %249 = memref.load %arg6[%c7] : memref<125xf32, #tpu.memory_space<smem>>
    %250 = vector.broadcast %249 : f32 to vector<12x16xf32>
    %251 = arith.mulf %250, %248 : vector<12x16xf32>
    %252 = arith.addf %230, %251 : vector<12x16xf32>
    %c32 = arith.constant 32 : index
    %253 = memref.load %arg6[%c32] : memref<125xf32, #tpu.memory_space<smem>>
    %254 = vector.broadcast %253 : f32 to vector<12x16xf32>
    %255 = arith.mulf %254, %248 : vector<12x16xf32>
    %256 = arith.addf %234, %255 : vector<12x16xf32>
    %c57 = arith.constant 57 : index
    %257 = memref.load %arg6[%c57] : memref<125xf32, #tpu.memory_space<smem>>
    %258 = vector.broadcast %257 : f32 to vector<12x16xf32>
    %259 = arith.mulf %258, %248 : vector<12x16xf32>
    %260 = arith.addf %238, %259 : vector<12x16xf32>
    %c82 = arith.constant 82 : index
    %261 = memref.load %arg6[%c82] : memref<125xf32, #tpu.memory_space<smem>>
    %262 = vector.broadcast %261 : f32 to vector<12x16xf32>
    %263 = arith.mulf %262, %248 : vector<12x16xf32>
    %264 = arith.addf %242, %263 : vector<12x16xf32>
    %c107 = arith.constant 107 : index
    %265 = memref.load %arg6[%c107] : memref<125xf32, #tpu.memory_space<smem>>
    %266 = vector.broadcast %265 : f32 to vector<12x16xf32>
    %267 = arith.mulf %266, %248 : vector<12x16xf32>
    %268 = arith.addf %246, %267 : vector<12x16xf32>
    %269 = vector.extract_strided_slice %224 {offsets = [2, 0, 0], sizes = [1, 12, 16], strides = [1, 1, 1]} : vector<5x12x16xf32> to vector<1x12x16xf32>
    %270 = vector.shape_cast %269 : vector<1x12x16xf32> to vector<12x16xf32>
    %c12 = arith.constant 12 : index
    %271 = memref.load %arg6[%c12] : memref<125xf32, #tpu.memory_space<smem>>
    %272 = vector.broadcast %271 : f32 to vector<12x16xf32>
    %273 = arith.mulf %272, %270 : vector<12x16xf32>
    %274 = arith.addf %252, %273 : vector<12x16xf32>
    %c37 = arith.constant 37 : index
    %275 = memref.load %arg6[%c37] : memref<125xf32, #tpu.memory_space<smem>>
    %276 = vector.broadcast %275 : f32 to vector<12x16xf32>
    %277 = arith.mulf %276, %270 : vector<12x16xf32>
    %278 = arith.addf %256, %277 : vector<12x16xf32>
    %c62 = arith.constant 62 : index
    %279 = memref.load %arg6[%c62] : memref<125xf32, #tpu.memory_space<smem>>
    %280 = vector.broadcast %279 : f32 to vector<12x16xf32>
    %281 = arith.mulf %280, %270 : vector<12x16xf32>
    %282 = arith.addf %260, %281 : vector<12x16xf32>
    %c87 = arith.constant 87 : index
    %283 = memref.load %arg6[%c87] : memref<125xf32, #tpu.memory_space<smem>>
    %284 = vector.broadcast %283 : f32 to vector<12x16xf32>
    %285 = arith.mulf %284, %270 : vector<12x16xf32>
    %286 = arith.addf %264, %285 : vector<12x16xf32>
    %c112 = arith.constant 112 : index
    %287 = memref.load %arg6[%c112] : memref<125xf32, #tpu.memory_space<smem>>
    %288 = vector.broadcast %287 : f32 to vector<12x16xf32>
    %289 = arith.mulf %288, %270 : vector<12x16xf32>
    %290 = arith.addf %268, %289 : vector<12x16xf32>
    %291 = vector.extract_strided_slice %224 {offsets = [3, 0, 0], sizes = [1, 12, 16], strides = [1, 1, 1]} : vector<5x12x16xf32> to vector<1x12x16xf32>
    %292 = vector.shape_cast %291 : vector<1x12x16xf32> to vector<12x16xf32>
    %c17 = arith.constant 17 : index
    %293 = memref.load %arg6[%c17] : memref<125xf32, #tpu.memory_space<smem>>
    %294 = vector.broadcast %293 : f32 to vector<12x16xf32>
    %295 = arith.mulf %294, %292 : vector<12x16xf32>
    %296 = arith.addf %274, %295 : vector<12x16xf32>
    %c42 = arith.constant 42 : index
    %297 = memref.load %arg6[%c42] : memref<125xf32, #tpu.memory_space<smem>>
    %298 = vector.broadcast %297 : f32 to vector<12x16xf32>
    %299 = arith.mulf %298, %292 : vector<12x16xf32>
    %300 = arith.addf %278, %299 : vector<12x16xf32>
    %c67 = arith.constant 67 : index
    %301 = memref.load %arg6[%c67] : memref<125xf32, #tpu.memory_space<smem>>
    %302 = vector.broadcast %301 : f32 to vector<12x16xf32>
    %303 = arith.mulf %302, %292 : vector<12x16xf32>
    %304 = arith.addf %282, %303 : vector<12x16xf32>
    %c92 = arith.constant 92 : index
    %305 = memref.load %arg6[%c92] : memref<125xf32, #tpu.memory_space<smem>>
    %306 = vector.broadcast %305 : f32 to vector<12x16xf32>
    %307 = arith.mulf %306, %292 : vector<12x16xf32>
    %308 = arith.addf %286, %307 : vector<12x16xf32>
    %c117 = arith.constant 117 : index
    %309 = memref.load %arg6[%c117] : memref<125xf32, #tpu.memory_space<smem>>
    %310 = vector.broadcast %309 : f32 to vector<12x16xf32>
    %311 = arith.mulf %310, %292 : vector<12x16xf32>
    %312 = arith.addf %290, %311 : vector<12x16xf32>
    %313 = vector.extract_strided_slice %224 {offsets = [4, 0, 0], sizes = [1, 12, 16], strides = [1, 1, 1]} : vector<5x12x16xf32> to vector<1x12x16xf32>
    %314 = vector.shape_cast %313 : vector<1x12x16xf32> to vector<12x16xf32>
    %c22 = arith.constant 22 : index
    %315 = memref.load %arg6[%c22] : memref<125xf32, #tpu.memory_space<smem>>
    %316 = vector.broadcast %315 : f32 to vector<12x16xf32>
    %317 = arith.mulf %316, %314 : vector<12x16xf32>
    %318 = arith.addf %296, %317 : vector<12x16xf32>
    %c47 = arith.constant 47 : index
    %319 = memref.load %arg6[%c47] : memref<125xf32, #tpu.memory_space<smem>>
    %320 = vector.broadcast %319 : f32 to vector<12x16xf32>
    %321 = arith.mulf %320, %314 : vector<12x16xf32>
    %322 = arith.addf %300, %321 : vector<12x16xf32>
    %c72 = arith.constant 72 : index
    %323 = memref.load %arg6[%c72] : memref<125xf32, #tpu.memory_space<smem>>
    %324 = vector.broadcast %323 : f32 to vector<12x16xf32>
    %325 = arith.mulf %324, %314 : vector<12x16xf32>
    %326 = arith.addf %304, %325 : vector<12x16xf32>
    %c97 = arith.constant 97 : index
    %327 = memref.load %arg6[%c97] : memref<125xf32, #tpu.memory_space<smem>>
    %328 = vector.broadcast %327 : f32 to vector<12x16xf32>
    %329 = arith.mulf %328, %314 : vector<12x16xf32>
    %330 = arith.addf %308, %329 : vector<12x16xf32>
    %c122 = arith.constant 122 : index
    %331 = memref.load %arg6[%c122] : memref<125xf32, #tpu.memory_space<smem>>
    %332 = vector.broadcast %331 : f32 to vector<12x16xf32>
    %333 = arith.mulf %332, %314 : vector<12x16xf32>
    %334 = arith.addf %312, %333 : vector<12x16xf32>
    %c0_23 = arith.constant 0 : index
    %c3 = arith.constant 3 : index
    %c0_24 = arith.constant 0 : index
    %335 = vector.load %arg9[%c0_23, %c3, %c0_24] : memref<5x16x16xf32, #tpu.memory_space<vmem>>, vector<5x12x16xf32>
    %336 = vector.extract_strided_slice %335 {offsets = [0, 0, 0], sizes = [1, 12, 16], strides = [1, 1, 1]} : vector<5x12x16xf32> to vector<1x12x16xf32>
    %337 = vector.shape_cast %336 : vector<1x12x16xf32> to vector<12x16xf32>
    %c3_25 = arith.constant 3 : index
    %338 = memref.load %arg6[%c3_25] : memref<125xf32, #tpu.memory_space<smem>>
    %339 = vector.broadcast %338 : f32 to vector<12x16xf32>
    %340 = arith.mulf %339, %337 : vector<12x16xf32>
    %341 = arith.addf %318, %340 : vector<12x16xf32>
    %c28 = arith.constant 28 : index
    %342 = memref.load %arg6[%c28] : memref<125xf32, #tpu.memory_space<smem>>
    %343 = vector.broadcast %342 : f32 to vector<12x16xf32>
    %344 = arith.mulf %343, %337 : vector<12x16xf32>
    %345 = arith.addf %322, %344 : vector<12x16xf32>
    %c53 = arith.constant 53 : index
    %346 = memref.load %arg6[%c53] : memref<125xf32, #tpu.memory_space<smem>>
    %347 = vector.broadcast %346 : f32 to vector<12x16xf32>
    %348 = arith.mulf %347, %337 : vector<12x16xf32>
    %349 = arith.addf %326, %348 : vector<12x16xf32>
    %c78 = arith.constant 78 : index
    %350 = memref.load %arg6[%c78] : memref<125xf32, #tpu.memory_space<smem>>
    %351 = vector.broadcast %350 : f32 to vector<12x16xf32>
    %352 = arith.mulf %351, %337 : vector<12x16xf32>
    %353 = arith.addf %330, %352 : vector<12x16xf32>
    %c103 = arith.constant 103 : index
    %354 = memref.load %arg6[%c103] : memref<125xf32, #tpu.memory_space<smem>>
    %355 = vector.broadcast %354 : f32 to vector<12x16xf32>
    %356 = arith.mulf %355, %337 : vector<12x16xf32>
    %357 = arith.addf %334, %356 : vector<12x16xf32>
    %358 = vector.extract_strided_slice %335 {offsets = [1, 0, 0], sizes = [1, 12, 16], strides = [1, 1, 1]} : vector<5x12x16xf32> to vector<1x12x16xf32>
    %359 = vector.shape_cast %358 : vector<1x12x16xf32> to vector<12x16xf32>
    %c8 = arith.constant 8 : index
    %360 = memref.load %arg6[%c8] : memref<125xf32, #tpu.memory_space<smem>>
    %361 = vector.broadcast %360 : f32 to vector<12x16xf32>
    %362 = arith.mulf %361, %359 : vector<12x16xf32>
    %363 = arith.addf %341, %362 : vector<12x16xf32>
    %c33 = arith.constant 33 : index
    %364 = memref.load %arg6[%c33] : memref<125xf32, #tpu.memory_space<smem>>
    %365 = vector.broadcast %364 : f32 to vector<12x16xf32>
    %366 = arith.mulf %365, %359 : vector<12x16xf32>
    %367 = arith.addf %345, %366 : vector<12x16xf32>
    %c58 = arith.constant 58 : index
    %368 = memref.load %arg6[%c58] : memref<125xf32, #tpu.memory_space<smem>>
    %369 = vector.broadcast %368 : f32 to vector<12x16xf32>
    %370 = arith.mulf %369, %359 : vector<12x16xf32>
    %371 = arith.addf %349, %370 : vector<12x16xf32>
    %c83 = arith.constant 83 : index
    %372 = memref.load %arg6[%c83] : memref<125xf32, #tpu.memory_space<smem>>
    %373 = vector.broadcast %372 : f32 to vector<12x16xf32>
    %374 = arith.mulf %373, %359 : vector<12x16xf32>
    %375 = arith.addf %353, %374 : vector<12x16xf32>
    %c108 = arith.constant 108 : index
    %376 = memref.load %arg6[%c108] : memref<125xf32, #tpu.memory_space<smem>>
    %377 = vector.broadcast %376 : f32 to vector<12x16xf32>
    %378 = arith.mulf %377, %359 : vector<12x16xf32>
    %379 = arith.addf %357, %378 : vector<12x16xf32>
    %380 = vector.extract_strided_slice %335 {offsets = [2, 0, 0], sizes = [1, 12, 16], strides = [1, 1, 1]} : vector<5x12x16xf32> to vector<1x12x16xf32>
    %381 = vector.shape_cast %380 : vector<1x12x16xf32> to vector<12x16xf32>
    %c13 = arith.constant 13 : index
    %382 = memref.load %arg6[%c13] : memref<125xf32, #tpu.memory_space<smem>>
    %383 = vector.broadcast %382 : f32 to vector<12x16xf32>
    %384 = arith.mulf %383, %381 : vector<12x16xf32>
    %385 = arith.addf %363, %384 : vector<12x16xf32>
    %c38 = arith.constant 38 : index
    %386 = memref.load %arg6[%c38] : memref<125xf32, #tpu.memory_space<smem>>
    %387 = vector.broadcast %386 : f32 to vector<12x16xf32>
    %388 = arith.mulf %387, %381 : vector<12x16xf32>
    %389 = arith.addf %367, %388 : vector<12x16xf32>
    %c63 = arith.constant 63 : index
    %390 = memref.load %arg6[%c63] : memref<125xf32, #tpu.memory_space<smem>>
    %391 = vector.broadcast %390 : f32 to vector<12x16xf32>
    %392 = arith.mulf %391, %381 : vector<12x16xf32>
    %393 = arith.addf %371, %392 : vector<12x16xf32>
    %c88 = arith.constant 88 : index
    %394 = memref.load %arg6[%c88] : memref<125xf32, #tpu.memory_space<smem>>
    %395 = vector.broadcast %394 : f32 to vector<12x16xf32>
    %396 = arith.mulf %395, %381 : vector<12x16xf32>
    %397 = arith.addf %375, %396 : vector<12x16xf32>
    %c113 = arith.constant 113 : index
    %398 = memref.load %arg6[%c113] : memref<125xf32, #tpu.memory_space<smem>>
    %399 = vector.broadcast %398 : f32 to vector<12x16xf32>
    %400 = arith.mulf %399, %381 : vector<12x16xf32>
    %401 = arith.addf %379, %400 : vector<12x16xf32>
    %402 = vector.extract_strided_slice %335 {offsets = [3, 0, 0], sizes = [1, 12, 16], strides = [1, 1, 1]} : vector<5x12x16xf32> to vector<1x12x16xf32>
    %403 = vector.shape_cast %402 : vector<1x12x16xf32> to vector<12x16xf32>
    %c18 = arith.constant 18 : index
    %404 = memref.load %arg6[%c18] : memref<125xf32, #tpu.memory_space<smem>>
    %405 = vector.broadcast %404 : f32 to vector<12x16xf32>
    %406 = arith.mulf %405, %403 : vector<12x16xf32>
    %407 = arith.addf %385, %406 : vector<12x16xf32>
    %c43 = arith.constant 43 : index
    %408 = memref.load %arg6[%c43] : memref<125xf32, #tpu.memory_space<smem>>
    %409 = vector.broadcast %408 : f32 to vector<12x16xf32>
    %410 = arith.mulf %409, %403 : vector<12x16xf32>
    %411 = arith.addf %389, %410 : vector<12x16xf32>
    %c68 = arith.constant 68 : index
    %412 = memref.load %arg6[%c68] : memref<125xf32, #tpu.memory_space<smem>>
    %413 = vector.broadcast %412 : f32 to vector<12x16xf32>
    %414 = arith.mulf %413, %403 : vector<12x16xf32>
    %415 = arith.addf %393, %414 : vector<12x16xf32>
    %c93 = arith.constant 93 : index
    %416 = memref.load %arg6[%c93] : memref<125xf32, #tpu.memory_space<smem>>
    %417 = vector.broadcast %416 : f32 to vector<12x16xf32>
    %418 = arith.mulf %417, %403 : vector<12x16xf32>
    %419 = arith.addf %397, %418 : vector<12x16xf32>
    %c118 = arith.constant 118 : index
    %420 = memref.load %arg6[%c118] : memref<125xf32, #tpu.memory_space<smem>>
    %421 = vector.broadcast %420 : f32 to vector<12x16xf32>
    %422 = arith.mulf %421, %403 : vector<12x16xf32>
    %423 = arith.addf %401, %422 : vector<12x16xf32>
    %424 = vector.extract_strided_slice %335 {offsets = [4, 0, 0], sizes = [1, 12, 16], strides = [1, 1, 1]} : vector<5x12x16xf32> to vector<1x12x16xf32>
    %425 = vector.shape_cast %424 : vector<1x12x16xf32> to vector<12x16xf32>
    %c23 = arith.constant 23 : index
    %426 = memref.load %arg6[%c23] : memref<125xf32, #tpu.memory_space<smem>>
    %427 = vector.broadcast %426 : f32 to vector<12x16xf32>
    %428 = arith.mulf %427, %425 : vector<12x16xf32>
    %429 = arith.addf %407, %428 : vector<12x16xf32>
    %c48 = arith.constant 48 : index
    %430 = memref.load %arg6[%c48] : memref<125xf32, #tpu.memory_space<smem>>
    %431 = vector.broadcast %430 : f32 to vector<12x16xf32>
    %432 = arith.mulf %431, %425 : vector<12x16xf32>
    %433 = arith.addf %411, %432 : vector<12x16xf32>
    %c73 = arith.constant 73 : index
    %434 = memref.load %arg6[%c73] : memref<125xf32, #tpu.memory_space<smem>>
    %435 = vector.broadcast %434 : f32 to vector<12x16xf32>
    %436 = arith.mulf %435, %425 : vector<12x16xf32>
    %437 = arith.addf %415, %436 : vector<12x16xf32>
    %c98 = arith.constant 98 : index
    %438 = memref.load %arg6[%c98] : memref<125xf32, #tpu.memory_space<smem>>
    %439 = vector.broadcast %438 : f32 to vector<12x16xf32>
    %440 = arith.mulf %439, %425 : vector<12x16xf32>
    %441 = arith.addf %419, %440 : vector<12x16xf32>
    %c123 = arith.constant 123 : index
    %442 = memref.load %arg6[%c123] : memref<125xf32, #tpu.memory_space<smem>>
    %443 = vector.broadcast %442 : f32 to vector<12x16xf32>
    %444 = arith.mulf %443, %425 : vector<12x16xf32>
    %445 = arith.addf %423, %444 : vector<12x16xf32>
    %c0_26 = arith.constant 0 : index
    %c4 = arith.constant 4 : index
    %c0_27 = arith.constant 0 : index
    %446 = vector.load %arg9[%c0_26, %c4, %c0_27] : memref<5x16x16xf32, #tpu.memory_space<vmem>>, vector<5x12x16xf32>
    %447 = vector.extract_strided_slice %446 {offsets = [0, 0, 0], sizes = [1, 12, 16], strides = [1, 1, 1]} : vector<5x12x16xf32> to vector<1x12x16xf32>
    %448 = vector.shape_cast %447 : vector<1x12x16xf32> to vector<12x16xf32>
    %c4_28 = arith.constant 4 : index
    %449 = memref.load %arg6[%c4_28] : memref<125xf32, #tpu.memory_space<smem>>
    %450 = vector.broadcast %449 : f32 to vector<12x16xf32>
    %451 = arith.mulf %450, %448 : vector<12x16xf32>
    %452 = arith.addf %429, %451 : vector<12x16xf32>
    %c29 = arith.constant 29 : index
    %453 = memref.load %arg6[%c29] : memref<125xf32, #tpu.memory_space<smem>>
    %454 = vector.broadcast %453 : f32 to vector<12x16xf32>
    %455 = arith.mulf %454, %448 : vector<12x16xf32>
    %456 = arith.addf %433, %455 : vector<12x16xf32>
    %c54 = arith.constant 54 : index
    %457 = memref.load %arg6[%c54] : memref<125xf32, #tpu.memory_space<smem>>
    %458 = vector.broadcast %457 : f32 to vector<12x16xf32>
    %459 = arith.mulf %458, %448 : vector<12x16xf32>
    %460 = arith.addf %437, %459 : vector<12x16xf32>
    %c79 = arith.constant 79 : index
    %461 = memref.load %arg6[%c79] : memref<125xf32, #tpu.memory_space<smem>>
    %462 = vector.broadcast %461 : f32 to vector<12x16xf32>
    %463 = arith.mulf %462, %448 : vector<12x16xf32>
    %464 = arith.addf %441, %463 : vector<12x16xf32>
    %c104 = arith.constant 104 : index
    %465 = memref.load %arg6[%c104] : memref<125xf32, #tpu.memory_space<smem>>
    %466 = vector.broadcast %465 : f32 to vector<12x16xf32>
    %467 = arith.mulf %466, %448 : vector<12x16xf32>
    %468 = arith.addf %445, %467 : vector<12x16xf32>
    %469 = vector.extract_strided_slice %446 {offsets = [1, 0, 0], sizes = [1, 12, 16], strides = [1, 1, 1]} : vector<5x12x16xf32> to vector<1x12x16xf32>
    %470 = vector.shape_cast %469 : vector<1x12x16xf32> to vector<12x16xf32>
    %c9 = arith.constant 9 : index
    %471 = memref.load %arg6[%c9] : memref<125xf32, #tpu.memory_space<smem>>
    %472 = vector.broadcast %471 : f32 to vector<12x16xf32>
    %473 = arith.mulf %472, %470 : vector<12x16xf32>
    %474 = arith.addf %452, %473 : vector<12x16xf32>
    %c34 = arith.constant 34 : index
    %475 = memref.load %arg6[%c34] : memref<125xf32, #tpu.memory_space<smem>>
    %476 = vector.broadcast %475 : f32 to vector<12x16xf32>
    %477 = arith.mulf %476, %470 : vector<12x16xf32>
    %478 = arith.addf %456, %477 : vector<12x16xf32>
    %c59 = arith.constant 59 : index
    %479 = memref.load %arg6[%c59] : memref<125xf32, #tpu.memory_space<smem>>
    %480 = vector.broadcast %479 : f32 to vector<12x16xf32>
    %481 = arith.mulf %480, %470 : vector<12x16xf32>
    %482 = arith.addf %460, %481 : vector<12x16xf32>
    %c84 = arith.constant 84 : index
    %483 = memref.load %arg6[%c84] : memref<125xf32, #tpu.memory_space<smem>>
    %484 = vector.broadcast %483 : f32 to vector<12x16xf32>
    %485 = arith.mulf %484, %470 : vector<12x16xf32>
    %486 = arith.addf %464, %485 : vector<12x16xf32>
    %c109 = arith.constant 109 : index
    %487 = memref.load %arg6[%c109] : memref<125xf32, #tpu.memory_space<smem>>
    %488 = vector.broadcast %487 : f32 to vector<12x16xf32>
    %489 = arith.mulf %488, %470 : vector<12x16xf32>
    %490 = arith.addf %468, %489 : vector<12x16xf32>
    %491 = vector.extract_strided_slice %446 {offsets = [2, 0, 0], sizes = [1, 12, 16], strides = [1, 1, 1]} : vector<5x12x16xf32> to vector<1x12x16xf32>
    %492 = vector.shape_cast %491 : vector<1x12x16xf32> to vector<12x16xf32>
    %c14 = arith.constant 14 : index
    %493 = memref.load %arg6[%c14] : memref<125xf32, #tpu.memory_space<smem>>
    %494 = vector.broadcast %493 : f32 to vector<12x16xf32>
    %495 = arith.mulf %494, %492 : vector<12x16xf32>
    %496 = arith.addf %474, %495 : vector<12x16xf32>
    %c39 = arith.constant 39 : index
    %497 = memref.load %arg6[%c39] : memref<125xf32, #tpu.memory_space<smem>>
    %498 = vector.broadcast %497 : f32 to vector<12x16xf32>
    %499 = arith.mulf %498, %492 : vector<12x16xf32>
    %500 = arith.addf %478, %499 : vector<12x16xf32>
    %c64 = arith.constant 64 : index
    %501 = memref.load %arg6[%c64] : memref<125xf32, #tpu.memory_space<smem>>
    %502 = vector.broadcast %501 : f32 to vector<12x16xf32>
    %503 = arith.mulf %502, %492 : vector<12x16xf32>
    %504 = arith.addf %482, %503 : vector<12x16xf32>
    %c89 = arith.constant 89 : index
    %505 = memref.load %arg6[%c89] : memref<125xf32, #tpu.memory_space<smem>>
    %506 = vector.broadcast %505 : f32 to vector<12x16xf32>
    %507 = arith.mulf %506, %492 : vector<12x16xf32>
    %508 = arith.addf %486, %507 : vector<12x16xf32>
    %c114 = arith.constant 114 : index
    %509 = memref.load %arg6[%c114] : memref<125xf32, #tpu.memory_space<smem>>
    %510 = vector.broadcast %509 : f32 to vector<12x16xf32>
    %511 = arith.mulf %510, %492 : vector<12x16xf32>
    %512 = arith.addf %490, %511 : vector<12x16xf32>
    %513 = vector.extract_strided_slice %446 {offsets = [3, 0, 0], sizes = [1, 12, 16], strides = [1, 1, 1]} : vector<5x12x16xf32> to vector<1x12x16xf32>
    %514 = vector.shape_cast %513 : vector<1x12x16xf32> to vector<12x16xf32>
    %c19 = arith.constant 19 : index
    %515 = memref.load %arg6[%c19] : memref<125xf32, #tpu.memory_space<smem>>
    %516 = vector.broadcast %515 : f32 to vector<12x16xf32>
    %517 = arith.mulf %516, %514 : vector<12x16xf32>
    %518 = arith.addf %496, %517 : vector<12x16xf32>
    %c44 = arith.constant 44 : index
    %519 = memref.load %arg6[%c44] : memref<125xf32, #tpu.memory_space<smem>>
    %520 = vector.broadcast %519 : f32 to vector<12x16xf32>
    %521 = arith.mulf %520, %514 : vector<12x16xf32>
    %522 = arith.addf %500, %521 : vector<12x16xf32>
    %c69 = arith.constant 69 : index
    %523 = memref.load %arg6[%c69] : memref<125xf32, #tpu.memory_space<smem>>
    %524 = vector.broadcast %523 : f32 to vector<12x16xf32>
    %525 = arith.mulf %524, %514 : vector<12x16xf32>
    %526 = arith.addf %504, %525 : vector<12x16xf32>
    %c94 = arith.constant 94 : index
    %527 = memref.load %arg6[%c94] : memref<125xf32, #tpu.memory_space<smem>>
    %528 = vector.broadcast %527 : f32 to vector<12x16xf32>
    %529 = arith.mulf %528, %514 : vector<12x16xf32>
    %530 = arith.addf %508, %529 : vector<12x16xf32>
    %c119 = arith.constant 119 : index
    %531 = memref.load %arg6[%c119] : memref<125xf32, #tpu.memory_space<smem>>
    %532 = vector.broadcast %531 : f32 to vector<12x16xf32>
    %533 = arith.mulf %532, %514 : vector<12x16xf32>
    %534 = arith.addf %512, %533 : vector<12x16xf32>
    %535 = vector.extract_strided_slice %446 {offsets = [4, 0, 0], sizes = [1, 12, 16], strides = [1, 1, 1]} : vector<5x12x16xf32> to vector<1x12x16xf32>
    %536 = vector.shape_cast %535 : vector<1x12x16xf32> to vector<12x16xf32>
    %c24 = arith.constant 24 : index
    %537 = memref.load %arg6[%c24] : memref<125xf32, #tpu.memory_space<smem>>
    %538 = vector.broadcast %537 : f32 to vector<12x16xf32>
    %539 = arith.mulf %538, %536 : vector<12x16xf32>
    %540 = arith.addf %518, %539 : vector<12x16xf32>
    %c49 = arith.constant 49 : index
    %541 = memref.load %arg6[%c49] : memref<125xf32, #tpu.memory_space<smem>>
    %542 = vector.broadcast %541 : f32 to vector<12x16xf32>
    %543 = arith.mulf %542, %536 : vector<12x16xf32>
    %544 = arith.addf %522, %543 : vector<12x16xf32>
    %c74 = arith.constant 74 : index
    %545 = memref.load %arg6[%c74] : memref<125xf32, #tpu.memory_space<smem>>
    %546 = vector.broadcast %545 : f32 to vector<12x16xf32>
    %547 = arith.mulf %546, %536 : vector<12x16xf32>
    %548 = arith.addf %526, %547 : vector<12x16xf32>
    %c99 = arith.constant 99 : index
    %549 = memref.load %arg6[%c99] : memref<125xf32, #tpu.memory_space<smem>>
    %550 = vector.broadcast %549 : f32 to vector<12x16xf32>
    %551 = arith.mulf %550, %536 : vector<12x16xf32>
    %552 = arith.addf %530, %551 : vector<12x16xf32>
    %c124 = arith.constant 124 : index
    %553 = memref.load %arg6[%c124] : memref<125xf32, #tpu.memory_space<smem>>
    %554 = vector.broadcast %553 : f32 to vector<12x16xf32>
    %555 = arith.mulf %554, %536 : vector<12x16xf32>
    %556 = arith.addf %534, %555 : vector<12x16xf32>
    %c0_29 = arith.constant 0 : index
    %557 = memref.load %arg7[%c0_29] : memref<5xf32, #tpu.memory_space<smem>>
    %558 = vector.broadcast %557 : f32 to vector<12x16xf32>
    %559 = arith.addf %540, %558 : vector<12x16xf32>
    %c1_30 = arith.constant 1 : index
    %560 = memref.load %arg7[%c1_30] : memref<5xf32, #tpu.memory_space<smem>>
    %561 = vector.broadcast %560 : f32 to vector<12x16xf32>
    %562 = arith.addf %544, %561 : vector<12x16xf32>
    %c2_31 = arith.constant 2 : index
    %563 = memref.load %arg7[%c2_31] : memref<5xf32, #tpu.memory_space<smem>>
    %564 = vector.broadcast %563 : f32 to vector<12x16xf32>
    %565 = arith.addf %548, %564 : vector<12x16xf32>
    %c3_32 = arith.constant 3 : index
    %566 = memref.load %arg7[%c3_32] : memref<5xf32, #tpu.memory_space<smem>>
    %567 = vector.broadcast %566 : f32 to vector<12x16xf32>
    %568 = arith.addf %552, %567 : vector<12x16xf32>
    %c4_33 = arith.constant 4 : index
    %569 = memref.load %arg7[%c4_33] : memref<5xf32, #tpu.memory_space<smem>>
    %570 = vector.broadcast %569 : f32 to vector<12x16xf32>
    %571 = arith.addf %556, %570 : vector<12x16xf32>
    %572 = vector.shape_cast %559 : vector<12x16xf32> to vector<1x12x16xf32>
    %573 = vector.shape_cast %562 : vector<12x16xf32> to vector<1x12x16xf32>
    %574 = vector.shape_cast %565 : vector<12x16xf32> to vector<1x12x16xf32>
    %575 = vector.shape_cast %568 : vector<12x16xf32> to vector<1x12x16xf32>
    %576 = vector.shape_cast %571 : vector<12x16xf32> to vector<1x12x16xf32>
    %577 = tpu.concatenate %572, %573, %574, %575, %576 in 0 : vector<1x12x16xf32>, vector<1x12x16xf32>, vector<1x12x16xf32>, vector<1x12x16xf32>, vector<1x12x16xf32> -> vector<5x12x16xf32>
    %c0_34 = arith.constant 0 : index
    %c0_35 = arith.constant 0 : index
    %c0_36 = arith.constant 0 : index
    %578 = vector.load %arg9[%c0_34, %c0_35, %c0_36] : memref<5x16x16xf32, #tpu.memory_space<vmem>>, vector<5x12x14xf32>
    %579 = vector.extract_strided_slice %578 {offsets = [0, 0, 0], sizes = [1, 12, 14], strides = [1, 1, 1]} : vector<5x12x14xf32> to vector<1x12x14xf32>
    %580 = vector.shape_cast %579 : vector<1x12x14xf32> to vector<12x14xf32>
    %c0_37 = arith.constant 0 : index
    %581 = memref.load %arg2[%c0_37] : memref<100xf32, #tpu.memory_space<smem>>
    %582 = vector.broadcast %581 : f32 to vector<12x14xf32>
    %583 = arith.mulf %582, %580 : vector<12x14xf32>
    %c20_38 = arith.constant 20 : index
    %584 = memref.load %arg2[%c20_38] : memref<100xf32, #tpu.memory_space<smem>>
    %585 = vector.broadcast %584 : f32 to vector<12x14xf32>
    %586 = arith.mulf %585, %580 : vector<12x14xf32>
    %c40_39 = arith.constant 40 : index
    %587 = memref.load %arg2[%c40_39] : memref<100xf32, #tpu.memory_space<smem>>
    %588 = vector.broadcast %587 : f32 to vector<12x14xf32>
    %589 = arith.mulf %588, %580 : vector<12x14xf32>
    %c60_40 = arith.constant 60 : index
    %590 = memref.load %arg2[%c60_40] : memref<100xf32, #tpu.memory_space<smem>>
    %591 = vector.broadcast %590 : f32 to vector<12x14xf32>
    %592 = arith.mulf %591, %580 : vector<12x14xf32>
    %c80_41 = arith.constant 80 : index
    %593 = memref.load %arg2[%c80_41] : memref<100xf32, #tpu.memory_space<smem>>
    %594 = vector.broadcast %593 : f32 to vector<12x14xf32>
    %595 = arith.mulf %594, %580 : vector<12x14xf32>
    %596 = vector.extract_strided_slice %578 {offsets = [1, 0, 0], sizes = [1, 12, 14], strides = [1, 1, 1]} : vector<5x12x14xf32> to vector<1x12x14xf32>
    %597 = vector.shape_cast %596 : vector<1x12x14xf32> to vector<12x14xf32>
    %c4_42 = arith.constant 4 : index
    %598 = memref.load %arg2[%c4_42] : memref<100xf32, #tpu.memory_space<smem>>
    %599 = vector.broadcast %598 : f32 to vector<12x14xf32>
    %600 = arith.mulf %599, %597 : vector<12x14xf32>
    %601 = arith.addf %583, %600 : vector<12x14xf32>
    %c24_43 = arith.constant 24 : index
    %602 = memref.load %arg2[%c24_43] : memref<100xf32, #tpu.memory_space<smem>>
    %603 = vector.broadcast %602 : f32 to vector<12x14xf32>
    %604 = arith.mulf %603, %597 : vector<12x14xf32>
    %605 = arith.addf %586, %604 : vector<12x14xf32>
    %c44_44 = arith.constant 44 : index
    %606 = memref.load %arg2[%c44_44] : memref<100xf32, #tpu.memory_space<smem>>
    %607 = vector.broadcast %606 : f32 to vector<12x14xf32>
    %608 = arith.mulf %607, %597 : vector<12x14xf32>
    %609 = arith.addf %589, %608 : vector<12x14xf32>
    %c64_45 = arith.constant 64 : index
    %610 = memref.load %arg2[%c64_45] : memref<100xf32, #tpu.memory_space<smem>>
    %611 = vector.broadcast %610 : f32 to vector<12x14xf32>
    %612 = arith.mulf %611, %597 : vector<12x14xf32>
    %613 = arith.addf %592, %612 : vector<12x14xf32>
    %c84_46 = arith.constant 84 : index
    %614 = memref.load %arg2[%c84_46] : memref<100xf32, #tpu.memory_space<smem>>
    %615 = vector.broadcast %614 : f32 to vector<12x14xf32>
    %616 = arith.mulf %615, %597 : vector<12x14xf32>
    %617 = arith.addf %595, %616 : vector<12x14xf32>
    %618 = vector.extract_strided_slice %578 {offsets = [2, 0, 0], sizes = [1, 12, 14], strides = [1, 1, 1]} : vector<5x12x14xf32> to vector<1x12x14xf32>
    %619 = vector.shape_cast %618 : vector<1x12x14xf32> to vector<12x14xf32>
    %c8_47 = arith.constant 8 : index
    %620 = memref.load %arg2[%c8_47] : memref<100xf32, #tpu.memory_space<smem>>
    %621 = vector.broadcast %620 : f32 to vector<12x14xf32>
    %622 = arith.mulf %621, %619 : vector<12x14xf32>
    %623 = arith.addf %601, %622 : vector<12x14xf32>
    %c28_48 = arith.constant 28 : index
    %624 = memref.load %arg2[%c28_48] : memref<100xf32, #tpu.memory_space<smem>>
    %625 = vector.broadcast %624 : f32 to vector<12x14xf32>
    %626 = arith.mulf %625, %619 : vector<12x14xf32>
    %627 = arith.addf %605, %626 : vector<12x14xf32>
    %c48_49 = arith.constant 48 : index
    %628 = memref.load %arg2[%c48_49] : memref<100xf32, #tpu.memory_space<smem>>
    %629 = vector.broadcast %628 : f32 to vector<12x14xf32>
    %630 = arith.mulf %629, %619 : vector<12x14xf32>
    %631 = arith.addf %609, %630 : vector<12x14xf32>
    %c68_50 = arith.constant 68 : index
    %632 = memref.load %arg2[%c68_50] : memref<100xf32, #tpu.memory_space<smem>>
    %633 = vector.broadcast %632 : f32 to vector<12x14xf32>
    %634 = arith.mulf %633, %619 : vector<12x14xf32>
    %635 = arith.addf %613, %634 : vector<12x14xf32>
    %c88_51 = arith.constant 88 : index
    %636 = memref.load %arg2[%c88_51] : memref<100xf32, #tpu.memory_space<smem>>
    %637 = vector.broadcast %636 : f32 to vector<12x14xf32>
    %638 = arith.mulf %637, %619 : vector<12x14xf32>
    %639 = arith.addf %617, %638 : vector<12x14xf32>
    %640 = vector.extract_strided_slice %578 {offsets = [3, 0, 0], sizes = [1, 12, 14], strides = [1, 1, 1]} : vector<5x12x14xf32> to vector<1x12x14xf32>
    %641 = vector.shape_cast %640 : vector<1x12x14xf32> to vector<12x14xf32>
    %c12_52 = arith.constant 12 : index
    %642 = memref.load %arg2[%c12_52] : memref<100xf32, #tpu.memory_space<smem>>
    %643 = vector.broadcast %642 : f32 to vector<12x14xf32>
    %644 = arith.mulf %643, %641 : vector<12x14xf32>
    %645 = arith.addf %623, %644 : vector<12x14xf32>
    %c32_53 = arith.constant 32 : index
    %646 = memref.load %arg2[%c32_53] : memref<100xf32, #tpu.memory_space<smem>>
    %647 = vector.broadcast %646 : f32 to vector<12x14xf32>
    %648 = arith.mulf %647, %641 : vector<12x14xf32>
    %649 = arith.addf %627, %648 : vector<12x14xf32>
    %c52_54 = arith.constant 52 : index
    %650 = memref.load %arg2[%c52_54] : memref<100xf32, #tpu.memory_space<smem>>
    %651 = vector.broadcast %650 : f32 to vector<12x14xf32>
    %652 = arith.mulf %651, %641 : vector<12x14xf32>
    %653 = arith.addf %631, %652 : vector<12x14xf32>
    %c72_55 = arith.constant 72 : index
    %654 = memref.load %arg2[%c72_55] : memref<100xf32, #tpu.memory_space<smem>>
    %655 = vector.broadcast %654 : f32 to vector<12x14xf32>
    %656 = arith.mulf %655, %641 : vector<12x14xf32>
    %657 = arith.addf %635, %656 : vector<12x14xf32>
    %c92_56 = arith.constant 92 : index
    %658 = memref.load %arg2[%c92_56] : memref<100xf32, #tpu.memory_space<smem>>
    %659 = vector.broadcast %658 : f32 to vector<12x14xf32>
    %660 = arith.mulf %659, %641 : vector<12x14xf32>
    %661 = arith.addf %639, %660 : vector<12x14xf32>
    %662 = vector.extract_strided_slice %578 {offsets = [4, 0, 0], sizes = [1, 12, 14], strides = [1, 1, 1]} : vector<5x12x14xf32> to vector<1x12x14xf32>
    %663 = vector.shape_cast %662 : vector<1x12x14xf32> to vector<12x14xf32>
    %c16_57 = arith.constant 16 : index
    %664 = memref.load %arg2[%c16_57] : memref<100xf32, #tpu.memory_space<smem>>
    %665 = vector.broadcast %664 : f32 to vector<12x14xf32>
    %666 = arith.mulf %665, %663 : vector<12x14xf32>
    %667 = arith.addf %645, %666 : vector<12x14xf32>
    %c36_58 = arith.constant 36 : index
    %668 = memref.load %arg2[%c36_58] : memref<100xf32, #tpu.memory_space<smem>>
    %669 = vector.broadcast %668 : f32 to vector<12x14xf32>
    %670 = arith.mulf %669, %663 : vector<12x14xf32>
    %671 = arith.addf %649, %670 : vector<12x14xf32>
    %c56_59 = arith.constant 56 : index
    %672 = memref.load %arg2[%c56_59] : memref<100xf32, #tpu.memory_space<smem>>
    %673 = vector.broadcast %672 : f32 to vector<12x14xf32>
    %674 = arith.mulf %673, %663 : vector<12x14xf32>
    %675 = arith.addf %653, %674 : vector<12x14xf32>
    %c76_60 = arith.constant 76 : index
    %676 = memref.load %arg2[%c76_60] : memref<100xf32, #tpu.memory_space<smem>>
    %677 = vector.broadcast %676 : f32 to vector<12x14xf32>
    %678 = arith.mulf %677, %663 : vector<12x14xf32>
    %679 = arith.addf %657, %678 : vector<12x14xf32>
    %c96_61 = arith.constant 96 : index
    %680 = memref.load %arg2[%c96_61] : memref<100xf32, #tpu.memory_space<smem>>
    %681 = vector.broadcast %680 : f32 to vector<12x14xf32>
    %682 = arith.mulf %681, %663 : vector<12x14xf32>
    %683 = arith.addf %661, %682 : vector<12x14xf32>
    %c0_62 = arith.constant 0 : index
    %c0_63 = arith.constant 0 : index
    %c2_64 = arith.constant 2 : index
    %684 = vector.load %arg9[%c0_62, %c0_63, %c2_64] : memref<5x16x16xf32, #tpu.memory_space<vmem>>, vector<5x12x14xf32>
    %685 = vector.extract_strided_slice %684 {offsets = [0, 0, 0], sizes = [1, 12, 14], strides = [1, 1, 1]} : vector<5x12x14xf32> to vector<1x12x14xf32>
    %686 = vector.shape_cast %685 : vector<1x12x14xf32> to vector<12x14xf32>
    %c1_65 = arith.constant 1 : index
    %687 = memref.load %arg2[%c1_65] : memref<100xf32, #tpu.memory_space<smem>>
    %688 = vector.broadcast %687 : f32 to vector<12x14xf32>
    %689 = arith.mulf %688, %686 : vector<12x14xf32>
    %690 = arith.addf %667, %689 : vector<12x14xf32>
    %c21_66 = arith.constant 21 : index
    %691 = memref.load %arg2[%c21_66] : memref<100xf32, #tpu.memory_space<smem>>
    %692 = vector.broadcast %691 : f32 to vector<12x14xf32>
    %693 = arith.mulf %692, %686 : vector<12x14xf32>
    %694 = arith.addf %671, %693 : vector<12x14xf32>
    %c41_67 = arith.constant 41 : index
    %695 = memref.load %arg2[%c41_67] : memref<100xf32, #tpu.memory_space<smem>>
    %696 = vector.broadcast %695 : f32 to vector<12x14xf32>
    %697 = arith.mulf %696, %686 : vector<12x14xf32>
    %698 = arith.addf %675, %697 : vector<12x14xf32>
    %c61_68 = arith.constant 61 : index
    %699 = memref.load %arg2[%c61_68] : memref<100xf32, #tpu.memory_space<smem>>
    %700 = vector.broadcast %699 : f32 to vector<12x14xf32>
    %701 = arith.mulf %700, %686 : vector<12x14xf32>
    %702 = arith.addf %679, %701 : vector<12x14xf32>
    %c81_69 = arith.constant 81 : index
    %703 = memref.load %arg2[%c81_69] : memref<100xf32, #tpu.memory_space<smem>>
    %704 = vector.broadcast %703 : f32 to vector<12x14xf32>
    %705 = arith.mulf %704, %686 : vector<12x14xf32>
    %706 = arith.addf %683, %705 : vector<12x14xf32>
    %707 = vector.extract_strided_slice %684 {offsets = [1, 0, 0], sizes = [1, 12, 14], strides = [1, 1, 1]} : vector<5x12x14xf32> to vector<1x12x14xf32>
    %708 = vector.shape_cast %707 : vector<1x12x14xf32> to vector<12x14xf32>
    %c5_70 = arith.constant 5 : index
    %709 = memref.load %arg2[%c5_70] : memref<100xf32, #tpu.memory_space<smem>>
    %710 = vector.broadcast %709 : f32 to vector<12x14xf32>
    %711 = arith.mulf %710, %708 : vector<12x14xf32>
    %712 = arith.addf %690, %711 : vector<12x14xf32>
    %c25_71 = arith.constant 25 : index
    %713 = memref.load %arg2[%c25_71] : memref<100xf32, #tpu.memory_space<smem>>
    %714 = vector.broadcast %713 : f32 to vector<12x14xf32>
    %715 = arith.mulf %714, %708 : vector<12x14xf32>
    %716 = arith.addf %694, %715 : vector<12x14xf32>
    %c45_72 = arith.constant 45 : index
    %717 = memref.load %arg2[%c45_72] : memref<100xf32, #tpu.memory_space<smem>>
    %718 = vector.broadcast %717 : f32 to vector<12x14xf32>
    %719 = arith.mulf %718, %708 : vector<12x14xf32>
    %720 = arith.addf %698, %719 : vector<12x14xf32>
    %c65_73 = arith.constant 65 : index
    %721 = memref.load %arg2[%c65_73] : memref<100xf32, #tpu.memory_space<smem>>
    %722 = vector.broadcast %721 : f32 to vector<12x14xf32>
    %723 = arith.mulf %722, %708 : vector<12x14xf32>
    %724 = arith.addf %702, %723 : vector<12x14xf32>
    %c85_74 = arith.constant 85 : index
    %725 = memref.load %arg2[%c85_74] : memref<100xf32, #tpu.memory_space<smem>>
    %726 = vector.broadcast %725 : f32 to vector<12x14xf32>
    %727 = arith.mulf %726, %708 : vector<12x14xf32>
    %728 = arith.addf %706, %727 : vector<12x14xf32>
    %729 = vector.extract_strided_slice %684 {offsets = [2, 0, 0], sizes = [1, 12, 14], strides = [1, 1, 1]} : vector<5x12x14xf32> to vector<1x12x14xf32>
    %730 = vector.shape_cast %729 : vector<1x12x14xf32> to vector<12x14xf32>
    %c9_75 = arith.constant 9 : index
    %731 = memref.load %arg2[%c9_75] : memref<100xf32, #tpu.memory_space<smem>>
    %732 = vector.broadcast %731 : f32 to vector<12x14xf32>
    %733 = arith.mulf %732, %730 : vector<12x14xf32>
    %734 = arith.addf %712, %733 : vector<12x14xf32>
    %c29_76 = arith.constant 29 : index
    %735 = memref.load %arg2[%c29_76] : memref<100xf32, #tpu.memory_space<smem>>
    %736 = vector.broadcast %735 : f32 to vector<12x14xf32>
    %737 = arith.mulf %736, %730 : vector<12x14xf32>
    %738 = arith.addf %716, %737 : vector<12x14xf32>
    %c49_77 = arith.constant 49 : index
    %739 = memref.load %arg2[%c49_77] : memref<100xf32, #tpu.memory_space<smem>>
    %740 = vector.broadcast %739 : f32 to vector<12x14xf32>
    %741 = arith.mulf %740, %730 : vector<12x14xf32>
    %742 = arith.addf %720, %741 : vector<12x14xf32>
    %c69_78 = arith.constant 69 : index
    %743 = memref.load %arg2[%c69_78] : memref<100xf32, #tpu.memory_space<smem>>
    %744 = vector.broadcast %743 : f32 to vector<12x14xf32>
    %745 = arith.mulf %744, %730 : vector<12x14xf32>
    %746 = arith.addf %724, %745 : vector<12x14xf32>
    %c89_79 = arith.constant 89 : index
    %747 = memref.load %arg2[%c89_79] : memref<100xf32, #tpu.memory_space<smem>>
    %748 = vector.broadcast %747 : f32 to vector<12x14xf32>
    %749 = arith.mulf %748, %730 : vector<12x14xf32>
    %750 = arith.addf %728, %749 : vector<12x14xf32>
    %751 = vector.extract_strided_slice %684 {offsets = [3, 0, 0], sizes = [1, 12, 14], strides = [1, 1, 1]} : vector<5x12x14xf32> to vector<1x12x14xf32>
    %752 = vector.shape_cast %751 : vector<1x12x14xf32> to vector<12x14xf32>
    %c13_80 = arith.constant 13 : index
    %753 = memref.load %arg2[%c13_80] : memref<100xf32, #tpu.memory_space<smem>>
    %754 = vector.broadcast %753 : f32 to vector<12x14xf32>
    %755 = arith.mulf %754, %752 : vector<12x14xf32>
    %756 = arith.addf %734, %755 : vector<12x14xf32>
    %c33_81 = arith.constant 33 : index
    %757 = memref.load %arg2[%c33_81] : memref<100xf32, #tpu.memory_space<smem>>
    %758 = vector.broadcast %757 : f32 to vector<12x14xf32>
    %759 = arith.mulf %758, %752 : vector<12x14xf32>
    %760 = arith.addf %738, %759 : vector<12x14xf32>
    %c53_82 = arith.constant 53 : index
    %761 = memref.load %arg2[%c53_82] : memref<100xf32, #tpu.memory_space<smem>>
    %762 = vector.broadcast %761 : f32 to vector<12x14xf32>
    %763 = arith.mulf %762, %752 : vector<12x14xf32>
    %764 = arith.addf %742, %763 : vector<12x14xf32>
    %c73_83 = arith.constant 73 : index
    %765 = memref.load %arg2[%c73_83] : memref<100xf32, #tpu.memory_space<smem>>
    %766 = vector.broadcast %765 : f32 to vector<12x14xf32>
    %767 = arith.mulf %766, %752 : vector<12x14xf32>
    %768 = arith.addf %746, %767 : vector<12x14xf32>
    %c93_84 = arith.constant 93 : index
    %769 = memref.load %arg2[%c93_84] : memref<100xf32, #tpu.memory_space<smem>>
    %770 = vector.broadcast %769 : f32 to vector<12x14xf32>
    %771 = arith.mulf %770, %752 : vector<12x14xf32>
    %772 = arith.addf %750, %771 : vector<12x14xf32>
    %773 = vector.extract_strided_slice %684 {offsets = [4, 0, 0], sizes = [1, 12, 14], strides = [1, 1, 1]} : vector<5x12x14xf32> to vector<1x12x14xf32>
    %774 = vector.shape_cast %773 : vector<1x12x14xf32> to vector<12x14xf32>
    %c17_85 = arith.constant 17 : index
    %775 = memref.load %arg2[%c17_85] : memref<100xf32, #tpu.memory_space<smem>>
    %776 = vector.broadcast %775 : f32 to vector<12x14xf32>
    %777 = arith.mulf %776, %774 : vector<12x14xf32>
    %778 = arith.addf %756, %777 : vector<12x14xf32>
    %c37_86 = arith.constant 37 : index
    %779 = memref.load %arg2[%c37_86] : memref<100xf32, #tpu.memory_space<smem>>
    %780 = vector.broadcast %779 : f32 to vector<12x14xf32>
    %781 = arith.mulf %780, %774 : vector<12x14xf32>
    %782 = arith.addf %760, %781 : vector<12x14xf32>
    %c57_87 = arith.constant 57 : index
    %783 = memref.load %arg2[%c57_87] : memref<100xf32, #tpu.memory_space<smem>>
    %784 = vector.broadcast %783 : f32 to vector<12x14xf32>
    %785 = arith.mulf %784, %774 : vector<12x14xf32>
    %786 = arith.addf %764, %785 : vector<12x14xf32>
    %c77_88 = arith.constant 77 : index
    %787 = memref.load %arg2[%c77_88] : memref<100xf32, #tpu.memory_space<smem>>
    %788 = vector.broadcast %787 : f32 to vector<12x14xf32>
    %789 = arith.mulf %788, %774 : vector<12x14xf32>
    %790 = arith.addf %768, %789 : vector<12x14xf32>
    %c97_89 = arith.constant 97 : index
    %791 = memref.load %arg2[%c97_89] : memref<100xf32, #tpu.memory_space<smem>>
    %792 = vector.broadcast %791 : f32 to vector<12x14xf32>
    %793 = arith.mulf %792, %774 : vector<12x14xf32>
    %794 = arith.addf %772, %793 : vector<12x14xf32>
    %c0_90 = arith.constant 0 : index
    %c2_91 = arith.constant 2 : index
    %c0_92 = arith.constant 0 : index
    %795 = vector.load %arg9[%c0_90, %c2_91, %c0_92] : memref<5x16x16xf32, #tpu.memory_space<vmem>>, vector<5x12x14xf32>
    %796 = vector.extract_strided_slice %795 {offsets = [0, 0, 0], sizes = [1, 12, 14], strides = [1, 1, 1]} : vector<5x12x14xf32> to vector<1x12x14xf32>
    %797 = vector.shape_cast %796 : vector<1x12x14xf32> to vector<12x14xf32>
    %c2_93 = arith.constant 2 : index
    %798 = memref.load %arg2[%c2_93] : memref<100xf32, #tpu.memory_space<smem>>
    %799 = vector.broadcast %798 : f32 to vector<12x14xf32>
    %800 = arith.mulf %799, %797 : vector<12x14xf32>
    %801 = arith.addf %778, %800 : vector<12x14xf32>
    %c22_94 = arith.constant 22 : index
    %802 = memref.load %arg2[%c22_94] : memref<100xf32, #tpu.memory_space<smem>>
    %803 = vector.broadcast %802 : f32 to vector<12x14xf32>
    %804 = arith.mulf %803, %797 : vector<12x14xf32>
    %805 = arith.addf %782, %804 : vector<12x14xf32>
    %c42_95 = arith.constant 42 : index
    %806 = memref.load %arg2[%c42_95] : memref<100xf32, #tpu.memory_space<smem>>
    %807 = vector.broadcast %806 : f32 to vector<12x14xf32>
    %808 = arith.mulf %807, %797 : vector<12x14xf32>
    %809 = arith.addf %786, %808 : vector<12x14xf32>
    %c62_96 = arith.constant 62 : index
    %810 = memref.load %arg2[%c62_96] : memref<100xf32, #tpu.memory_space<smem>>
    %811 = vector.broadcast %810 : f32 to vector<12x14xf32>
    %812 = arith.mulf %811, %797 : vector<12x14xf32>
    %813 = arith.addf %790, %812 : vector<12x14xf32>
    %c82_97 = arith.constant 82 : index
    %814 = memref.load %arg2[%c82_97] : memref<100xf32, #tpu.memory_space<smem>>
    %815 = vector.broadcast %814 : f32 to vector<12x14xf32>
    %816 = arith.mulf %815, %797 : vector<12x14xf32>
    %817 = arith.addf %794, %816 : vector<12x14xf32>
    %818 = vector.extract_strided_slice %795 {offsets = [1, 0, 0], sizes = [1, 12, 14], strides = [1, 1, 1]} : vector<5x12x14xf32> to vector<1x12x14xf32>
    %819 = vector.shape_cast %818 : vector<1x12x14xf32> to vector<12x14xf32>
    %c6_98 = arith.constant 6 : index
    %820 = memref.load %arg2[%c6_98] : memref<100xf32, #tpu.memory_space<smem>>
    %821 = vector.broadcast %820 : f32 to vector<12x14xf32>
    %822 = arith.mulf %821, %819 : vector<12x14xf32>
    %823 = arith.addf %801, %822 : vector<12x14xf32>
    %c26_99 = arith.constant 26 : index
    %824 = memref.load %arg2[%c26_99] : memref<100xf32, #tpu.memory_space<smem>>
    %825 = vector.broadcast %824 : f32 to vector<12x14xf32>
    %826 = arith.mulf %825, %819 : vector<12x14xf32>
    %827 = arith.addf %805, %826 : vector<12x14xf32>
    %c46_100 = arith.constant 46 : index
    %828 = memref.load %arg2[%c46_100] : memref<100xf32, #tpu.memory_space<smem>>
    %829 = vector.broadcast %828 : f32 to vector<12x14xf32>
    %830 = arith.mulf %829, %819 : vector<12x14xf32>
    %831 = arith.addf %809, %830 : vector<12x14xf32>
    %c66_101 = arith.constant 66 : index
    %832 = memref.load %arg2[%c66_101] : memref<100xf32, #tpu.memory_space<smem>>
    %833 = vector.broadcast %832 : f32 to vector<12x14xf32>
    %834 = arith.mulf %833, %819 : vector<12x14xf32>
    %835 = arith.addf %813, %834 : vector<12x14xf32>
    %c86_102 = arith.constant 86 : index
    %836 = memref.load %arg2[%c86_102] : memref<100xf32, #tpu.memory_space<smem>>
    %837 = vector.broadcast %836 : f32 to vector<12x14xf32>
    %838 = arith.mulf %837, %819 : vector<12x14xf32>
    %839 = arith.addf %817, %838 : vector<12x14xf32>
    %840 = vector.extract_strided_slice %795 {offsets = [2, 0, 0], sizes = [1, 12, 14], strides = [1, 1, 1]} : vector<5x12x14xf32> to vector<1x12x14xf32>
    %841 = vector.shape_cast %840 : vector<1x12x14xf32> to vector<12x14xf32>
    %c10_103 = arith.constant 10 : index
    %842 = memref.load %arg2[%c10_103] : memref<100xf32, #tpu.memory_space<smem>>
    %843 = vector.broadcast %842 : f32 to vector<12x14xf32>
    %844 = arith.mulf %843, %841 : vector<12x14xf32>
    %845 = arith.addf %823, %844 : vector<12x14xf32>
    %c30_104 = arith.constant 30 : index
    %846 = memref.load %arg2[%c30_104] : memref<100xf32, #tpu.memory_space<smem>>
    %847 = vector.broadcast %846 : f32 to vector<12x14xf32>
    %848 = arith.mulf %847, %841 : vector<12x14xf32>
    %849 = arith.addf %827, %848 : vector<12x14xf32>
    %c50_105 = arith.constant 50 : index
    %850 = memref.load %arg2[%c50_105] : memref<100xf32, #tpu.memory_space<smem>>
    %851 = vector.broadcast %850 : f32 to vector<12x14xf32>
    %852 = arith.mulf %851, %841 : vector<12x14xf32>
    %853 = arith.addf %831, %852 : vector<12x14xf32>
    %c70_106 = arith.constant 70 : index
    %854 = memref.load %arg2[%c70_106] : memref<100xf32, #tpu.memory_space<smem>>
    %855 = vector.broadcast %854 : f32 to vector<12x14xf32>
    %856 = arith.mulf %855, %841 : vector<12x14xf32>
    %857 = arith.addf %835, %856 : vector<12x14xf32>
    %c90_107 = arith.constant 90 : index
    %858 = memref.load %arg2[%c90_107] : memref<100xf32, #tpu.memory_space<smem>>
    %859 = vector.broadcast %858 : f32 to vector<12x14xf32>
    %860 = arith.mulf %859, %841 : vector<12x14xf32>
    %861 = arith.addf %839, %860 : vector<12x14xf32>
    %862 = vector.extract_strided_slice %795 {offsets = [3, 0, 0], sizes = [1, 12, 14], strides = [1, 1, 1]} : vector<5x12x14xf32> to vector<1x12x14xf32>
    %863 = vector.shape_cast %862 : vector<1x12x14xf32> to vector<12x14xf32>
    %c14_108 = arith.constant 14 : index
    %864 = memref.load %arg2[%c14_108] : memref<100xf32, #tpu.memory_space<smem>>
    %865 = vector.broadcast %864 : f32 to vector<12x14xf32>
    %866 = arith.mulf %865, %863 : vector<12x14xf32>
    %867 = arith.addf %845, %866 : vector<12x14xf32>
    %c34_109 = arith.constant 34 : index
    %868 = memref.load %arg2[%c34_109] : memref<100xf32, #tpu.memory_space<smem>>
    %869 = vector.broadcast %868 : f32 to vector<12x14xf32>
    %870 = arith.mulf %869, %863 : vector<12x14xf32>
    %871 = arith.addf %849, %870 : vector<12x14xf32>
    %c54_110 = arith.constant 54 : index
    %872 = memref.load %arg2[%c54_110] : memref<100xf32, #tpu.memory_space<smem>>
    %873 = vector.broadcast %872 : f32 to vector<12x14xf32>
    %874 = arith.mulf %873, %863 : vector<12x14xf32>
    %875 = arith.addf %853, %874 : vector<12x14xf32>
    %c74_111 = arith.constant 74 : index
    %876 = memref.load %arg2[%c74_111] : memref<100xf32, #tpu.memory_space<smem>>
    %877 = vector.broadcast %876 : f32 to vector<12x14xf32>
    %878 = arith.mulf %877, %863 : vector<12x14xf32>
    %879 = arith.addf %857, %878 : vector<12x14xf32>
    %c94_112 = arith.constant 94 : index
    %880 = memref.load %arg2[%c94_112] : memref<100xf32, #tpu.memory_space<smem>>
    %881 = vector.broadcast %880 : f32 to vector<12x14xf32>
    %882 = arith.mulf %881, %863 : vector<12x14xf32>
    %883 = arith.addf %861, %882 : vector<12x14xf32>
    %884 = vector.extract_strided_slice %795 {offsets = [4, 0, 0], sizes = [1, 12, 14], strides = [1, 1, 1]} : vector<5x12x14xf32> to vector<1x12x14xf32>
    %885 = vector.shape_cast %884 : vector<1x12x14xf32> to vector<12x14xf32>
    %c18_113 = arith.constant 18 : index
    %886 = memref.load %arg2[%c18_113] : memref<100xf32, #tpu.memory_space<smem>>
    %887 = vector.broadcast %886 : f32 to vector<12x14xf32>
    %888 = arith.mulf %887, %885 : vector<12x14xf32>
    %889 = arith.addf %867, %888 : vector<12x14xf32>
    %c38_114 = arith.constant 38 : index
    %890 = memref.load %arg2[%c38_114] : memref<100xf32, #tpu.memory_space<smem>>
    %891 = vector.broadcast %890 : f32 to vector<12x14xf32>
    %892 = arith.mulf %891, %885 : vector<12x14xf32>
    %893 = arith.addf %871, %892 : vector<12x14xf32>
    %c58_115 = arith.constant 58 : index
    %894 = memref.load %arg2[%c58_115] : memref<100xf32, #tpu.memory_space<smem>>
    %895 = vector.broadcast %894 : f32 to vector<12x14xf32>
    %896 = arith.mulf %895, %885 : vector<12x14xf32>
    %897 = arith.addf %875, %896 : vector<12x14xf32>
    %c78_116 = arith.constant 78 : index
    %898 = memref.load %arg2[%c78_116] : memref<100xf32, #tpu.memory_space<smem>>
    %899 = vector.broadcast %898 : f32 to vector<12x14xf32>
    %900 = arith.mulf %899, %885 : vector<12x14xf32>
    %901 = arith.addf %879, %900 : vector<12x14xf32>
    %c98_117 = arith.constant 98 : index
    %902 = memref.load %arg2[%c98_117] : memref<100xf32, #tpu.memory_space<smem>>
    %903 = vector.broadcast %902 : f32 to vector<12x14xf32>
    %904 = arith.mulf %903, %885 : vector<12x14xf32>
    %905 = arith.addf %883, %904 : vector<12x14xf32>
    %c0_118 = arith.constant 0 : index
    %c2_119 = arith.constant 2 : index
    %c2_120 = arith.constant 2 : index
    %906 = vector.load %arg9[%c0_118, %c2_119, %c2_120] : memref<5x16x16xf32, #tpu.memory_space<vmem>>, vector<5x12x14xf32>
    %907 = vector.extract_strided_slice %906 {offsets = [0, 0, 0], sizes = [1, 12, 14], strides = [1, 1, 1]} : vector<5x12x14xf32> to vector<1x12x14xf32>
    %908 = vector.shape_cast %907 : vector<1x12x14xf32> to vector<12x14xf32>
    %c3_121 = arith.constant 3 : index
    %909 = memref.load %arg2[%c3_121] : memref<100xf32, #tpu.memory_space<smem>>
    %910 = vector.broadcast %909 : f32 to vector<12x14xf32>
    %911 = arith.mulf %910, %908 : vector<12x14xf32>
    %912 = arith.addf %889, %911 : vector<12x14xf32>
    %c23_122 = arith.constant 23 : index
    %913 = memref.load %arg2[%c23_122] : memref<100xf32, #tpu.memory_space<smem>>
    %914 = vector.broadcast %913 : f32 to vector<12x14xf32>
    %915 = arith.mulf %914, %908 : vector<12x14xf32>
    %916 = arith.addf %893, %915 : vector<12x14xf32>
    %c43_123 = arith.constant 43 : index
    %917 = memref.load %arg2[%c43_123] : memref<100xf32, #tpu.memory_space<smem>>
    %918 = vector.broadcast %917 : f32 to vector<12x14xf32>
    %919 = arith.mulf %918, %908 : vector<12x14xf32>
    %920 = arith.addf %897, %919 : vector<12x14xf32>
    %c63_124 = arith.constant 63 : index
    %921 = memref.load %arg2[%c63_124] : memref<100xf32, #tpu.memory_space<smem>>
    %922 = vector.broadcast %921 : f32 to vector<12x14xf32>
    %923 = arith.mulf %922, %908 : vector<12x14xf32>
    %924 = arith.addf %901, %923 : vector<12x14xf32>
    %c83_125 = arith.constant 83 : index
    %925 = memref.load %arg2[%c83_125] : memref<100xf32, #tpu.memory_space<smem>>
    %926 = vector.broadcast %925 : f32 to vector<12x14xf32>
    %927 = arith.mulf %926, %908 : vector<12x14xf32>
    %928 = arith.addf %905, %927 : vector<12x14xf32>
    %929 = vector.extract_strided_slice %906 {offsets = [1, 0, 0], sizes = [1, 12, 14], strides = [1, 1, 1]} : vector<5x12x14xf32> to vector<1x12x14xf32>
    %930 = vector.shape_cast %929 : vector<1x12x14xf32> to vector<12x14xf32>
    %c7_126 = arith.constant 7 : index
    %931 = memref.load %arg2[%c7_126] : memref<100xf32, #tpu.memory_space<smem>>
    %932 = vector.broadcast %931 : f32 to vector<12x14xf32>
    %933 = arith.mulf %932, %930 : vector<12x14xf32>
    %934 = arith.addf %912, %933 : vector<12x14xf32>
    %c27_127 = arith.constant 27 : index
    %935 = memref.load %arg2[%c27_127] : memref<100xf32, #tpu.memory_space<smem>>
    %936 = vector.broadcast %935 : f32 to vector<12x14xf32>
    %937 = arith.mulf %936, %930 : vector<12x14xf32>
    %938 = arith.addf %916, %937 : vector<12x14xf32>
    %c47_128 = arith.constant 47 : index
    %939 = memref.load %arg2[%c47_128] : memref<100xf32, #tpu.memory_space<smem>>
    %940 = vector.broadcast %939 : f32 to vector<12x14xf32>
    %941 = arith.mulf %940, %930 : vector<12x14xf32>
    %942 = arith.addf %920, %941 : vector<12x14xf32>
    %c67_129 = arith.constant 67 : index
    %943 = memref.load %arg2[%c67_129] : memref<100xf32, #tpu.memory_space<smem>>
    %944 = vector.broadcast %943 : f32 to vector<12x14xf32>
    %945 = arith.mulf %944, %930 : vector<12x14xf32>
    %946 = arith.addf %924, %945 : vector<12x14xf32>
    %c87_130 = arith.constant 87 : index
    %947 = memref.load %arg2[%c87_130] : memref<100xf32, #tpu.memory_space<smem>>
    %948 = vector.broadcast %947 : f32 to vector<12x14xf32>
    %949 = arith.mulf %948, %930 : vector<12x14xf32>
    %950 = arith.addf %928, %949 : vector<12x14xf32>
    %951 = vector.extract_strided_slice %906 {offsets = [2, 0, 0], sizes = [1, 12, 14], strides = [1, 1, 1]} : vector<5x12x14xf32> to vector<1x12x14xf32>
    %952 = vector.shape_cast %951 : vector<1x12x14xf32> to vector<12x14xf32>
    %c11_131 = arith.constant 11 : index
    %953 = memref.load %arg2[%c11_131] : memref<100xf32, #tpu.memory_space<smem>>
    %954 = vector.broadcast %953 : f32 to vector<12x14xf32>
    %955 = arith.mulf %954, %952 : vector<12x14xf32>
    %956 = arith.addf %934, %955 : vector<12x14xf32>
    %c31_132 = arith.constant 31 : index
    %957 = memref.load %arg2[%c31_132] : memref<100xf32, #tpu.memory_space<smem>>
    %958 = vector.broadcast %957 : f32 to vector<12x14xf32>
    %959 = arith.mulf %958, %952 : vector<12x14xf32>
    %960 = arith.addf %938, %959 : vector<12x14xf32>
    %c51_133 = arith.constant 51 : index
    %961 = memref.load %arg2[%c51_133] : memref<100xf32, #tpu.memory_space<smem>>
    %962 = vector.broadcast %961 : f32 to vector<12x14xf32>
    %963 = arith.mulf %962, %952 : vector<12x14xf32>
    %964 = arith.addf %942, %963 : vector<12x14xf32>
    %c71_134 = arith.constant 71 : index
    %965 = memref.load %arg2[%c71_134] : memref<100xf32, #tpu.memory_space<smem>>
    %966 = vector.broadcast %965 : f32 to vector<12x14xf32>
    %967 = arith.mulf %966, %952 : vector<12x14xf32>
    %968 = arith.addf %946, %967 : vector<12x14xf32>
    %c91_135 = arith.constant 91 : index
    %969 = memref.load %arg2[%c91_135] : memref<100xf32, #tpu.memory_space<smem>>
    %970 = vector.broadcast %969 : f32 to vector<12x14xf32>
    %971 = arith.mulf %970, %952 : vector<12x14xf32>
    %972 = arith.addf %950, %971 : vector<12x14xf32>
    %973 = vector.extract_strided_slice %906 {offsets = [3, 0, 0], sizes = [1, 12, 14], strides = [1, 1, 1]} : vector<5x12x14xf32> to vector<1x12x14xf32>
    %974 = vector.shape_cast %973 : vector<1x12x14xf32> to vector<12x14xf32>
    %c15_136 = arith.constant 15 : index
    %975 = memref.load %arg2[%c15_136] : memref<100xf32, #tpu.memory_space<smem>>
    %976 = vector.broadcast %975 : f32 to vector<12x14xf32>
    %977 = arith.mulf %976, %974 : vector<12x14xf32>
    %978 = arith.addf %956, %977 : vector<12x14xf32>
    %c35_137 = arith.constant 35 : index
    %979 = memref.load %arg2[%c35_137] : memref<100xf32, #tpu.memory_space<smem>>
    %980 = vector.broadcast %979 : f32 to vector<12x14xf32>
    %981 = arith.mulf %980, %974 : vector<12x14xf32>
    %982 = arith.addf %960, %981 : vector<12x14xf32>
    %c55_138 = arith.constant 55 : index
    %983 = memref.load %arg2[%c55_138] : memref<100xf32, #tpu.memory_space<smem>>
    %984 = vector.broadcast %983 : f32 to vector<12x14xf32>
    %985 = arith.mulf %984, %974 : vector<12x14xf32>
    %986 = arith.addf %964, %985 : vector<12x14xf32>
    %c75_139 = arith.constant 75 : index
    %987 = memref.load %arg2[%c75_139] : memref<100xf32, #tpu.memory_space<smem>>
    %988 = vector.broadcast %987 : f32 to vector<12x14xf32>
    %989 = arith.mulf %988, %974 : vector<12x14xf32>
    %990 = arith.addf %968, %989 : vector<12x14xf32>
    %c95_140 = arith.constant 95 : index
    %991 = memref.load %arg2[%c95_140] : memref<100xf32, #tpu.memory_space<smem>>
    %992 = vector.broadcast %991 : f32 to vector<12x14xf32>
    %993 = arith.mulf %992, %974 : vector<12x14xf32>
    %994 = arith.addf %972, %993 : vector<12x14xf32>
    %995 = vector.extract_strided_slice %906 {offsets = [4, 0, 0], sizes = [1, 12, 14], strides = [1, 1, 1]} : vector<5x12x14xf32> to vector<1x12x14xf32>
    %996 = vector.shape_cast %995 : vector<1x12x14xf32> to vector<12x14xf32>
    %c19_141 = arith.constant 19 : index
    %997 = memref.load %arg2[%c19_141] : memref<100xf32, #tpu.memory_space<smem>>
    %998 = vector.broadcast %997 : f32 to vector<12x14xf32>
    %999 = arith.mulf %998, %996 : vector<12x14xf32>
    %1000 = arith.addf %978, %999 : vector<12x14xf32>
    %c39_142 = arith.constant 39 : index
    %1001 = memref.load %arg2[%c39_142] : memref<100xf32, #tpu.memory_space<smem>>
    %1002 = vector.broadcast %1001 : f32 to vector<12x14xf32>
    %1003 = arith.mulf %1002, %996 : vector<12x14xf32>
    %1004 = arith.addf %982, %1003 : vector<12x14xf32>
    %c59_143 = arith.constant 59 : index
    %1005 = memref.load %arg2[%c59_143] : memref<100xf32, #tpu.memory_space<smem>>
    %1006 = vector.broadcast %1005 : f32 to vector<12x14xf32>
    %1007 = arith.mulf %1006, %996 : vector<12x14xf32>
    %1008 = arith.addf %986, %1007 : vector<12x14xf32>
    %c79_144 = arith.constant 79 : index
    %1009 = memref.load %arg2[%c79_144] : memref<100xf32, #tpu.memory_space<smem>>
    %1010 = vector.broadcast %1009 : f32 to vector<12x14xf32>
    %1011 = arith.mulf %1010, %996 : vector<12x14xf32>
    %1012 = arith.addf %990, %1011 : vector<12x14xf32>
    %c99_145 = arith.constant 99 : index
    %1013 = memref.load %arg2[%c99_145] : memref<100xf32, #tpu.memory_space<smem>>
    %1014 = vector.broadcast %1013 : f32 to vector<12x14xf32>
    %1015 = arith.mulf %1014, %996 : vector<12x14xf32>
    %1016 = arith.addf %994, %1015 : vector<12x14xf32>
    %c0_146 = arith.constant 0 : index
    %1017 = memref.load %arg3[%c0_146] : memref<5xf32, #tpu.memory_space<smem>>
    %1018 = vector.broadcast %1017 : f32 to vector<12x14xf32>
    %1019 = arith.addf %1000, %1018 : vector<12x14xf32>
    %c1_147 = arith.constant 1 : index
    %1020 = memref.load %arg3[%c1_147] : memref<5xf32, #tpu.memory_space<smem>>
    %1021 = vector.broadcast %1020 : f32 to vector<12x14xf32>
    %1022 = arith.addf %1004, %1021 : vector<12x14xf32>
    %c2_148 = arith.constant 2 : index
    %1023 = memref.load %arg3[%c2_148] : memref<5xf32, #tpu.memory_space<smem>>
    %1024 = vector.broadcast %1023 : f32 to vector<12x14xf32>
    %1025 = arith.addf %1008, %1024 : vector<12x14xf32>
    %c3_149 = arith.constant 3 : index
    %1026 = memref.load %arg3[%c3_149] : memref<5xf32, #tpu.memory_space<smem>>
    %1027 = vector.broadcast %1026 : f32 to vector<12x14xf32>
    %1028 = arith.addf %1012, %1027 : vector<12x14xf32>
    %c4_150 = arith.constant 4 : index
    %1029 = memref.load %arg3[%c4_150] : memref<5xf32, #tpu.memory_space<smem>>
    %1030 = vector.broadcast %1029 : f32 to vector<12x14xf32>
    %1031 = arith.addf %1016, %1030 : vector<12x14xf32>
    %1032 = math.tanh %1019 : vector<12x14xf32>
    %1033 = math.tanh %1022 : vector<12x14xf32>
    %1034 = math.tanh %1025 : vector<12x14xf32>
    %1035 = math.tanh %1028 : vector<12x14xf32>
    %1036 = math.tanh %1031 : vector<12x14xf32>
    %1037 = vector.shape_cast %1032 : vector<12x14xf32> to vector<1x12x14xf32>
    %1038 = vector.shape_cast %1033 : vector<12x14xf32> to vector<1x12x14xf32>
    %1039 = vector.shape_cast %1034 : vector<12x14xf32> to vector<1x12x14xf32>
    %1040 = vector.shape_cast %1035 : vector<12x14xf32> to vector<1x12x14xf32>
    %1041 = vector.shape_cast %1036 : vector<12x14xf32> to vector<1x12x14xf32>
    %1042 = tpu.concatenate %1037, %1038, %1039, %1040, %1041 in 0 : vector<1x12x14xf32>, vector<1x12x14xf32>, vector<1x12x14xf32>, vector<1x12x14xf32>, vector<1x12x14xf32> -> vector<5x12x14xf32>
    %c0_151 = arith.constant 0 : index
    %c2_152 = arith.constant 2 : index
    %c2_153 = arith.constant 2 : index
    %1043 = vector.load %arg10[%c0_151, %c2_152, %c2_153] : memref<5x16x18xf32, #tpu.memory_space<vmem>>, vector<5x12x14xf32>
    tpu.vector_store %arg10[%c0_151, %c2_152, %c2_153], %1042 {strides = array<i32>} : memref<5x16x18xf32, #tpu.memory_space<vmem>>, vector<5x12x14xf32>,
    %c0_154 = arith.constant 0 : index
    %c0_155 = arith.constant 0 : index
    %c0_156 = arith.constant 0 : index
    %1044 = vector.load %arg10[%c0_154, %c0_155, %c0_156] : memref<5x16x18xf32, #tpu.memory_space<vmem>>, vector<5x12x16xf32>
    %1045 = vector.extract_strided_slice %1044 {offsets = [0, 0, 0], sizes = [1, 12, 16], strides = [1, 1, 1]} : vector<5x12x16xf32> to vector<1x12x16xf32>
    %1046 = vector.shape_cast %1045 : vector<1x12x16xf32> to vector<12x16xf32>
    %c0_157 = arith.constant 0 : index
    %1047 = memref.load %arg4[%c0_157] : memref<100xf32, #tpu.memory_space<smem>>
    %1048 = vector.broadcast %1047 : f32 to vector<12x16xf32>
    %1049 = arith.mulf %1048, %1046 : vector<12x16xf32>
    %c20_158 = arith.constant 20 : index
    %1050 = memref.load %arg4[%c20_158] : memref<100xf32, #tpu.memory_space<smem>>
    %1051 = vector.broadcast %1050 : f32 to vector<12x16xf32>
    %1052 = arith.mulf %1051, %1046 : vector<12x16xf32>
    %c40_159 = arith.constant 40 : index
    %1053 = memref.load %arg4[%c40_159] : memref<100xf32, #tpu.memory_space<smem>>
    %1054 = vector.broadcast %1053 : f32 to vector<12x16xf32>
    %1055 = arith.mulf %1054, %1046 : vector<12x16xf32>
    %c60_160 = arith.constant 60 : index
    %1056 = memref.load %arg4[%c60_160] : memref<100xf32, #tpu.memory_space<smem>>
    %1057 = vector.broadcast %1056 : f32 to vector<12x16xf32>
    %1058 = arith.mulf %1057, %1046 : vector<12x16xf32>
    %c80_161 = arith.constant 80 : index
    %1059 = memref.load %arg4[%c80_161] : memref<100xf32, #tpu.memory_space<smem>>
    %1060 = vector.broadcast %1059 : f32 to vector<12x16xf32>
    %1061 = arith.mulf %1060, %1046 : vector<12x16xf32>
    %1062 = vector.extract_strided_slice %1044 {offsets = [1, 0, 0], sizes = [1, 12, 16], strides = [1, 1, 1]} : vector<5x12x16xf32> to vector<1x12x16xf32>
    %1063 = vector.shape_cast %1062 : vector<1x12x16xf32> to vector<12x16xf32>
    %c4_162 = arith.constant 4 : index
    %1064 = memref.load %arg4[%c4_162] : memref<100xf32, #tpu.memory_space<smem>>
    %1065 = vector.broadcast %1064 : f32 to vector<12x16xf32>
    %1066 = arith.mulf %1065, %1063 : vector<12x16xf32>
    %1067 = arith.addf %1049, %1066 : vector<12x16xf32>
    %c24_163 = arith.constant 24 : index
    %1068 = memref.load %arg4[%c24_163] : memref<100xf32, #tpu.memory_space<smem>>
    %1069 = vector.broadcast %1068 : f32 to vector<12x16xf32>
    %1070 = arith.mulf %1069, %1063 : vector<12x16xf32>
    %1071 = arith.addf %1052, %1070 : vector<12x16xf32>
    %c44_164 = arith.constant 44 : index
    %1072 = memref.load %arg4[%c44_164] : memref<100xf32, #tpu.memory_space<smem>>
    %1073 = vector.broadcast %1072 : f32 to vector<12x16xf32>
    %1074 = arith.mulf %1073, %1063 : vector<12x16xf32>
    %1075 = arith.addf %1055, %1074 : vector<12x16xf32>
    %c64_165 = arith.constant 64 : index
    %1076 = memref.load %arg4[%c64_165] : memref<100xf32, #tpu.memory_space<smem>>
    %1077 = vector.broadcast %1076 : f32 to vector<12x16xf32>
    %1078 = arith.mulf %1077, %1063 : vector<12x16xf32>
    %1079 = arith.addf %1058, %1078 : vector<12x16xf32>
    %c84_166 = arith.constant 84 : index
    %1080 = memref.load %arg4[%c84_166] : memref<100xf32, #tpu.memory_space<smem>>
    %1081 = vector.broadcast %1080 : f32 to vector<12x16xf32>
    %1082 = arith.mulf %1081, %1063 : vector<12x16xf32>
    %1083 = arith.addf %1061, %1082 : vector<12x16xf32>
    %1084 = vector.extract_strided_slice %1044 {offsets = [2, 0, 0], sizes = [1, 12, 16], strides = [1, 1, 1]} : vector<5x12x16xf32> to vector<1x12x16xf32>
    %1085 = vector.shape_cast %1084 : vector<1x12x16xf32> to vector<12x16xf32>
    %c8_167 = arith.constant 8 : index
    %1086 = memref.load %arg4[%c8_167] : memref<100xf32, #tpu.memory_space<smem>>
    %1087 = vector.broadcast %1086 : f32 to vector<12x16xf32>
    %1088 = arith.mulf %1087, %1085 : vector<12x16xf32>
    %1089 = arith.addf %1067, %1088 : vector<12x16xf32>
    %c28_168 = arith.constant 28 : index
    %1090 = memref.load %arg4[%c28_168] : memref<100xf32, #tpu.memory_space<smem>>
    %1091 = vector.broadcast %1090 : f32 to vector<12x16xf32>
    %1092 = arith.mulf %1091, %1085 : vector<12x16xf32>
    %1093 = arith.addf %1071, %1092 : vector<12x16xf32>
    %c48_169 = arith.constant 48 : index
    %1094 = memref.load %arg4[%c48_169] : memref<100xf32, #tpu.memory_space<smem>>
    %1095 = vector.broadcast %1094 : f32 to vector<12x16xf32>
    %1096 = arith.mulf %1095, %1085 : vector<12x16xf32>
    %1097 = arith.addf %1075, %1096 : vector<12x16xf32>
    %c68_170 = arith.constant 68 : index
    %1098 = memref.load %arg4[%c68_170] : memref<100xf32, #tpu.memory_space<smem>>
    %1099 = vector.broadcast %1098 : f32 to vector<12x16xf32>
    %1100 = arith.mulf %1099, %1085 : vector<12x16xf32>
    %1101 = arith.addf %1079, %1100 : vector<12x16xf32>
    %c88_171 = arith.constant 88 : index
    %1102 = memref.load %arg4[%c88_171] : memref<100xf32, #tpu.memory_space<smem>>
    %1103 = vector.broadcast %1102 : f32 to vector<12x16xf32>
    %1104 = arith.mulf %1103, %1085 : vector<12x16xf32>
    %1105 = arith.addf %1083, %1104 : vector<12x16xf32>
    %1106 = vector.extract_strided_slice %1044 {offsets = [3, 0, 0], sizes = [1, 12, 16], strides = [1, 1, 1]} : vector<5x12x16xf32> to vector<1x12x16xf32>
    %1107 = vector.shape_cast %1106 : vector<1x12x16xf32> to vector<12x16xf32>
    %c12_172 = arith.constant 12 : index
    %1108 = memref.load %arg4[%c12_172] : memref<100xf32, #tpu.memory_space<smem>>
    %1109 = vector.broadcast %1108 : f32 to vector<12x16xf32>
    %1110 = arith.mulf %1109, %1107 : vector<12x16xf32>
    %1111 = arith.addf %1089, %1110 : vector<12x16xf32>
    %c32_173 = arith.constant 32 : index
    %1112 = memref.load %arg4[%c32_173] : memref<100xf32, #tpu.memory_space<smem>>
    %1113 = vector.broadcast %1112 : f32 to vector<12x16xf32>
    %1114 = arith.mulf %1113, %1107 : vector<12x16xf32>
    %1115 = arith.addf %1093, %1114 : vector<12x16xf32>
    %c52_174 = arith.constant 52 : index
    %1116 = memref.load %arg4[%c52_174] : memref<100xf32, #tpu.memory_space<smem>>
    %1117 = vector.broadcast %1116 : f32 to vector<12x16xf32>
    %1118 = arith.mulf %1117, %1107 : vector<12x16xf32>
    %1119 = arith.addf %1097, %1118 : vector<12x16xf32>
    %c72_175 = arith.constant 72 : index
    %1120 = memref.load %arg4[%c72_175] : memref<100xf32, #tpu.memory_space<smem>>
    %1121 = vector.broadcast %1120 : f32 to vector<12x16xf32>
    %1122 = arith.mulf %1121, %1107 : vector<12x16xf32>
    %1123 = arith.addf %1101, %1122 : vector<12x16xf32>
    %c92_176 = arith.constant 92 : index
    %1124 = memref.load %arg4[%c92_176] : memref<100xf32, #tpu.memory_space<smem>>
    %1125 = vector.broadcast %1124 : f32 to vector<12x16xf32>
    %1126 = arith.mulf %1125, %1107 : vector<12x16xf32>
    %1127 = arith.addf %1105, %1126 : vector<12x16xf32>
    %1128 = vector.extract_strided_slice %1044 {offsets = [4, 0, 0], sizes = [1, 12, 16], strides = [1, 1, 1]} : vector<5x12x16xf32> to vector<1x12x16xf32>
    %1129 = vector.shape_cast %1128 : vector<1x12x16xf32> to vector<12x16xf32>
    %c16_177 = arith.constant 16 : index
    %1130 = memref.load %arg4[%c16_177] : memref<100xf32, #tpu.memory_space<smem>>
    %1131 = vector.broadcast %1130 : f32 to vector<12x16xf32>
    %1132 = arith.mulf %1131, %1129 : vector<12x16xf32>
    %1133 = arith.addf %1111, %1132 : vector<12x16xf32>
    %c36_178 = arith.constant 36 : index
    %1134 = memref.load %arg4[%c36_178] : memref<100xf32, #tpu.memory_space<smem>>
    %1135 = vector.broadcast %1134 : f32 to vector<12x16xf32>
    %1136 = arith.mulf %1135, %1129 : vector<12x16xf32>
    %1137 = arith.addf %1115, %1136 : vector<12x16xf32>
    %c56_179 = arith.constant 56 : index
    %1138 = memref.load %arg4[%c56_179] : memref<100xf32, #tpu.memory_space<smem>>
    %1139 = vector.broadcast %1138 : f32 to vector<12x16xf32>
    %1140 = arith.mulf %1139, %1129 : vector<12x16xf32>
    %1141 = arith.addf %1119, %1140 : vector<12x16xf32>
    %c76_180 = arith.constant 76 : index
    %1142 = memref.load %arg4[%c76_180] : memref<100xf32, #tpu.memory_space<smem>>
    %1143 = vector.broadcast %1142 : f32 to vector<12x16xf32>
    %1144 = arith.mulf %1143, %1129 : vector<12x16xf32>
    %1145 = arith.addf %1123, %1144 : vector<12x16xf32>
    %c96_181 = arith.constant 96 : index
    %1146 = memref.load %arg4[%c96_181] : memref<100xf32, #tpu.memory_space<smem>>
    %1147 = vector.broadcast %1146 : f32 to vector<12x16xf32>
    %1148 = arith.mulf %1147, %1129 : vector<12x16xf32>
    %1149 = arith.addf %1127, %1148 : vector<12x16xf32>
    %c0_182 = arith.constant 0 : index
    %c0_183 = arith.constant 0 : index
    %c2_184 = arith.constant 2 : index
    %1150 = vector.load %arg10[%c0_182, %c0_183, %c2_184] : memref<5x16x18xf32, #tpu.memory_space<vmem>>, vector<5x12x16xf32>
    %1151 = vector.extract_strided_slice %1150 {offsets = [0, 0, 0], sizes = [1, 12, 16], strides = [1, 1, 1]} : vector<5x12x16xf32> to vector<1x12x16xf32>
    %1152 = vector.shape_cast %1151 : vector<1x12x16xf32> to vector<12x16xf32>
    %c1_185 = arith.constant 1 : index
    %1153 = memref.load %arg4[%c1_185] : memref<100xf32, #tpu.memory_space<smem>>
    %1154 = vector.broadcast %1153 : f32 to vector<12x16xf32>
    %1155 = arith.mulf %1154, %1152 : vector<12x16xf32>
    %1156 = arith.addf %1133, %1155 : vector<12x16xf32>
    %c21_186 = arith.constant 21 : index
    %1157 = memref.load %arg4[%c21_186] : memref<100xf32, #tpu.memory_space<smem>>
    %1158 = vector.broadcast %1157 : f32 to vector<12x16xf32>
    %1159 = arith.mulf %1158, %1152 : vector<12x16xf32>
    %1160 = arith.addf %1137, %1159 : vector<12x16xf32>
    %c41_187 = arith.constant 41 : index
    %1161 = memref.load %arg4[%c41_187] : memref<100xf32, #tpu.memory_space<smem>>
    %1162 = vector.broadcast %1161 : f32 to vector<12x16xf32>
    %1163 = arith.mulf %1162, %1152 : vector<12x16xf32>
    %1164 = arith.addf %1141, %1163 : vector<12x16xf32>
    %c61_188 = arith.constant 61 : index
    %1165 = memref.load %arg4[%c61_188] : memref<100xf32, #tpu.memory_space<smem>>
    %1166 = vector.broadcast %1165 : f32 to vector<12x16xf32>
    %1167 = arith.mulf %1166, %1152 : vector<12x16xf32>
    %1168 = arith.addf %1145, %1167 : vector<12x16xf32>
    %c81_189 = arith.constant 81 : index
    %1169 = memref.load %arg4[%c81_189] : memref<100xf32, #tpu.memory_space<smem>>
    %1170 = vector.broadcast %1169 : f32 to vector<12x16xf32>
    %1171 = arith.mulf %1170, %1152 : vector<12x16xf32>
    %1172 = arith.addf %1149, %1171 : vector<12x16xf32>
    %1173 = vector.extract_strided_slice %1150 {offsets = [1, 0, 0], sizes = [1, 12, 16], strides = [1, 1, 1]} : vector<5x12x16xf32> to vector<1x12x16xf32>
    %1174 = vector.shape_cast %1173 : vector<1x12x16xf32> to vector<12x16xf32>
    %c5_190 = arith.constant 5 : index
    %1175 = memref.load %arg4[%c5_190] : memref<100xf32, #tpu.memory_space<smem>>
    %1176 = vector.broadcast %1175 : f32 to vector<12x16xf32>
    %1177 = arith.mulf %1176, %1174 : vector<12x16xf32>
    %1178 = arith.addf %1156, %1177 : vector<12x16xf32>
    %c25_191 = arith.constant 25 : index
    %1179 = memref.load %arg4[%c25_191] : memref<100xf32, #tpu.memory_space<smem>>
    %1180 = vector.broadcast %1179 : f32 to vector<12x16xf32>
    %1181 = arith.mulf %1180, %1174 : vector<12x16xf32>
    %1182 = arith.addf %1160, %1181 : vector<12x16xf32>
    %c45_192 = arith.constant 45 : index
    %1183 = memref.load %arg4[%c45_192] : memref<100xf32, #tpu.memory_space<smem>>
    %1184 = vector.broadcast %1183 : f32 to vector<12x16xf32>
    %1185 = arith.mulf %1184, %1174 : vector<12x16xf32>
    %1186 = arith.addf %1164, %1185 : vector<12x16xf32>
    %c65_193 = arith.constant 65 : index
    %1187 = memref.load %arg4[%c65_193] : memref<100xf32, #tpu.memory_space<smem>>
    %1188 = vector.broadcast %1187 : f32 to vector<12x16xf32>
    %1189 = arith.mulf %1188, %1174 : vector<12x16xf32>
    %1190 = arith.addf %1168, %1189 : vector<12x16xf32>
    %c85_194 = arith.constant 85 : index
    %1191 = memref.load %arg4[%c85_194] : memref<100xf32, #tpu.memory_space<smem>>
    %1192 = vector.broadcast %1191 : f32 to vector<12x16xf32>
    %1193 = arith.mulf %1192, %1174 : vector<12x16xf32>
    %1194 = arith.addf %1172, %1193 : vector<12x16xf32>
    %1195 = vector.extract_strided_slice %1150 {offsets = [2, 0, 0], sizes = [1, 12, 16], strides = [1, 1, 1]} : vector<5x12x16xf32> to vector<1x12x16xf32>
    %1196 = vector.shape_cast %1195 : vector<1x12x16xf32> to vector<12x16xf32>
    %c9_195 = arith.constant 9 : index
    %1197 = memref.load %arg4[%c9_195] : memref<100xf32, #tpu.memory_space<smem>>
    %1198 = vector.broadcast %1197 : f32 to vector<12x16xf32>
    %1199 = arith.mulf %1198, %1196 : vector<12x16xf32>
    %1200 = arith.addf %1178, %1199 : vector<12x16xf32>
    %c29_196 = arith.constant 29 : index
    %1201 = memref.load %arg4[%c29_196] : memref<100xf32, #tpu.memory_space<smem>>
    %1202 = vector.broadcast %1201 : f32 to vector<12x16xf32>
    %1203 = arith.mulf %1202, %1196 : vector<12x16xf32>
    %1204 = arith.addf %1182, %1203 : vector<12x16xf32>
    %c49_197 = arith.constant 49 : index
    %1205 = memref.load %arg4[%c49_197] : memref<100xf32, #tpu.memory_space<smem>>
    %1206 = vector.broadcast %1205 : f32 to vector<12x16xf32>
    %1207 = arith.mulf %1206, %1196 : vector<12x16xf32>
    %1208 = arith.addf %1186, %1207 : vector<12x16xf32>
    %c69_198 = arith.constant 69 : index
    %1209 = memref.load %arg4[%c69_198] : memref<100xf32, #tpu.memory_space<smem>>
    %1210 = vector.broadcast %1209 : f32 to vector<12x16xf32>
    %1211 = arith.mulf %1210, %1196 : vector<12x16xf32>
    %1212 = arith.addf %1190, %1211 : vector<12x16xf32>
    %c89_199 = arith.constant 89 : index
    %1213 = memref.load %arg4[%c89_199] : memref<100xf32, #tpu.memory_space<smem>>
    %1214 = vector.broadcast %1213 : f32 to vector<12x16xf32>
    %1215 = arith.mulf %1214, %1196 : vector<12x16xf32>
    %1216 = arith.addf %1194, %1215 : vector<12x16xf32>
    %1217 = vector.extract_strided_slice %1150 {offsets = [3, 0, 0], sizes = [1, 12, 16], strides = [1, 1, 1]} : vector<5x12x16xf32> to vector<1x12x16xf32>
    %1218 = vector.shape_cast %1217 : vector<1x12x16xf32> to vector<12x16xf32>
    %c13_200 = arith.constant 13 : index
    %1219 = memref.load %arg4[%c13_200] : memref<100xf32, #tpu.memory_space<smem>>
    %1220 = vector.broadcast %1219 : f32 to vector<12x16xf32>
    %1221 = arith.mulf %1220, %1218 : vector<12x16xf32>
    %1222 = arith.addf %1200, %1221 : vector<12x16xf32>
    %c33_201 = arith.constant 33 : index
    %1223 = memref.load %arg4[%c33_201] : memref<100xf32, #tpu.memory_space<smem>>
    %1224 = vector.broadcast %1223 : f32 to vector<12x16xf32>
    %1225 = arith.mulf %1224, %1218 : vector<12x16xf32>
    %1226 = arith.addf %1204, %1225 : vector<12x16xf32>
    %c53_202 = arith.constant 53 : index
    %1227 = memref.load %arg4[%c53_202] : memref<100xf32, #tpu.memory_space<smem>>
    %1228 = vector.broadcast %1227 : f32 to vector<12x16xf32>
    %1229 = arith.mulf %1228, %1218 : vector<12x16xf32>
    %1230 = arith.addf %1208, %1229 : vector<12x16xf32>
    %c73_203 = arith.constant 73 : index
    %1231 = memref.load %arg4[%c73_203] : memref<100xf32, #tpu.memory_space<smem>>
    %1232 = vector.broadcast %1231 : f32 to vector<12x16xf32>
    %1233 = arith.mulf %1232, %1218 : vector<12x16xf32>
    %1234 = arith.addf %1212, %1233 : vector<12x16xf32>
    %c93_204 = arith.constant 93 : index
    %1235 = memref.load %arg4[%c93_204] : memref<100xf32, #tpu.memory_space<smem>>
    %1236 = vector.broadcast %1235 : f32 to vector<12x16xf32>
    %1237 = arith.mulf %1236, %1218 : vector<12x16xf32>
    %1238 = arith.addf %1216, %1237 : vector<12x16xf32>
    %1239 = vector.extract_strided_slice %1150 {offsets = [4, 0, 0], sizes = [1, 12, 16], strides = [1, 1, 1]} : vector<5x12x16xf32> to vector<1x12x16xf32>
    %1240 = vector.shape_cast %1239 : vector<1x12x16xf32> to vector<12x16xf32>
    %c17_205 = arith.constant 17 : index
    %1241 = memref.load %arg4[%c17_205] : memref<100xf32, #tpu.memory_space<smem>>
    %1242 = vector.broadcast %1241 : f32 to vector<12x16xf32>
    %1243 = arith.mulf %1242, %1240 : vector<12x16xf32>
    %1244 = arith.addf %1222, %1243 : vector<12x16xf32>
    %c37_206 = arith.constant 37 : index
    %1245 = memref.load %arg4[%c37_206] : memref<100xf32, #tpu.memory_space<smem>>
    %1246 = vector.broadcast %1245 : f32 to vector<12x16xf32>
    %1247 = arith.mulf %1246, %1240 : vector<12x16xf32>
    %1248 = arith.addf %1226, %1247 : vector<12x16xf32>
    %c57_207 = arith.constant 57 : index
    %1249 = memref.load %arg4[%c57_207] : memref<100xf32, #tpu.memory_space<smem>>
    %1250 = vector.broadcast %1249 : f32 to vector<12x16xf32>
    %1251 = arith.mulf %1250, %1240 : vector<12x16xf32>
    %1252 = arith.addf %1230, %1251 : vector<12x16xf32>
    %c77_208 = arith.constant 77 : index
    %1253 = memref.load %arg4[%c77_208] : memref<100xf32, #tpu.memory_space<smem>>
    %1254 = vector.broadcast %1253 : f32 to vector<12x16xf32>
    %1255 = arith.mulf %1254, %1240 : vector<12x16xf32>
    %1256 = arith.addf %1234, %1255 : vector<12x16xf32>
    %c97_209 = arith.constant 97 : index
    %1257 = memref.load %arg4[%c97_209] : memref<100xf32, #tpu.memory_space<smem>>
    %1258 = vector.broadcast %1257 : f32 to vector<12x16xf32>
    %1259 = arith.mulf %1258, %1240 : vector<12x16xf32>
    %1260 = arith.addf %1238, %1259 : vector<12x16xf32>
    %c0_210 = arith.constant 0 : index
    %c2_211 = arith.constant 2 : index
    %c0_212 = arith.constant 0 : index
    %1261 = vector.load %arg10[%c0_210, %c2_211, %c0_212] : memref<5x16x18xf32, #tpu.memory_space<vmem>>, vector<5x12x16xf32>
    %1262 = vector.extract_strided_slice %1261 {offsets = [0, 0, 0], sizes = [1, 12, 16], strides = [1, 1, 1]} : vector<5x12x16xf32> to vector<1x12x16xf32>
    %1263 = vector.shape_cast %1262 : vector<1x12x16xf32> to vector<12x16xf32>
    %c2_213 = arith.constant 2 : index
    %1264 = memref.load %arg4[%c2_213] : memref<100xf32, #tpu.memory_space<smem>>
    %1265 = vector.broadcast %1264 : f32 to vector<12x16xf32>
    %1266 = arith.mulf %1265, %1263 : vector<12x16xf32>
    %1267 = arith.addf %1244, %1266 : vector<12x16xf32>
    %c22_214 = arith.constant 22 : index
    %1268 = memref.load %arg4[%c22_214] : memref<100xf32, #tpu.memory_space<smem>>
    %1269 = vector.broadcast %1268 : f32 to vector<12x16xf32>
    %1270 = arith.mulf %1269, %1263 : vector<12x16xf32>
    %1271 = arith.addf %1248, %1270 : vector<12x16xf32>
    %c42_215 = arith.constant 42 : index
    %1272 = memref.load %arg4[%c42_215] : memref<100xf32, #tpu.memory_space<smem>>
    %1273 = vector.broadcast %1272 : f32 to vector<12x16xf32>
    %1274 = arith.mulf %1273, %1263 : vector<12x16xf32>
    %1275 = arith.addf %1252, %1274 : vector<12x16xf32>
    %c62_216 = arith.constant 62 : index
    %1276 = memref.load %arg4[%c62_216] : memref<100xf32, #tpu.memory_space<smem>>
    %1277 = vector.broadcast %1276 : f32 to vector<12x16xf32>
    %1278 = arith.mulf %1277, %1263 : vector<12x16xf32>
    %1279 = arith.addf %1256, %1278 : vector<12x16xf32>
    %c82_217 = arith.constant 82 : index
    %1280 = memref.load %arg4[%c82_217] : memref<100xf32, #tpu.memory_space<smem>>
    %1281 = vector.broadcast %1280 : f32 to vector<12x16xf32>
    %1282 = arith.mulf %1281, %1263 : vector<12x16xf32>
    %1283 = arith.addf %1260, %1282 : vector<12x16xf32>
    %1284 = vector.extract_strided_slice %1261 {offsets = [1, 0, 0], sizes = [1, 12, 16], strides = [1, 1, 1]} : vector<5x12x16xf32> to vector<1x12x16xf32>
    %1285 = vector.shape_cast %1284 : vector<1x12x16xf32> to vector<12x16xf32>
    %c6_218 = arith.constant 6 : index
    %1286 = memref.load %arg4[%c6_218] : memref<100xf32, #tpu.memory_space<smem>>
    %1287 = vector.broadcast %1286 : f32 to vector<12x16xf32>
    %1288 = arith.mulf %1287, %1285 : vector<12x16xf32>
    %1289 = arith.addf %1267, %1288 : vector<12x16xf32>
    %c26_219 = arith.constant 26 : index
    %1290 = memref.load %arg4[%c26_219] : memref<100xf32, #tpu.memory_space<smem>>
    %1291 = vector.broadcast %1290 : f32 to vector<12x16xf32>
    %1292 = arith.mulf %1291, %1285 : vector<12x16xf32>
    %1293 = arith.addf %1271, %1292 : vector<12x16xf32>
    %c46_220 = arith.constant 46 : index
    %1294 = memref.load %arg4[%c46_220] : memref<100xf32, #tpu.memory_space<smem>>
    %1295 = vector.broadcast %1294 : f32 to vector<12x16xf32>
    %1296 = arith.mulf %1295, %1285 : vector<12x16xf32>
    %1297 = arith.addf %1275, %1296 : vector<12x16xf32>
    %c66_221 = arith.constant 66 : index
    %1298 = memref.load %arg4[%c66_221] : memref<100xf32, #tpu.memory_space<smem>>
    %1299 = vector.broadcast %1298 : f32 to vector<12x16xf32>
    %1300 = arith.mulf %1299, %1285 : vector<12x16xf32>
    %1301 = arith.addf %1279, %1300 : vector<12x16xf32>
    %c86_222 = arith.constant 86 : index
    %1302 = memref.load %arg4[%c86_222] : memref<100xf32, #tpu.memory_space<smem>>
    %1303 = vector.broadcast %1302 : f32 to vector<12x16xf32>
    %1304 = arith.mulf %1303, %1285 : vector<12x16xf32>
    %1305 = arith.addf %1283, %1304 : vector<12x16xf32>
    %1306 = vector.extract_strided_slice %1261 {offsets = [2, 0, 0], sizes = [1, 12, 16], strides = [1, 1, 1]} : vector<5x12x16xf32> to vector<1x12x16xf32>
    %1307 = vector.shape_cast %1306 : vector<1x12x16xf32> to vector<12x16xf32>
    %c10_223 = arith.constant 10 : index
    %1308 = memref.load %arg4[%c10_223] : memref<100xf32, #tpu.memory_space<smem>>
    %1309 = vector.broadcast %1308 : f32 to vector<12x16xf32>
    %1310 = arith.mulf %1309, %1307 : vector<12x16xf32>
    %1311 = arith.addf %1289, %1310 : vector<12x16xf32>
    %c30_224 = arith.constant 30 : index
    %1312 = memref.load %arg4[%c30_224] : memref<100xf32, #tpu.memory_space<smem>>
    %1313 = vector.broadcast %1312 : f32 to vector<12x16xf32>
    %1314 = arith.mulf %1313, %1307 : vector<12x16xf32>
    %1315 = arith.addf %1293, %1314 : vector<12x16xf32>
    %c50_225 = arith.constant 50 : index
    %1316 = memref.load %arg4[%c50_225] : memref<100xf32, #tpu.memory_space<smem>>
    %1317 = vector.broadcast %1316 : f32 to vector<12x16xf32>
    %1318 = arith.mulf %1317, %1307 : vector<12x16xf32>
    %1319 = arith.addf %1297, %1318 : vector<12x16xf32>
    %c70_226 = arith.constant 70 : index
    %1320 = memref.load %arg4[%c70_226] : memref<100xf32, #tpu.memory_space<smem>>
    %1321 = vector.broadcast %1320 : f32 to vector<12x16xf32>
    %1322 = arith.mulf %1321, %1307 : vector<12x16xf32>
    %1323 = arith.addf %1301, %1322 : vector<12x16xf32>
    %c90_227 = arith.constant 90 : index
    %1324 = memref.load %arg4[%c90_227] : memref<100xf32, #tpu.memory_space<smem>>
    %1325 = vector.broadcast %1324 : f32 to vector<12x16xf32>
    %1326 = arith.mulf %1325, %1307 : vector<12x16xf32>
    %1327 = arith.addf %1305, %1326 : vector<12x16xf32>
    %1328 = vector.extract_strided_slice %1261 {offsets = [3, 0, 0], sizes = [1, 12, 16], strides = [1, 1, 1]} : vector<5x12x16xf32> to vector<1x12x16xf32>
    %1329 = vector.shape_cast %1328 : vector<1x12x16xf32> to vector<12x16xf32>
    %c14_228 = arith.constant 14 : index
    %1330 = memref.load %arg4[%c14_228] : memref<100xf32, #tpu.memory_space<smem>>
    %1331 = vector.broadcast %1330 : f32 to vector<12x16xf32>
    %1332 = arith.mulf %1331, %1329 : vector<12x16xf32>
    %1333 = arith.addf %1311, %1332 : vector<12x16xf32>
    %c34_229 = arith.constant 34 : index
    %1334 = memref.load %arg4[%c34_229] : memref<100xf32, #tpu.memory_space<smem>>
    %1335 = vector.broadcast %1334 : f32 to vector<12x16xf32>
    %1336 = arith.mulf %1335, %1329 : vector<12x16xf32>
    %1337 = arith.addf %1315, %1336 : vector<12x16xf32>
    %c54_230 = arith.constant 54 : index
    %1338 = memref.load %arg4[%c54_230] : memref<100xf32, #tpu.memory_space<smem>>
    %1339 = vector.broadcast %1338 : f32 to vector<12x16xf32>
    %1340 = arith.mulf %1339, %1329 : vector<12x16xf32>
    %1341 = arith.addf %1319, %1340 : vector<12x16xf32>
    %c74_231 = arith.constant 74 : index
    %1342 = memref.load %arg4[%c74_231] : memref<100xf32, #tpu.memory_space<smem>>
    %1343 = vector.broadcast %1342 : f32 to vector<12x16xf32>
    %1344 = arith.mulf %1343, %1329 : vector<12x16xf32>
    %1345 = arith.addf %1323, %1344 : vector<12x16xf32>
    %c94_232 = arith.constant 94 : index
    %1346 = memref.load %arg4[%c94_232] : memref<100xf32, #tpu.memory_space<smem>>
    %1347 = vector.broadcast %1346 : f32 to vector<12x16xf32>
    %1348 = arith.mulf %1347, %1329 : vector<12x16xf32>
    %1349 = arith.addf %1327, %1348 : vector<12x16xf32>
    %1350 = vector.extract_strided_slice %1261 {offsets = [4, 0, 0], sizes = [1, 12, 16], strides = [1, 1, 1]} : vector<5x12x16xf32> to vector<1x12x16xf32>
    %1351 = vector.shape_cast %1350 : vector<1x12x16xf32> to vector<12x16xf32>
    %c18_233 = arith.constant 18 : index
    %1352 = memref.load %arg4[%c18_233] : memref<100xf32, #tpu.memory_space<smem>>
    %1353 = vector.broadcast %1352 : f32 to vector<12x16xf32>
    %1354 = arith.mulf %1353, %1351 : vector<12x16xf32>
    %1355 = arith.addf %1333, %1354 : vector<12x16xf32>
    %c38_234 = arith.constant 38 : index
    %1356 = memref.load %arg4[%c38_234] : memref<100xf32, #tpu.memory_space<smem>>
    %1357 = vector.broadcast %1356 : f32 to vector<12x16xf32>
    %1358 = arith.mulf %1357, %1351 : vector<12x16xf32>
    %1359 = arith.addf %1337, %1358 : vector<12x16xf32>
    %c58_235 = arith.constant 58 : index
    %1360 = memref.load %arg4[%c58_235] : memref<100xf32, #tpu.memory_space<smem>>
    %1361 = vector.broadcast %1360 : f32 to vector<12x16xf32>
    %1362 = arith.mulf %1361, %1351 : vector<12x16xf32>
    %1363 = arith.addf %1341, %1362 : vector<12x16xf32>
    %c78_236 = arith.constant 78 : index
    %1364 = memref.load %arg4[%c78_236] : memref<100xf32, #tpu.memory_space<smem>>
    %1365 = vector.broadcast %1364 : f32 to vector<12x16xf32>
    %1366 = arith.mulf %1365, %1351 : vector<12x16xf32>
    %1367 = arith.addf %1345, %1366 : vector<12x16xf32>
    %c98_237 = arith.constant 98 : index
    %1368 = memref.load %arg4[%c98_237] : memref<100xf32, #tpu.memory_space<smem>>
    %1369 = vector.broadcast %1368 : f32 to vector<12x16xf32>
    %1370 = arith.mulf %1369, %1351 : vector<12x16xf32>
    %1371 = arith.addf %1349, %1370 : vector<12x16xf32>
    %c0_238 = arith.constant 0 : index
    %c2_239 = arith.constant 2 : index
    %c2_240 = arith.constant 2 : index
    %1372 = vector.load %arg10[%c0_238, %c2_239, %c2_240] : memref<5x16x18xf32, #tpu.memory_space<vmem>>, vector<5x12x16xf32>
    %1373 = vector.extract_strided_slice %1372 {offsets = [0, 0, 0], sizes = [1, 12, 16], strides = [1, 1, 1]} : vector<5x12x16xf32> to vector<1x12x16xf32>
    %1374 = vector.shape_cast %1373 : vector<1x12x16xf32> to vector<12x16xf32>
    %c3_241 = arith.constant 3 : index
    %1375 = memref.load %arg4[%c3_241] : memref<100xf32, #tpu.memory_space<smem>>
    %1376 = vector.broadcast %1375 : f32 to vector<12x16xf32>
    %1377 = arith.mulf %1376, %1374 : vector<12x16xf32>
    %1378 = arith.addf %1355, %1377 : vector<12x16xf32>
    %c23_242 = arith.constant 23 : index
    %1379 = memref.load %arg4[%c23_242] : memref<100xf32, #tpu.memory_space<smem>>
    %1380 = vector.broadcast %1379 : f32 to vector<12x16xf32>
    %1381 = arith.mulf %1380, %1374 : vector<12x16xf32>
    %1382 = arith.addf %1359, %1381 : vector<12x16xf32>
    %c43_243 = arith.constant 43 : index
    %1383 = memref.load %arg4[%c43_243] : memref<100xf32, #tpu.memory_space<smem>>
    %1384 = vector.broadcast %1383 : f32 to vector<12x16xf32>
    %1385 = arith.mulf %1384, %1374 : vector<12x16xf32>
    %1386 = arith.addf %1363, %1385 : vector<12x16xf32>
    %c63_244 = arith.constant 63 : index
    %1387 = memref.load %arg4[%c63_244] : memref<100xf32, #tpu.memory_space<smem>>
    %1388 = vector.broadcast %1387 : f32 to vector<12x16xf32>
    %1389 = arith.mulf %1388, %1374 : vector<12x16xf32>
    %1390 = arith.addf %1367, %1389 : vector<12x16xf32>
    %c83_245 = arith.constant 83 : index
    %1391 = memref.load %arg4[%c83_245] : memref<100xf32, #tpu.memory_space<smem>>
    %1392 = vector.broadcast %1391 : f32 to vector<12x16xf32>
    %1393 = arith.mulf %1392, %1374 : vector<12x16xf32>
    %1394 = arith.addf %1371, %1393 : vector<12x16xf32>
    %1395 = vector.extract_strided_slice %1372 {offsets = [1, 0, 0], sizes = [1, 12, 16], strides = [1, 1, 1]} : vector<5x12x16xf32> to vector<1x12x16xf32>
    %1396 = vector.shape_cast %1395 : vector<1x12x16xf32> to vector<12x16xf32>
    %c7_246 = arith.constant 7 : index
    %1397 = memref.load %arg4[%c7_246] : memref<100xf32, #tpu.memory_space<smem>>
    %1398 = vector.broadcast %1397 : f32 to vector<12x16xf32>
    %1399 = arith.mulf %1398, %1396 : vector<12x16xf32>
    %1400 = arith.addf %1378, %1399 : vector<12x16xf32>
    %c27_247 = arith.constant 27 : index
    %1401 = memref.load %arg4[%c27_247] : memref<100xf32, #tpu.memory_space<smem>>
    %1402 = vector.broadcast %1401 : f32 to vector<12x16xf32>
    %1403 = arith.mulf %1402, %1396 : vector<12x16xf32>
    %1404 = arith.addf %1382, %1403 : vector<12x16xf32>
    %c47_248 = arith.constant 47 : index
    %1405 = memref.load %arg4[%c47_248] : memref<100xf32, #tpu.memory_space<smem>>
    %1406 = vector.broadcast %1405 : f32 to vector<12x16xf32>
    %1407 = arith.mulf %1406, %1396 : vector<12x16xf32>
    %1408 = arith.addf %1386, %1407 : vector<12x16xf32>
    %c67_249 = arith.constant 67 : index
    %1409 = memref.load %arg4[%c67_249] : memref<100xf32, #tpu.memory_space<smem>>
    %1410 = vector.broadcast %1409 : f32 to vector<12x16xf32>
    %1411 = arith.mulf %1410, %1396 : vector<12x16xf32>
    %1412 = arith.addf %1390, %1411 : vector<12x16xf32>
    %c87_250 = arith.constant 87 : index
    %1413 = memref.load %arg4[%c87_250] : memref<100xf32, #tpu.memory_space<smem>>
    %1414 = vector.broadcast %1413 : f32 to vector<12x16xf32>
    %1415 = arith.mulf %1414, %1396 : vector<12x16xf32>
    %1416 = arith.addf %1394, %1415 : vector<12x16xf32>
    %1417 = vector.extract_strided_slice %1372 {offsets = [2, 0, 0], sizes = [1, 12, 16], strides = [1, 1, 1]} : vector<5x12x16xf32> to vector<1x12x16xf32>
    %1418 = vector.shape_cast %1417 : vector<1x12x16xf32> to vector<12x16xf32>
    %c11_251 = arith.constant 11 : index
    %1419 = memref.load %arg4[%c11_251] : memref<100xf32, #tpu.memory_space<smem>>
    %1420 = vector.broadcast %1419 : f32 to vector<12x16xf32>
    %1421 = arith.mulf %1420, %1418 : vector<12x16xf32>
    %1422 = arith.addf %1400, %1421 : vector<12x16xf32>
    %c31_252 = arith.constant 31 : index
    %1423 = memref.load %arg4[%c31_252] : memref<100xf32, #tpu.memory_space<smem>>
    %1424 = vector.broadcast %1423 : f32 to vector<12x16xf32>
    %1425 = arith.mulf %1424, %1418 : vector<12x16xf32>
    %1426 = arith.addf %1404, %1425 : vector<12x16xf32>
    %c51_253 = arith.constant 51 : index
    %1427 = memref.load %arg4[%c51_253] : memref<100xf32, #tpu.memory_space<smem>>
    %1428 = vector.broadcast %1427 : f32 to vector<12x16xf32>
    %1429 = arith.mulf %1428, %1418 : vector<12x16xf32>
    %1430 = arith.addf %1408, %1429 : vector<12x16xf32>
    %c71_254 = arith.constant 71 : index
    %1431 = memref.load %arg4[%c71_254] : memref<100xf32, #tpu.memory_space<smem>>
    %1432 = vector.broadcast %1431 : f32 to vector<12x16xf32>
    %1433 = arith.mulf %1432, %1418 : vector<12x16xf32>
    %1434 = arith.addf %1412, %1433 : vector<12x16xf32>
    %c91_255 = arith.constant 91 : index
    %1435 = memref.load %arg4[%c91_255] : memref<100xf32, #tpu.memory_space<smem>>
    %1436 = vector.broadcast %1435 : f32 to vector<12x16xf32>
    %1437 = arith.mulf %1436, %1418 : vector<12x16xf32>
    %1438 = arith.addf %1416, %1437 : vector<12x16xf32>
    %1439 = vector.extract_strided_slice %1372 {offsets = [3, 0, 0], sizes = [1, 12, 16], strides = [1, 1, 1]} : vector<5x12x16xf32> to vector<1x12x16xf32>
    %1440 = vector.shape_cast %1439 : vector<1x12x16xf32> to vector<12x16xf32>
    %c15_256 = arith.constant 15 : index
    %1441 = memref.load %arg4[%c15_256] : memref<100xf32, #tpu.memory_space<smem>>
    %1442 = vector.broadcast %1441 : f32 to vector<12x16xf32>
    %1443 = arith.mulf %1442, %1440 : vector<12x16xf32>
    %1444 = arith.addf %1422, %1443 : vector<12x16xf32>
    %c35_257 = arith.constant 35 : index
    %1445 = memref.load %arg4[%c35_257] : memref<100xf32, #tpu.memory_space<smem>>
    %1446 = vector.broadcast %1445 : f32 to vector<12x16xf32>
    %1447 = arith.mulf %1446, %1440 : vector<12x16xf32>
    %1448 = arith.addf %1426, %1447 : vector<12x16xf32>
    %c55_258 = arith.constant 55 : index
    %1449 = memref.load %arg4[%c55_258] : memref<100xf32, #tpu.memory_space<smem>>
    %1450 = vector.broadcast %1449 : f32 to vector<12x16xf32>
    %1451 = arith.mulf %1450, %1440 : vector<12x16xf32>
    %1452 = arith.addf %1430, %1451 : vector<12x16xf32>
    %c75_259 = arith.constant 75 : index
    %1453 = memref.load %arg4[%c75_259] : memref<100xf32, #tpu.memory_space<smem>>
    %1454 = vector.broadcast %1453 : f32 to vector<12x16xf32>
    %1455 = arith.mulf %1454, %1440 : vector<12x16xf32>
    %1456 = arith.addf %1434, %1455 : vector<12x16xf32>
    %c95_260 = arith.constant 95 : index
    %1457 = memref.load %arg4[%c95_260] : memref<100xf32, #tpu.memory_space<smem>>
    %1458 = vector.broadcast %1457 : f32 to vector<12x16xf32>
    %1459 = arith.mulf %1458, %1440 : vector<12x16xf32>
    %1460 = arith.addf %1438, %1459 : vector<12x16xf32>
    %1461 = vector.extract_strided_slice %1372 {offsets = [4, 0, 0], sizes = [1, 12, 16], strides = [1, 1, 1]} : vector<5x12x16xf32> to vector<1x12x16xf32>
    %1462 = vector.shape_cast %1461 : vector<1x12x16xf32> to vector<12x16xf32>
    %c19_261 = arith.constant 19 : index
    %1463 = memref.load %arg4[%c19_261] : memref<100xf32, #tpu.memory_space<smem>>
    %1464 = vector.broadcast %1463 : f32 to vector<12x16xf32>
    %1465 = arith.mulf %1464, %1462 : vector<12x16xf32>
    %1466 = arith.addf %1444, %1465 : vector<12x16xf32>
    %c39_262 = arith.constant 39 : index
    %1467 = memref.load %arg4[%c39_262] : memref<100xf32, #tpu.memory_space<smem>>
    %1468 = vector.broadcast %1467 : f32 to vector<12x16xf32>
    %1469 = arith.mulf %1468, %1462 : vector<12x16xf32>
    %1470 = arith.addf %1448, %1469 : vector<12x16xf32>
    %c59_263 = arith.constant 59 : index
    %1471 = memref.load %arg4[%c59_263] : memref<100xf32, #tpu.memory_space<smem>>
    %1472 = vector.broadcast %1471 : f32 to vector<12x16xf32>
    %1473 = arith.mulf %1472, %1462 : vector<12x16xf32>
    %1474 = arith.addf %1452, %1473 : vector<12x16xf32>
    %c79_264 = arith.constant 79 : index
    %1475 = memref.load %arg4[%c79_264] : memref<100xf32, #tpu.memory_space<smem>>
    %1476 = vector.broadcast %1475 : f32 to vector<12x16xf32>
    %1477 = arith.mulf %1476, %1462 : vector<12x16xf32>
    %1478 = arith.addf %1456, %1477 : vector<12x16xf32>
    %c99_265 = arith.constant 99 : index
    %1479 = memref.load %arg4[%c99_265] : memref<100xf32, #tpu.memory_space<smem>>
    %1480 = vector.broadcast %1479 : f32 to vector<12x16xf32>
    %1481 = arith.mulf %1480, %1462 : vector<12x16xf32>
    %1482 = arith.addf %1460, %1481 : vector<12x16xf32>
    %c0_266 = arith.constant 0 : index
    %1483 = memref.load %arg5[%c0_266] : memref<5xf32, #tpu.memory_space<smem>>
    %1484 = vector.broadcast %1483 : f32 to vector<12x16xf32>
    %1485 = arith.addf %1466, %1484 : vector<12x16xf32>
    %c1_267 = arith.constant 1 : index
    %1486 = memref.load %arg5[%c1_267] : memref<5xf32, #tpu.memory_space<smem>>
    %1487 = vector.broadcast %1486 : f32 to vector<12x16xf32>
    %1488 = arith.addf %1470, %1487 : vector<12x16xf32>
    %c2_268 = arith.constant 2 : index
    %1489 = memref.load %arg5[%c2_268] : memref<5xf32, #tpu.memory_space<smem>>
    %1490 = vector.broadcast %1489 : f32 to vector<12x16xf32>
    %1491 = arith.addf %1474, %1490 : vector<12x16xf32>
    %c3_269 = arith.constant 3 : index
    %1492 = memref.load %arg5[%c3_269] : memref<5xf32, #tpu.memory_space<smem>>
    %1493 = vector.broadcast %1492 : f32 to vector<12x16xf32>
    %1494 = arith.addf %1478, %1493 : vector<12x16xf32>
    %c4_270 = arith.constant 4 : index
    %1495 = memref.load %arg5[%c4_270] : memref<5xf32, #tpu.memory_space<smem>>
    %1496 = vector.broadcast %1495 : f32 to vector<12x16xf32>
    %1497 = arith.addf %1482, %1496 : vector<12x16xf32>
    %1498 = math.tanh %1485 : vector<12x16xf32>
    %1499 = math.tanh %1488 : vector<12x16xf32>
    %1500 = math.tanh %1491 : vector<12x16xf32>
    %1501 = math.tanh %1494 : vector<12x16xf32>
    %1502 = math.tanh %1497 : vector<12x16xf32>
    %1503 = vector.shape_cast %1498 : vector<12x16xf32> to vector<1x12x16xf32>
    %1504 = vector.shape_cast %1499 : vector<12x16xf32> to vector<1x12x16xf32>
    %1505 = vector.shape_cast %1500 : vector<12x16xf32> to vector<1x12x16xf32>
    %1506 = vector.shape_cast %1501 : vector<12x16xf32> to vector<1x12x16xf32>
    %1507 = vector.shape_cast %1502 : vector<12x16xf32> to vector<1x12x16xf32>
    %1508 = tpu.concatenate %1503, %1504, %1505, %1506, %1507 in 0 : vector<1x12x16xf32>, vector<1x12x16xf32>, vector<1x12x16xf32>, vector<1x12x16xf32>, vector<1x12x16xf32> -> vector<5x12x16xf32>
    %1509 = arith.addf %1508, %577 : vector<5x12x16xf32>
    %cst_271 = arith.constant 0.000000e+00 : f32
    %1510 = vector.broadcast %cst_271 : f32 to vector<5x12x16xf32>
    %1511 = arith.maximumf %1509, %1510 : vector<5x12x16xf32>
    %c0_272 = arith.constant 0 : index
    %c0_273 = arith.constant 0 : index
    %c0_274 = arith.constant 0 : index
    %c0_275 = arith.constant 0 : index
    %1512 = vector.load %arg8[%c0_272, %c0_273, %c0_274, %c0_275] : memref<2x5x12x16xf32, #tpu.memory_space<vmem>>, vector<1x5x12x16xf32>
    %1513 = vector.shape_cast %1512 : vector<1x5x12x16xf32> to vector<5x12x16xf32>
    %1514 = vector.shape_cast %1511 : vector<5x12x16xf32> to vector<1x5x12x16xf32>
    tpu.vector_store %arg8[%c0_272, %c0_273, %c0_274, %c0_275], %1514 {strides = array<i32>} : memref<2x5x12x16xf32, #tpu.memory_space<vmem>>, vector<1x5x12x16xf32>,
    %c1_276 = arith.constant 1 : index
    %c0_277 = arith.constant 0 : index
    %c0_278 = arith.constant 0 : index
    %c0_279 = arith.constant 0 : index
    %1515 = vector.load %arg1[%c1_276, %c0_277, %c0_278, %c0_279] : memref<2x5x12x12xf32, #tpu.memory_space<vmem>>, vector<1x5x12x12xf32>
    %1516 = vector.shape_cast %1515 : vector<1x5x12x12xf32> to vector<5x12x12xf32>
    %c0_280 = arith.constant 0 : index
    %c2_281 = arith.constant 2 : index
    %c2_282 = arith.constant 2 : index
    %1517 = vector.load %arg9[%c0_280, %c2_281, %c2_282] : memref<5x16x16xf32, #tpu.memory_space<vmem>>, vector<5x12x12xf32>
    tpu.vector_store %arg9[%c0_280, %c2_281, %c2_282], %1516 {strides = array<i32>} : memref<5x16x16xf32, #tpu.memory_space<vmem>>, vector<5x12x12xf32>,
    %c0_283 = arith.constant 0 : index
    %c0_284 = arith.constant 0 : index
    %c0_285 = arith.constant 0 : index
    %1518 = vector.load %arg9[%c0_283, %c0_284, %c0_285] : memref<5x16x16xf32, #tpu.memory_space<vmem>>, vector<5x12x16xf32>
    %1519 = vector.extract_strided_slice %1518 {offsets = [0, 0, 0], sizes = [1, 12, 16], strides = [1, 1, 1]} : vector<5x12x16xf32> to vector<1x12x16xf32>
    %1520 = vector.shape_cast %1519 : vector<1x12x16xf32> to vector<12x16xf32>
    %c0_286 = arith.constant 0 : index
    %1521 = memref.load %arg6[%c0_286] : memref<125xf32, #tpu.memory_space<smem>>
    %1522 = vector.broadcast %1521 : f32 to vector<12x16xf32>
    %1523 = arith.mulf %1522, %1520 : vector<12x16xf32>
    %c25_287 = arith.constant 25 : index
    %1524 = memref.load %arg6[%c25_287] : memref<125xf32, #tpu.memory_space<smem>>
    %1525 = vector.broadcast %1524 : f32 to vector<12x16xf32>
    %1526 = arith.mulf %1525, %1520 : vector<12x16xf32>
    %c50_288 = arith.constant 50 : index
    %1527 = memref.load %arg6[%c50_288] : memref<125xf32, #tpu.memory_space<smem>>
    %1528 = vector.broadcast %1527 : f32 to vector<12x16xf32>
    %1529 = arith.mulf %1528, %1520 : vector<12x16xf32>
    %c75_289 = arith.constant 75 : index
    %1530 = memref.load %arg6[%c75_289] : memref<125xf32, #tpu.memory_space<smem>>
    %1531 = vector.broadcast %1530 : f32 to vector<12x16xf32>
    %1532 = arith.mulf %1531, %1520 : vector<12x16xf32>
    %c100_290 = arith.constant 100 : index
    %1533 = memref.load %arg6[%c100_290] : memref<125xf32, #tpu.memory_space<smem>>
    %1534 = vector.broadcast %1533 : f32 to vector<12x16xf32>
    %1535 = arith.mulf %1534, %1520 : vector<12x16xf32>
    %1536 = vector.extract_strided_slice %1518 {offsets = [1, 0, 0], sizes = [1, 12, 16], strides = [1, 1, 1]} : vector<5x12x16xf32> to vector<1x12x16xf32>
    %1537 = vector.shape_cast %1536 : vector<1x12x16xf32> to vector<12x16xf32>
    %c5_291 = arith.constant 5 : index
    %1538 = memref.load %arg6[%c5_291] : memref<125xf32, #tpu.memory_space<smem>>
    %1539 = vector.broadcast %1538 : f32 to vector<12x16xf32>
    %1540 = arith.mulf %1539, %1537 : vector<12x16xf32>
    %1541 = arith.addf %1523, %1540 : vector<12x16xf32>
    %c30_292 = arith.constant 30 : index
    %1542 = memref.load %arg6[%c30_292] : memref<125xf32, #tpu.memory_space<smem>>
    %1543 = vector.broadcast %1542 : f32 to vector<12x16xf32>
    %1544 = arith.mulf %1543, %1537 : vector<12x16xf32>
    %1545 = arith.addf %1526, %1544 : vector<12x16xf32>
    %c55_293 = arith.constant 55 : index
    %1546 = memref.load %arg6[%c55_293] : memref<125xf32, #tpu.memory_space<smem>>
    %1547 = vector.broadcast %1546 : f32 to vector<12x16xf32>
    %1548 = arith.mulf %1547, %1537 : vector<12x16xf32>
    %1549 = arith.addf %1529, %1548 : vector<12x16xf32>
    %c80_294 = arith.constant 80 : index
    %1550 = memref.load %arg6[%c80_294] : memref<125xf32, #tpu.memory_space<smem>>
    %1551 = vector.broadcast %1550 : f32 to vector<12x16xf32>
    %1552 = arith.mulf %1551, %1537 : vector<12x16xf32>
    %1553 = arith.addf %1532, %1552 : vector<12x16xf32>
    %c105_295 = arith.constant 105 : index
    %1554 = memref.load %arg6[%c105_295] : memref<125xf32, #tpu.memory_space<smem>>
    %1555 = vector.broadcast %1554 : f32 to vector<12x16xf32>
    %1556 = arith.mulf %1555, %1537 : vector<12x16xf32>
    %1557 = arith.addf %1535, %1556 : vector<12x16xf32>
    %1558 = vector.extract_strided_slice %1518 {offsets = [2, 0, 0], sizes = [1, 12, 16], strides = [1, 1, 1]} : vector<5x12x16xf32> to vector<1x12x16xf32>
    %1559 = vector.shape_cast %1558 : vector<1x12x16xf32> to vector<12x16xf32>
    %c10_296 = arith.constant 10 : index
    %1560 = memref.load %arg6[%c10_296] : memref<125xf32, #tpu.memory_space<smem>>
    %1561 = vector.broadcast %1560 : f32 to vector<12x16xf32>
    %1562 = arith.mulf %1561, %1559 : vector<12x16xf32>
    %1563 = arith.addf %1541, %1562 : vector<12x16xf32>
    %c35_297 = arith.constant 35 : index
    %1564 = memref.load %arg6[%c35_297] : memref<125xf32, #tpu.memory_space<smem>>
    %1565 = vector.broadcast %1564 : f32 to vector<12x16xf32>
    %1566 = arith.mulf %1565, %1559 : vector<12x16xf32>
    %1567 = arith.addf %1545, %1566 : vector<12x16xf32>
    %c60_298 = arith.constant 60 : index
    %1568 = memref.load %arg6[%c60_298] : memref<125xf32, #tpu.memory_space<smem>>
    %1569 = vector.broadcast %1568 : f32 to vector<12x16xf32>
    %1570 = arith.mulf %1569, %1559 : vector<12x16xf32>
    %1571 = arith.addf %1549, %1570 : vector<12x16xf32>
    %c85_299 = arith.constant 85 : index
    %1572 = memref.load %arg6[%c85_299] : memref<125xf32, #tpu.memory_space<smem>>
    %1573 = vector.broadcast %1572 : f32 to vector<12x16xf32>
    %1574 = arith.mulf %1573, %1559 : vector<12x16xf32>
    %1575 = arith.addf %1553, %1574 : vector<12x16xf32>
    %c110_300 = arith.constant 110 : index
    %1576 = memref.load %arg6[%c110_300] : memref<125xf32, #tpu.memory_space<smem>>
    %1577 = vector.broadcast %1576 : f32 to vector<12x16xf32>
    %1578 = arith.mulf %1577, %1559 : vector<12x16xf32>
    %1579 = arith.addf %1557, %1578 : vector<12x16xf32>
    %1580 = vector.extract_strided_slice %1518 {offsets = [3, 0, 0], sizes = [1, 12, 16], strides = [1, 1, 1]} : vector<5x12x16xf32> to vector<1x12x16xf32>
    %1581 = vector.shape_cast %1580 : vector<1x12x16xf32> to vector<12x16xf32>
    %c15_301 = arith.constant 15 : index
    %1582 = memref.load %arg6[%c15_301] : memref<125xf32, #tpu.memory_space<smem>>
    %1583 = vector.broadcast %1582 : f32 to vector<12x16xf32>
    %1584 = arith.mulf %1583, %1581 : vector<12x16xf32>
    %1585 = arith.addf %1563, %1584 : vector<12x16xf32>
    %c40_302 = arith.constant 40 : index
    %1586 = memref.load %arg6[%c40_302] : memref<125xf32, #tpu.memory_space<smem>>
    %1587 = vector.broadcast %1586 : f32 to vector<12x16xf32>
    %1588 = arith.mulf %1587, %1581 : vector<12x16xf32>
    %1589 = arith.addf %1567, %1588 : vector<12x16xf32>
    %c65_303 = arith.constant 65 : index
    %1590 = memref.load %arg6[%c65_303] : memref<125xf32, #tpu.memory_space<smem>>
    %1591 = vector.broadcast %1590 : f32 to vector<12x16xf32>
    %1592 = arith.mulf %1591, %1581 : vector<12x16xf32>
    %1593 = arith.addf %1571, %1592 : vector<12x16xf32>
    %c90_304 = arith.constant 90 : index
    %1594 = memref.load %arg6[%c90_304] : memref<125xf32, #tpu.memory_space<smem>>
    %1595 = vector.broadcast %1594 : f32 to vector<12x16xf32>
    %1596 = arith.mulf %1595, %1581 : vector<12x16xf32>
    %1597 = arith.addf %1575, %1596 : vector<12x16xf32>
    %c115_305 = arith.constant 115 : index
    %1598 = memref.load %arg6[%c115_305] : memref<125xf32, #tpu.memory_space<smem>>
    %1599 = vector.broadcast %1598 : f32 to vector<12x16xf32>
    %1600 = arith.mulf %1599, %1581 : vector<12x16xf32>
    %1601 = arith.addf %1579, %1600 : vector<12x16xf32>
    %1602 = vector.extract_strided_slice %1518 {offsets = [4, 0, 0], sizes = [1, 12, 16], strides = [1, 1, 1]} : vector<5x12x16xf32> to vector<1x12x16xf32>
    %1603 = vector.shape_cast %1602 : vector<1x12x16xf32> to vector<12x16xf32>
    %c20_306 = arith.constant 20 : index
    %1604 = memref.load %arg6[%c20_306] : memref<125xf32, #tpu.memory_space<smem>>
    %1605 = vector.broadcast %1604 : f32 to vector<12x16xf32>
    %1606 = arith.mulf %1605, %1603 : vector<12x16xf32>
    %1607 = arith.addf %1585, %1606 : vector<12x16xf32>
    %c45_307 = arith.constant 45 : index
    %1608 = memref.load %arg6[%c45_307] : memref<125xf32, #tpu.memory_space<smem>>
    %1609 = vector.broadcast %1608 : f32 to vector<12x16xf32>
    %1610 = arith.mulf %1609, %1603 : vector<12x16xf32>
    %1611 = arith.addf %1589, %1610 : vector<12x16xf32>
    %c70_308 = arith.constant 70 : index
    %1612 = memref.load %arg6[%c70_308] : memref<125xf32, #tpu.memory_space<smem>>
    %1613 = vector.broadcast %1612 : f32 to vector<12x16xf32>
    %1614 = arith.mulf %1613, %1603 : vector<12x16xf32>
    %1615 = arith.addf %1593, %1614 : vector<12x16xf32>
    %c95_309 = arith.constant 95 : index
    %1616 = memref.load %arg6[%c95_309] : memref<125xf32, #tpu.memory_space<smem>>
    %1617 = vector.broadcast %1616 : f32 to vector<12x16xf32>
    %1618 = arith.mulf %1617, %1603 : vector<12x16xf32>
    %1619 = arith.addf %1597, %1618 : vector<12x16xf32>
    %c120_310 = arith.constant 120 : index
    %1620 = memref.load %arg6[%c120_310] : memref<125xf32, #tpu.memory_space<smem>>
    %1621 = vector.broadcast %1620 : f32 to vector<12x16xf32>
    %1622 = arith.mulf %1621, %1603 : vector<12x16xf32>
    %1623 = arith.addf %1601, %1622 : vector<12x16xf32>
    %c0_311 = arith.constant 0 : index
    %c1_312 = arith.constant 1 : index
    %c0_313 = arith.constant 0 : index
    %1624 = vector.load %arg9[%c0_311, %c1_312, %c0_313] : memref<5x16x16xf32, #tpu.memory_space<vmem>>, vector<5x12x16xf32>
    %1625 = vector.extract_strided_slice %1624 {offsets = [0, 0, 0], sizes = [1, 12, 16], strides = [1, 1, 1]} : vector<5x12x16xf32> to vector<1x12x16xf32>
    %1626 = vector.shape_cast %1625 : vector<1x12x16xf32> to vector<12x16xf32>
    %c1_314 = arith.constant 1 : index
    %1627 = memref.load %arg6[%c1_314] : memref<125xf32, #tpu.memory_space<smem>>
    %1628 = vector.broadcast %1627 : f32 to vector<12x16xf32>
    %1629 = arith.mulf %1628, %1626 : vector<12x16xf32>
    %1630 = arith.addf %1607, %1629 : vector<12x16xf32>
    %c26_315 = arith.constant 26 : index
    %1631 = memref.load %arg6[%c26_315] : memref<125xf32, #tpu.memory_space<smem>>
    %1632 = vector.broadcast %1631 : f32 to vector<12x16xf32>
    %1633 = arith.mulf %1632, %1626 : vector<12x16xf32>
    %1634 = arith.addf %1611, %1633 : vector<12x16xf32>
    %c51_316 = arith.constant 51 : index
    %1635 = memref.load %arg6[%c51_316] : memref<125xf32, #tpu.memory_space<smem>>
    %1636 = vector.broadcast %1635 : f32 to vector<12x16xf32>
    %1637 = arith.mulf %1636, %1626 : vector<12x16xf32>
    %1638 = arith.addf %1615, %1637 : vector<12x16xf32>
    %c76_317 = arith.constant 76 : index
    %1639 = memref.load %arg6[%c76_317] : memref<125xf32, #tpu.memory_space<smem>>
    %1640 = vector.broadcast %1639 : f32 to vector<12x16xf32>
    %1641 = arith.mulf %1640, %1626 : vector<12x16xf32>
    %1642 = arith.addf %1619, %1641 : vector<12x16xf32>
    %c101_318 = arith.constant 101 : index
    %1643 = memref.load %arg6[%c101_318] : memref<125xf32, #tpu.memory_space<smem>>
    %1644 = vector.broadcast %1643 : f32 to vector<12x16xf32>
    %1645 = arith.mulf %1644, %1626 : vector<12x16xf32>
    %1646 = arith.addf %1623, %1645 : vector<12x16xf32>
    %1647 = vector.extract_strided_slice %1624 {offsets = [1, 0, 0], sizes = [1, 12, 16], strides = [1, 1, 1]} : vector<5x12x16xf32> to vector<1x12x16xf32>
    %1648 = vector.shape_cast %1647 : vector<1x12x16xf32> to vector<12x16xf32>
    %c6_319 = arith.constant 6 : index
    %1649 = memref.load %arg6[%c6_319] : memref<125xf32, #tpu.memory_space<smem>>
    %1650 = vector.broadcast %1649 : f32 to vector<12x16xf32>
    %1651 = arith.mulf %1650, %1648 : vector<12x16xf32>
    %1652 = arith.addf %1630, %1651 : vector<12x16xf32>
    %c31_320 = arith.constant 31 : index
    %1653 = memref.load %arg6[%c31_320] : memref<125xf32, #tpu.memory_space<smem>>
    %1654 = vector.broadcast %1653 : f32 to vector<12x16xf32>
    %1655 = arith.mulf %1654, %1648 : vector<12x16xf32>
    %1656 = arith.addf %1634, %1655 : vector<12x16xf32>
    %c56_321 = arith.constant 56 : index
    %1657 = memref.load %arg6[%c56_321] : memref<125xf32, #tpu.memory_space<smem>>
    %1658 = vector.broadcast %1657 : f32 to vector<12x16xf32>
    %1659 = arith.mulf %1658, %1648 : vector<12x16xf32>
    %1660 = arith.addf %1638, %1659 : vector<12x16xf32>
    %c81_322 = arith.constant 81 : index
    %1661 = memref.load %arg6[%c81_322] : memref<125xf32, #tpu.memory_space<smem>>
    %1662 = vector.broadcast %1661 : f32 to vector<12x16xf32>
    %1663 = arith.mulf %1662, %1648 : vector<12x16xf32>
    %1664 = arith.addf %1642, %1663 : vector<12x16xf32>
    %c106_323 = arith.constant 106 : index
    %1665 = memref.load %arg6[%c106_323] : memref<125xf32, #tpu.memory_space<smem>>
    %1666 = vector.broadcast %1665 : f32 to vector<12x16xf32>
    %1667 = arith.mulf %1666, %1648 : vector<12x16xf32>
    %1668 = arith.addf %1646, %1667 : vector<12x16xf32>
    %1669 = vector.extract_strided_slice %1624 {offsets = [2, 0, 0], sizes = [1, 12, 16], strides = [1, 1, 1]} : vector<5x12x16xf32> to vector<1x12x16xf32>
    %1670 = vector.shape_cast %1669 : vector<1x12x16xf32> to vector<12x16xf32>
    %c11_324 = arith.constant 11 : index
    %1671 = memref.load %arg6[%c11_324] : memref<125xf32, #tpu.memory_space<smem>>
    %1672 = vector.broadcast %1671 : f32 to vector<12x16xf32>
    %1673 = arith.mulf %1672, %1670 : vector<12x16xf32>
    %1674 = arith.addf %1652, %1673 : vector<12x16xf32>
    %c36_325 = arith.constant 36 : index
    %1675 = memref.load %arg6[%c36_325] : memref<125xf32, #tpu.memory_space<smem>>
    %1676 = vector.broadcast %1675 : f32 to vector<12x16xf32>
    %1677 = arith.mulf %1676, %1670 : vector<12x16xf32>
    %1678 = arith.addf %1656, %1677 : vector<12x16xf32>
    %c61_326 = arith.constant 61 : index
    %1679 = memref.load %arg6[%c61_326] : memref<125xf32, #tpu.memory_space<smem>>
    %1680 = vector.broadcast %1679 : f32 to vector<12x16xf32>
    %1681 = arith.mulf %1680, %1670 : vector<12x16xf32>
    %1682 = arith.addf %1660, %1681 : vector<12x16xf32>
    %c86_327 = arith.constant 86 : index
    %1683 = memref.load %arg6[%c86_327] : memref<125xf32, #tpu.memory_space<smem>>
    %1684 = vector.broadcast %1683 : f32 to vector<12x16xf32>
    %1685 = arith.mulf %1684, %1670 : vector<12x16xf32>
    %1686 = arith.addf %1664, %1685 : vector<12x16xf32>
    %c111_328 = arith.constant 111 : index
    %1687 = memref.load %arg6[%c111_328] : memref<125xf32, #tpu.memory_space<smem>>
    %1688 = vector.broadcast %1687 : f32 to vector<12x16xf32>
    %1689 = arith.mulf %1688, %1670 : vector<12x16xf32>
    %1690 = arith.addf %1668, %1689 : vector<12x16xf32>
    %1691 = vector.extract_strided_slice %1624 {offsets = [3, 0, 0], sizes = [1, 12, 16], strides = [1, 1, 1]} : vector<5x12x16xf32> to vector<1x12x16xf32>
    %1692 = vector.shape_cast %1691 : vector<1x12x16xf32> to vector<12x16xf32>
    %c16_329 = arith.constant 16 : index
    %1693 = memref.load %arg6[%c16_329] : memref<125xf32, #tpu.memory_space<smem>>
    %1694 = vector.broadcast %1693 : f32 to vector<12x16xf32>
    %1695 = arith.mulf %1694, %1692 : vector<12x16xf32>
    %1696 = arith.addf %1674, %1695 : vector<12x16xf32>
    %c41_330 = arith.constant 41 : index
    %1697 = memref.load %arg6[%c41_330] : memref<125xf32, #tpu.memory_space<smem>>
    %1698 = vector.broadcast %1697 : f32 to vector<12x16xf32>
    %1699 = arith.mulf %1698, %1692 : vector<12x16xf32>
    %1700 = arith.addf %1678, %1699 : vector<12x16xf32>
    %c66_331 = arith.constant 66 : index
    %1701 = memref.load %arg6[%c66_331] : memref<125xf32, #tpu.memory_space<smem>>
    %1702 = vector.broadcast %1701 : f32 to vector<12x16xf32>
    %1703 = arith.mulf %1702, %1692 : vector<12x16xf32>
    %1704 = arith.addf %1682, %1703 : vector<12x16xf32>
    %c91_332 = arith.constant 91 : index
    %1705 = memref.load %arg6[%c91_332] : memref<125xf32, #tpu.memory_space<smem>>
    %1706 = vector.broadcast %1705 : f32 to vector<12x16xf32>
    %1707 = arith.mulf %1706, %1692 : vector<12x16xf32>
    %1708 = arith.addf %1686, %1707 : vector<12x16xf32>
    %c116_333 = arith.constant 116 : index
    %1709 = memref.load %arg6[%c116_333] : memref<125xf32, #tpu.memory_space<smem>>
    %1710 = vector.broadcast %1709 : f32 to vector<12x16xf32>
    %1711 = arith.mulf %1710, %1692 : vector<12x16xf32>
    %1712 = arith.addf %1690, %1711 : vector<12x16xf32>
    %1713 = vector.extract_strided_slice %1624 {offsets = [4, 0, 0], sizes = [1, 12, 16], strides = [1, 1, 1]} : vector<5x12x16xf32> to vector<1x12x16xf32>
    %1714 = vector.shape_cast %1713 : vector<1x12x16xf32> to vector<12x16xf32>
    %c21_334 = arith.constant 21 : index
    %1715 = memref.load %arg6[%c21_334] : memref<125xf32, #tpu.memory_space<smem>>
    %1716 = vector.broadcast %1715 : f32 to vector<12x16xf32>
    %1717 = arith.mulf %1716, %1714 : vector<12x16xf32>
    %1718 = arith.addf %1696, %1717 : vector<12x16xf32>
    %c46_335 = arith.constant 46 : index
    %1719 = memref.load %arg6[%c46_335] : memref<125xf32, #tpu.memory_space<smem>>
    %1720 = vector.broadcast %1719 : f32 to vector<12x16xf32>
    %1721 = arith.mulf %1720, %1714 : vector<12x16xf32>
    %1722 = arith.addf %1700, %1721 : vector<12x16xf32>
    %c71_336 = arith.constant 71 : index
    %1723 = memref.load %arg6[%c71_336] : memref<125xf32, #tpu.memory_space<smem>>
    %1724 = vector.broadcast %1723 : f32 to vector<12x16xf32>
    %1725 = arith.mulf %1724, %1714 : vector<12x16xf32>
    %1726 = arith.addf %1704, %1725 : vector<12x16xf32>
    %c96_337 = arith.constant 96 : index
    %1727 = memref.load %arg6[%c96_337] : memref<125xf32, #tpu.memory_space<smem>>
    %1728 = vector.broadcast %1727 : f32 to vector<12x16xf32>
    %1729 = arith.mulf %1728, %1714 : vector<12x16xf32>
    %1730 = arith.addf %1708, %1729 : vector<12x16xf32>
    %c121_338 = arith.constant 121 : index
    %1731 = memref.load %arg6[%c121_338] : memref<125xf32, #tpu.memory_space<smem>>
    %1732 = vector.broadcast %1731 : f32 to vector<12x16xf32>
    %1733 = arith.mulf %1732, %1714 : vector<12x16xf32>
    %1734 = arith.addf %1712, %1733 : vector<12x16xf32>
    %c0_339 = arith.constant 0 : index
    %c2_340 = arith.constant 2 : index
    %c0_341 = arith.constant 0 : index
    %1735 = vector.load %arg9[%c0_339, %c2_340, %c0_341] : memref<5x16x16xf32, #tpu.memory_space<vmem>>, vector<5x12x16xf32>
    %1736 = vector.extract_strided_slice %1735 {offsets = [0, 0, 0], sizes = [1, 12, 16], strides = [1, 1, 1]} : vector<5x12x16xf32> to vector<1x12x16xf32>
    %1737 = vector.shape_cast %1736 : vector<1x12x16xf32> to vector<12x16xf32>
    %c2_342 = arith.constant 2 : index
    %1738 = memref.load %arg6[%c2_342] : memref<125xf32, #tpu.memory_space<smem>>
    %1739 = vector.broadcast %1738 : f32 to vector<12x16xf32>
    %1740 = arith.mulf %1739, %1737 : vector<12x16xf32>
    %1741 = arith.addf %1718, %1740 : vector<12x16xf32>
    %c27_343 = arith.constant 27 : index
    %1742 = memref.load %arg6[%c27_343] : memref<125xf32, #tpu.memory_space<smem>>
    %1743 = vector.broadcast %1742 : f32 to vector<12x16xf32>
    %1744 = arith.mulf %1743, %1737 : vector<12x16xf32>
    %1745 = arith.addf %1722, %1744 : vector<12x16xf32>
    %c52_344 = arith.constant 52 : index
    %1746 = memref.load %arg6[%c52_344] : memref<125xf32, #tpu.memory_space<smem>>
    %1747 = vector.broadcast %1746 : f32 to vector<12x16xf32>
    %1748 = arith.mulf %1747, %1737 : vector<12x16xf32>
    %1749 = arith.addf %1726, %1748 : vector<12x16xf32>
    %c77_345 = arith.constant 77 : index
    %1750 = memref.load %arg6[%c77_345] : memref<125xf32, #tpu.memory_space<smem>>
    %1751 = vector.broadcast %1750 : f32 to vector<12x16xf32>
    %1752 = arith.mulf %1751, %1737 : vector<12x16xf32>
    %1753 = arith.addf %1730, %1752 : vector<12x16xf32>
    %c102_346 = arith.constant 102 : index
    %1754 = memref.load %arg6[%c102_346] : memref<125xf32, #tpu.memory_space<smem>>
    %1755 = vector.broadcast %1754 : f32 to vector<12x16xf32>
    %1756 = arith.mulf %1755, %1737 : vector<12x16xf32>
    %1757 = arith.addf %1734, %1756 : vector<12x16xf32>
    %1758 = vector.extract_strided_slice %1735 {offsets = [1, 0, 0], sizes = [1, 12, 16], strides = [1, 1, 1]} : vector<5x12x16xf32> to vector<1x12x16xf32>
    %1759 = vector.shape_cast %1758 : vector<1x12x16xf32> to vector<12x16xf32>
    %c7_347 = arith.constant 7 : index
    %1760 = memref.load %arg6[%c7_347] : memref<125xf32, #tpu.memory_space<smem>>
    %1761 = vector.broadcast %1760 : f32 to vector<12x16xf32>
    %1762 = arith.mulf %1761, %1759 : vector<12x16xf32>
    %1763 = arith.addf %1741, %1762 : vector<12x16xf32>
    %c32_348 = arith.constant 32 : index
    %1764 = memref.load %arg6[%c32_348] : memref<125xf32, #tpu.memory_space<smem>>
    %1765 = vector.broadcast %1764 : f32 to vector<12x16xf32>
    %1766 = arith.mulf %1765, %1759 : vector<12x16xf32>
    %1767 = arith.addf %1745, %1766 : vector<12x16xf32>
    %c57_349 = arith.constant 57 : index
    %1768 = memref.load %arg6[%c57_349] : memref<125xf32, #tpu.memory_space<smem>>
    %1769 = vector.broadcast %1768 : f32 to vector<12x16xf32>
    %1770 = arith.mulf %1769, %1759 : vector<12x16xf32>
    %1771 = arith.addf %1749, %1770 : vector<12x16xf32>
    %c82_350 = arith.constant 82 : index
    %1772 = memref.load %arg6[%c82_350] : memref<125xf32, #tpu.memory_space<smem>>
    %1773 = vector.broadcast %1772 : f32 to vector<12x16xf32>
    %1774 = arith.mulf %1773, %1759 : vector<12x16xf32>
    %1775 = arith.addf %1753, %1774 : vector<12x16xf32>
    %c107_351 = arith.constant 107 : index
    %1776 = memref.load %arg6[%c107_351] : memref<125xf32, #tpu.memory_space<smem>>
    %1777 = vector.broadcast %1776 : f32 to vector<12x16xf32>
    %1778 = arith.mulf %1777, %1759 : vector<12x16xf32>
    %1779 = arith.addf %1757, %1778 : vector<12x16xf32>
    %1780 = vector.extract_strided_slice %1735 {offsets = [2, 0, 0], sizes = [1, 12, 16], strides = [1, 1, 1]} : vector<5x12x16xf32> to vector<1x12x16xf32>
    %1781 = vector.shape_cast %1780 : vector<1x12x16xf32> to vector<12x16xf32>
    %c12_352 = arith.constant 12 : index
    %1782 = memref.load %arg6[%c12_352] : memref<125xf32, #tpu.memory_space<smem>>
    %1783 = vector.broadcast %1782 : f32 to vector<12x16xf32>
    %1784 = arith.mulf %1783, %1781 : vector<12x16xf32>
    %1785 = arith.addf %1763, %1784 : vector<12x16xf32>
    %c37_353 = arith.constant 37 : index
    %1786 = memref.load %arg6[%c37_353] : memref<125xf32, #tpu.memory_space<smem>>
    %1787 = vector.broadcast %1786 : f32 to vector<12x16xf32>
    %1788 = arith.mulf %1787, %1781 : vector<12x16xf32>
    %1789 = arith.addf %1767, %1788 : vector<12x16xf32>
    %c62_354 = arith.constant 62 : index
    %1790 = memref.load %arg6[%c62_354] : memref<125xf32, #tpu.memory_space<smem>>
    %1791 = vector.broadcast %1790 : f32 to vector<12x16xf32>
    %1792 = arith.mulf %1791, %1781 : vector<12x16xf32>
    %1793 = arith.addf %1771, %1792 : vector<12x16xf32>
    %c87_355 = arith.constant 87 : index
    %1794 = memref.load %arg6[%c87_355] : memref<125xf32, #tpu.memory_space<smem>>
    %1795 = vector.broadcast %1794 : f32 to vector<12x16xf32>
    %1796 = arith.mulf %1795, %1781 : vector<12x16xf32>
    %1797 = arith.addf %1775, %1796 : vector<12x16xf32>
    %c112_356 = arith.constant 112 : index
    %1798 = memref.load %arg6[%c112_356] : memref<125xf32, #tpu.memory_space<smem>>
    %1799 = vector.broadcast %1798 : f32 to vector<12x16xf32>
    %1800 = arith.mulf %1799, %1781 : vector<12x16xf32>
    %1801 = arith.addf %1779, %1800 : vector<12x16xf32>
    %1802 = vector.extract_strided_slice %1735 {offsets = [3, 0, 0], sizes = [1, 12, 16], strides = [1, 1, 1]} : vector<5x12x16xf32> to vector<1x12x16xf32>
    %1803 = vector.shape_cast %1802 : vector<1x12x16xf32> to vector<12x16xf32>
    %c17_357 = arith.constant 17 : index
    %1804 = memref.load %arg6[%c17_357] : memref<125xf32, #tpu.memory_space<smem>>
    %1805 = vector.broadcast %1804 : f32 to vector<12x16xf32>
    %1806 = arith.mulf %1805, %1803 : vector<12x16xf32>
    %1807 = arith.addf %1785, %1806 : vector<12x16xf32>
    %c42_358 = arith.constant 42 : index
    %1808 = memref.load %arg6[%c42_358] : memref<125xf32, #tpu.memory_space<smem>>
    %1809 = vector.broadcast %1808 : f32 to vector<12x16xf32>
    %1810 = arith.mulf %1809, %1803 : vector<12x16xf32>
    %1811 = arith.addf %1789, %1810 : vector<12x16xf32>
    %c67_359 = arith.constant 67 : index
    %1812 = memref.load %arg6[%c67_359] : memref<125xf32, #tpu.memory_space<smem>>
    %1813 = vector.broadcast %1812 : f32 to vector<12x16xf32>
    %1814 = arith.mulf %1813, %1803 : vector<12x16xf32>
    %1815 = arith.addf %1793, %1814 : vector<12x16xf32>
    %c92_360 = arith.constant 92 : index
    %1816 = memref.load %arg6[%c92_360] : memref<125xf32, #tpu.memory_space<smem>>
    %1817 = vector.broadcast %1816 : f32 to vector<12x16xf32>
    %1818 = arith.mulf %1817, %1803 : vector<12x16xf32>
    %1819 = arith.addf %1797, %1818 : vector<12x16xf32>
    %c117_361 = arith.constant 117 : index
    %1820 = memref.load %arg6[%c117_361] : memref<125xf32, #tpu.memory_space<smem>>
    %1821 = vector.broadcast %1820 : f32 to vector<12x16xf32>
    %1822 = arith.mulf %1821, %1803 : vector<12x16xf32>
    %1823 = arith.addf %1801, %1822 : vector<12x16xf32>
    %1824 = vector.extract_strided_slice %1735 {offsets = [4, 0, 0], sizes = [1, 12, 16], strides = [1, 1, 1]} : vector<5x12x16xf32> to vector<1x12x16xf32>
    %1825 = vector.shape_cast %1824 : vector<1x12x16xf32> to vector<12x16xf32>
    %c22_362 = arith.constant 22 : index
    %1826 = memref.load %arg6[%c22_362] : memref<125xf32, #tpu.memory_space<smem>>
    %1827 = vector.broadcast %1826 : f32 to vector<12x16xf32>
    %1828 = arith.mulf %1827, %1825 : vector<12x16xf32>
    %1829 = arith.addf %1807, %1828 : vector<12x16xf32>
    %c47_363 = arith.constant 47 : index
    %1830 = memref.load %arg6[%c47_363] : memref<125xf32, #tpu.memory_space<smem>>
    %1831 = vector.broadcast %1830 : f32 to vector<12x16xf32>
    %1832 = arith.mulf %1831, %1825 : vector<12x16xf32>
    %1833 = arith.addf %1811, %1832 : vector<12x16xf32>
    %c72_364 = arith.constant 72 : index
    %1834 = memref.load %arg6[%c72_364] : memref<125xf32, #tpu.memory_space<smem>>
    %1835 = vector.broadcast %1834 : f32 to vector<12x16xf32>
    %1836 = arith.mulf %1835, %1825 : vector<12x16xf32>
    %1837 = arith.addf %1815, %1836 : vector<12x16xf32>
    %c97_365 = arith.constant 97 : index
    %1838 = memref.load %arg6[%c97_365] : memref<125xf32, #tpu.memory_space<smem>>
    %1839 = vector.broadcast %1838 : f32 to vector<12x16xf32>
    %1840 = arith.mulf %1839, %1825 : vector<12x16xf32>
    %1841 = arith.addf %1819, %1840 : vector<12x16xf32>
    %c122_366 = arith.constant 122 : index
    %1842 = memref.load %arg6[%c122_366] : memref<125xf32, #tpu.memory_space<smem>>
    %1843 = vector.broadcast %1842 : f32 to vector<12x16xf32>
    %1844 = arith.mulf %1843, %1825 : vector<12x16xf32>
    %1845 = arith.addf %1823, %1844 : vector<12x16xf32>
    %c0_367 = arith.constant 0 : index
    %c3_368 = arith.constant 3 : index
    %c0_369 = arith.constant 0 : index
    %1846 = vector.load %arg9[%c0_367, %c3_368, %c0_369] : memref<5x16x16xf32, #tpu.memory_space<vmem>>, vector<5x12x16xf32>
    %1847 = vector.extract_strided_slice %1846 {offsets = [0, 0, 0], sizes = [1, 12, 16], strides = [1, 1, 1]} : vector<5x12x16xf32> to vector<1x12x16xf32>
    %1848 = vector.shape_cast %1847 : vector<1x12x16xf32> to vector<12x16xf32>
    %c3_370 = arith.constant 3 : index
    %1849 = memref.load %arg6[%c3_370] : memref<125xf32, #tpu.memory_space<smem>>
    %1850 = vector.broadcast %1849 : f32 to vector<12x16xf32>
    %1851 = arith.mulf %1850, %1848 : vector<12x16xf32>
    %1852 = arith.addf %1829, %1851 : vector<12x16xf32>
    %c28_371 = arith.constant 28 : index
    %1853 = memref.load %arg6[%c28_371] : memref<125xf32, #tpu.memory_space<smem>>
    %1854 = vector.broadcast %1853 : f32 to vector<12x16xf32>
    %1855 = arith.mulf %1854, %1848 : vector<12x16xf32>
    %1856 = arith.addf %1833, %1855 : vector<12x16xf32>
    %c53_372 = arith.constant 53 : index
    %1857 = memref.load %arg6[%c53_372] : memref<125xf32, #tpu.memory_space<smem>>
    %1858 = vector.broadcast %1857 : f32 to vector<12x16xf32>
    %1859 = arith.mulf %1858, %1848 : vector<12x16xf32>
    %1860 = arith.addf %1837, %1859 : vector<12x16xf32>
    %c78_373 = arith.constant 78 : index
    %1861 = memref.load %arg6[%c78_373] : memref<125xf32, #tpu.memory_space<smem>>
    %1862 = vector.broadcast %1861 : f32 to vector<12x16xf32>
    %1863 = arith.mulf %1862, %1848 : vector<12x16xf32>
    %1864 = arith.addf %1841, %1863 : vector<12x16xf32>
    %c103_374 = arith.constant 103 : index
    %1865 = memref.load %arg6[%c103_374] : memref<125xf32, #tpu.memory_space<smem>>
    %1866 = vector.broadcast %1865 : f32 to vector<12x16xf32>
    %1867 = arith.mulf %1866, %1848 : vector<12x16xf32>
    %1868 = arith.addf %1845, %1867 : vector<12x16xf32>
    %1869 = vector.extract_strided_slice %1846 {offsets = [1, 0, 0], sizes = [1, 12, 16], strides = [1, 1, 1]} : vector<5x12x16xf32> to vector<1x12x16xf32>
    %1870 = vector.shape_cast %1869 : vector<1x12x16xf32> to vector<12x16xf32>
    %c8_375 = arith.constant 8 : index
    %1871 = memref.load %arg6[%c8_375] : memref<125xf32, #tpu.memory_space<smem>>
    %1872 = vector.broadcast %1871 : f32 to vector<12x16xf32>
    %1873 = arith.mulf %1872, %1870 : vector<12x16xf32>
    %1874 = arith.addf %1852, %1873 : vector<12x16xf32>
    %c33_376 = arith.constant 33 : index
    %1875 = memref.load %arg6[%c33_376] : memref<125xf32, #tpu.memory_space<smem>>
    %1876 = vector.broadcast %1875 : f32 to vector<12x16xf32>
    %1877 = arith.mulf %1876, %1870 : vector<12x16xf32>
    %1878 = arith.addf %1856, %1877 : vector<12x16xf32>
    %c58_377 = arith.constant 58 : index
    %1879 = memref.load %arg6[%c58_377] : memref<125xf32, #tpu.memory_space<smem>>
    %1880 = vector.broadcast %1879 : f32 to vector<12x16xf32>
    %1881 = arith.mulf %1880, %1870 : vector<12x16xf32>
    %1882 = arith.addf %1860, %1881 : vector<12x16xf32>
    %c83_378 = arith.constant 83 : index
    %1883 = memref.load %arg6[%c83_378] : memref<125xf32, #tpu.memory_space<smem>>
    %1884 = vector.broadcast %1883 : f32 to vector<12x16xf32>
    %1885 = arith.mulf %1884, %1870 : vector<12x16xf32>
    %1886 = arith.addf %1864, %1885 : vector<12x16xf32>
    %c108_379 = arith.constant 108 : index
    %1887 = memref.load %arg6[%c108_379] : memref<125xf32, #tpu.memory_space<smem>>
    %1888 = vector.broadcast %1887 : f32 to vector<12x16xf32>
    %1889 = arith.mulf %1888, %1870 : vector<12x16xf32>
    %1890 = arith.addf %1868, %1889 : vector<12x16xf32>
    %1891 = vector.extract_strided_slice %1846 {offsets = [2, 0, 0], sizes = [1, 12, 16], strides = [1, 1, 1]} : vector<5x12x16xf32> to vector<1x12x16xf32>
    %1892 = vector.shape_cast %1891 : vector<1x12x16xf32> to vector<12x16xf32>
    %c13_380 = arith.constant 13 : index
    %1893 = memref.load %arg6[%c13_380] : memref<125xf32, #tpu.memory_space<smem>>
    %1894 = vector.broadcast %1893 : f32 to vector<12x16xf32>
    %1895 = arith.mulf %1894, %1892 : vector<12x16xf32>
    %1896 = arith.addf %1874, %1895 : vector<12x16xf32>
    %c38_381 = arith.constant 38 : index
    %1897 = memref.load %arg6[%c38_381] : memref<125xf32, #tpu.memory_space<smem>>
    %1898 = vector.broadcast %1897 : f32 to vector<12x16xf32>
    %1899 = arith.mulf %1898, %1892 : vector<12x16xf32>
    %1900 = arith.addf %1878, %1899 : vector<12x16xf32>
    %c63_382 = arith.constant 63 : index
    %1901 = memref.load %arg6[%c63_382] : memref<125xf32, #tpu.memory_space<smem>>
    %1902 = vector.broadcast %1901 : f32 to vector<12x16xf32>
    %1903 = arith.mulf %1902, %1892 : vector<12x16xf32>
    %1904 = arith.addf %1882, %1903 : vector<12x16xf32>
    %c88_383 = arith.constant 88 : index
    %1905 = memref.load %arg6[%c88_383] : memref<125xf32, #tpu.memory_space<smem>>
    %1906 = vector.broadcast %1905 : f32 to vector<12x16xf32>
    %1907 = arith.mulf %1906, %1892 : vector<12x16xf32>
    %1908 = arith.addf %1886, %1907 : vector<12x16xf32>
    %c113_384 = arith.constant 113 : index
    %1909 = memref.load %arg6[%c113_384] : memref<125xf32, #tpu.memory_space<smem>>
    %1910 = vector.broadcast %1909 : f32 to vector<12x16xf32>
    %1911 = arith.mulf %1910, %1892 : vector<12x16xf32>
    %1912 = arith.addf %1890, %1911 : vector<12x16xf32>
    %1913 = vector.extract_strided_slice %1846 {offsets = [3, 0, 0], sizes = [1, 12, 16], strides = [1, 1, 1]} : vector<5x12x16xf32> to vector<1x12x16xf32>
    %1914 = vector.shape_cast %1913 : vector<1x12x16xf32> to vector<12x16xf32>
    %c18_385 = arith.constant 18 : index
    %1915 = memref.load %arg6[%c18_385] : memref<125xf32, #tpu.memory_space<smem>>
    %1916 = vector.broadcast %1915 : f32 to vector<12x16xf32>
    %1917 = arith.mulf %1916, %1914 : vector<12x16xf32>
    %1918 = arith.addf %1896, %1917 : vector<12x16xf32>
    %c43_386 = arith.constant 43 : index
    %1919 = memref.load %arg6[%c43_386] : memref<125xf32, #tpu.memory_space<smem>>
    %1920 = vector.broadcast %1919 : f32 to vector<12x16xf32>
    %1921 = arith.mulf %1920, %1914 : vector<12x16xf32>
    %1922 = arith.addf %1900, %1921 : vector<12x16xf32>
    %c68_387 = arith.constant 68 : index
    %1923 = memref.load %arg6[%c68_387] : memref<125xf32, #tpu.memory_space<smem>>
    %1924 = vector.broadcast %1923 : f32 to vector<12x16xf32>
    %1925 = arith.mulf %1924, %1914 : vector<12x16xf32>
    %1926 = arith.addf %1904, %1925 : vector<12x16xf32>
    %c93_388 = arith.constant 93 : index
    %1927 = memref.load %arg6[%c93_388] : memref<125xf32, #tpu.memory_space<smem>>
    %1928 = vector.broadcast %1927 : f32 to vector<12x16xf32>
    %1929 = arith.mulf %1928, %1914 : vector<12x16xf32>
    %1930 = arith.addf %1908, %1929 : vector<12x16xf32>
    %c118_389 = arith.constant 118 : index
    %1931 = memref.load %arg6[%c118_389] : memref<125xf32, #tpu.memory_space<smem>>
    %1932 = vector.broadcast %1931 : f32 to vector<12x16xf32>
    %1933 = arith.mulf %1932, %1914 : vector<12x16xf32>
    %1934 = arith.addf %1912, %1933 : vector<12x16xf32>
    %1935 = vector.extract_strided_slice %1846 {offsets = [4, 0, 0], sizes = [1, 12, 16], strides = [1, 1, 1]} : vector<5x12x16xf32> to vector<1x12x16xf32>
    %1936 = vector.shape_cast %1935 : vector<1x12x16xf32> to vector<12x16xf32>
    %c23_390 = arith.constant 23 : index
    %1937 = memref.load %arg6[%c23_390] : memref<125xf32, #tpu.memory_space<smem>>
    %1938 = vector.broadcast %1937 : f32 to vector<12x16xf32>
    %1939 = arith.mulf %1938, %1936 : vector<12x16xf32>
    %1940 = arith.addf %1918, %1939 : vector<12x16xf32>
    %c48_391 = arith.constant 48 : index
    %1941 = memref.load %arg6[%c48_391] : memref<125xf32, #tpu.memory_space<smem>>
    %1942 = vector.broadcast %1941 : f32 to vector<12x16xf32>
    %1943 = arith.mulf %1942, %1936 : vector<12x16xf32>
    %1944 = arith.addf %1922, %1943 : vector<12x16xf32>
    %c73_392 = arith.constant 73 : index
    %1945 = memref.load %arg6[%c73_392] : memref<125xf32, #tpu.memory_space<smem>>
    %1946 = vector.broadcast %1945 : f32 to vector<12x16xf32>
    %1947 = arith.mulf %1946, %1936 : vector<12x16xf32>
    %1948 = arith.addf %1926, %1947 : vector<12x16xf32>
    %c98_393 = arith.constant 98 : index
    %1949 = memref.load %arg6[%c98_393] : memref<125xf32, #tpu.memory_space<smem>>
    %1950 = vector.broadcast %1949 : f32 to vector<12x16xf32>
    %1951 = arith.mulf %1950, %1936 : vector<12x16xf32>
    %1952 = arith.addf %1930, %1951 : vector<12x16xf32>
    %c123_394 = arith.constant 123 : index
    %1953 = memref.load %arg6[%c123_394] : memref<125xf32, #tpu.memory_space<smem>>
    %1954 = vector.broadcast %1953 : f32 to vector<12x16xf32>
    %1955 = arith.mulf %1954, %1936 : vector<12x16xf32>
    %1956 = arith.addf %1934, %1955 : vector<12x16xf32>
    %c0_395 = arith.constant 0 : index
    %c4_396 = arith.constant 4 : index
    %c0_397 = arith.constant 0 : index
    %1957 = vector.load %arg9[%c0_395, %c4_396, %c0_397] : memref<5x16x16xf32, #tpu.memory_space<vmem>>, vector<5x12x16xf32>
    %1958 = vector.extract_strided_slice %1957 {offsets = [0, 0, 0], sizes = [1, 12, 16], strides = [1, 1, 1]} : vector<5x12x16xf32> to vector<1x12x16xf32>
    %1959 = vector.shape_cast %1958 : vector<1x12x16xf32> to vector<12x16xf32>
    %c4_398 = arith.constant 4 : index
    %1960 = memref.load %arg6[%c4_398] : memref<125xf32, #tpu.memory_space<smem>>
    %1961 = vector.broadcast %1960 : f32 to vector<12x16xf32>
    %1962 = arith.mulf %1961, %1959 : vector<12x16xf32>
    %1963 = arith.addf %1940, %1962 : vector<12x16xf32>
    %c29_399 = arith.constant 29 : index
    %1964 = memref.load %arg6[%c29_399] : memref<125xf32, #tpu.memory_space<smem>>
    %1965 = vector.broadcast %1964 : f32 to vector<12x16xf32>
    %1966 = arith.mulf %1965, %1959 : vector<12x16xf32>
    %1967 = arith.addf %1944, %1966 : vector<12x16xf32>
    %c54_400 = arith.constant 54 : index
    %1968 = memref.load %arg6[%c54_400] : memref<125xf32, #tpu.memory_space<smem>>
    %1969 = vector.broadcast %1968 : f32 to vector<12x16xf32>
    %1970 = arith.mulf %1969, %1959 : vector<12x16xf32>
    %1971 = arith.addf %1948, %1970 : vector<12x16xf32>
    %c79_401 = arith.constant 79 : index
    %1972 = memref.load %arg6[%c79_401] : memref<125xf32, #tpu.memory_space<smem>>
    %1973 = vector.broadcast %1972 : f32 to vector<12x16xf32>
    %1974 = arith.mulf %1973, %1959 : vector<12x16xf32>
    %1975 = arith.addf %1952, %1974 : vector<12x16xf32>
    %c104_402 = arith.constant 104 : index
    %1976 = memref.load %arg6[%c104_402] : memref<125xf32, #tpu.memory_space<smem>>
    %1977 = vector.broadcast %1976 : f32 to vector<12x16xf32>
    %1978 = arith.mulf %1977, %1959 : vector<12x16xf32>
    %1979 = arith.addf %1956, %1978 : vector<12x16xf32>
    %1980 = vector.extract_strided_slice %1957 {offsets = [1, 0, 0], sizes = [1, 12, 16], strides = [1, 1, 1]} : vector<5x12x16xf32> to vector<1x12x16xf32>
    %1981 = vector.shape_cast %1980 : vector<1x12x16xf32> to vector<12x16xf32>
    %c9_403 = arith.constant 9 : index
    %1982 = memref.load %arg6[%c9_403] : memref<125xf32, #tpu.memory_space<smem>>
    %1983 = vector.broadcast %1982 : f32 to vector<12x16xf32>
    %1984 = arith.mulf %1983, %1981 : vector<12x16xf32>
    %1985 = arith.addf %1963, %1984 : vector<12x16xf32>
    %c34_404 = arith.constant 34 : index
    %1986 = memref.load %arg6[%c34_404] : memref<125xf32, #tpu.memory_space<smem>>
    %1987 = vector.broadcast %1986 : f32 to vector<12x16xf32>
    %1988 = arith.mulf %1987, %1981 : vector<12x16xf32>
    %1989 = arith.addf %1967, %1988 : vector<12x16xf32>
    %c59_405 = arith.constant 59 : index
    %1990 = memref.load %arg6[%c59_405] : memref<125xf32, #tpu.memory_space<smem>>
    %1991 = vector.broadcast %1990 : f32 to vector<12x16xf32>
    %1992 = arith.mulf %1991, %1981 : vector<12x16xf32>
    %1993 = arith.addf %1971, %1992 : vector<12x16xf32>
    %c84_406 = arith.constant 84 : index
    %1994 = memref.load %arg6[%c84_406] : memref<125xf32, #tpu.memory_space<smem>>
    %1995 = vector.broadcast %1994 : f32 to vector<12x16xf32>
    %1996 = arith.mulf %1995, %1981 : vector<12x16xf32>
    %1997 = arith.addf %1975, %1996 : vector<12x16xf32>
    %c109_407 = arith.constant 109 : index
    %1998 = memref.load %arg6[%c109_407] : memref<125xf32, #tpu.memory_space<smem>>
    %1999 = vector.broadcast %1998 : f32 to vector<12x16xf32>
    %2000 = arith.mulf %1999, %1981 : vector<12x16xf32>
    %2001 = arith.addf %1979, %2000 : vector<12x16xf32>
    %2002 = vector.extract_strided_slice %1957 {offsets = [2, 0, 0], sizes = [1, 12, 16], strides = [1, 1, 1]} : vector<5x12x16xf32> to vector<1x12x16xf32>
    %2003 = vector.shape_cast %2002 : vector<1x12x16xf32> to vector<12x16xf32>
    %c14_408 = arith.constant 14 : index
    %2004 = memref.load %arg6[%c14_408] : memref<125xf32, #tpu.memory_space<smem>>
    %2005 = vector.broadcast %2004 : f32 to vector<12x16xf32>
    %2006 = arith.mulf %2005, %2003 : vector<12x16xf32>
    %2007 = arith.addf %1985, %2006 : vector<12x16xf32>
    %c39_409 = arith.constant 39 : index
    %2008 = memref.load %arg6[%c39_409] : memref<125xf32, #tpu.memory_space<smem>>
    %2009 = vector.broadcast %2008 : f32 to vector<12x16xf32>
    %2010 = arith.mulf %2009, %2003 : vector<12x16xf32>
    %2011 = arith.addf %1989, %2010 : vector<12x16xf32>
    %c64_410 = arith.constant 64 : index
    %2012 = memref.load %arg6[%c64_410] : memref<125xf32, #tpu.memory_space<smem>>
    %2013 = vector.broadcast %2012 : f32 to vector<12x16xf32>
    %2014 = arith.mulf %2013, %2003 : vector<12x16xf32>
    %2015 = arith.addf %1993, %2014 : vector<12x16xf32>
    %c89_411 = arith.constant 89 : index
    %2016 = memref.load %arg6[%c89_411] : memref<125xf32, #tpu.memory_space<smem>>
    %2017 = vector.broadcast %2016 : f32 to vector<12x16xf32>
    %2018 = arith.mulf %2017, %2003 : vector<12x16xf32>
    %2019 = arith.addf %1997, %2018 : vector<12x16xf32>
    %c114_412 = arith.constant 114 : index
    %2020 = memref.load %arg6[%c114_412] : memref<125xf32, #tpu.memory_space<smem>>
    %2021 = vector.broadcast %2020 : f32 to vector<12x16xf32>
    %2022 = arith.mulf %2021, %2003 : vector<12x16xf32>
    %2023 = arith.addf %2001, %2022 : vector<12x16xf32>
    %2024 = vector.extract_strided_slice %1957 {offsets = [3, 0, 0], sizes = [1, 12, 16], strides = [1, 1, 1]} : vector<5x12x16xf32> to vector<1x12x16xf32>
    %2025 = vector.shape_cast %2024 : vector<1x12x16xf32> to vector<12x16xf32>
    %c19_413 = arith.constant 19 : index
    %2026 = memref.load %arg6[%c19_413] : memref<125xf32, #tpu.memory_space<smem>>
    %2027 = vector.broadcast %2026 : f32 to vector<12x16xf32>
    %2028 = arith.mulf %2027, %2025 : vector<12x16xf32>
    %2029 = arith.addf %2007, %2028 : vector<12x16xf32>
    %c44_414 = arith.constant 44 : index
    %2030 = memref.load %arg6[%c44_414] : memref<125xf32, #tpu.memory_space<smem>>
    %2031 = vector.broadcast %2030 : f32 to vector<12x16xf32>
    %2032 = arith.mulf %2031, %2025 : vector<12x16xf32>
    %2033 = arith.addf %2011, %2032 : vector<12x16xf32>
    %c69_415 = arith.constant 69 : index
    %2034 = memref.load %arg6[%c69_415] : memref<125xf32, #tpu.memory_space<smem>>
    %2035 = vector.broadcast %2034 : f32 to vector<12x16xf32>
    %2036 = arith.mulf %2035, %2025 : vector<12x16xf32>
    %2037 = arith.addf %2015, %2036 : vector<12x16xf32>
    %c94_416 = arith.constant 94 : index
    %2038 = memref.load %arg6[%c94_416] : memref<125xf32, #tpu.memory_space<smem>>
    %2039 = vector.broadcast %2038 : f32 to vector<12x16xf32>
    %2040 = arith.mulf %2039, %2025 : vector<12x16xf32>
    %2041 = arith.addf %2019, %2040 : vector<12x16xf32>
    %c119_417 = arith.constant 119 : index
    %2042 = memref.load %arg6[%c119_417] : memref<125xf32, #tpu.memory_space<smem>>
    %2043 = vector.broadcast %2042 : f32 to vector<12x16xf32>
    %2044 = arith.mulf %2043, %2025 : vector<12x16xf32>
    %2045 = arith.addf %2023, %2044 : vector<12x16xf32>
    %2046 = vector.extract_strided_slice %1957 {offsets = [4, 0, 0], sizes = [1, 12, 16], strides = [1, 1, 1]} : vector<5x12x16xf32> to vector<1x12x16xf32>
    %2047 = vector.shape_cast %2046 : vector<1x12x16xf32> to vector<12x16xf32>
    %c24_418 = arith.constant 24 : index
    %2048 = memref.load %arg6[%c24_418] : memref<125xf32, #tpu.memory_space<smem>>
    %2049 = vector.broadcast %2048 : f32 to vector<12x16xf32>
    %2050 = arith.mulf %2049, %2047 : vector<12x16xf32>
    %2051 = arith.addf %2029, %2050 : vector<12x16xf32>
    %c49_419 = arith.constant 49 : index
    %2052 = memref.load %arg6[%c49_419] : memref<125xf32, #tpu.memory_space<smem>>
    %2053 = vector.broadcast %2052 : f32 to vector<12x16xf32>
    %2054 = arith.mulf %2053, %2047 : vector<12x16xf32>
    %2055 = arith.addf %2033, %2054 : vector<12x16xf32>
    %c74_420 = arith.constant 74 : index
    %2056 = memref.load %arg6[%c74_420] : memref<125xf32, #tpu.memory_space<smem>>
    %2057 = vector.broadcast %2056 : f32 to vector<12x16xf32>
    %2058 = arith.mulf %2057, %2047 : vector<12x16xf32>
    %2059 = arith.addf %2037, %2058 : vector<12x16xf32>
    %c99_421 = arith.constant 99 : index
    %2060 = memref.load %arg6[%c99_421] : memref<125xf32, #tpu.memory_space<smem>>
    %2061 = vector.broadcast %2060 : f32 to vector<12x16xf32>
    %2062 = arith.mulf %2061, %2047 : vector<12x16xf32>
    %2063 = arith.addf %2041, %2062 : vector<12x16xf32>
    %c124_422 = arith.constant 124 : index
    %2064 = memref.load %arg6[%c124_422] : memref<125xf32, #tpu.memory_space<smem>>
    %2065 = vector.broadcast %2064 : f32 to vector<12x16xf32>
    %2066 = arith.mulf %2065, %2047 : vector<12x16xf32>
    %2067 = arith.addf %2045, %2066 : vector<12x16xf32>
    %c0_423 = arith.constant 0 : index
    %2068 = memref.load %arg7[%c0_423] : memref<5xf32, #tpu.memory_space<smem>>
    %2069 = vector.broadcast %2068 : f32 to vector<12x16xf32>
    %2070 = arith.addf %2051, %2069 : vector<12x16xf32>
    %c1_424 = arith.constant 1 : index
    %2071 = memref.load %arg7[%c1_424] : memref<5xf32, #tpu.memory_space<smem>>
    %2072 = vector.broadcast %2071 : f32 to vector<12x16xf32>
    %2073 = arith.addf %2055, %2072 : vector<12x16xf32>
    %c2_425 = arith.constant 2 : index
    %2074 = memref.load %arg7[%c2_425] : memref<5xf32, #tpu.memory_space<smem>>
    %2075 = vector.broadcast %2074 : f32 to vector<12x16xf32>
    %2076 = arith.addf %2059, %2075 : vector<12x16xf32>
    %c3_426 = arith.constant 3 : index
    %2077 = memref.load %arg7[%c3_426] : memref<5xf32, #tpu.memory_space<smem>>
    %2078 = vector.broadcast %2077 : f32 to vector<12x16xf32>
    %2079 = arith.addf %2063, %2078 : vector<12x16xf32>
    %c4_427 = arith.constant 4 : index
    %2080 = memref.load %arg7[%c4_427] : memref<5xf32, #tpu.memory_space<smem>>
    %2081 = vector.broadcast %2080 : f32 to vector<12x16xf32>
    %2082 = arith.addf %2067, %2081 : vector<12x16xf32>
    %2083 = vector.shape_cast %2070 : vector<12x16xf32> to vector<1x12x16xf32>
    %2084 = vector.shape_cast %2073 : vector<12x16xf32> to vector<1x12x16xf32>
    %2085 = vector.shape_cast %2076 : vector<12x16xf32> to vector<1x12x16xf32>
    %2086 = vector.shape_cast %2079 : vector<12x16xf32> to vector<1x12x16xf32>
    %2087 = vector.shape_cast %2082 : vector<12x16xf32> to vector<1x12x16xf32>
    %2088 = tpu.concatenate %2083, %2084, %2085, %2086, %2087 in 0 : vector<1x12x16xf32>, vector<1x12x16xf32>, vector<1x12x16xf32>, vector<1x12x16xf32>, vector<1x12x16xf32> -> vector<5x12x16xf32>
    %c0_428 = arith.constant 0 : index
    %c0_429 = arith.constant 0 : index
    %c0_430 = arith.constant 0 : index
    %2089 = vector.load %arg9[%c0_428, %c0_429, %c0_430] : memref<5x16x16xf32, #tpu.memory_space<vmem>>, vector<5x12x14xf32>
    %2090 = vector.extract_strided_slice %2089 {offsets = [0, 0, 0], sizes = [1, 12, 14], strides = [1, 1, 1]} : vector<5x12x14xf32> to vector<1x12x14xf32>
    %2091 = vector.shape_cast %2090 : vector<1x12x14xf32> to vector<12x14xf32>
    %c0_431 = arith.constant 0 : index
    %2092 = memref.load %arg2[%c0_431] : memref<100xf32, #tpu.memory_space<smem>>
    %2093 = vector.broadcast %2092 : f32 to vector<12x14xf32>
    %2094 = arith.mulf %2093, %2091 : vector<12x14xf32>
    %c20_432 = arith.constant 20 : index
    %2095 = memref.load %arg2[%c20_432] : memref<100xf32, #tpu.memory_space<smem>>
    %2096 = vector.broadcast %2095 : f32 to vector<12x14xf32>
    %2097 = arith.mulf %2096, %2091 : vector<12x14xf32>
    %c40_433 = arith.constant 40 : index
    %2098 = memref.load %arg2[%c40_433] : memref<100xf32, #tpu.memory_space<smem>>
    %2099 = vector.broadcast %2098 : f32 to vector<12x14xf32>
    %2100 = arith.mulf %2099, %2091 : vector<12x14xf32>
    %c60_434 = arith.constant 60 : index
    %2101 = memref.load %arg2[%c60_434] : memref<100xf32, #tpu.memory_space<smem>>
    %2102 = vector.broadcast %2101 : f32 to vector<12x14xf32>
    %2103 = arith.mulf %2102, %2091 : vector<12x14xf32>
    %c80_435 = arith.constant 80 : index
    %2104 = memref.load %arg2[%c80_435] : memref<100xf32, #tpu.memory_space<smem>>
    %2105 = vector.broadcast %2104 : f32 to vector<12x14xf32>
    %2106 = arith.mulf %2105, %2091 : vector<12x14xf32>
    %2107 = vector.extract_strided_slice %2089 {offsets = [1, 0, 0], sizes = [1, 12, 14], strides = [1, 1, 1]} : vector<5x12x14xf32> to vector<1x12x14xf32>
    %2108 = vector.shape_cast %2107 : vector<1x12x14xf32> to vector<12x14xf32>
    %c4_436 = arith.constant 4 : index
    %2109 = memref.load %arg2[%c4_436] : memref<100xf32, #tpu.memory_space<smem>>
    %2110 = vector.broadcast %2109 : f32 to vector<12x14xf32>
    %2111 = arith.mulf %2110, %2108 : vector<12x14xf32>
    %2112 = arith.addf %2094, %2111 : vector<12x14xf32>
    %c24_437 = arith.constant 24 : index
    %2113 = memref.load %arg2[%c24_437] : memref<100xf32, #tpu.memory_space<smem>>
    %2114 = vector.broadcast %2113 : f32 to vector<12x14xf32>
    %2115 = arith.mulf %2114, %2108 : vector<12x14xf32>
    %2116 = arith.addf %2097, %2115 : vector<12x14xf32>
    %c44_438 = arith.constant 44 : index
    %2117 = memref.load %arg2[%c44_438] : memref<100xf32, #tpu.memory_space<smem>>
    %2118 = vector.broadcast %2117 : f32 to vector<12x14xf32>
    %2119 = arith.mulf %2118, %2108 : vector<12x14xf32>
    %2120 = arith.addf %2100, %2119 : vector<12x14xf32>
    %c64_439 = arith.constant 64 : index
    %2121 = memref.load %arg2[%c64_439] : memref<100xf32, #tpu.memory_space<smem>>
    %2122 = vector.broadcast %2121 : f32 to vector<12x14xf32>
    %2123 = arith.mulf %2122, %2108 : vector<12x14xf32>
    %2124 = arith.addf %2103, %2123 : vector<12x14xf32>
    %c84_440 = arith.constant 84 : index
    %2125 = memref.load %arg2[%c84_440] : memref<100xf32, #tpu.memory_space<smem>>
    %2126 = vector.broadcast %2125 : f32 to vector<12x14xf32>
    %2127 = arith.mulf %2126, %2108 : vector<12x14xf32>
    %2128 = arith.addf %2106, %2127 : vector<12x14xf32>
    %2129 = vector.extract_strided_slice %2089 {offsets = [2, 0, 0], sizes = [1, 12, 14], strides = [1, 1, 1]} : vector<5x12x14xf32> to vector<1x12x14xf32>
    %2130 = vector.shape_cast %2129 : vector<1x12x14xf32> to vector<12x14xf32>
    %c8_441 = arith.constant 8 : index
    %2131 = memref.load %arg2[%c8_441] : memref<100xf32, #tpu.memory_space<smem>>
    %2132 = vector.broadcast %2131 : f32 to vector<12x14xf32>
    %2133 = arith.mulf %2132, %2130 : vector<12x14xf32>
    %2134 = arith.addf %2112, %2133 : vector<12x14xf32>
    %c28_442 = arith.constant 28 : index
    %2135 = memref.load %arg2[%c28_442] : memref<100xf32, #tpu.memory_space<smem>>
    %2136 = vector.broadcast %2135 : f32 to vector<12x14xf32>
    %2137 = arith.mulf %2136, %2130 : vector<12x14xf32>
    %2138 = arith.addf %2116, %2137 : vector<12x14xf32>
    %c48_443 = arith.constant 48 : index
    %2139 = memref.load %arg2[%c48_443] : memref<100xf32, #tpu.memory_space<smem>>
    %2140 = vector.broadcast %2139 : f32 to vector<12x14xf32>
    %2141 = arith.mulf %2140, %2130 : vector<12x14xf32>
    %2142 = arith.addf %2120, %2141 : vector<12x14xf32>
    %c68_444 = arith.constant 68 : index
    %2143 = memref.load %arg2[%c68_444] : memref<100xf32, #tpu.memory_space<smem>>
    %2144 = vector.broadcast %2143 : f32 to vector<12x14xf32>
    %2145 = arith.mulf %2144, %2130 : vector<12x14xf32>
    %2146 = arith.addf %2124, %2145 : vector<12x14xf32>
    %c88_445 = arith.constant 88 : index
    %2147 = memref.load %arg2[%c88_445] : memref<100xf32, #tpu.memory_space<smem>>
    %2148 = vector.broadcast %2147 : f32 to vector<12x14xf32>
    %2149 = arith.mulf %2148, %2130 : vector<12x14xf32>
    %2150 = arith.addf %2128, %2149 : vector<12x14xf32>
    %2151 = vector.extract_strided_slice %2089 {offsets = [3, 0, 0], sizes = [1, 12, 14], strides = [1, 1, 1]} : vector<5x12x14xf32> to vector<1x12x14xf32>
    %2152 = vector.shape_cast %2151 : vector<1x12x14xf32> to vector<12x14xf32>
    %c12_446 = arith.constant 12 : index
    %2153 = memref.load %arg2[%c12_446] : memref<100xf32, #tpu.memory_space<smem>>
    %2154 = vector.broadcast %2153 : f32 to vector<12x14xf32>
    %2155 = arith.mulf %2154, %2152 : vector<12x14xf32>
    %2156 = arith.addf %2134, %2155 : vector<12x14xf32>
    %c32_447 = arith.constant 32 : index
    %2157 = memref.load %arg2[%c32_447] : memref<100xf32, #tpu.memory_space<smem>>
    %2158 = vector.broadcast %2157 : f32 to vector<12x14xf32>
    %2159 = arith.mulf %2158, %2152 : vector<12x14xf32>
    %2160 = arith.addf %2138, %2159 : vector<12x14xf32>
    %c52_448 = arith.constant 52 : index
    %2161 = memref.load %arg2[%c52_448] : memref<100xf32, #tpu.memory_space<smem>>
    %2162 = vector.broadcast %2161 : f32 to vector<12x14xf32>
    %2163 = arith.mulf %2162, %2152 : vector<12x14xf32>
    %2164 = arith.addf %2142, %2163 : vector<12x14xf32>
    %c72_449 = arith.constant 72 : index
    %2165 = memref.load %arg2[%c72_449] : memref<100xf32, #tpu.memory_space<smem>>
    %2166 = vector.broadcast %2165 : f32 to vector<12x14xf32>
    %2167 = arith.mulf %2166, %2152 : vector<12x14xf32>
    %2168 = arith.addf %2146, %2167 : vector<12x14xf32>
    %c92_450 = arith.constant 92 : index
    %2169 = memref.load %arg2[%c92_450] : memref<100xf32, #tpu.memory_space<smem>>
    %2170 = vector.broadcast %2169 : f32 to vector<12x14xf32>
    %2171 = arith.mulf %2170, %2152 : vector<12x14xf32>
    %2172 = arith.addf %2150, %2171 : vector<12x14xf32>
    %2173 = vector.extract_strided_slice %2089 {offsets = [4, 0, 0], sizes = [1, 12, 14], strides = [1, 1, 1]} : vector<5x12x14xf32> to vector<1x12x14xf32>
    %2174 = vector.shape_cast %2173 : vector<1x12x14xf32> to vector<12x14xf32>
    %c16_451 = arith.constant 16 : index
    %2175 = memref.load %arg2[%c16_451] : memref<100xf32, #tpu.memory_space<smem>>
    %2176 = vector.broadcast %2175 : f32 to vector<12x14xf32>
    %2177 = arith.mulf %2176, %2174 : vector<12x14xf32>
    %2178 = arith.addf %2156, %2177 : vector<12x14xf32>
    %c36_452 = arith.constant 36 : index
    %2179 = memref.load %arg2[%c36_452] : memref<100xf32, #tpu.memory_space<smem>>
    %2180 = vector.broadcast %2179 : f32 to vector<12x14xf32>
    %2181 = arith.mulf %2180, %2174 : vector<12x14xf32>
    %2182 = arith.addf %2160, %2181 : vector<12x14xf32>
    %c56_453 = arith.constant 56 : index
    %2183 = memref.load %arg2[%c56_453] : memref<100xf32, #tpu.memory_space<smem>>
    %2184 = vector.broadcast %2183 : f32 to vector<12x14xf32>
    %2185 = arith.mulf %2184, %2174 : vector<12x14xf32>
    %2186 = arith.addf %2164, %2185 : vector<12x14xf32>
    %c76_454 = arith.constant 76 : index
    %2187 = memref.load %arg2[%c76_454] : memref<100xf32, #tpu.memory_space<smem>>
    %2188 = vector.broadcast %2187 : f32 to vector<12x14xf32>
    %2189 = arith.mulf %2188, %2174 : vector<12x14xf32>
    %2190 = arith.addf %2168, %2189 : vector<12x14xf32>
    %c96_455 = arith.constant 96 : index
    %2191 = memref.load %arg2[%c96_455] : memref<100xf32, #tpu.memory_space<smem>>
    %2192 = vector.broadcast %2191 : f32 to vector<12x14xf32>
    %2193 = arith.mulf %2192, %2174 : vector<12x14xf32>
    %2194 = arith.addf %2172, %2193 : vector<12x14xf32>
    %c0_456 = arith.constant 0 : index
    %c0_457 = arith.constant 0 : index
    %c2_458 = arith.constant 2 : index
    %2195 = vector.load %arg9[%c0_456, %c0_457, %c2_458] : memref<5x16x16xf32, #tpu.memory_space<vmem>>, vector<5x12x14xf32>
    %2196 = vector.extract_strided_slice %2195 {offsets = [0, 0, 0], sizes = [1, 12, 14], strides = [1, 1, 1]} : vector<5x12x14xf32> to vector<1x12x14xf32>
    %2197 = vector.shape_cast %2196 : vector<1x12x14xf32> to vector<12x14xf32>
    %c1_459 = arith.constant 1 : index
    %2198 = memref.load %arg2[%c1_459] : memref<100xf32, #tpu.memory_space<smem>>
    %2199 = vector.broadcast %2198 : f32 to vector<12x14xf32>
    %2200 = arith.mulf %2199, %2197 : vector<12x14xf32>
    %2201 = arith.addf %2178, %2200 : vector<12x14xf32>
    %c21_460 = arith.constant 21 : index
    %2202 = memref.load %arg2[%c21_460] : memref<100xf32, #tpu.memory_space<smem>>
    %2203 = vector.broadcast %2202 : f32 to vector<12x14xf32>
    %2204 = arith.mulf %2203, %2197 : vector<12x14xf32>
    %2205 = arith.addf %2182, %2204 : vector<12x14xf32>
    %c41_461 = arith.constant 41 : index
    %2206 = memref.load %arg2[%c41_461] : memref<100xf32, #tpu.memory_space<smem>>
    %2207 = vector.broadcast %2206 : f32 to vector<12x14xf32>
    %2208 = arith.mulf %2207, %2197 : vector<12x14xf32>
    %2209 = arith.addf %2186, %2208 : vector<12x14xf32>
    %c61_462 = arith.constant 61 : index
    %2210 = memref.load %arg2[%c61_462] : memref<100xf32, #tpu.memory_space<smem>>
    %2211 = vector.broadcast %2210 : f32 to vector<12x14xf32>
    %2212 = arith.mulf %2211, %2197 : vector<12x14xf32>
    %2213 = arith.addf %2190, %2212 : vector<12x14xf32>
    %c81_463 = arith.constant 81 : index
    %2214 = memref.load %arg2[%c81_463] : memref<100xf32, #tpu.memory_space<smem>>
    %2215 = vector.broadcast %2214 : f32 to vector<12x14xf32>
    %2216 = arith.mulf %2215, %2197 : vector<12x14xf32>
    %2217 = arith.addf %2194, %2216 : vector<12x14xf32>
    %2218 = vector.extract_strided_slice %2195 {offsets = [1, 0, 0], sizes = [1, 12, 14], strides = [1, 1, 1]} : vector<5x12x14xf32> to vector<1x12x14xf32>
    %2219 = vector.shape_cast %2218 : vector<1x12x14xf32> to vector<12x14xf32>
    %c5_464 = arith.constant 5 : index
    %2220 = memref.load %arg2[%c5_464] : memref<100xf32, #tpu.memory_space<smem>>
    %2221 = vector.broadcast %2220 : f32 to vector<12x14xf32>
    %2222 = arith.mulf %2221, %2219 : vector<12x14xf32>
    %2223 = arith.addf %2201, %2222 : vector<12x14xf32>
    %c25_465 = arith.constant 25 : index
    %2224 = memref.load %arg2[%c25_465] : memref<100xf32, #tpu.memory_space<smem>>
    %2225 = vector.broadcast %2224 : f32 to vector<12x14xf32>
    %2226 = arith.mulf %2225, %2219 : vector<12x14xf32>
    %2227 = arith.addf %2205, %2226 : vector<12x14xf32>
    %c45_466 = arith.constant 45 : index
    %2228 = memref.load %arg2[%c45_466] : memref<100xf32, #tpu.memory_space<smem>>
    %2229 = vector.broadcast %2228 : f32 to vector<12x14xf32>
    %2230 = arith.mulf %2229, %2219 : vector<12x14xf32>
    %2231 = arith.addf %2209, %2230 : vector<12x14xf32>
    %c65_467 = arith.constant 65 : index
    %2232 = memref.load %arg2[%c65_467] : memref<100xf32, #tpu.memory_space<smem>>
    %2233 = vector.broadcast %2232 : f32 to vector<12x14xf32>
    %2234 = arith.mulf %2233, %2219 : vector<12x14xf32>
    %2235 = arith.addf %2213, %2234 : vector<12x14xf32>
    %c85_468 = arith.constant 85 : index
    %2236 = memref.load %arg2[%c85_468] : memref<100xf32, #tpu.memory_space<smem>>
    %2237 = vector.broadcast %2236 : f32 to vector<12x14xf32>
    %2238 = arith.mulf %2237, %2219 : vector<12x14xf32>
    %2239 = arith.addf %2217, %2238 : vector<12x14xf32>
    %2240 = vector.extract_strided_slice %2195 {offsets = [2, 0, 0], sizes = [1, 12, 14], strides = [1, 1, 1]} : vector<5x12x14xf32> to vector<1x12x14xf32>
    %2241 = vector.shape_cast %2240 : vector<1x12x14xf32> to vector<12x14xf32>
    %c9_469 = arith.constant 9 : index
    %2242 = memref.load %arg2[%c9_469] : memref<100xf32, #tpu.memory_space<smem>>
    %2243 = vector.broadcast %2242 : f32 to vector<12x14xf32>
    %2244 = arith.mulf %2243, %2241 : vector<12x14xf32>
    %2245 = arith.addf %2223, %2244 : vector<12x14xf32>
    %c29_470 = arith.constant 29 : index
    %2246 = memref.load %arg2[%c29_470] : memref<100xf32, #tpu.memory_space<smem>>
    %2247 = vector.broadcast %2246 : f32 to vector<12x14xf32>
    %2248 = arith.mulf %2247, %2241 : vector<12x14xf32>
    %2249 = arith.addf %2227, %2248 : vector<12x14xf32>
    %c49_471 = arith.constant 49 : index
    %2250 = memref.load %arg2[%c49_471] : memref<100xf32, #tpu.memory_space<smem>>
    %2251 = vector.broadcast %2250 : f32 to vector<12x14xf32>
    %2252 = arith.mulf %2251, %2241 : vector<12x14xf32>
    %2253 = arith.addf %2231, %2252 : vector<12x14xf32>
    %c69_472 = arith.constant 69 : index
    %2254 = memref.load %arg2[%c69_472] : memref<100xf32, #tpu.memory_space<smem>>
    %2255 = vector.broadcast %2254 : f32 to vector<12x14xf32>
    %2256 = arith.mulf %2255, %2241 : vector<12x14xf32>
    %2257 = arith.addf %2235, %2256 : vector<12x14xf32>
    %c89_473 = arith.constant 89 : index
    %2258 = memref.load %arg2[%c89_473] : memref<100xf32, #tpu.memory_space<smem>>
    %2259 = vector.broadcast %2258 : f32 to vector<12x14xf32>
    %2260 = arith.mulf %2259, %2241 : vector<12x14xf32>
    %2261 = arith.addf %2239, %2260 : vector<12x14xf32>
    %2262 = vector.extract_strided_slice %2195 {offsets = [3, 0, 0], sizes = [1, 12, 14], strides = [1, 1, 1]} : vector<5x12x14xf32> to vector<1x12x14xf32>
    %2263 = vector.shape_cast %2262 : vector<1x12x14xf32> to vector<12x14xf32>
    %c13_474 = arith.constant 13 : index
    %2264 = memref.load %arg2[%c13_474] : memref<100xf32, #tpu.memory_space<smem>>
    %2265 = vector.broadcast %2264 : f32 to vector<12x14xf32>
    %2266 = arith.mulf %2265, %2263 : vector<12x14xf32>
    %2267 = arith.addf %2245, %2266 : vector<12x14xf32>
    %c33_475 = arith.constant 33 : index
    %2268 = memref.load %arg2[%c33_475] : memref<100xf32, #tpu.memory_space<smem>>
    %2269 = vector.broadcast %2268 : f32 to vector<12x14xf32>
    %2270 = arith.mulf %2269, %2263 : vector<12x14xf32>
    %2271 = arith.addf %2249, %2270 : vector<12x14xf32>
    %c53_476 = arith.constant 53 : index
    %2272 = memref.load %arg2[%c53_476] : memref<100xf32, #tpu.memory_space<smem>>
    %2273 = vector.broadcast %2272 : f32 to vector<12x14xf32>
    %2274 = arith.mulf %2273, %2263 : vector<12x14xf32>
    %2275 = arith.addf %2253, %2274 : vector<12x14xf32>
    %c73_477 = arith.constant 73 : index
    %2276 = memref.load %arg2[%c73_477] : memref<100xf32, #tpu.memory_space<smem>>
    %2277 = vector.broadcast %2276 : f32 to vector<12x14xf32>
    %2278 = arith.mulf %2277, %2263 : vector<12x14xf32>
    %2279 = arith.addf %2257, %2278 : vector<12x14xf32>
    %c93_478 = arith.constant 93 : index
    %2280 = memref.load %arg2[%c93_478] : memref<100xf32, #tpu.memory_space<smem>>
    %2281 = vector.broadcast %2280 : f32 to vector<12x14xf32>
    %2282 = arith.mulf %2281, %2263 : vector<12x14xf32>
    %2283 = arith.addf %2261, %2282 : vector<12x14xf32>
    %2284 = vector.extract_strided_slice %2195 {offsets = [4, 0, 0], sizes = [1, 12, 14], strides = [1, 1, 1]} : vector<5x12x14xf32> to vector<1x12x14xf32>
    %2285 = vector.shape_cast %2284 : vector<1x12x14xf32> to vector<12x14xf32>
    %c17_479 = arith.constant 17 : index
    %2286 = memref.load %arg2[%c17_479] : memref<100xf32, #tpu.memory_space<smem>>
    %2287 = vector.broadcast %2286 : f32 to vector<12x14xf32>
    %2288 = arith.mulf %2287, %2285 : vector<12x14xf32>
    %2289 = arith.addf %2267, %2288 : vector<12x14xf32>
    %c37_480 = arith.constant 37 : index
    %2290 = memref.load %arg2[%c37_480] : memref<100xf32, #tpu.memory_space<smem>>
    %2291 = vector.broadcast %2290 : f32 to vector<12x14xf32>
    %2292 = arith.mulf %2291, %2285 : vector<12x14xf32>
    %2293 = arith.addf %2271, %2292 : vector<12x14xf32>
    %c57_481 = arith.constant 57 : index
    %2294 = memref.load %arg2[%c57_481] : memref<100xf32, #tpu.memory_space<smem>>
    %2295 = vector.broadcast %2294 : f32 to vector<12x14xf32>
    %2296 = arith.mulf %2295, %2285 : vector<12x14xf32>
    %2297 = arith.addf %2275, %2296 : vector<12x14xf32>
    %c77_482 = arith.constant 77 : index
    %2298 = memref.load %arg2[%c77_482] : memref<100xf32, #tpu.memory_space<smem>>
    %2299 = vector.broadcast %2298 : f32 to vector<12x14xf32>
    %2300 = arith.mulf %2299, %2285 : vector<12x14xf32>
    %2301 = arith.addf %2279, %2300 : vector<12x14xf32>
    %c97_483 = arith.constant 97 : index
    %2302 = memref.load %arg2[%c97_483] : memref<100xf32, #tpu.memory_space<smem>>
    %2303 = vector.broadcast %2302 : f32 to vector<12x14xf32>
    %2304 = arith.mulf %2303, %2285 : vector<12x14xf32>
    %2305 = arith.addf %2283, %2304 : vector<12x14xf32>
    %c0_484 = arith.constant 0 : index
    %c2_485 = arith.constant 2 : index
    %c0_486 = arith.constant 0 : index
    %2306 = vector.load %arg9[%c0_484, %c2_485, %c0_486] : memref<5x16x16xf32, #tpu.memory_space<vmem>>, vector<5x12x14xf32>
    %2307 = vector.extract_strided_slice %2306 {offsets = [0, 0, 0], sizes = [1, 12, 14], strides = [1, 1, 1]} : vector<5x12x14xf32> to vector<1x12x14xf32>
    %2308 = vector.shape_cast %2307 : vector<1x12x14xf32> to vector<12x14xf32>
    %c2_487 = arith.constant 2 : index
    %2309 = memref.load %arg2[%c2_487] : memref<100xf32, #tpu.memory_space<smem>>
    %2310 = vector.broadcast %2309 : f32 to vector<12x14xf32>
    %2311 = arith.mulf %2310, %2308 : vector<12x14xf32>
    %2312 = arith.addf %2289, %2311 : vector<12x14xf32>
    %c22_488 = arith.constant 22 : index
    %2313 = memref.load %arg2[%c22_488] : memref<100xf32, #tpu.memory_space<smem>>
    %2314 = vector.broadcast %2313 : f32 to vector<12x14xf32>
    %2315 = arith.mulf %2314, %2308 : vector<12x14xf32>
    %2316 = arith.addf %2293, %2315 : vector<12x14xf32>
    %c42_489 = arith.constant 42 : index
    %2317 = memref.load %arg2[%c42_489] : memref<100xf32, #tpu.memory_space<smem>>
    %2318 = vector.broadcast %2317 : f32 to vector<12x14xf32>
    %2319 = arith.mulf %2318, %2308 : vector<12x14xf32>
    %2320 = arith.addf %2297, %2319 : vector<12x14xf32>
    %c62_490 = arith.constant 62 : index
    %2321 = memref.load %arg2[%c62_490] : memref<100xf32, #tpu.memory_space<smem>>
    %2322 = vector.broadcast %2321 : f32 to vector<12x14xf32>
    %2323 = arith.mulf %2322, %2308 : vector<12x14xf32>
    %2324 = arith.addf %2301, %2323 : vector<12x14xf32>
    %c82_491 = arith.constant 82 : index
    %2325 = memref.load %arg2[%c82_491] : memref<100xf32, #tpu.memory_space<smem>>
    %2326 = vector.broadcast %2325 : f32 to vector<12x14xf32>
    %2327 = arith.mulf %2326, %2308 : vector<12x14xf32>
    %2328 = arith.addf %2305, %2327 : vector<12x14xf32>
    %2329 = vector.extract_strided_slice %2306 {offsets = [1, 0, 0], sizes = [1, 12, 14], strides = [1, 1, 1]} : vector<5x12x14xf32> to vector<1x12x14xf32>
    %2330 = vector.shape_cast %2329 : vector<1x12x14xf32> to vector<12x14xf32>
    %c6_492 = arith.constant 6 : index
    %2331 = memref.load %arg2[%c6_492] : memref<100xf32, #tpu.memory_space<smem>>
    %2332 = vector.broadcast %2331 : f32 to vector<12x14xf32>
    %2333 = arith.mulf %2332, %2330 : vector<12x14xf32>
    %2334 = arith.addf %2312, %2333 : vector<12x14xf32>
    %c26_493 = arith.constant 26 : index
    %2335 = memref.load %arg2[%c26_493] : memref<100xf32, #tpu.memory_space<smem>>
    %2336 = vector.broadcast %2335 : f32 to vector<12x14xf32>
    %2337 = arith.mulf %2336, %2330 : vector<12x14xf32>
    %2338 = arith.addf %2316, %2337 : vector<12x14xf32>
    %c46_494 = arith.constant 46 : index
    %2339 = memref.load %arg2[%c46_494] : memref<100xf32, #tpu.memory_space<smem>>
    %2340 = vector.broadcast %2339 : f32 to vector<12x14xf32>
    %2341 = arith.mulf %2340, %2330 : vector<12x14xf32>
    %2342 = arith.addf %2320, %2341 : vector<12x14xf32>
    %c66_495 = arith.constant 66 : index
    %2343 = memref.load %arg2[%c66_495] : memref<100xf32, #tpu.memory_space<smem>>
    %2344 = vector.broadcast %2343 : f32 to vector<12x14xf32>
    %2345 = arith.mulf %2344, %2330 : vector<12x14xf32>
    %2346 = arith.addf %2324, %2345 : vector<12x14xf32>
    %c86_496 = arith.constant 86 : index
    %2347 = memref.load %arg2[%c86_496] : memref<100xf32, #tpu.memory_space<smem>>
    %2348 = vector.broadcast %2347 : f32 to vector<12x14xf32>
    %2349 = arith.mulf %2348, %2330 : vector<12x14xf32>
    %2350 = arith.addf %2328, %2349 : vector<12x14xf32>
    %2351 = vector.extract_strided_slice %2306 {offsets = [2, 0, 0], sizes = [1, 12, 14], strides = [1, 1, 1]} : vector<5x12x14xf32> to vector<1x12x14xf32>
    %2352 = vector.shape_cast %2351 : vector<1x12x14xf32> to vector<12x14xf32>
    %c10_497 = arith.constant 10 : index
    %2353 = memref.load %arg2[%c10_497] : memref<100xf32, #tpu.memory_space<smem>>
    %2354 = vector.broadcast %2353 : f32 to vector<12x14xf32>
    %2355 = arith.mulf %2354, %2352 : vector<12x14xf32>
    %2356 = arith.addf %2334, %2355 : vector<12x14xf32>
    %c30_498 = arith.constant 30 : index
    %2357 = memref.load %arg2[%c30_498] : memref<100xf32, #tpu.memory_space<smem>>
    %2358 = vector.broadcast %2357 : f32 to vector<12x14xf32>
    %2359 = arith.mulf %2358, %2352 : vector<12x14xf32>
    %2360 = arith.addf %2338, %2359 : vector<12x14xf32>
    %c50_499 = arith.constant 50 : index
    %2361 = memref.load %arg2[%c50_499] : memref<100xf32, #tpu.memory_space<smem>>
    %2362 = vector.broadcast %2361 : f32 to vector<12x14xf32>
    %2363 = arith.mulf %2362, %2352 : vector<12x14xf32>
    %2364 = arith.addf %2342, %2363 : vector<12x14xf32>
    %c70_500 = arith.constant 70 : index
    %2365 = memref.load %arg2[%c70_500] : memref<100xf32, #tpu.memory_space<smem>>
    %2366 = vector.broadcast %2365 : f32 to vector<12x14xf32>
    %2367 = arith.mulf %2366, %2352 : vector<12x14xf32>
    %2368 = arith.addf %2346, %2367 : vector<12x14xf32>
    %c90_501 = arith.constant 90 : index
    %2369 = memref.load %arg2[%c90_501] : memref<100xf32, #tpu.memory_space<smem>>
    %2370 = vector.broadcast %2369 : f32 to vector<12x14xf32>
    %2371 = arith.mulf %2370, %2352 : vector<12x14xf32>
    %2372 = arith.addf %2350, %2371 : vector<12x14xf32>
    %2373 = vector.extract_strided_slice %2306 {offsets = [3, 0, 0], sizes = [1, 12, 14], strides = [1, 1, 1]} : vector<5x12x14xf32> to vector<1x12x14xf32>
    %2374 = vector.shape_cast %2373 : vector<1x12x14xf32> to vector<12x14xf32>
    %c14_502 = arith.constant 14 : index
    %2375 = memref.load %arg2[%c14_502] : memref<100xf32, #tpu.memory_space<smem>>
    %2376 = vector.broadcast %2375 : f32 to vector<12x14xf32>
    %2377 = arith.mulf %2376, %2374 : vector<12x14xf32>
    %2378 = arith.addf %2356, %2377 : vector<12x14xf32>
    %c34_503 = arith.constant 34 : index
    %2379 = memref.load %arg2[%c34_503] : memref<100xf32, #tpu.memory_space<smem>>
    %2380 = vector.broadcast %2379 : f32 to vector<12x14xf32>
    %2381 = arith.mulf %2380, %2374 : vector<12x14xf32>
    %2382 = arith.addf %2360, %2381 : vector<12x14xf32>
    %c54_504 = arith.constant 54 : index
    %2383 = memref.load %arg2[%c54_504] : memref<100xf32, #tpu.memory_space<smem>>
    %2384 = vector.broadcast %2383 : f32 to vector<12x14xf32>
    %2385 = arith.mulf %2384, %2374 : vector<12x14xf32>
    %2386 = arith.addf %2364, %2385 : vector<12x14xf32>
    %c74_505 = arith.constant 74 : index
    %2387 = memref.load %arg2[%c74_505] : memref<100xf32, #tpu.memory_space<smem>>
    %2388 = vector.broadcast %2387 : f32 to vector<12x14xf32>
    %2389 = arith.mulf %2388, %2374 : vector<12x14xf32>
    %2390 = arith.addf %2368, %2389 : vector<12x14xf32>
    %c94_506 = arith.constant 94 : index
    %2391 = memref.load %arg2[%c94_506] : memref<100xf32, #tpu.memory_space<smem>>
    %2392 = vector.broadcast %2391 : f32 to vector<12x14xf32>
    %2393 = arith.mulf %2392, %2374 : vector<12x14xf32>
    %2394 = arith.addf %2372, %2393 : vector<12x14xf32>
    %2395 = vector.extract_strided_slice %2306 {offsets = [4, 0, 0], sizes = [1, 12, 14], strides = [1, 1, 1]} : vector<5x12x14xf32> to vector<1x12x14xf32>
    %2396 = vector.shape_cast %2395 : vector<1x12x14xf32> to vector<12x14xf32>
    %c18_507 = arith.constant 18 : index
    %2397 = memref.load %arg2[%c18_507] : memref<100xf32, #tpu.memory_space<smem>>
    %2398 = vector.broadcast %2397 : f32 to vector<12x14xf32>
    %2399 = arith.mulf %2398, %2396 : vector<12x14xf32>
    %2400 = arith.addf %2378, %2399 : vector<12x14xf32>
    %c38_508 = arith.constant 38 : index
    %2401 = memref.load %arg2[%c38_508] : memref<100xf32, #tpu.memory_space<smem>>
    %2402 = vector.broadcast %2401 : f32 to vector<12x14xf32>
    %2403 = arith.mulf %2402, %2396 : vector<12x14xf32>
    %2404 = arith.addf %2382, %2403 : vector<12x14xf32>
    %c58_509 = arith.constant 58 : index
    %2405 = memref.load %arg2[%c58_509] : memref<100xf32, #tpu.memory_space<smem>>
    %2406 = vector.broadcast %2405 : f32 to vector<12x14xf32>
    %2407 = arith.mulf %2406, %2396 : vector<12x14xf32>
    %2408 = arith.addf %2386, %2407 : vector<12x14xf32>
    %c78_510 = arith.constant 78 : index
    %2409 = memref.load %arg2[%c78_510] : memref<100xf32, #tpu.memory_space<smem>>
    %2410 = vector.broadcast %2409 : f32 to vector<12x14xf32>
    %2411 = arith.mulf %2410, %2396 : vector<12x14xf32>
    %2412 = arith.addf %2390, %2411 : vector<12x14xf32>
    %c98_511 = arith.constant 98 : index
    %2413 = memref.load %arg2[%c98_511] : memref<100xf32, #tpu.memory_space<smem>>
    %2414 = vector.broadcast %2413 : f32 to vector<12x14xf32>
    %2415 = arith.mulf %2414, %2396 : vector<12x14xf32>
    %2416 = arith.addf %2394, %2415 : vector<12x14xf32>
    %c0_512 = arith.constant 0 : index
    %c2_513 = arith.constant 2 : index
    %c2_514 = arith.constant 2 : index
    %2417 = vector.load %arg9[%c0_512, %c2_513, %c2_514] : memref<5x16x16xf32, #tpu.memory_space<vmem>>, vector<5x12x14xf32>
    %2418 = vector.extract_strided_slice %2417 {offsets = [0, 0, 0], sizes = [1, 12, 14], strides = [1, 1, 1]} : vector<5x12x14xf32> to vector<1x12x14xf32>
    %2419 = vector.shape_cast %2418 : vector<1x12x14xf32> to vector<12x14xf32>
    %c3_515 = arith.constant 3 : index
    %2420 = memref.load %arg2[%c3_515] : memref<100xf32, #tpu.memory_space<smem>>
    %2421 = vector.broadcast %2420 : f32 to vector<12x14xf32>
    %2422 = arith.mulf %2421, %2419 : vector<12x14xf32>
    %2423 = arith.addf %2400, %2422 : vector<12x14xf32>
    %c23_516 = arith.constant 23 : index
    %2424 = memref.load %arg2[%c23_516] : memref<100xf32, #tpu.memory_space<smem>>
    %2425 = vector.broadcast %2424 : f32 to vector<12x14xf32>
    %2426 = arith.mulf %2425, %2419 : vector<12x14xf32>
    %2427 = arith.addf %2404, %2426 : vector<12x14xf32>
    %c43_517 = arith.constant 43 : index
    %2428 = memref.load %arg2[%c43_517] : memref<100xf32, #tpu.memory_space<smem>>
    %2429 = vector.broadcast %2428 : f32 to vector<12x14xf32>
    %2430 = arith.mulf %2429, %2419 : vector<12x14xf32>
    %2431 = arith.addf %2408, %2430 : vector<12x14xf32>
    %c63_518 = arith.constant 63 : index
    %2432 = memref.load %arg2[%c63_518] : memref<100xf32, #tpu.memory_space<smem>>
    %2433 = vector.broadcast %2432 : f32 to vector<12x14xf32>
    %2434 = arith.mulf %2433, %2419 : vector<12x14xf32>
    %2435 = arith.addf %2412, %2434 : vector<12x14xf32>
    %c83_519 = arith.constant 83 : index
    %2436 = memref.load %arg2[%c83_519] : memref<100xf32, #tpu.memory_space<smem>>
    %2437 = vector.broadcast %2436 : f32 to vector<12x14xf32>
    %2438 = arith.mulf %2437, %2419 : vector<12x14xf32>
    %2439 = arith.addf %2416, %2438 : vector<12x14xf32>
    %2440 = vector.extract_strided_slice %2417 {offsets = [1, 0, 0], sizes = [1, 12, 14], strides = [1, 1, 1]} : vector<5x12x14xf32> to vector<1x12x14xf32>
    %2441 = vector.shape_cast %2440 : vector<1x12x14xf32> to vector<12x14xf32>
    %c7_520 = arith.constant 7 : index
    %2442 = memref.load %arg2[%c7_520] : memref<100xf32, #tpu.memory_space<smem>>
    %2443 = vector.broadcast %2442 : f32 to vector<12x14xf32>
    %2444 = arith.mulf %2443, %2441 : vector<12x14xf32>
    %2445 = arith.addf %2423, %2444 : vector<12x14xf32>
    %c27_521 = arith.constant 27 : index
    %2446 = memref.load %arg2[%c27_521] : memref<100xf32, #tpu.memory_space<smem>>
    %2447 = vector.broadcast %2446 : f32 to vector<12x14xf32>
    %2448 = arith.mulf %2447, %2441 : vector<12x14xf32>
    %2449 = arith.addf %2427, %2448 : vector<12x14xf32>
    %c47_522 = arith.constant 47 : index
    %2450 = memref.load %arg2[%c47_522] : memref<100xf32, #tpu.memory_space<smem>>
    %2451 = vector.broadcast %2450 : f32 to vector<12x14xf32>
    %2452 = arith.mulf %2451, %2441 : vector<12x14xf32>
    %2453 = arith.addf %2431, %2452 : vector<12x14xf32>
    %c67_523 = arith.constant 67 : index
    %2454 = memref.load %arg2[%c67_523] : memref<100xf32, #tpu.memory_space<smem>>
    %2455 = vector.broadcast %2454 : f32 to vector<12x14xf32>
    %2456 = arith.mulf %2455, %2441 : vector<12x14xf32>
    %2457 = arith.addf %2435, %2456 : vector<12x14xf32>
    %c87_524 = arith.constant 87 : index
    %2458 = memref.load %arg2[%c87_524] : memref<100xf32, #tpu.memory_space<smem>>
    %2459 = vector.broadcast %2458 : f32 to vector<12x14xf32>
    %2460 = arith.mulf %2459, %2441 : vector<12x14xf32>
    %2461 = arith.addf %2439, %2460 : vector<12x14xf32>
    %2462 = vector.extract_strided_slice %2417 {offsets = [2, 0, 0], sizes = [1, 12, 14], strides = [1, 1, 1]} : vector<5x12x14xf32> to vector<1x12x14xf32>
    %2463 = vector.shape_cast %2462 : vector<1x12x14xf32> to vector<12x14xf32>
    %c11_525 = arith.constant 11 : index
    %2464 = memref.load %arg2[%c11_525] : memref<100xf32, #tpu.memory_space<smem>>
    %2465 = vector.broadcast %2464 : f32 to vector<12x14xf32>
    %2466 = arith.mulf %2465, %2463 : vector<12x14xf32>
    %2467 = arith.addf %2445, %2466 : vector<12x14xf32>
    %c31_526 = arith.constant 31 : index
    %2468 = memref.load %arg2[%c31_526] : memref<100xf32, #tpu.memory_space<smem>>
    %2469 = vector.broadcast %2468 : f32 to vector<12x14xf32>
    %2470 = arith.mulf %2469, %2463 : vector<12x14xf32>
    %2471 = arith.addf %2449, %2470 : vector<12x14xf32>
    %c51_527 = arith.constant 51 : index
    %2472 = memref.load %arg2[%c51_527] : memref<100xf32, #tpu.memory_space<smem>>
    %2473 = vector.broadcast %2472 : f32 to vector<12x14xf32>
    %2474 = arith.mulf %2473, %2463 : vector<12x14xf32>
    %2475 = arith.addf %2453, %2474 : vector<12x14xf32>
    %c71_528 = arith.constant 71 : index
    %2476 = memref.load %arg2[%c71_528] : memref<100xf32, #tpu.memory_space<smem>>
    %2477 = vector.broadcast %2476 : f32 to vector<12x14xf32>
    %2478 = arith.mulf %2477, %2463 : vector<12x14xf32>
    %2479 = arith.addf %2457, %2478 : vector<12x14xf32>
    %c91_529 = arith.constant 91 : index
    %2480 = memref.load %arg2[%c91_529] : memref<100xf32, #tpu.memory_space<smem>>
    %2481 = vector.broadcast %2480 : f32 to vector<12x14xf32>
    %2482 = arith.mulf %2481, %2463 : vector<12x14xf32>
    %2483 = arith.addf %2461, %2482 : vector<12x14xf32>
    %2484 = vector.extract_strided_slice %2417 {offsets = [3, 0, 0], sizes = [1, 12, 14], strides = [1, 1, 1]} : vector<5x12x14xf32> to vector<1x12x14xf32>
    %2485 = vector.shape_cast %2484 : vector<1x12x14xf32> to vector<12x14xf32>
    %c15_530 = arith.constant 15 : index
    %2486 = memref.load %arg2[%c15_530] : memref<100xf32, #tpu.memory_space<smem>>
    %2487 = vector.broadcast %2486 : f32 to vector<12x14xf32>
    %2488 = arith.mulf %2487, %2485 : vector<12x14xf32>
    %2489 = arith.addf %2467, %2488 : vector<12x14xf32>
    %c35_531 = arith.constant 35 : index
    %2490 = memref.load %arg2[%c35_531] : memref<100xf32, #tpu.memory_space<smem>>
    %2491 = vector.broadcast %2490 : f32 to vector<12x14xf32>
    %2492 = arith.mulf %2491, %2485 : vector<12x14xf32>
    %2493 = arith.addf %2471, %2492 : vector<12x14xf32>
    %c55_532 = arith.constant 55 : index
    %2494 = memref.load %arg2[%c55_532] : memref<100xf32, #tpu.memory_space<smem>>
    %2495 = vector.broadcast %2494 : f32 to vector<12x14xf32>
    %2496 = arith.mulf %2495, %2485 : vector<12x14xf32>
    %2497 = arith.addf %2475, %2496 : vector<12x14xf32>
    %c75_533 = arith.constant 75 : index
    %2498 = memref.load %arg2[%c75_533] : memref<100xf32, #tpu.memory_space<smem>>
    %2499 = vector.broadcast %2498 : f32 to vector<12x14xf32>
    %2500 = arith.mulf %2499, %2485 : vector<12x14xf32>
    %2501 = arith.addf %2479, %2500 : vector<12x14xf32>
    %c95_534 = arith.constant 95 : index
    %2502 = memref.load %arg2[%c95_534] : memref<100xf32, #tpu.memory_space<smem>>
    %2503 = vector.broadcast %2502 : f32 to vector<12x14xf32>
    %2504 = arith.mulf %2503, %2485 : vector<12x14xf32>
    %2505 = arith.addf %2483, %2504 : vector<12x14xf32>
    %2506 = vector.extract_strided_slice %2417 {offsets = [4, 0, 0], sizes = [1, 12, 14], strides = [1, 1, 1]} : vector<5x12x14xf32> to vector<1x12x14xf32>
    %2507 = vector.shape_cast %2506 : vector<1x12x14xf32> to vector<12x14xf32>
    %c19_535 = arith.constant 19 : index
    %2508 = memref.load %arg2[%c19_535] : memref<100xf32, #tpu.memory_space<smem>>
    %2509 = vector.broadcast %2508 : f32 to vector<12x14xf32>
    %2510 = arith.mulf %2509, %2507 : vector<12x14xf32>
    %2511 = arith.addf %2489, %2510 : vector<12x14xf32>
    %c39_536 = arith.constant 39 : index
    %2512 = memref.load %arg2[%c39_536] : memref<100xf32, #tpu.memory_space<smem>>
    %2513 = vector.broadcast %2512 : f32 to vector<12x14xf32>
    %2514 = arith.mulf %2513, %2507 : vector<12x14xf32>
    %2515 = arith.addf %2493, %2514 : vector<12x14xf32>
    %c59_537 = arith.constant 59 : index
    %2516 = memref.load %arg2[%c59_537] : memref<100xf32, #tpu.memory_space<smem>>
    %2517 = vector.broadcast %2516 : f32 to vector<12x14xf32>
    %2518 = arith.mulf %2517, %2507 : vector<12x14xf32>
    %2519 = arith.addf %2497, %2518 : vector<12x14xf32>
    %c79_538 = arith.constant 79 : index
    %2520 = memref.load %arg2[%c79_538] : memref<100xf32, #tpu.memory_space<smem>>
    %2521 = vector.broadcast %2520 : f32 to vector<12x14xf32>
    %2522 = arith.mulf %2521, %2507 : vector<12x14xf32>
    %2523 = arith.addf %2501, %2522 : vector<12x14xf32>
    %c99_539 = arith.constant 99 : index
    %2524 = memref.load %arg2[%c99_539] : memref<100xf32, #tpu.memory_space<smem>>
    %2525 = vector.broadcast %2524 : f32 to vector<12x14xf32>
    %2526 = arith.mulf %2525, %2507 : vector<12x14xf32>
    %2527 = arith.addf %2505, %2526 : vector<12x14xf32>
    %c0_540 = arith.constant 0 : index
    %2528 = memref.load %arg3[%c0_540] : memref<5xf32, #tpu.memory_space<smem>>
    %2529 = vector.broadcast %2528 : f32 to vector<12x14xf32>
    %2530 = arith.addf %2511, %2529 : vector<12x14xf32>
    %c1_541 = arith.constant 1 : index
    %2531 = memref.load %arg3[%c1_541] : memref<5xf32, #tpu.memory_space<smem>>
    %2532 = vector.broadcast %2531 : f32 to vector<12x14xf32>
    %2533 = arith.addf %2515, %2532 : vector<12x14xf32>
    %c2_542 = arith.constant 2 : index
    %2534 = memref.load %arg3[%c2_542] : memref<5xf32, #tpu.memory_space<smem>>
    %2535 = vector.broadcast %2534 : f32 to vector<12x14xf32>
    %2536 = arith.addf %2519, %2535 : vector<12x14xf32>
    %c3_543 = arith.constant 3 : index
    %2537 = memref.load %arg3[%c3_543] : memref<5xf32, #tpu.memory_space<smem>>
    %2538 = vector.broadcast %2537 : f32 to vector<12x14xf32>
    %2539 = arith.addf %2523, %2538 : vector<12x14xf32>
    %c4_544 = arith.constant 4 : index
    %2540 = memref.load %arg3[%c4_544] : memref<5xf32, #tpu.memory_space<smem>>
    %2541 = vector.broadcast %2540 : f32 to vector<12x14xf32>
    %2542 = arith.addf %2527, %2541 : vector<12x14xf32>
    %2543 = math.tanh %2530 : vector<12x14xf32>
    %2544 = math.tanh %2533 : vector<12x14xf32>
    %2545 = math.tanh %2536 : vector<12x14xf32>
    %2546 = math.tanh %2539 : vector<12x14xf32>
    %2547 = math.tanh %2542 : vector<12x14xf32>
    %2548 = vector.shape_cast %2543 : vector<12x14xf32> to vector<1x12x14xf32>
    %2549 = vector.shape_cast %2544 : vector<12x14xf32> to vector<1x12x14xf32>
    %2550 = vector.shape_cast %2545 : vector<12x14xf32> to vector<1x12x14xf32>
    %2551 = vector.shape_cast %2546 : vector<12x14xf32> to vector<1x12x14xf32>
    %2552 = vector.shape_cast %2547 : vector<12x14xf32> to vector<1x12x14xf32>
    %2553 = tpu.concatenate %2548, %2549, %2550, %2551, %2552 in 0 : vector<1x12x14xf32>, vector<1x12x14xf32>, vector<1x12x14xf32>, vector<1x12x14xf32>, vector<1x12x14xf32> -> vector<5x12x14xf32>
    %c0_545 = arith.constant 0 : index
    %c2_546 = arith.constant 2 : index
    %c2_547 = arith.constant 2 : index
    %2554 = vector.load %arg10[%c0_545, %c2_546, %c2_547] : memref<5x16x18xf32, #tpu.memory_space<vmem>>, vector<5x12x14xf32>
    tpu.vector_store %arg10[%c0_545, %c2_546, %c2_547], %2553 {strides = array<i32>} : memref<5x16x18xf32, #tpu.memory_space<vmem>>, vector<5x12x14xf32>,
    %c0_548 = arith.constant 0 : index
    %c0_549 = arith.constant 0 : index
    %c0_550 = arith.constant 0 : index
    %2555 = vector.load %arg10[%c0_548, %c0_549, %c0_550] : memref<5x16x18xf32, #tpu.memory_space<vmem>>, vector<5x12x16xf32>
    %2556 = vector.extract_strided_slice %2555 {offsets = [0, 0, 0], sizes = [1, 12, 16], strides = [1, 1, 1]} : vector<5x12x16xf32> to vector<1x12x16xf32>
    %2557 = vector.shape_cast %2556 : vector<1x12x16xf32> to vector<12x16xf32>
    %c0_551 = arith.constant 0 : index
    %2558 = memref.load %arg4[%c0_551] : memref<100xf32, #tpu.memory_space<smem>>
    %2559 = vector.broadcast %2558 : f32 to vector<12x16xf32>
    %2560 = arith.mulf %2559, %2557 : vector<12x16xf32>
    %c20_552 = arith.constant 20 : index
    %2561 = memref.load %arg4[%c20_552] : memref<100xf32, #tpu.memory_space<smem>>
    %2562 = vector.broadcast %2561 : f32 to vector<12x16xf32>
    %2563 = arith.mulf %2562, %2557 : vector<12x16xf32>
    %c40_553 = arith.constant 40 : index
    %2564 = memref.load %arg4[%c40_553] : memref<100xf32, #tpu.memory_space<smem>>
    %2565 = vector.broadcast %2564 : f32 to vector<12x16xf32>
    %2566 = arith.mulf %2565, %2557 : vector<12x16xf32>
    %c60_554 = arith.constant 60 : index
    %2567 = memref.load %arg4[%c60_554] : memref<100xf32, #tpu.memory_space<smem>>
    %2568 = vector.broadcast %2567 : f32 to vector<12x16xf32>
    %2569 = arith.mulf %2568, %2557 : vector<12x16xf32>
    %c80_555 = arith.constant 80 : index
    %2570 = memref.load %arg4[%c80_555] : memref<100xf32, #tpu.memory_space<smem>>
    %2571 = vector.broadcast %2570 : f32 to vector<12x16xf32>
    %2572 = arith.mulf %2571, %2557 : vector<12x16xf32>
    %2573 = vector.extract_strided_slice %2555 {offsets = [1, 0, 0], sizes = [1, 12, 16], strides = [1, 1, 1]} : vector<5x12x16xf32> to vector<1x12x16xf32>
    %2574 = vector.shape_cast %2573 : vector<1x12x16xf32> to vector<12x16xf32>
    %c4_556 = arith.constant 4 : index
    %2575 = memref.load %arg4[%c4_556] : memref<100xf32, #tpu.memory_space<smem>>
    %2576 = vector.broadcast %2575 : f32 to vector<12x16xf32>
    %2577 = arith.mulf %2576, %2574 : vector<12x16xf32>
    %2578 = arith.addf %2560, %2577 : vector<12x16xf32>
    %c24_557 = arith.constant 24 : index
    %2579 = memref.load %arg4[%c24_557] : memref<100xf32, #tpu.memory_space<smem>>
    %2580 = vector.broadcast %2579 : f32 to vector<12x16xf32>
    %2581 = arith.mulf %2580, %2574 : vector<12x16xf32>
    %2582 = arith.addf %2563, %2581 : vector<12x16xf32>
    %c44_558 = arith.constant 44 : index
    %2583 = memref.load %arg4[%c44_558] : memref<100xf32, #tpu.memory_space<smem>>
    %2584 = vector.broadcast %2583 : f32 to vector<12x16xf32>
    %2585 = arith.mulf %2584, %2574 : vector<12x16xf32>
    %2586 = arith.addf %2566, %2585 : vector<12x16xf32>
    %c64_559 = arith.constant 64 : index
    %2587 = memref.load %arg4[%c64_559] : memref<100xf32, #tpu.memory_space<smem>>
    %2588 = vector.broadcast %2587 : f32 to vector<12x16xf32>
    %2589 = arith.mulf %2588, %2574 : vector<12x16xf32>
    %2590 = arith.addf %2569, %2589 : vector<12x16xf32>
    %c84_560 = arith.constant 84 : index
    %2591 = memref.load %arg4[%c84_560] : memref<100xf32, #tpu.memory_space<smem>>
    %2592 = vector.broadcast %2591 : f32 to vector<12x16xf32>
    %2593 = arith.mulf %2592, %2574 : vector<12x16xf32>
    %2594 = arith.addf %2572, %2593 : vector<12x16xf32>
    %2595 = vector.extract_strided_slice %2555 {offsets = [2, 0, 0], sizes = [1, 12, 16], strides = [1, 1, 1]} : vector<5x12x16xf32> to vector<1x12x16xf32>
    %2596 = vector.shape_cast %2595 : vector<1x12x16xf32> to vector<12x16xf32>
    %c8_561 = arith.constant 8 : index
    %2597 = memref.load %arg4[%c8_561] : memref<100xf32, #tpu.memory_space<smem>>
    %2598 = vector.broadcast %2597 : f32 to vector<12x16xf32>
    %2599 = arith.mulf %2598, %2596 : vector<12x16xf32>
    %2600 = arith.addf %2578, %2599 : vector<12x16xf32>
    %c28_562 = arith.constant 28 : index
    %2601 = memref.load %arg4[%c28_562] : memref<100xf32, #tpu.memory_space<smem>>
    %2602 = vector.broadcast %2601 : f32 to vector<12x16xf32>
    %2603 = arith.mulf %2602, %2596 : vector<12x16xf32>
    %2604 = arith.addf %2582, %2603 : vector<12x16xf32>
    %c48_563 = arith.constant 48 : index
    %2605 = memref.load %arg4[%c48_563] : memref<100xf32, #tpu.memory_space<smem>>
    %2606 = vector.broadcast %2605 : f32 to vector<12x16xf32>
    %2607 = arith.mulf %2606, %2596 : vector<12x16xf32>
    %2608 = arith.addf %2586, %2607 : vector<12x16xf32>
    %c68_564 = arith.constant 68 : index
    %2609 = memref.load %arg4[%c68_564] : memref<100xf32, #tpu.memory_space<smem>>
    %2610 = vector.broadcast %2609 : f32 to vector<12x16xf32>
    %2611 = arith.mulf %2610, %2596 : vector<12x16xf32>
    %2612 = arith.addf %2590, %2611 : vector<12x16xf32>
    %c88_565 = arith.constant 88 : index
    %2613 = memref.load %arg4[%c88_565] : memref<100xf32, #tpu.memory_space<smem>>
    %2614 = vector.broadcast %2613 : f32 to vector<12x16xf32>
    %2615 = arith.mulf %2614, %2596 : vector<12x16xf32>
    %2616 = arith.addf %2594, %2615 : vector<12x16xf32>
    %2617 = vector.extract_strided_slice %2555 {offsets = [3, 0, 0], sizes = [1, 12, 16], strides = [1, 1, 1]} : vector<5x12x16xf32> to vector<1x12x16xf32>
    %2618 = vector.shape_cast %2617 : vector<1x12x16xf32> to vector<12x16xf32>
    %c12_566 = arith.constant 12 : index
    %2619 = memref.load %arg4[%c12_566] : memref<100xf32, #tpu.memory_space<smem>>
    %2620 = vector.broadcast %2619 : f32 to vector<12x16xf32>
    %2621 = arith.mulf %2620, %2618 : vector<12x16xf32>
    %2622 = arith.addf %2600, %2621 : vector<12x16xf32>
    %c32_567 = arith.constant 32 : index
    %2623 = memref.load %arg4[%c32_567] : memref<100xf32, #tpu.memory_space<smem>>
    %2624 = vector.broadcast %2623 : f32 to vector<12x16xf32>
    %2625 = arith.mulf %2624, %2618 : vector<12x16xf32>
    %2626 = arith.addf %2604, %2625 : vector<12x16xf32>
    %c52_568 = arith.constant 52 : index
    %2627 = memref.load %arg4[%c52_568] : memref<100xf32, #tpu.memory_space<smem>>
    %2628 = vector.broadcast %2627 : f32 to vector<12x16xf32>
    %2629 = arith.mulf %2628, %2618 : vector<12x16xf32>
    %2630 = arith.addf %2608, %2629 : vector<12x16xf32>
    %c72_569 = arith.constant 72 : index
    %2631 = memref.load %arg4[%c72_569] : memref<100xf32, #tpu.memory_space<smem>>
    %2632 = vector.broadcast %2631 : f32 to vector<12x16xf32>
    %2633 = arith.mulf %2632, %2618 : vector<12x16xf32>
    %2634 = arith.addf %2612, %2633 : vector<12x16xf32>
    %c92_570 = arith.constant 92 : index
    %2635 = memref.load %arg4[%c92_570] : memref<100xf32, #tpu.memory_space<smem>>
    %2636 = vector.broadcast %2635 : f32 to vector<12x16xf32>
    %2637 = arith.mulf %2636, %2618 : vector<12x16xf32>
    %2638 = arith.addf %2616, %2637 : vector<12x16xf32>
    %2639 = vector.extract_strided_slice %2555 {offsets = [4, 0, 0], sizes = [1, 12, 16], strides = [1, 1, 1]} : vector<5x12x16xf32> to vector<1x12x16xf32>
    %2640 = vector.shape_cast %2639 : vector<1x12x16xf32> to vector<12x16xf32>
    %c16_571 = arith.constant 16 : index
    %2641 = memref.load %arg4[%c16_571] : memref<100xf32, #tpu.memory_space<smem>>
    %2642 = vector.broadcast %2641 : f32 to vector<12x16xf32>
    %2643 = arith.mulf %2642, %2640 : vector<12x16xf32>
    %2644 = arith.addf %2622, %2643 : vector<12x16xf32>
    %c36_572 = arith.constant 36 : index
    %2645 = memref.load %arg4[%c36_572] : memref<100xf32, #tpu.memory_space<smem>>
    %2646 = vector.broadcast %2645 : f32 to vector<12x16xf32>
    %2647 = arith.mulf %2646, %2640 : vector<12x16xf32>
    %2648 = arith.addf %2626, %2647 : vector<12x16xf32>
    %c56_573 = arith.constant 56 : index
    %2649 = memref.load %arg4[%c56_573] : memref<100xf32, #tpu.memory_space<smem>>
    %2650 = vector.broadcast %2649 : f32 to vector<12x16xf32>
    %2651 = arith.mulf %2650, %2640 : vector<12x16xf32>
    %2652 = arith.addf %2630, %2651 : vector<12x16xf32>
    %c76_574 = arith.constant 76 : index
    %2653 = memref.load %arg4[%c76_574] : memref<100xf32, #tpu.memory_space<smem>>
    %2654 = vector.broadcast %2653 : f32 to vector<12x16xf32>
    %2655 = arith.mulf %2654, %2640 : vector<12x16xf32>
    %2656 = arith.addf %2634, %2655 : vector<12x16xf32>
    %c96_575 = arith.constant 96 : index
    %2657 = memref.load %arg4[%c96_575] : memref<100xf32, #tpu.memory_space<smem>>
    %2658 = vector.broadcast %2657 : f32 to vector<12x16xf32>
    %2659 = arith.mulf %2658, %2640 : vector<12x16xf32>
    %2660 = arith.addf %2638, %2659 : vector<12x16xf32>
    %c0_576 = arith.constant 0 : index
    %c0_577 = arith.constant 0 : index
    %c2_578 = arith.constant 2 : index
    %2661 = vector.load %arg10[%c0_576, %c0_577, %c2_578] : memref<5x16x18xf32, #tpu.memory_space<vmem>>, vector<5x12x16xf32>
    %2662 = vector.extract_strided_slice %2661 {offsets = [0, 0, 0], sizes = [1, 12, 16], strides = [1, 1, 1]} : vector<5x12x16xf32> to vector<1x12x16xf32>
    %2663 = vector.shape_cast %2662 : vector<1x12x16xf32> to vector<12x16xf32>
    %c1_579 = arith.constant 1 : index
    %2664 = memref.load %arg4[%c1_579] : memref<100xf32, #tpu.memory_space<smem>>
    %2665 = vector.broadcast %2664 : f32 to vector<12x16xf32>
    %2666 = arith.mulf %2665, %2663 : vector<12x16xf32>
    %2667 = arith.addf %2644, %2666 : vector<12x16xf32>
    %c21_580 = arith.constant 21 : index
    %2668 = memref.load %arg4[%c21_580] : memref<100xf32, #tpu.memory_space<smem>>
    %2669 = vector.broadcast %2668 : f32 to vector<12x16xf32>
    %2670 = arith.mulf %2669, %2663 : vector<12x16xf32>
    %2671 = arith.addf %2648, %2670 : vector<12x16xf32>
    %c41_581 = arith.constant 41 : index
    %2672 = memref.load %arg4[%c41_581] : memref<100xf32, #tpu.memory_space<smem>>
    %2673 = vector.broadcast %2672 : f32 to vector<12x16xf32>
    %2674 = arith.mulf %2673, %2663 : vector<12x16xf32>
    %2675 = arith.addf %2652, %2674 : vector<12x16xf32>
    %c61_582 = arith.constant 61 : index
    %2676 = memref.load %arg4[%c61_582] : memref<100xf32, #tpu.memory_space<smem>>
    %2677 = vector.broadcast %2676 : f32 to vector<12x16xf32>
    %2678 = arith.mulf %2677, %2663 : vector<12x16xf32>
    %2679 = arith.addf %2656, %2678 : vector<12x16xf32>
    %c81_583 = arith.constant 81 : index
    %2680 = memref.load %arg4[%c81_583] : memref<100xf32, #tpu.memory_space<smem>>
    %2681 = vector.broadcast %2680 : f32 to vector<12x16xf32>
    %2682 = arith.mulf %2681, %2663 : vector<12x16xf32>
    %2683 = arith.addf %2660, %2682 : vector<12x16xf32>
    %2684 = vector.extract_strided_slice %2661 {offsets = [1, 0, 0], sizes = [1, 12, 16], strides = [1, 1, 1]} : vector<5x12x16xf32> to vector<1x12x16xf32>
    %2685 = vector.shape_cast %2684 : vector<1x12x16xf32> to vector<12x16xf32>
    %c5_584 = arith.constant 5 : index
    %2686 = memref.load %arg4[%c5_584] : memref<100xf32, #tpu.memory_space<smem>>
    %2687 = vector.broadcast %2686 : f32 to vector<12x16xf32>
    %2688 = arith.mulf %2687, %2685 : vector<12x16xf32>
    %2689 = arith.addf %2667, %2688 : vector<12x16xf32>
    %c25_585 = arith.constant 25 : index
    %2690 = memref.load %arg4[%c25_585] : memref<100xf32, #tpu.memory_space<smem>>
    %2691 = vector.broadcast %2690 : f32 to vector<12x16xf32>
    %2692 = arith.mulf %2691, %2685 : vector<12x16xf32>
    %2693 = arith.addf %2671, %2692 : vector<12x16xf32>
    %c45_586 = arith.constant 45 : index
    %2694 = memref.load %arg4[%c45_586] : memref<100xf32, #tpu.memory_space<smem>>
    %2695 = vector.broadcast %2694 : f32 to vector<12x16xf32>
    %2696 = arith.mulf %2695, %2685 : vector<12x16xf32>
    %2697 = arith.addf %2675, %2696 : vector<12x16xf32>
    %c65_587 = arith.constant 65 : index
    %2698 = memref.load %arg4[%c65_587] : memref<100xf32, #tpu.memory_space<smem>>
    %2699 = vector.broadcast %2698 : f32 to vector<12x16xf32>
    %2700 = arith.mulf %2699, %2685 : vector<12x16xf32>
    %2701 = arith.addf %2679, %2700 : vector<12x16xf32>
    %c85_588 = arith.constant 85 : index
    %2702 = memref.load %arg4[%c85_588] : memref<100xf32, #tpu.memory_space<smem>>
    %2703 = vector.broadcast %2702 : f32 to vector<12x16xf32>
    %2704 = arith.mulf %2703, %2685 : vector<12x16xf32>
    %2705 = arith.addf %2683, %2704 : vector<12x16xf32>
    %2706 = vector.extract_strided_slice %2661 {offsets = [2, 0, 0], sizes = [1, 12, 16], strides = [1, 1, 1]} : vector<5x12x16xf32> to vector<1x12x16xf32>
    %2707 = vector.shape_cast %2706 : vector<1x12x16xf32> to vector<12x16xf32>
    %c9_589 = arith.constant 9 : index
    %2708 = memref.load %arg4[%c9_589] : memref<100xf32, #tpu.memory_space<smem>>
    %2709 = vector.broadcast %2708 : f32 to vector<12x16xf32>
    %2710 = arith.mulf %2709, %2707 : vector<12x16xf32>
    %2711 = arith.addf %2689, %2710 : vector<12x16xf32>
    %c29_590 = arith.constant 29 : index
    %2712 = memref.load %arg4[%c29_590] : memref<100xf32, #tpu.memory_space<smem>>
    %2713 = vector.broadcast %2712 : f32 to vector<12x16xf32>
    %2714 = arith.mulf %2713, %2707 : vector<12x16xf32>
    %2715 = arith.addf %2693, %2714 : vector<12x16xf32>
    %c49_591 = arith.constant 49 : index
    %2716 = memref.load %arg4[%c49_591] : memref<100xf32, #tpu.memory_space<smem>>
    %2717 = vector.broadcast %2716 : f32 to vector<12x16xf32>
    %2718 = arith.mulf %2717, %2707 : vector<12x16xf32>
    %2719 = arith.addf %2697, %2718 : vector<12x16xf32>
    %c69_592 = arith.constant 69 : index
    %2720 = memref.load %arg4[%c69_592] : memref<100xf32, #tpu.memory_space<smem>>
    %2721 = vector.broadcast %2720 : f32 to vector<12x16xf32>
    %2722 = arith.mulf %2721, %2707 : vector<12x16xf32>
    %2723 = arith.addf %2701, %2722 : vector<12x16xf32>
    %c89_593 = arith.constant 89 : index
    %2724 = memref.load %arg4[%c89_593] : memref<100xf32, #tpu.memory_space<smem>>
    %2725 = vector.broadcast %2724 : f32 to vector<12x16xf32>
    %2726 = arith.mulf %2725, %2707 : vector<12x16xf32>
    %2727 = arith.addf %2705, %2726 : vector<12x16xf32>
    %2728 = vector.extract_strided_slice %2661 {offsets = [3, 0, 0], sizes = [1, 12, 16], strides = [1, 1, 1]} : vector<5x12x16xf32> to vector<1x12x16xf32>
    %2729 = vector.shape_cast %2728 : vector<1x12x16xf32> to vector<12x16xf32>
    %c13_594 = arith.constant 13 : index
    %2730 = memref.load %arg4[%c13_594] : memref<100xf32, #tpu.memory_space<smem>>
    %2731 = vector.broadcast %2730 : f32 to vector<12x16xf32>
    %2732 = arith.mulf %2731, %2729 : vector<12x16xf32>
    %2733 = arith.addf %2711, %2732 : vector<12x16xf32>
    %c33_595 = arith.constant 33 : index
    %2734 = memref.load %arg4[%c33_595] : memref<100xf32, #tpu.memory_space<smem>>
    %2735 = vector.broadcast %2734 : f32 to vector<12x16xf32>
    %2736 = arith.mulf %2735, %2729 : vector<12x16xf32>
    %2737 = arith.addf %2715, %2736 : vector<12x16xf32>
    %c53_596 = arith.constant 53 : index
    %2738 = memref.load %arg4[%c53_596] : memref<100xf32, #tpu.memory_space<smem>>
    %2739 = vector.broadcast %2738 : f32 to vector<12x16xf32>
    %2740 = arith.mulf %2739, %2729 : vector<12x16xf32>
    %2741 = arith.addf %2719, %2740 : vector<12x16xf32>
    %c73_597 = arith.constant 73 : index
    %2742 = memref.load %arg4[%c73_597] : memref<100xf32, #tpu.memory_space<smem>>
    %2743 = vector.broadcast %2742 : f32 to vector<12x16xf32>
    %2744 = arith.mulf %2743, %2729 : vector<12x16xf32>
    %2745 = arith.addf %2723, %2744 : vector<12x16xf32>
    %c93_598 = arith.constant 93 : index
    %2746 = memref.load %arg4[%c93_598] : memref<100xf32, #tpu.memory_space<smem>>
    %2747 = vector.broadcast %2746 : f32 to vector<12x16xf32>
    %2748 = arith.mulf %2747, %2729 : vector<12x16xf32>
    %2749 = arith.addf %2727, %2748 : vector<12x16xf32>
    %2750 = vector.extract_strided_slice %2661 {offsets = [4, 0, 0], sizes = [1, 12, 16], strides = [1, 1, 1]} : vector<5x12x16xf32> to vector<1x12x16xf32>
    %2751 = vector.shape_cast %2750 : vector<1x12x16xf32> to vector<12x16xf32>
    %c17_599 = arith.constant 17 : index
    %2752 = memref.load %arg4[%c17_599] : memref<100xf32, #tpu.memory_space<smem>>
    %2753 = vector.broadcast %2752 : f32 to vector<12x16xf32>
    %2754 = arith.mulf %2753, %2751 : vector<12x16xf32>
    %2755 = arith.addf %2733, %2754 : vector<12x16xf32>
    %c37_600 = arith.constant 37 : index
    %2756 = memref.load %arg4[%c37_600] : memref<100xf32, #tpu.memory_space<smem>>
    %2757 = vector.broadcast %2756 : f32 to vector<12x16xf32>
    %2758 = arith.mulf %2757, %2751 : vector<12x16xf32>
    %2759 = arith.addf %2737, %2758 : vector<12x16xf32>
    %c57_601 = arith.constant 57 : index
    %2760 = memref.load %arg4[%c57_601] : memref<100xf32, #tpu.memory_space<smem>>
    %2761 = vector.broadcast %2760 : f32 to vector<12x16xf32>
    %2762 = arith.mulf %2761, %2751 : vector<12x16xf32>
    %2763 = arith.addf %2741, %2762 : vector<12x16xf32>
    %c77_602 = arith.constant 77 : index
    %2764 = memref.load %arg4[%c77_602] : memref<100xf32, #tpu.memory_space<smem>>
    %2765 = vector.broadcast %2764 : f32 to vector<12x16xf32>
    %2766 = arith.mulf %2765, %2751 : vector<12x16xf32>
    %2767 = arith.addf %2745, %2766 : vector<12x16xf32>
    %c97_603 = arith.constant 97 : index
    %2768 = memref.load %arg4[%c97_603] : memref<100xf32, #tpu.memory_space<smem>>
    %2769 = vector.broadcast %2768 : f32 to vector<12x16xf32>
    %2770 = arith.mulf %2769, %2751 : vector<12x16xf32>
    %2771 = arith.addf %2749, %2770 : vector<12x16xf32>
    %c0_604 = arith.constant 0 : index
    %c2_605 = arith.constant 2 : index
    %c0_606 = arith.constant 0 : index
    %2772 = vector.load %arg10[%c0_604, %c2_605, %c0_606] : memref<5x16x18xf32, #tpu.memory_space<vmem>>, vector<5x12x16xf32>
    %2773 = vector.extract_strided_slice %2772 {offsets = [0, 0, 0], sizes = [1, 12, 16], strides = [1, 1, 1]} : vector<5x12x16xf32> to vector<1x12x16xf32>
    %2774 = vector.shape_cast %2773 : vector<1x12x16xf32> to vector<12x16xf32>
    %c2_607 = arith.constant 2 : index
    %2775 = memref.load %arg4[%c2_607] : memref<100xf32, #tpu.memory_space<smem>>
    %2776 = vector.broadcast %2775 : f32 to vector<12x16xf32>
    %2777 = arith.mulf %2776, %2774 : vector<12x16xf32>
    %2778 = arith.addf %2755, %2777 : vector<12x16xf32>
    %c22_608 = arith.constant 22 : index
    %2779 = memref.load %arg4[%c22_608] : memref<100xf32, #tpu.memory_space<smem>>
    %2780 = vector.broadcast %2779 : f32 to vector<12x16xf32>
    %2781 = arith.mulf %2780, %2774 : vector<12x16xf32>
    %2782 = arith.addf %2759, %2781 : vector<12x16xf32>
    %c42_609 = arith.constant 42 : index
    %2783 = memref.load %arg4[%c42_609] : memref<100xf32, #tpu.memory_space<smem>>
    %2784 = vector.broadcast %2783 : f32 to vector<12x16xf32>
    %2785 = arith.mulf %2784, %2774 : vector<12x16xf32>
    %2786 = arith.addf %2763, %2785 : vector<12x16xf32>
    %c62_610 = arith.constant 62 : index
    %2787 = memref.load %arg4[%c62_610] : memref<100xf32, #tpu.memory_space<smem>>
    %2788 = vector.broadcast %2787 : f32 to vector<12x16xf32>
    %2789 = arith.mulf %2788, %2774 : vector<12x16xf32>
    %2790 = arith.addf %2767, %2789 : vector<12x16xf32>
    %c82_611 = arith.constant 82 : index
    %2791 = memref.load %arg4[%c82_611] : memref<100xf32, #tpu.memory_space<smem>>
    %2792 = vector.broadcast %2791 : f32 to vector<12x16xf32>
    %2793 = arith.mulf %2792, %2774 : vector<12x16xf32>
    %2794 = arith.addf %2771, %2793 : vector<12x16xf32>
    %2795 = vector.extract_strided_slice %2772 {offsets = [1, 0, 0], sizes = [1, 12, 16], strides = [1, 1, 1]} : vector<5x12x16xf32> to vector<1x12x16xf32>
    %2796 = vector.shape_cast %2795 : vector<1x12x16xf32> to vector<12x16xf32>
    %c6_612 = arith.constant 6 : index
    %2797 = memref.load %arg4[%c6_612] : memref<100xf32, #tpu.memory_space<smem>>
    %2798 = vector.broadcast %2797 : f32 to vector<12x16xf32>
    %2799 = arith.mulf %2798, %2796 : vector<12x16xf32>
    %2800 = arith.addf %2778, %2799 : vector<12x16xf32>
    %c26_613 = arith.constant 26 : index
    %2801 = memref.load %arg4[%c26_613] : memref<100xf32, #tpu.memory_space<smem>>
    %2802 = vector.broadcast %2801 : f32 to vector<12x16xf32>
    %2803 = arith.mulf %2802, %2796 : vector<12x16xf32>
    %2804 = arith.addf %2782, %2803 : vector<12x16xf32>
    %c46_614 = arith.constant 46 : index
    %2805 = memref.load %arg4[%c46_614] : memref<100xf32, #tpu.memory_space<smem>>
    %2806 = vector.broadcast %2805 : f32 to vector<12x16xf32>
    %2807 = arith.mulf %2806, %2796 : vector<12x16xf32>
    %2808 = arith.addf %2786, %2807 : vector<12x16xf32>
    %c66_615 = arith.constant 66 : index
    %2809 = memref.load %arg4[%c66_615] : memref<100xf32, #tpu.memory_space<smem>>
    %2810 = vector.broadcast %2809 : f32 to vector<12x16xf32>
    %2811 = arith.mulf %2810, %2796 : vector<12x16xf32>
    %2812 = arith.addf %2790, %2811 : vector<12x16xf32>
    %c86_616 = arith.constant 86 : index
    %2813 = memref.load %arg4[%c86_616] : memref<100xf32, #tpu.memory_space<smem>>
    %2814 = vector.broadcast %2813 : f32 to vector<12x16xf32>
    %2815 = arith.mulf %2814, %2796 : vector<12x16xf32>
    %2816 = arith.addf %2794, %2815 : vector<12x16xf32>
    %2817 = vector.extract_strided_slice %2772 {offsets = [2, 0, 0], sizes = [1, 12, 16], strides = [1, 1, 1]} : vector<5x12x16xf32> to vector<1x12x16xf32>
    %2818 = vector.shape_cast %2817 : vector<1x12x16xf32> to vector<12x16xf32>
    %c10_617 = arith.constant 10 : index
    %2819 = memref.load %arg4[%c10_617] : memref<100xf32, #tpu.memory_space<smem>>
    %2820 = vector.broadcast %2819 : f32 to vector<12x16xf32>
    %2821 = arith.mulf %2820, %2818 : vector<12x16xf32>
    %2822 = arith.addf %2800, %2821 : vector<12x16xf32>
    %c30_618 = arith.constant 30 : index
    %2823 = memref.load %arg4[%c30_618] : memref<100xf32, #tpu.memory_space<smem>>
    %2824 = vector.broadcast %2823 : f32 to vector<12x16xf32>
    %2825 = arith.mulf %2824, %2818 : vector<12x16xf32>
    %2826 = arith.addf %2804, %2825 : vector<12x16xf32>
    %c50_619 = arith.constant 50 : index
    %2827 = memref.load %arg4[%c50_619] : memref<100xf32, #tpu.memory_space<smem>>
    %2828 = vector.broadcast %2827 : f32 to vector<12x16xf32>
    %2829 = arith.mulf %2828, %2818 : vector<12x16xf32>
    %2830 = arith.addf %2808, %2829 : vector<12x16xf32>
    %c70_620 = arith.constant 70 : index
    %2831 = memref.load %arg4[%c70_620] : memref<100xf32, #tpu.memory_space<smem>>
    %2832 = vector.broadcast %2831 : f32 to vector<12x16xf32>
    %2833 = arith.mulf %2832, %2818 : vector<12x16xf32>
    %2834 = arith.addf %2812, %2833 : vector<12x16xf32>
    %c90_621 = arith.constant 90 : index
    %2835 = memref.load %arg4[%c90_621] : memref<100xf32, #tpu.memory_space<smem>>
    %2836 = vector.broadcast %2835 : f32 to vector<12x16xf32>
    %2837 = arith.mulf %2836, %2818 : vector<12x16xf32>
    %2838 = arith.addf %2816, %2837 : vector<12x16xf32>
    %2839 = vector.extract_strided_slice %2772 {offsets = [3, 0, 0], sizes = [1, 12, 16], strides = [1, 1, 1]} : vector<5x12x16xf32> to vector<1x12x16xf32>
    %2840 = vector.shape_cast %2839 : vector<1x12x16xf32> to vector<12x16xf32>
    %c14_622 = arith.constant 14 : index
    %2841 = memref.load %arg4[%c14_622] : memref<100xf32, #tpu.memory_space<smem>>
    %2842 = vector.broadcast %2841 : f32 to vector<12x16xf32>
    %2843 = arith.mulf %2842, %2840 : vector<12x16xf32>
    %2844 = arith.addf %2822, %2843 : vector<12x16xf32>
    %c34_623 = arith.constant 34 : index
    %2845 = memref.load %arg4[%c34_623] : memref<100xf32, #tpu.memory_space<smem>>
    %2846 = vector.broadcast %2845 : f32 to vector<12x16xf32>
    %2847 = arith.mulf %2846, %2840 : vector<12x16xf32>
    %2848 = arith.addf %2826, %2847 : vector<12x16xf32>
    %c54_624 = arith.constant 54 : index
    %2849 = memref.load %arg4[%c54_624] : memref<100xf32, #tpu.memory_space<smem>>
    %2850 = vector.broadcast %2849 : f32 to vector<12x16xf32>
    %2851 = arith.mulf %2850, %2840 : vector<12x16xf32>
    %2852 = arith.addf %2830, %2851 : vector<12x16xf32>
    %c74_625 = arith.constant 74 : index
    %2853 = memref.load %arg4[%c74_625] : memref<100xf32, #tpu.memory_space<smem>>
    %2854 = vector.broadcast %2853 : f32 to vector<12x16xf32>
    %2855 = arith.mulf %2854, %2840 : vector<12x16xf32>
    %2856 = arith.addf %2834, %2855 : vector<12x16xf32>
    %c94_626 = arith.constant 94 : index
    %2857 = memref.load %arg4[%c94_626] : memref<100xf32, #tpu.memory_space<smem>>
    %2858 = vector.broadcast %2857 : f32 to vector<12x16xf32>
    %2859 = arith.mulf %2858, %2840 : vector<12x16xf32>
    %2860 = arith.addf %2838, %2859 : vector<12x16xf32>
    %2861 = vector.extract_strided_slice %2772 {offsets = [4, 0, 0], sizes = [1, 12, 16], strides = [1, 1, 1]} : vector<5x12x16xf32> to vector<1x12x16xf32>
    %2862 = vector.shape_cast %2861 : vector<1x12x16xf32> to vector<12x16xf32>
    %c18_627 = arith.constant 18 : index
    %2863 = memref.load %arg4[%c18_627] : memref<100xf32, #tpu.memory_space<smem>>
    %2864 = vector.broadcast %2863 : f32 to vector<12x16xf32>
    %2865 = arith.mulf %2864, %2862 : vector<12x16xf32>
    %2866 = arith.addf %2844, %2865 : vector<12x16xf32>
    %c38_628 = arith.constant 38 : index
    %2867 = memref.load %arg4[%c38_628] : memref<100xf32, #tpu.memory_space<smem>>
    %2868 = vector.broadcast %2867 : f32 to vector<12x16xf32>
    %2869 = arith.mulf %2868, %2862 : vector<12x16xf32>
    %2870 = arith.addf %2848, %2869 : vector<12x16xf32>
    %c58_629 = arith.constant 58 : index
    %2871 = memref.load %arg4[%c58_629] : memref<100xf32, #tpu.memory_space<smem>>
    %2872 = vector.broadcast %2871 : f32 to vector<12x16xf32>
    %2873 = arith.mulf %2872, %2862 : vector<12x16xf32>
    %2874 = arith.addf %2852, %2873 : vector<12x16xf32>
    %c78_630 = arith.constant 78 : index
    %2875 = memref.load %arg4[%c78_630] : memref<100xf32, #tpu.memory_space<smem>>
    %2876 = vector.broadcast %2875 : f32 to vector<12x16xf32>
    %2877 = arith.mulf %2876, %2862 : vector<12x16xf32>
    %2878 = arith.addf %2856, %2877 : vector<12x16xf32>
    %c98_631 = arith.constant 98 : index
    %2879 = memref.load %arg4[%c98_631] : memref<100xf32, #tpu.memory_space<smem>>
    %2880 = vector.broadcast %2879 : f32 to vector<12x16xf32>
    %2881 = arith.mulf %2880, %2862 : vector<12x16xf32>
    %2882 = arith.addf %2860, %2881 : vector<12x16xf32>
    %c0_632 = arith.constant 0 : index
    %c2_633 = arith.constant 2 : index
    %c2_634 = arith.constant 2 : index
    %2883 = vector.load %arg10[%c0_632, %c2_633, %c2_634] : memref<5x16x18xf32, #tpu.memory_space<vmem>>, vector<5x12x16xf32>
    %2884 = vector.extract_strided_slice %2883 {offsets = [0, 0, 0], sizes = [1, 12, 16], strides = [1, 1, 1]} : vector<5x12x16xf32> to vector<1x12x16xf32>
    %2885 = vector.shape_cast %2884 : vector<1x12x16xf32> to vector<12x16xf32>
    %c3_635 = arith.constant 3 : index
    %2886 = memref.load %arg4[%c3_635] : memref<100xf32, #tpu.memory_space<smem>>
    %2887 = vector.broadcast %2886 : f32 to vector<12x16xf32>
    %2888 = arith.mulf %2887, %2885 : vector<12x16xf32>
    %2889 = arith.addf %2866, %2888 : vector<12x16xf32>
    %c23_636 = arith.constant 23 : index
    %2890 = memref.load %arg4[%c23_636] : memref<100xf32, #tpu.memory_space<smem>>
    %2891 = vector.broadcast %2890 : f32 to vector<12x16xf32>
    %2892 = arith.mulf %2891, %2885 : vector<12x16xf32>
    %2893 = arith.addf %2870, %2892 : vector<12x16xf32>
    %c43_637 = arith.constant 43 : index
    %2894 = memref.load %arg4[%c43_637] : memref<100xf32, #tpu.memory_space<smem>>
    %2895 = vector.broadcast %2894 : f32 to vector<12x16xf32>
    %2896 = arith.mulf %2895, %2885 : vector<12x16xf32>
    %2897 = arith.addf %2874, %2896 : vector<12x16xf32>
    %c63_638 = arith.constant 63 : index
    %2898 = memref.load %arg4[%c63_638] : memref<100xf32, #tpu.memory_space<smem>>
    %2899 = vector.broadcast %2898 : f32 to vector<12x16xf32>
    %2900 = arith.mulf %2899, %2885 : vector<12x16xf32>
    %2901 = arith.addf %2878, %2900 : vector<12x16xf32>
    %c83_639 = arith.constant 83 : index
    %2902 = memref.load %arg4[%c83_639] : memref<100xf32, #tpu.memory_space<smem>>
    %2903 = vector.broadcast %2902 : f32 to vector<12x16xf32>
    %2904 = arith.mulf %2903, %2885 : vector<12x16xf32>
    %2905 = arith.addf %2882, %2904 : vector<12x16xf32>
    %2906 = vector.extract_strided_slice %2883 {offsets = [1, 0, 0], sizes = [1, 12, 16], strides = [1, 1, 1]} : vector<5x12x16xf32> to vector<1x12x16xf32>
    %2907 = vector.shape_cast %2906 : vector<1x12x16xf32> to vector<12x16xf32>
    %c7_640 = arith.constant 7 : index
    %2908 = memref.load %arg4[%c7_640] : memref<100xf32, #tpu.memory_space<smem>>
    %2909 = vector.broadcast %2908 : f32 to vector<12x16xf32>
    %2910 = arith.mulf %2909, %2907 : vector<12x16xf32>
    %2911 = arith.addf %2889, %2910 : vector<12x16xf32>
    %c27_641 = arith.constant 27 : index
    %2912 = memref.load %arg4[%c27_641] : memref<100xf32, #tpu.memory_space<smem>>
    %2913 = vector.broadcast %2912 : f32 to vector<12x16xf32>
    %2914 = arith.mulf %2913, %2907 : vector<12x16xf32>
    %2915 = arith.addf %2893, %2914 : vector<12x16xf32>
    %c47_642 = arith.constant 47 : index
    %2916 = memref.load %arg4[%c47_642] : memref<100xf32, #tpu.memory_space<smem>>
    %2917 = vector.broadcast %2916 : f32 to vector<12x16xf32>
    %2918 = arith.mulf %2917, %2907 : vector<12x16xf32>
    %2919 = arith.addf %2897, %2918 : vector<12x16xf32>
    %c67_643 = arith.constant 67 : index
    %2920 = memref.load %arg4[%c67_643] : memref<100xf32, #tpu.memory_space<smem>>
    %2921 = vector.broadcast %2920 : f32 to vector<12x16xf32>
    %2922 = arith.mulf %2921, %2907 : vector<12x16xf32>
    %2923 = arith.addf %2901, %2922 : vector<12x16xf32>
    %c87_644 = arith.constant 87 : index
    %2924 = memref.load %arg4[%c87_644] : memref<100xf32, #tpu.memory_space<smem>>
    %2925 = vector.broadcast %2924 : f32 to vector<12x16xf32>
    %2926 = arith.mulf %2925, %2907 : vector<12x16xf32>
    %2927 = arith.addf %2905, %2926 : vector<12x16xf32>
    %2928 = vector.extract_strided_slice %2883 {offsets = [2, 0, 0], sizes = [1, 12, 16], strides = [1, 1, 1]} : vector<5x12x16xf32> to vector<1x12x16xf32>
    %2929 = vector.shape_cast %2928 : vector<1x12x16xf32> to vector<12x16xf32>
    %c11_645 = arith.constant 11 : index
    %2930 = memref.load %arg4[%c11_645] : memref<100xf32, #tpu.memory_space<smem>>
    %2931 = vector.broadcast %2930 : f32 to vector<12x16xf32>
    %2932 = arith.mulf %2931, %2929 : vector<12x16xf32>
    %2933 = arith.addf %2911, %2932 : vector<12x16xf32>
    %c31_646 = arith.constant 31 : index
    %2934 = memref.load %arg4[%c31_646] : memref<100xf32, #tpu.memory_space<smem>>
    %2935 = vector.broadcast %2934 : f32 to vector<12x16xf32>
    %2936 = arith.mulf %2935, %2929 : vector<12x16xf32>
    %2937 = arith.addf %2915, %2936 : vector<12x16xf32>
    %c51_647 = arith.constant 51 : index
    %2938 = memref.load %arg4[%c51_647] : memref<100xf32, #tpu.memory_space<smem>>
    %2939 = vector.broadcast %2938 : f32 to vector<12x16xf32>
    %2940 = arith.mulf %2939, %2929 : vector<12x16xf32>
    %2941 = arith.addf %2919, %2940 : vector<12x16xf32>
    %c71_648 = arith.constant 71 : index
    %2942 = memref.load %arg4[%c71_648] : memref<100xf32, #tpu.memory_space<smem>>
    %2943 = vector.broadcast %2942 : f32 to vector<12x16xf32>
    %2944 = arith.mulf %2943, %2929 : vector<12x16xf32>
    %2945 = arith.addf %2923, %2944 : vector<12x16xf32>
    %c91_649 = arith.constant 91 : index
    %2946 = memref.load %arg4[%c91_649] : memref<100xf32, #tpu.memory_space<smem>>
    %2947 = vector.broadcast %2946 : f32 to vector<12x16xf32>
    %2948 = arith.mulf %2947, %2929 : vector<12x16xf32>
    %2949 = arith.addf %2927, %2948 : vector<12x16xf32>
    %2950 = vector.extract_strided_slice %2883 {offsets = [3, 0, 0], sizes = [1, 12, 16], strides = [1, 1, 1]} : vector<5x12x16xf32> to vector<1x12x16xf32>
    %2951 = vector.shape_cast %2950 : vector<1x12x16xf32> to vector<12x16xf32>
    %c15_650 = arith.constant 15 : index
    %2952 = memref.load %arg4[%c15_650] : memref<100xf32, #tpu.memory_space<smem>>
    %2953 = vector.broadcast %2952 : f32 to vector<12x16xf32>
    %2954 = arith.mulf %2953, %2951 : vector<12x16xf32>
    %2955 = arith.addf %2933, %2954 : vector<12x16xf32>
    %c35_651 = arith.constant 35 : index
    %2956 = memref.load %arg4[%c35_651] : memref<100xf32, #tpu.memory_space<smem>>
    %2957 = vector.broadcast %2956 : f32 to vector<12x16xf32>
    %2958 = arith.mulf %2957, %2951 : vector<12x16xf32>
    %2959 = arith.addf %2937, %2958 : vector<12x16xf32>
    %c55_652 = arith.constant 55 : index
    %2960 = memref.load %arg4[%c55_652] : memref<100xf32, #tpu.memory_space<smem>>
    %2961 = vector.broadcast %2960 : f32 to vector<12x16xf32>
    %2962 = arith.mulf %2961, %2951 : vector<12x16xf32>
    %2963 = arith.addf %2941, %2962 : vector<12x16xf32>
    %c75_653 = arith.constant 75 : index
    %2964 = memref.load %arg4[%c75_653] : memref<100xf32, #tpu.memory_space<smem>>
    %2965 = vector.broadcast %2964 : f32 to vector<12x16xf32>
    %2966 = arith.mulf %2965, %2951 : vector<12x16xf32>
    %2967 = arith.addf %2945, %2966 : vector<12x16xf32>
    %c95_654 = arith.constant 95 : index
    %2968 = memref.load %arg4[%c95_654] : memref<100xf32, #tpu.memory_space<smem>>
    %2969 = vector.broadcast %2968 : f32 to vector<12x16xf32>
    %2970 = arith.mulf %2969, %2951 : vector<12x16xf32>
    %2971 = arith.addf %2949, %2970 : vector<12x16xf32>
    %2972 = vector.extract_strided_slice %2883 {offsets = [4, 0, 0], sizes = [1, 12, 16], strides = [1, 1, 1]} : vector<5x12x16xf32> to vector<1x12x16xf32>
    %2973 = vector.shape_cast %2972 : vector<1x12x16xf32> to vector<12x16xf32>
    %c19_655 = arith.constant 19 : index
    %2974 = memref.load %arg4[%c19_655] : memref<100xf32, #tpu.memory_space<smem>>
    %2975 = vector.broadcast %2974 : f32 to vector<12x16xf32>
    %2976 = arith.mulf %2975, %2973 : vector<12x16xf32>
    %2977 = arith.addf %2955, %2976 : vector<12x16xf32>
    %c39_656 = arith.constant 39 : index
    %2978 = memref.load %arg4[%c39_656] : memref<100xf32, #tpu.memory_space<smem>>
    %2979 = vector.broadcast %2978 : f32 to vector<12x16xf32>
    %2980 = arith.mulf %2979, %2973 : vector<12x16xf32>
    %2981 = arith.addf %2959, %2980 : vector<12x16xf32>
    %c59_657 = arith.constant 59 : index
    %2982 = memref.load %arg4[%c59_657] : memref<100xf32, #tpu.memory_space<smem>>
    %2983 = vector.broadcast %2982 : f32 to vector<12x16xf32>
    %2984 = arith.mulf %2983, %2973 : vector<12x16xf32>
    %2985 = arith.addf %2963, %2984 : vector<12x16xf32>
    %c79_658 = arith.constant 79 : index
    %2986 = memref.load %arg4[%c79_658] : memref<100xf32, #tpu.memory_space<smem>>
    %2987 = vector.broadcast %2986 : f32 to vector<12x16xf32>
    %2988 = arith.mulf %2987, %2973 : vector<12x16xf32>
    %2989 = arith.addf %2967, %2988 : vector<12x16xf32>
    %c99_659 = arith.constant 99 : index
    %2990 = memref.load %arg4[%c99_659] : memref<100xf32, #tpu.memory_space<smem>>
    %2991 = vector.broadcast %2990 : f32 to vector<12x16xf32>
    %2992 = arith.mulf %2991, %2973 : vector<12x16xf32>
    %2993 = arith.addf %2971, %2992 : vector<12x16xf32>
    %c0_660 = arith.constant 0 : index
    %2994 = memref.load %arg5[%c0_660] : memref<5xf32, #tpu.memory_space<smem>>
    %2995 = vector.broadcast %2994 : f32 to vector<12x16xf32>
    %2996 = arith.addf %2977, %2995 : vector<12x16xf32>
    %c1_661 = arith.constant 1 : index
    %2997 = memref.load %arg5[%c1_661] : memref<5xf32, #tpu.memory_space<smem>>
    %2998 = vector.broadcast %2997 : f32 to vector<12x16xf32>
    %2999 = arith.addf %2981, %2998 : vector<12x16xf32>
    %c2_662 = arith.constant 2 : index
    %3000 = memref.load %arg5[%c2_662] : memref<5xf32, #tpu.memory_space<smem>>
    %3001 = vector.broadcast %3000 : f32 to vector<12x16xf32>
    %3002 = arith.addf %2985, %3001 : vector<12x16xf32>
    %c3_663 = arith.constant 3 : index
    %3003 = memref.load %arg5[%c3_663] : memref<5xf32, #tpu.memory_space<smem>>
    %3004 = vector.broadcast %3003 : f32 to vector<12x16xf32>
    %3005 = arith.addf %2989, %3004 : vector<12x16xf32>
    %c4_664 = arith.constant 4 : index
    %3006 = memref.load %arg5[%c4_664] : memref<5xf32, #tpu.memory_space<smem>>
    %3007 = vector.broadcast %3006 : f32 to vector<12x16xf32>
    %3008 = arith.addf %2993, %3007 : vector<12x16xf32>
    %3009 = math.tanh %2996 : vector<12x16xf32>
    %3010 = math.tanh %2999 : vector<12x16xf32>
    %3011 = math.tanh %3002 : vector<12x16xf32>
    %3012 = math.tanh %3005 : vector<12x16xf32>
    %3013 = math.tanh %3008 : vector<12x16xf32>
    %3014 = vector.shape_cast %3009 : vector<12x16xf32> to vector<1x12x16xf32>
    %3015 = vector.shape_cast %3010 : vector<12x16xf32> to vector<1x12x16xf32>
    %3016 = vector.shape_cast %3011 : vector<12x16xf32> to vector<1x12x16xf32>
    %3017 = vector.shape_cast %3012 : vector<12x16xf32> to vector<1x12x16xf32>
    %3018 = vector.shape_cast %3013 : vector<12x16xf32> to vector<1x12x16xf32>
    %3019 = tpu.concatenate %3014, %3015, %3016, %3017, %3018 in 0 : vector<1x12x16xf32>, vector<1x12x16xf32>, vector<1x12x16xf32>, vector<1x12x16xf32>, vector<1x12x16xf32> -> vector<5x12x16xf32>
    %3020 = arith.addf %3019, %2088 : vector<5x12x16xf32>
    %cst_665 = arith.constant 0.000000e+00 : f32
    %3021 = vector.broadcast %cst_665 : f32 to vector<5x12x16xf32>
    %3022 = arith.maximumf %3020, %3021 : vector<5x12x16xf32>
    %c1_666 = arith.constant 1 : index
    %c0_667 = arith.constant 0 : index
    %c0_668 = arith.constant 0 : index
    %c0_669 = arith.constant 0 : index
    %3023 = vector.load %arg8[%c1_666, %c0_667, %c0_668, %c0_669] : memref<2x5x12x16xf32, #tpu.memory_space<vmem>>, vector<1x5x12x16xf32>
    %3024 = vector.shape_cast %3023 : vector<1x5x12x16xf32> to vector<5x12x16xf32>
    %3025 = vector.shape_cast %3022 : vector<5x12x16xf32> to vector<1x5x12x16xf32>
    tpu.vector_store %arg8[%c1_666, %c0_667, %c0_668, %c0_669], %3025 {strides = array<i32>} : memref<2x5x12x16xf32, #tpu.memory_space<vmem>>, vector<1x5x12x16xf32>,
    return
  }
  func.func @transform_0(%arg0: i32) -> (i32, i32, i32, i32) {
    %c0_i32 = arith.constant 0 : i32
    %c0_i32_0 = arith.constant 0 : i32
    %c0_i32_1 = arith.constant 0 : i32
    %c0_i32_2 = arith.constant 0 : i32
    return %arg0, %c0_i32, %c0_i32_0, %c0_i32_1 : i32, i32, i32, i32
  }
  func.func @transform_1(%arg0: i32) -> i32 {
    %c0_i32 = arith.constant 0 : i32
    %c0_i32_0 = arith.constant 0 : i32
    return %c0_i32 : i32
  }
  func.func @transform_2(%arg0: i32) -> i32 {
    %c0_i32 = arith.constant 0 : i32
    %c0_i32_0 = arith.constant 0 : i32
    return %c0_i32 : i32
  }
  func.func @transform_3(%arg0: i32) -> i32 {
    %c0_i32 = arith.constant 0 : i32
    %c0_i32_0 = arith.constant 0 : i32
    return %c0_i32 : i32
  }
  func.func @transform_4(%arg0: i32) -> i32 {
    %c0_i32 = arith.constant 0 : i32
    %c0_i32_0 = arith.constant 0 : i32
    return %c0_i32 : i32
  }
  func.func @transform_5(%arg0: i32) -> i32 {
    %c0_i32 = arith.constant 0 : i32
    %c0_i32_0 = arith.constant 0 : i32
    return %c0_i32 : i32
  }
  func.func @transform_6(%arg0: i32) -> i32 {
    %c0_i32 = arith.constant 0 : i32
    %c0_i32_0 = arith.constant 0 : i32
    return %c0_i32 : i32
  }
  func.func @transform_7(%arg0: i32) -> (i32, i32, i32, i32) {
    %c0_i32 = arith.constant 0 : i32
    %c0_i32_0 = arith.constant 0 : i32
    %c0_i32_1 = arith.constant 0 : i32
    %c0_i32_2 = arith.constant 0 : i32
    return %arg0, %c0_i32, %c0_i32_0, %c0_i32_1 : i32, i32, i32, i32
  }
}

</mosaic_0001>

<llo_original>
// kernel: temporal_block_forward.1
$region0: #{temporal_block_forward.1}
  #allocation0 [shape = 'u32[]', space=smem, size = 0x4, offset = 0x4, fixed_abs, tag = 'smem constant byte address 0x4 - core index']
  #allocation1 [shape = 'u32[72,128]{1,0:T(1,128)}', space=vmem, size = 0x9000, scoped, tag = 'internal scratch']
  #allocation2 [shape = 'f32[5,16,16]{2,1,0:T(8,128)}', space=vmem, size = 0xa000, scoped, tag = 'scratch operand']
  #allocation3 [shape = 'f32[5,16,18]{2,1,0:T(8,128)}', space=vmem, size = 0xa000, scoped, tag = 'scratch operand']
  %s0 = inlined_call_operand.vmem [shape: f32[2,5,12,12], index: 0, kind: input, shape index: {}]
  %s1 = inlined_call_operand.vmem [shape: f32[100], index: 1, kind: input, shape index: {}]
  %s2 = inlined_call_operand.vmem [shape: f32[5], index: 2, kind: input, shape index: {}]
  %s3 = inlined_call_operand.vmem [shape: f32[100], index: 3, kind: input, shape index: {}]
  %s4 = inlined_call_operand.vmem [shape: f32[5], index: 4, kind: input, shape index: {}]
  %s5 = inlined_call_operand.vmem [shape: f32[125], index: 5, kind: input, shape index: {}]
  %s6 = inlined_call_operand.vmem [shape: f32[5], index: 6, kind: input, shape index: {}]
  %s7 = inlined_call_operand.vmem [shape: f32[2,5,12,16], index: 7, kind: output, shape index: {}]
  %s8 = sld [smem:[#allocation0]]
  $region62: #{temporal_block_forward.1} parent=0
    _
  %s10 = ssub.s32 1, %s8
  %s11 = scalar_select 0, %s10, %s8
  $region1: #{temporal_block_forward.1} parent=0
    #allocation4 [shape = 'u8[512]{0}', space=smem, size = 0x200, scoped, tag = 'input window, operand 1, single buffered']
    #allocation5 [shape = 's32[1]{0}', space=sflag, size = 0x4, scoped, tag = 'scoped memory for temporal_block_forward.1']
    #allocation6 [shape = 'u8[512]{0}', space=smem, size = 0x200, scoped, tag = 'input window, operand 2, single buffered']
    #allocation7 [shape = 's32[1]{0}', space=sflag, size = 0x4, scoped, tag = 'scoped memory for temporal_block_forward.1']
    #allocation8 [shape = 'u8[512]{0}', space=smem, size = 0x200, scoped, tag = 'input window, operand 3, single buffered']
    #allocation9 [shape = 'u8[512]{0}', space=smem, size = 0x200, scoped, tag = 'input window, operand 4, single buffered']
    #allocation10 [shape = 's32[1]{0}', space=sflag, size = 0x4, scoped, tag = 'scoped memory for temporal_block_forward.1']
    #allocation11 [shape = 'u8[512]{0}', space=smem, size = 0x200, scoped, tag = 'input window, operand 5, single buffered']
    #allocation12 [shape = 'u8[512]{0}', space=smem, size = 0x200, scoped, tag = 'input window, operand 6, single buffered']
    #allocation13 [shape = 's32[1]{0}', space=sflag, size = 0x4, scoped, tag = 'scoped memory for temporal_block_forward.1']
    %12 = vsyncpa [#allocation5], 0
    %13 = vsyncpa [#allocation7], 0
    %14 = vsyncpa [#allocation10], 0
    %15 = vsyncpa [#allocation13], 0
    // Predicated region
    $region2: #{temporal_block_forward.1} parent=1 // pred_check
      _
    $region3: #{temporal_block_forward.1} parent=1 // pred_check_branch
      %17 = sbr.rel (0) target = $region5
    $region4: #{temporal_block_forward.1} parent=1 // pred_region
      _
    $region5: #{temporal_block_forward.1} parent=1 // pred_fallthru
      _
    // Predicated region
    $region6: #{temporal_block_forward.1} parent=1 // pred_check
      _
    $region7: #{temporal_block_forward.1} parent=1 // pred_check_branch
      %19 = sbr.rel (0) target = $region9
    $region8: #{temporal_block_forward.1} parent=1 // pred_region
      %21 = vsyncadd [#allocation5], 0
      %s23 = sshll.u32 %s1, 4
      %s24 = int_to_ptr.vmem [resolvable:$true] %s23
      %26 = dma.vmem_to_smem %s24, 16, [#allocation4], [#allocation5]
    $region9: #{temporal_block_forward.1} parent=1 // pred_fallthru
      _
    // Predicated region
    $region10: #{temporal_block_forward.1} parent=1 // pred_check
      _
    $region11: #{temporal_block_forward.1} parent=1 // pred_check_branch
      %28 = sbr.rel (0) target = $region13
    $region12: #{temporal_block_forward.1} parent=1 // pred_region
      %30 = vsyncadd [#allocation7], 0
      %s32 = sshll.u32 %s2, 4
      %s33 = int_to_ptr.vmem [resolvable:$true] %s32
      %35 = dma.vmem_to_smem %s33, 16, [#allocation6], [#allocation7]
    $region13: #{temporal_block_forward.1} parent=1 // pred_fallthru
      _
    // Predicated region
    $region14: #{temporal_block_forward.1} parent=1 // pred_check
      _
    $region15: #{temporal_block_forward.1} parent=1 // pred_check_branch
      %37 = sbr.rel (0) target = $region17
    $region16: #{temporal_block_forward.1} parent=1 // pred_region
      %39 = vsyncadd [#allocation7], 0
      %s41 = sshll.u32 %s3, 4
      %s42 = int_to_ptr.vmem [resolvable:$true] %s41
      %44 = dma.vmem_to_smem %s42, 16, [#allocation8], [#allocation7]
    $region17: #{temporal_block_forward.1} parent=1 // pred_fallthru
      _
    // Predicated region
    $region18: #{temporal_block_forward.1} parent=1 // pred_check
      _
    $region19: #{temporal_block_forward.1} parent=1 // pred_check_branch
      %46 = sbr.rel (0) target = $region21
    $region20: #{temporal_block_forward.1} parent=1 // pred_region
      %48 = vsyncadd [#allocation10], 0
      %s50 = sshll.u32 %s4, 4
      %s51 = int_to_ptr.vmem [resolvable:$true] %s50
      %53 = dma.vmem_to_smem %s51, 16, [#allocation9], [#allocation10]
    $region21: #{temporal_block_forward.1} parent=1 // pred_fallthru
      _
    // Predicated region
    $region22: #{temporal_block_forward.1} parent=1 // pred_check
      _
    $region23: #{temporal_block_forward.1} parent=1 // pred_check_branch
      %55 = sbr.rel (0) target = $region25
    $region24: #{temporal_block_forward.1} parent=1 // pred_region
      %57 = vsyncadd [#allocation10], 0
      %s59 = sshll.u32 %s5, 4
      %s60 = int_to_ptr.vmem [resolvable:$true] %s59
      %62 = dma.vmem_to_smem %s60, 16, [#allocation11], [#allocation10]
    $region25: #{temporal_block_forward.1} parent=1 // pred_fallthru
      _
    // Predicated region
    $region26: #{temporal_block_forward.1} parent=1 // pred_check
      _
    $region27: #{temporal_block_forward.1} parent=1 // pred_check_branch
      %64 = sbr.rel (0) target = $region29
    $region28: #{temporal_block_forward.1} parent=1 // pred_region
      %66 = vsyncadd [#allocation13], 0
      %s68 = sshll.u32 %s6, 4
      %s69 = int_to_ptr.vmem [resolvable:$true] %s68
      %71 = dma.vmem_to_smem %s69, 16, [#allocation12], [#allocation13]
    $region29: #{temporal_block_forward.1} parent=1 // pred_fallthru
      _
    // Predicated region
    $region30: #{temporal_block_forward.1} parent=1 // pred_check
      _
    $region31: #{temporal_block_forward.1} parent=1 // pred_check_branch
      %73 = sbr.rel (0) target = $region33
    $region32: #{temporal_block_forward.1} parent=1 // pred_region
      %75 = dma.done [#allocation5], 16
    $region33: #{temporal_block_forward.1} parent=1 // pred_fallthru
      _
    // Predicated region
    $region34: #{temporal_block_forward.1} parent=1 // pred_check
      _
    $region35: #{temporal_block_forward.1} parent=1 // pred_check_branch
      %77 = sbr.rel (0) target = $region37
    $region36: #{temporal_block_forward.1} parent=1 // pred_region
      %79 = dma.done [#allocation7], 16
    $region37: #{temporal_block_forward.1} parent=1 // pred_fallthru
      _
    // Predicated region
    $region38: #{temporal_block_forward.1} parent=1 // pred_check
      _
    $region39: #{temporal_block_forward.1} parent=1 // pred_check_branch
      %81 = sbr.rel (0) target = $region41
    $region40: #{temporal_block_forward.1} parent=1 // pred_region
      %83 = dma.done [#allocation7], 16
    $region41: #{temporal_block_forward.1} parent=1 // pred_fallthru
      _
    // Predicated region
    $region42: #{temporal_block_forward.1} parent=1 // pred_check
      _
    $region43: #{temporal_block_forward.1} parent=1 // pred_check_branch
      %85 = sbr.rel (0) target = $region45
    $region44: #{temporal_block_forward.1} parent=1 // pred_region
      %87 = dma.done [#allocation10], 16
    $region45: #{temporal_block_forward.1} parent=1 // pred_fallthru
      _
    // Predicated region
    $region46: #{temporal_block_forward.1} parent=1 // pred_check
      _
    $region47: #{temporal_block_forward.1} parent=1 // pred_check_branch
      %89 = sbr.rel (0) target = $region49
    $region48: #{temporal_block_forward.1} parent=1 // pred_region
      %91 = dma.done [#allocation10], 16
    $region49: #{temporal_block_forward.1} parent=1 // pred_fallthru
      _
    // Predicated region
    $region50: #{temporal_block_forward.1} parent=1 // pred_check
      _
    $region51: #{temporal_block_forward.1} parent=1 // pred_check_branch
      %93 = sbr.rel (0) target = $region53
    $region52: #{temporal_block_forward.1} parent=1 // pred_region
      %95 = dma.done [#allocation13], 16
    $region53: #{temporal_block_forward.1} parent=1 // pred_fallthru
      _
    %96 = sfence
    %vm97 = vcmask 130048
    %98 = vst.msk [vmem:[#allocation2] sm:$0xff] %vm97, 0.0
    %99 = vst.msk [vmem:[#allocation2 + $0x8] sm:$0xff] %vm97, 0.0
    %100 = vst.msk [vmem:[#allocation2 + $0x10] sm:$0xff] %vm97, 0.0
    %101 = vst.msk [vmem:[#allocation2 + $0x18] sm:$0xff] %vm97, 0.0
    %102 = vst.msk [vmem:[#allocation2 + $0x20] sm:$0xff] %vm97, 0.0
    %103 = vst.msk [vmem:[#allocation2 + $0x28] sm:$0xff] %vm97, 0.0
    %104 = vst.msk [vmem:[#allocation2 + $0x30] sm:$0xff] %vm97, 0.0
    %105 = vst.msk [vmem:[#allocation2 + $0x38] sm:$0xff] %vm97, 0.0
    %106 = vst.msk [vmem:[#allocation2 + $0x40] sm:$0xff] %vm97, 0.0
    %107 = vst.msk [vmem:[#allocation2 + $0x48] sm:$0xff] %vm97, 0.0
    %vm108 = vcmask 146432
    %109 = vst.msk [vmem:[#allocation3] sm:$0xff] %vm108, 0.0
    %110 = vst.msk [vmem:[#allocation3 + $0x8] sm:$0xff] %vm108, 0.0
    %111 = vst.msk [vmem:[#allocation3 + $0x10] sm:$0xff] %vm108, 0.0
    %112 = vst.msk [vmem:[#allocation3 + $0x18] sm:$0xff] %vm108, 0.0
    %113 = vst.msk [vmem:[#allocation3 + $0x20] sm:$0xff] %vm108, 0.0
    %114 = vst.msk [vmem:[#allocation3 + $0x28] sm:$0xff] %vm108, 0.0
    %115 = vst.msk [vmem:[#allocation3 + $0x30] sm:$0xff] %vm108, 0.0
    %116 = vst.msk [vmem:[#allocation3 + $0x38] sm:$0xff] %vm108, 0.0
    %117 = vst.msk [vmem:[#allocation3 + $0x40] sm:$0xff] %vm108, 0.0
    %118 = vst.msk [vmem:[#allocation3 + $0x48] sm:$0xff] %vm108, 0.0
    %v119 = vld [vmem:[%s0] sm:$0xff]
    %v120 = vld [vmem:[%s0 + $0x8] sm:$0xf]
    %v121 = vld [vmem:[%s0 + $0x10] sm:$0xff]
    %v122 = vld [vmem:[%s0 + $0x18] sm:$0xf]
    %v123 = vld [vmem:[%s0 + $0x20] sm:$0xff]
    %v124 = vld [vmem:[%s0 + $0x28] sm:$0xf]
    %v125 = vld [vmem:[%s0 + $0x30] sm:$0xff]
    %v126 = vld [vmem:[%s0 + $0x38] sm:$0xf]
    %v127 = vld [vmem:[%s0 + $0x40] sm:$0xff]
    %v128 = vld [vmem:[%s0 + $0x48] sm:$0xf]
    %139 = vrot.lane.b32.xlu0 %v119, 2
    %v140 = vpop.permute.xlu0 %139
    %141 = vrot.lane.b32.xlu0 %v120, 2
    %v142 = vpop.permute.xlu0 %141
    %143 = vrot.lane.b32.xlu0 %v121, 2
    %v144 = vpop.permute.xlu0 %143
    %145 = vrot.lane.b32.xlu0 %v122, 2
    %v146 = vpop.permute.xlu0 %145
    %147 = vrot.lane.b32.xlu0 %v123, 2
    %v148 = vpop.permute.xlu0 %147
    %149 = vrot.lane.b32.xlu0 %v124, 2
    %v150 = vpop.permute.xlu0 %149
    %151 = vrot.lane.b32.xlu0 %v125, 2
    %v152 = vpop.permute.xlu0 %151
    %153 = vrot.lane.b32.xlu0 %v126, 2
    %v154 = vpop.permute.xlu0 %153
    %155 = vrot.lane.b32.xlu0 %v127, 2
    %v156 = vpop.permute.xlu0 %155
    %157 = vrot.lane.b32.xlu0 %v128, 2
    %v158 = vpop.permute.xlu0 %157
    %vm169 = vcmask 113680
    %170 = vst.msk [vmem:[#allocation2 + $0x2] sm:$0xff] %vm169, %v140
    %vm171 = vcmask 109584
    %172 = vst.msk [vmem:[#allocation2 + $0xa] sm:$0xf] %vm171, %v142
    %173 = vst.msk [vmem:[#allocation2 + $0x12] sm:$0xff] %vm169, %v144
    %174 = vst.msk [vmem:[#allocation2 + $0x1a] sm:$0xf] %vm171, %v146
    %175 = vst.msk [vmem:[#allocation2 + $0x22] sm:$0xff] %vm169, %v148
    %176 = vst.msk [vmem:[#allocation2 + $0x2a] sm:$0xf] %vm171, %v150
    %177 = vst.msk [vmem:[#allocation2 + $0x32] sm:$0xff] %vm169, %v152
    %178 = vst.msk [vmem:[#allocation2 + $0x3a] sm:$0xf] %vm171, %v154
    %179 = vst.msk [vmem:[#allocation2 + $0x42] sm:$0xff] %vm169, %v156
    %180 = vst.msk [vmem:[#allocation2 + $0x4a] sm:$0xf] %vm171, %v158
    %v181 = vld [vmem:[#allocation2] sm:$0xff]
    %v182 = vld [vmem:[#allocation2 + $0x8] sm:$0xf]
    %v183 = vld [vmem:[#allocation2 + $0x10] sm:$0xff]
    %v184 = vld [vmem:[#allocation2 + $0x18] sm:$0xf]
    %v185 = vld [vmem:[#allocation2 + $0x20] sm:$0xff]
    %v186 = vld [vmem:[#allocation2 + $0x28] sm:$0xf]
    %v187 = vld [vmem:[#allocation2 + $0x30] sm:$0xff]
    %v188 = vld [vmem:[#allocation2 + $0x38] sm:$0xf]
    %v189 = vld [vmem:[#allocation2 + $0x40] sm:$0xff]
    %v190 = vld [vmem:[#allocation2 + $0x48] sm:$0xf]
    %s191 = sld [smem:[#allocation11]]
    %v192 = vstv %s191
    %v193 = vmul.f32 %v192, %v181
    %v194 = vmul.f32 %v192, %v182
    %s195 = sld [smem:[#allocation11 + $0x19]]
    %v196 = vstv %s195
    %v197 = vmul.f32 %v196, %v181
    %v198 = vmul.f32 %v196, %v182
    %s199 = sld [smem:[#allocation11 + $0x32]]
    %v200 = vstv %s199
    %v201 = vmul.f32 %v200, %v181
    %v202 = vmul.f32 %v200, %v182
    %s203 = sld [smem:[#allocation11 + $0x4b]]
    %v204 = vstv %s203
    %v205 = vmul.f32 %v204, %v181
    %v206 = vmul.f32 %v204, %v182
    %s207 = sld [smem:[#allocation11 + $0x64]]
    %v208 = vstv %s207
    %v209 = vmul.f32 %v208, %v181
    %v210 = vmul.f32 %v208, %v182
    %s211 = sld [smem:[#allocation11 + $0x5]]
    %v212 = vstv %s211
    %v213 = vmul.f32 %v212, %v183
    %v214 = vmul.f32 %v212, %v184
    %v215 = vadd.f32 %v193, %v213
    %v216 = vadd.f32 %v194, %v214
    %s217 = sld [smem:[#allocation11 + $0x1e]]
    %v218 = vstv %s217
    %v219 = vmul.f32 %v218, %v183
    %v220 = vmul.f32 %v218, %v184
    %v221 = vadd.f32 %v197, %v219
    %v222 = vadd.f32 %v198, %v220
    %s223 = sld [smem:[#allocation11 + $0x37]]
    %v224 = vstv %s223
    %v225 = vmul.f32 %v224, %v183
    %v226 = vmul.f32 %v224, %v184
    %v227 = vadd.f32 %v201, %v225
    %v228 = vadd.f32 %v202, %v226
    %s229 = sld [smem:[#allocation11 + $0x50]]
    %v230 = vstv %s229
    %v231 = vmul.f32 %v230, %v183
    %v232 = vmul.f32 %v230, %v184
    %v233 = vadd.f32 %v205, %v231
    %v234 = vadd.f32 %v206, %v232
    %s235 = sld [smem:[#allocation11 + $0x69]]
    %v236 = vstv %s235
    %v237 = vmul.f32 %v236, %v183
    %v238 = vmul.f32 %v236, %v184
    %v239 = vadd.f32 %v209, %v237
    %v240 = vadd.f32 %v210, %v238
    %s241 = sld [smem:[#allocation11 + $0xa]]
    %v242 = vstv %s241
    %v243 = vmul.f32 %v242, %v185
    %v244 = vmul.f32 %v242, %v186
    %v245 = vadd.f32 %v215, %v243
    %v246 = vadd.f32 %v216, %v244
    %s247 = sld [smem:[#allocation11 + $0x23]]
    %v248 = vstv %s247
    %v249 = vmul.f32 %v248, %v185
    %v250 = vmul.f32 %v248, %v186
    %v251 = vadd.f32 %v221, %v249
    %v252 = vadd.f32 %v222, %v250
    %s253 = sld [smem:[#allocation11 + $0x3c]]
    %v254 = vstv %s253
    %v255 = vmul.f32 %v254, %v185
    %v256 = vmul.f32 %v254, %v186
    %v257 = vadd.f32 %v227, %v255
    %v258 = vadd.f32 %v228, %v256
    %s259 = sld [smem:[#allocation11 + $0x55]]
    %v260 = vstv %s259
    %v261 = vmul.f32 %v260, %v185
    %v262 = vmul.f32 %v260, %v186
    %v263 = vadd.f32 %v233, %v261
    %v264 = vadd.f32 %v234, %v262
    %s265 = sld [smem:[#allocation11 + $0x6e]]
    %v266 = vstv %s265
    %v267 = vmul.f32 %v266, %v185
    %v268 = vmul.f32 %v266, %v186
    %v269 = vadd.f32 %v239, %v267
    %v270 = vadd.f32 %v240, %v268
    %s271 = sld [smem:[#allocation11 + $0xf]]
    %v272 = vstv %s271
    %v273 = vmul.f32 %v272, %v187
    %v274 = vmul.f32 %v272, %v188
    %v275 = vadd.f32 %v245, %v273
    %v276 = vadd.f32 %v246, %v274
    %s277 = sld [smem:[#allocation11 + $0x28]]
    %v278 = vstv %s277
    %v279 = vmul.f32 %v278, %v187
    %v280 = vmul.f32 %v278, %v188
    %v281 = vadd.f32 %v251, %v279
    %v282 = vadd.f32 %v252, %v280
    %s283 = sld [smem:[#allocation11 + $0x41]]
    %v284 = vstv %s283
    %v285 = vmul.f32 %v284, %v187
    %v286 = vmul.f32 %v284, %v188
    %v287 = vadd.f32 %v257, %v285
    %v288 = vadd.f32 %v258, %v286
    %s289 = sld [smem:[#allocation11 + $0x5a]]
    %v290 = vstv %s289
    %v291 = vmul.f32 %v290, %v187
    %v292 = vmul.f32 %v290, %v188
    %v293 = vadd.f32 %v263, %v291
    %v294 = vadd.f32 %v264, %v292
    %s295 = sld [smem:[#allocation11 + $0x73]]
    %v296 = vstv %s295
    %v297 = vmul.f32 %v296, %v187
    %v298 = vmul.f32 %v296, %v188
    %v299 = vadd.f32 %v269, %v297
    %v300 = vadd.f32 %v270, %v298
    %s301 = sld [smem:[#allocation11 + $0x14]]
    %v302 = vstv %s301
    %v303 = vmul.f32 %v302, %v189
    %v304 = vmul.f32 %v302, %v190
    %v305 = vadd.f32 %v275, %v303
    %v306 = vadd.f32 %v276, %v304
    %s307 = sld [smem:[#allocation11 + $0x2d]]
    %v308 = vstv %s307
    %v309 = vmul.f32 %v308, %v189
    %v310 = vmul.f32 %v308, %v190
    %v311 = vadd.f32 %v281, %v309
    %v312 = vadd.f32 %v282, %v310
    %s313 = sld [smem:[#allocation11 + $0x46]]
    %v314 = vstv %s313
    %v315 = vmul.f32 %v314, %v189
    %v316 = vmul.f32 %v314, %v190
    %v317 = vadd.f32 %v287, %v315
    %v318 = vadd.f32 %v288, %v316
    %s319 = sld [smem:[#allocation11 + $0x5f]]
    %v320 = vstv %s319
    %v321 = vmul.f32 %v320, %v189
    %v322 = vmul.f32 %v320, %v190
    %v323 = vadd.f32 %v293, %v321
    %v324 = vadd.f32 %v294, %v322
    %s325 = sld [smem:[#allocation11 + $0x78]]
    %v326 = vstv %s325
    %v327 = vmul.f32 %v326, %v189
    %v328 = vmul.f32 %v326, %v190
    %v329 = vadd.f32 %v299, %v327
    %v330 = vadd.f32 %v300, %v328
    %v331 = vld [vmem:[#allocation2 + $0x1] sm:$0xff]
    %v332 = vld [vmem:[#allocation2 + $0x9] sm:$0xf]
    %v333 = vld [vmem:[#allocation2 + $0x11] sm:$0xff]
    %v334 = vld [vmem:[#allocation2 + $0x19] sm:$0xf]
    %v335 = vld [vmem:[#allocation2 + $0x21] sm:$0xff]
    %v336 = vld [vmem:[#allocation2 + $0x29] sm:$0xf]
    %v337 = vld [vmem:[#allocation2 + $0x31] sm:$0xff]
    %v338 = vld [vmem:[#allocation2 + $0x39] sm:$0xf]
    %v339 = vld [vmem:[#allocation2 + $0x41] sm:$0xff]
    %v340 = vld [vmem:[#allocation2 + $0x49] sm:$0xf]
    %s341 = sld [smem:[#allocation11 + $0x1]]
    %v342 = vstv %s341
    %v343 = vmul.f32 %v342, %v331
    %v344 = vmul.f32 %v342, %v332
    %v345 = vadd.f32 %v305, %v343
    %v346 = vadd.f32 %v306, %v344
    %s347 = sld [smem:[#allocation11 + $0x1a]]
    %v348 = vstv %s347
    %v349 = vmul.f32 %v348, %v331
    %v350 = vmul.f32 %v348, %v332
    %v351 = vadd.f32 %v311, %v349
    %v352 = vadd.f32 %v312, %v350
    %s353 = sld [smem:[#allocation11 + $0x33]]
    %v354 = vstv %s353
    %v355 = vmul.f32 %v354, %v331
    %v356 = vmul.f32 %v354, %v332
    %v357 = vadd.f32 %v317, %v355
    %v358 = vadd.f32 %v318, %v356
    %s359 = sld [smem:[#allocation11 + $0x4c]]
    %v360 = vstv %s359
    %v361 = vmul.f32 %v360, %v331
    %v362 = vmul.f32 %v360, %v332
    %v363 = vadd.f32 %v323, %v361
    %v364 = vadd.f32 %v324, %v362
    %s365 = sld [smem:[#allocation11 + $0x65]]
    %v366 = vstv %s365
    %v367 = vmul.f32 %v366, %v331
    %v368 = vmul.f32 %v366, %v332
    %v369 = vadd.f32 %v329, %v367
    %v370 = vadd.f32 %v330, %v368
    %s371 = sld [smem:[#allocation11 + $0x6]]
    %v372 = vstv %s371
    %v373 = vmul.f32 %v372, %v333
    %v374 = vmul.f32 %v372, %v334
    %v375 = vadd.f32 %v345, %v373
    %v376 = vadd.f32 %v346, %v374
    %s377 = sld [smem:[#allocation11 + $0x1f]]
    %v378 = vstv %s377
    %v379 = vmul.f32 %v378, %v333
    %v380 = vmul.f32 %v378, %v334
    %v381 = vadd.f32 %v351, %v379
    %v382 = vadd.f32 %v352, %v380
    %s383 = sld [smem:[#allocation11 + $0x38]]
    %v384 = vstv %s383
    %v385 = vmul.f32 %v384, %v333
    %v386 = vmul.f32 %v384, %v334
    %v387 = vadd.f32 %v357, %v385
    %v388 = vadd.f32 %v358, %v386
    %s389 = sld [smem:[#allocation11 + $0x51]]
    %v390 = vstv %s389
    %v391 = vmul.f32 %v390, %v333
    %v392 = vmul.f32 %v390, %v334
    %v393 = vadd.f32 %v363, %v391
    %v394 = vadd.f32 %v364, %v392
    %s395 = sld [smem:[#allocation11 + $0x6a]]
    %v396 = vstv %s395
    %v397 = vmul.f32 %v396, %v333
    %v398 = vmul.f32 %v396, %v334
    %v399 = vadd.f32 %v369, %v397
    %v400 = vadd.f32 %v370, %v398
    %s401 = sld [smem:[#allocation11 + $0xb]]
    %v402 = vstv %s401
    %v403 = vmul.f32 %v402, %v335
    %v404 = vmul.f32 %v402, %v336
    %v405 = vadd.f32 %v375, %v403
    %v406 = vadd.f32 %v376, %v404
    %s407 = sld [smem:[#allocation11 + $0x24]]
    %v408 = vstv %s407
    %v409 = vmul.f32 %v408, %v335
    %v410 = vmul.f32 %v408, %v336
    %v411 = vadd.f32 %v381, %v409
    %v412 = vadd.f32 %v382, %v410
    %s413 = sld [smem:[#allocation11 + $0x3d]]
    %v414 = vstv %s413
    %v415 = vmul.f32 %v414, %v335
    %v416 = vmul.f32 %v414, %v336
    %v417 = vadd.f32 %v387, %v415
    %v418 = vadd.f32 %v388, %v416
    %s419 = sld [smem:[#allocation11 + $0x56]]
    %v420 = vstv %s419
    %v421 = vmul.f32 %v420, %v335
    %v422 = vmul.f32 %v420, %v336
    %v423 = vadd.f32 %v393, %v421
    %v424 = vadd.f32 %v394, %v422
    %s425 = sld [smem:[#allocation11 + $0x6f]]
    %v426 = vstv %s425
    %v427 = vmul.f32 %v426, %v335
    %v428 = vmul.f32 %v426, %v336
    %v429 = vadd.f32 %v399, %v427
    %v430 = vadd.f32 %v400, %v428
    %s431 = sld [smem:[#allocation11 + $0x10]]
    %v432 = vstv %s431
    %v433 = vmul.f32 %v432, %v337
    %v434 = vmul.f32 %v432, %v338
    %v435 = vadd.f32 %v405, %v433
    %v436 = vadd.f32 %v406, %v434
    %s437 = sld [smem:[#allocation11 + $0x29]]
    %v438 = vstv %s437
    %v439 = vmul.f32 %v438, %v337
    %v440 = vmul.f32 %v438, %v338
    %v441 = vadd.f32 %v411, %v439
    %v442 = vadd.f32 %v412, %v440
    %s443 = sld [smem:[#allocation11 + $0x42]]
    %v444 = vstv %s443
    %v445 = vmul.f32 %v444, %v337
    %v446 = vmul.f32 %v444, %v338
    %v447 = vadd.f32 %v417, %v445
    %v448 = vadd.f32 %v418, %v446
    %s449 = sld [smem:[#allocation11 + $0x5b]]
    %v450 = vstv %s449
    %v451 = vmul.f32 %v450, %v337
    %v452 = vmul.f32 %v450, %v338
    %v453 = vadd.f32 %v423, %v451
    %v454 = vadd.f32 %v424, %v452
    %s455 = sld [smem:[#allocation11 + $0x74]]
    %v456 = vstv %s455
    %v457 = vmul.f32 %v456, %v337
    %v458 = vmul.f32 %v456, %v338
    %v459 = vadd.f32 %v429, %v457
    %v460 = vadd.f32 %v430, %v458
    %s461 = sld [smem:[#allocation11 + $0x15]]
    %v462 = vstv %s461
    %v463 = vmul.f32 %v462, %v339
    %v464 = vmul.f32 %v462, %v340
    %v465 = vadd.f32 %v435, %v463
    %v466 = vadd.f32 %v436, %v464
    %s467 = sld [smem:[#allocation11 + $0x2e]]
    %v468 = vstv %s467
    %v469 = vmul.f32 %v468, %v339
    %v470 = vmul.f32 %v468, %v340
    %v471 = vadd.f32 %v441, %v469
    %v472 = vadd.f32 %v442, %v470
    %s473 = sld [smem:[#allocation11 + $0x47]]
    %v474 = vstv %s473
    %v475 = vmul.f32 %v474, %v339
    %v476 = vmul.f32 %v474, %v340
    %v477 = vadd.f32 %v447, %v475
    %v478 = vadd.f32 %v448, %v476
    %s479 = sld [smem:[#allocation11 + $0x60]]
    %v480 = vstv %s479
    %v481 = vmul.f32 %v480, %v339
    %v482 = vmul.f32 %v480, %v340
    %v483 = vadd.f32 %v453, %v481
    %v484 = vadd.f32 %v454, %v482
    %s485 = sld [smem:[#allocation11 + $0x79]]
    %v486 = vstv %s485
    %v487 = vmul.f32 %v486, %v339
    %v488 = vmul.f32 %v486, %v340
    %v489 = vadd.f32 %v459, %v487
    %v490 = vadd.f32 %v460, %v488
    %v491 = vld [vmem:[#allocation2 + $0x2] sm:$0xff]
    %v492 = vld [vmem:[#allocation2 + $0xa] sm:$0xf]
    %v493 = vld [vmem:[#allocation2 + $0x12] sm:$0xff]
    %v494 = vld [vmem:[#allocation2 + $0x1a] sm:$0xf]
    %v495 = vld [vmem:[#allocation2 + $0x22] sm:$0xff]
    %v496 = vld [vmem:[#allocation2 + $0x2a] sm:$0xf]
    %v497 = vld [vmem:[#allocation2 + $0x32] sm:$0xff]
    %v498 = vld [vmem:[#allocation2 + $0x3a] sm:$0xf]
    %v499 = vld [vmem:[#allocation2 + $0x42] sm:$0xff]
    %v500 = vld [vmem:[#allocation2 + $0x4a] sm:$0xf]
    %s501 = sld [smem:[#allocation11 + $0x2]]
    %v502 = vstv %s501
    %v503 = vmul.f32 %v502, %v491
    %v504 = vmul.f32 %v502, %v492
    %v505 = vadd.f32 %v465, %v503
    %v506 = vadd.f32 %v466, %v504
    %s507 = sld [smem:[#allocation11 + $0x1b]]
    %v508 = vstv %s507
    %v509 = vmul.f32 %v508, %v491
    %v510 = vmul.f32 %v508, %v492
    %v511 = vadd.f32 %v471, %v509
    %v512 = vadd.f32 %v472, %v510
    %s513 = sld [smem:[#allocation11 + $0x34]]
    %v514 = vstv %s513
    %v515 = vmul.f32 %v514, %v491
    %v516 = vmul.f32 %v514, %v492
    %v517 = vadd.f32 %v477, %v515
    %v518 = vadd.f32 %v478, %v516
    %s519 = sld [smem:[#allocation11 + $0x4d]]
    %v520 = vstv %s519
    %v521 = vmul.f32 %v520, %v491
    %v522 = vmul.f32 %v520, %v492
    %v523 = vadd.f32 %v483, %v521
    %v524 = vadd.f32 %v484, %v522
    %s525 = sld [smem:[#allocation11 + $0x66]]
    %v526 = vstv %s525
    %v527 = vmul.f32 %v526, %v491
    %v528 = vmul.f32 %v526, %v492
    %v529 = vadd.f32 %v489, %v527
    %v530 = vadd.f32 %v490, %v528
    %s531 = sld [smem:[#allocation11 + $0x7]]
    %v532 = vstv %s531
    %v533 = vmul.f32 %v532, %v493
    %v534 = vmul.f32 %v532, %v494
    %v535 = vadd.f32 %v505, %v533
    %v536 = vadd.f32 %v506, %v534
    %s537 = sld [smem:[#allocation11 + $0x20]]
    %v538 = vstv %s537
    %v539 = vmul.f32 %v538, %v493
    %v540 = vmul.f32 %v538, %v494
    %v541 = vadd.f32 %v511, %v539
    %v542 = vadd.f32 %v512, %v540
    %s543 = sld [smem:[#allocation11 + $0x39]]
    %v544 = vstv %s543
    %v545 = vmul.f32 %v544, %v493
    %v546 = vmul.f32 %v544, %v494
    %v547 = vadd.f32 %v517, %v545
    %v548 = vadd.f32 %v518, %v546
    %s549 = sld [smem:[#allocation11 + $0x52]]
    %v550 = vstv %s549
    %v551 = vmul.f32 %v550, %v493
    %v552 = vmul.f32 %v550, %v494
    %v553 = vadd.f32 %v523, %v551
    %v554 = vadd.f32 %v524, %v552
    %s555 = sld [smem:[#allocation11 + $0x6b]]
    %v556 = vstv %s555
    %v557 = vmul.f32 %v556, %v493
    %v558 = vmul.f32 %v556, %v494
    %v559 = vadd.f32 %v529, %v557
    %v560 = vadd.f32 %v530, %v558
    %s561 = sld [smem:[#allocation11 + $0xc]]
    %v562 = vstv %s561
    %v563 = vmul.f32 %v562, %v495
    %v564 = vmul.f32 %v562, %v496
    %v565 = vadd.f32 %v535, %v563
    %v566 = vadd.f32 %v536, %v564
    %s567 = sld [smem:[#allocation11 + $0x25]]
    %v568 = vstv %s567
    %v569 = vmul.f32 %v568, %v495
    %v570 = vmul.f32 %v568, %v496
    %v571 = vadd.f32 %v541, %v569
    %v572 = vadd.f32 %v542, %v570
    %s573 = sld [smem:[#allocation11 + $0x3e]]
    %v574 = vstv %s573
    %v575 = vmul.f32 %v574, %v495
    %v576 = vmul.f32 %v574, %v496
    %v577 = vadd.f32 %v547, %v575
    %v578 = vadd.f32 %v548, %v576
    %s579 = sld [smem:[#allocation11 + $0x57]]
    %v580 = vstv %s579
    %v581 = vmul.f32 %v580, %v495
    %v582 = vmul.f32 %v580, %v496
    %v583 = vadd.f32 %v553, %v581
    %v584 = vadd.f32 %v554, %v582
    %s585 = sld [smem:[#allocation11 + $0x70]]
    %v586 = vstv %s585
    %v587 = vmul.f32 %v586, %v495
    %v588 = vmul.f32 %v586, %v496
    %v589 = vadd.f32 %v559, %v587
    %v590 = vadd.f32 %v560, %v588
    %s591 = sld [smem:[#allocation11 + $0x11]]
    %v592 = vstv %s591
    %v593 = vmul.f32 %v592, %v497
    %v594 = vmul.f32 %v592, %v498
    %v595 = vadd.f32 %v565, %v593
    %v596 = vadd.f32 %v566, %v594
    %s597 = sld [smem:[#allocation11 + $0x2a]]
    %v598 = vstv %s597
    %v599 = vmul.f32 %v598, %v497
    %v600 = vmul.f32 %v598, %v498
    %v601 = vadd.f32 %v571, %v599
    %v602 = vadd.f32 %v572, %v600
    %s603 = sld [smem:[#allocation11 + $0x43]]
    %v604 = vstv %s603
    %v605 = vmul.f32 %v604, %v497
    %v606 = vmul.f32 %v604, %v498
    %v607 = vadd.f32 %v577, %v605
    %v608 = vadd.f32 %v578, %v606
    %s609 = sld [smem:[#allocation11 + $0x5c]]
    %v610 = vstv %s609
    %v611 = vmul.f32 %v610, %v497
    %v612 = vmul.f32 %v610, %v498
    %v613 = vadd.f32 %v583, %v611
    %v614 = vadd.f32 %v584, %v612
    %s615 = sld [smem:[#allocation11 + $0x75]]
    %v616 = vstv %s615
    %v617 = vmul.f32 %v616, %v497
    %v618 = vmul.f32 %v616, %v498
    %v619 = vadd.f32 %v589, %v617
    %v620 = vadd.f32 %v590, %v618
    %s621 = sld [smem:[#allocation11 + $0x16]]
    %v622 = vstv %s621
    %v623 = vmul.f32 %v622, %v499
    %v624 = vmul.f32 %v622, %v500
    %v625 = vadd.f32 %v595, %v623
    %v626 = vadd.f32 %v596, %v624
    %s627 = sld [smem:[#allocation11 + $0x2f]]
    %v628 = vstv %s627
    %v629 = vmul.f32 %v628, %v499
    %v630 = vmul.f32 %v628, %v500
    %v631 = vadd.f32 %v601, %v629
    %v632 = vadd.f32 %v602, %v630
    %s633 = sld [smem:[#allocation11 + $0x48]]
    %v634 = vstv %s633
    %v635 = vmul.f32 %v634, %v499
    %v636 = vmul.f32 %v634, %v500
    %v637 = vadd.f32 %v607, %v635
    %v638 = vadd.f32 %v608, %v636
    %s639 = sld [smem:[#allocation11 + $0x61]]
    %v640 = vstv %s639
    %v641 = vmul.f32 %v640, %v499
    %v642 = vmul.f32 %v640, %v500
    %v643 = vadd.f32 %v613, %v641
    %v644 = vadd.f32 %v614, %v642
    %s645 = sld [smem:[#allocation11 + $0x7a]]
    %v646 = vstv %s645
    %v647 = vmul.f32 %v646, %v499
    %v648 = vmul.f32 %v646, %v500
    %v649 = vadd.f32 %v619, %v647
    %v650 = vadd.f32 %v620, %v648
    %v651 = vld [vmem:[#allocation2 + $0x3] sm:$0xff]
    %v652 = vld [vmem:[#allocation2 + $0xb] sm:$0xf]
    %v653 = vld [vmem:[#allocation2 + $0x13] sm:$0xff]
    %v654 = vld [vmem:[#allocation2 + $0x1b] sm:$0xf]
    %v655 = vld [vmem:[#allocation2 + $0x23] sm:$0xff]
    %v656 = vld [vmem:[#allocation2 + $0x2b] sm:$0xf]
    %v657 = vld [vmem:[#allocation2 + $0x33] sm:$0xff]
    %v658 = vld [vmem:[#allocation2 + $0x3b] sm:$0xf]
    %v659 = vld [vmem:[#allocation2 + $0x43] sm:$0xff]
    %v660 = vld [vmem:[#allocation2 + $0x4b] sm:$0xf]
    %s661 = sld [smem:[#allocation11 + $0x3]]
    %v662 = vstv %s661
    %v663 = vmul.f32 %v662, %v651
    %v664 = vmul.f32 %v662, %v652
    %v665 = vadd.f32 %v625, %v663
    %v666 = vadd.f32 %v626, %v664
    %s667 = sld [smem:[#allocation11 + $0x1c]]
    %v668 = vstv %s667
    %v669 = vmul.f32 %v668, %v651
    %v670 = vmul.f32 %v668, %v652
    %v671 = vadd.f32 %v631, %v669
    %v672 = vadd.f32 %v632, %v670
    %s673 = sld [smem:[#allocation11 + $0x35]]
    %v674 = vstv %s673
    %v675 = vmul.f32 %v674, %v651
    %v676 = vmul.f32 %v674, %v652
    %v677 = vadd.f32 %v637, %v675
    %v678 = vadd.f32 %v638, %v676
    %s679 = sld [smem:[#allocation11 + $0x4e]]
    %v680 = vstv %s679
    %v681 = vmul.f32 %v680, %v651
    %v682 = vmul.f32 %v680, %v652
    %v683 = vadd.f32 %v643, %v681
    %v684 = vadd.f32 %v644, %v682
    %s685 = sld [smem:[#allocation11 + $0x67]]
    %v686 = vstv %s685
    %v687 = vmul.f32 %v686, %v651
    %v688 = vmul.f32 %v686, %v652
    %v689 = vadd.f32 %v649, %v687
    %v690 = vadd.f32 %v650, %v688
    %s691 = sld [smem:[#allocation11 + $0x8]]
    %v692 = vstv %s691
    %v693 = vmul.f32 %v692, %v653
    %v694 = vmul.f32 %v692, %v654
    %v695 = vadd.f32 %v665, %v693
    %v696 = vadd.f32 %v666, %v694
    %s697 = sld [smem:[#allocation11 + $0x21]]
    %v698 = vstv %s697
    %v699 = vmul.f32 %v698, %v653
    %v700 = vmul.f32 %v698, %v654
    %v701 = vadd.f32 %v671, %v699
    %v702 = vadd.f32 %v672, %v700
    %s703 = sld [smem:[#allocation11 + $0x3a]]
    %v704 = vstv %s703
    %v705 = vmul.f32 %v704, %v653
    %v706 = vmul.f32 %v704, %v654
    %v707 = vadd.f32 %v677, %v705
    %v708 = vadd.f32 %v678, %v706
    %s709 = sld [smem:[#allocation11 + $0x53]]
    %v710 = vstv %s709
    %v711 = vmul.f32 %v710, %v653
    %v712 = vmul.f32 %v710, %v654
    %v713 = vadd.f32 %v683, %v711
    %v714 = vadd.f32 %v684, %v712
    %s715 = sld [smem:[#allocation11 + $0x6c]]
    %v716 = vstv %s715
    %v717 = vmul.f32 %v716, %v653
    %v718 = vmul.f32 %v716, %v654
    %v719 = vadd.f32 %v689, %v717
    %v720 = vadd.f32 %v690, %v718
    %s721 = sld [smem:[#allocation11 + $0xd]]
    %v722 = vstv %s721
    %v723 = vmul.f32 %v722, %v655
    %v724 = vmul.f32 %v722, %v656
    %v725 = vadd.f32 %v695, %v723
    %v726 = vadd.f32 %v696, %v724
    %s727 = sld [smem:[#allocation11 + $0x26]]
    %v728 = vstv %s727
    %v729 = vmul.f32 %v728, %v655
    %v730 = vmul.f32 %v728, %v656
    %v731 = vadd.f32 %v701, %v729
    %v732 = vadd.f32 %v702, %v730
    %s733 = sld [smem:[#allocation11 + $0x3f]]
    %v734 = vstv %s733
    %v735 = vmul.f32 %v734, %v655
    %v736 = vmul.f32 %v734, %v656
    %v737 = vadd.f32 %v707, %v735
    %v738 = vadd.f32 %v708, %v736
    %s739 = sld [smem:[#allocation11 + $0x58]]
    %v740 = vstv %s739
    %v741 = vmul.f32 %v740, %v655
    %v742 = vmul.f32 %v740, %v656
    %v743 = vadd.f32 %v713, %v741
    %v744 = vadd.f32 %v714, %v742
    %s745 = sld [smem:[#allocation11 + $0x71]]
    %v746 = vstv %s745
    %v747 = vmul.f32 %v746, %v655
    %v748 = vmul.f32 %v746, %v656
    %v749 = vadd.f32 %v719, %v747
    %v750 = vadd.f32 %v720, %v748
    %s751 = sld [smem:[#allocation11 + $0x12]]
    %v752 = vstv %s751
    %v753 = vmul.f32 %v752, %v657
    %v754 = vmul.f32 %v752, %v658
    %v755 = vadd.f32 %v725, %v753
    %v756 = vadd.f32 %v726, %v754
    %s757 = sld [smem:[#allocation11 + $0x2b]]
    %v758 = vstv %s757
    %v759 = vmul.f32 %v758, %v657
    %v760 = vmul.f32 %v758, %v658
    %v761 = vadd.f32 %v731, %v759
    %v762 = vadd.f32 %v732, %v760
    %s763 = sld [smem:[#allocation11 + $0x44]]
    %v764 = vstv %s763
    %v765 = vmul.f32 %v764, %v657
    %v766 = vmul.f32 %v764, %v658
    %v767 = vadd.f32 %v737, %v765
    %v768 = vadd.f32 %v738, %v766
    %s769 = sld [smem:[#allocation11 + $0x5d]]
    %v770 = vstv %s769
    %v771 = vmul.f32 %v770, %v657
    %v772 = vmul.f32 %v770, %v658
    %v773 = vadd.f32 %v743, %v771
    %v774 = vadd.f32 %v744, %v772
    %s775 = sld [smem:[#allocation11 + $0x76]]
    %v776 = vstv %s775
    %v777 = vmul.f32 %v776, %v657
    %v778 = vmul.f32 %v776, %v658
    %v779 = vadd.f32 %v749, %v777
    %v780 = vadd.f32 %v750, %v778
    %s781 = sld [smem:[#allocation11 + $0x17]]
    %v782 = vstv %s781
    %v783 = vmul.f32 %v782, %v659
    %v784 = vmul.f32 %v782, %v660
    %v785 = vadd.f32 %v755, %v783
    %v786 = vadd.f32 %v756, %v784
    %s787 = sld [smem:[#allocation11 + $0x30]]
    %v788 = vstv %s787
    %v789 = vmul.f32 %v788, %v659
    %v790 = vmul.f32 %v788, %v660
    %v791 = vadd.f32 %v761, %v789
    %v792 = vadd.f32 %v762, %v790
    %s793 = sld [smem:[#allocation11 + $0x49]]
    %v794 = vstv %s793
    %v795 = vmul.f32 %v794, %v659
    %v796 = vmul.f32 %v794, %v660
    %v797 = vadd.f32 %v767, %v795
    %v798 = vadd.f32 %v768, %v796
    %s799 = sld [smem:[#allocation11 + $0x62]]
    %v800 = vstv %s799
    %v801 = vmul.f32 %v800, %v659
    %v802 = vmul.f32 %v800, %v660
    %v803 = vadd.f32 %v773, %v801
    %v804 = vadd.f32 %v774, %v802
    %s805 = sld [smem:[#allocation11 + $0x7b]]
    %v806 = vstv %s805
    %v807 = vmul.f32 %v806, %v659
    %v808 = vmul.f32 %v806, %v660
    %v809 = vadd.f32 %v779, %v807
    %v810 = vadd.f32 %v780, %v808
    %v811 = vld [vmem:[#allocation2 + $0x4] sm:$0xff]
    %v812 = vld [vmem:[#allocation2 + $0xc] sm:$0xf]
    %v813 = vld [vmem:[#allocation2 + $0x14] sm:$0xff]
    %v814 = vld [vmem:[#allocation2 + $0x1c] sm:$0xf]
    %v815 = vld [vmem:[#allocation2 + $0x24] sm:$0xff]
    %v816 = vld [vmem:[#allocation2 + $0x2c] sm:$0xf]
    %v817 = vld [vmem:[#allocation2 + $0x34] sm:$0xff]
    %v818 = vld [vmem:[#allocation2 + $0x3c] sm:$0xf]
    %v819 = vld [vmem:[#allocation2 + $0x44] sm:$0xff]
    %v820 = vld [vmem:[#allocation2 + $0x4c] sm:$0xf]
    %s821 = sld [smem:[#allocation11 + $0x4]]
    %v822 = vstv %s821
    %v823 = vmul.f32 %v822, %v811
    %v824 = vmul.f32 %v822, %v812
    %v825 = vadd.f32 %v785, %v823
    %v826 = vadd.f32 %v786, %v824
    %s827 = sld [smem:[#allocation11 + $0x1d]]
    %v828 = vstv %s827
    %v829 = vmul.f32 %v828, %v811
    %v830 = vmul.f32 %v828, %v812
    %v831 = vadd.f32 %v791, %v829
    %v832 = vadd.f32 %v792, %v830
    %s833 = sld [smem:[#allocation11 + $0x36]]
    %v834 = vstv %s833
    %v835 = vmul.f32 %v834, %v811
    %v836 = vmul.f32 %v834, %v812
    %v837 = vadd.f32 %v797, %v835
    %v838 = vadd.f32 %v798, %v836
    %s839 = sld [smem:[#allocation11 + $0x4f]]
    %v840 = vstv %s839
    %v841 = vmul.f32 %v840, %v811
    %v842 = vmul.f32 %v840, %v812
    %v843 = vadd.f32 %v803, %v841
    %v844 = vadd.f32 %v804, %v842
    %s845 = sld [smem:[#allocation11 + $0x68]]
    %v846 = vstv %s845
    %v847 = vmul.f32 %v846, %v811
    %v848 = vmul.f32 %v846, %v812
    %v849 = vadd.f32 %v809, %v847
    %v850 = vadd.f32 %v810, %v848
    %s851 = sld [smem:[#allocation11 + $0x9]]
    %v852 = vstv %s851
    %v853 = vmul.f32 %v852, %v813
    %v854 = vmul.f32 %v852, %v814
    %v855 = vadd.f32 %v825, %v853
    %v856 = vadd.f32 %v826, %v854
    %s857 = sld [smem:[#allocation11 + $0x22]]
    %v858 = vstv %s857
    %v859 = vmul.f32 %v858, %v813
    %v860 = vmul.f32 %v858, %v814
    %v861 = vadd.f32 %v831, %v859
    %v862 = vadd.f32 %v832, %v860
    %s863 = sld [smem:[#allocation11 + $0x3b]]
    %v864 = vstv %s863
    %v865 = vmul.f32 %v864, %v813
    %v866 = vmul.f32 %v864, %v814
    %v867 = vadd.f32 %v837, %v865
    %v868 = vadd.f32 %v838, %v866
    %s869 = sld [smem:[#allocation11 + $0x54]]
    %v870 = vstv %s869
    %v871 = vmul.f32 %v870, %v813
    %v872 = vmul.f32 %v870, %v814
    %v873 = vadd.f32 %v843, %v871
    %v874 = vadd.f32 %v844, %v872
    %s875 = sld [smem:[#allocation11 + $0x6d]]
    %v876 = vstv %s875
    %v877 = vmul.f32 %v876, %v813
    %v878 = vmul.f32 %v876, %v814
    %v879 = vadd.f32 %v849, %v877
    %v880 = vadd.f32 %v850, %v878
    %s881 = sld [smem:[#allocation11 + $0xe]]
    %v882 = vstv %s881
    %v883 = vmul.f32 %v882, %v815
    %v884 = vmul.f32 %v882, %v816
    %v885 = vadd.f32 %v855, %v883
    %v886 = vadd.f32 %v856, %v884
    %s887 = sld [smem:[#allocation11 + $0x27]]
    %v888 = vstv %s887
    %v889 = vmul.f32 %v888, %v815
    %v890 = vmul.f32 %v888, %v816
    %v891 = vadd.f32 %v861, %v889
    %v892 = vadd.f32 %v862, %v890
    %s893 = sld [smem:[#allocation11 + $0x40]]
    %v894 = vstv %s893
    %v895 = vmul.f32 %v894, %v815
    %v896 = vmul.f32 %v894, %v816
    %v897 = vadd.f32 %v867, %v895
    %v898 = vadd.f32 %v868, %v896
    %s899 = sld [smem:[#allocation11 + $0x59]]
    %v900 = vstv %s899
    %v901 = vmul.f32 %v900, %v815
    %v902 = vmul.f32 %v900, %v816
    %v903 = vadd.f32 %v873, %v901
    %v904 = vadd.f32 %v874, %v902
    %s905 = sld [smem:[#allocation11 + $0x72]]
    %v906 = vstv %s905
    %v907 = vmul.f32 %v906, %v815
    %v908 = vmul.f32 %v906, %v816
    %v909 = vadd.f32 %v879, %v907
    %v910 = vadd.f32 %v880, %v908
    %s911 = sld [smem:[#allocation11 + $0x13]]
    %v912 = vstv %s911
    %v913 = vmul.f32 %v912, %v817
    %v914 = vmul.f32 %v912, %v818
    %v915 = vadd.f32 %v885, %v913
    %v916 = vadd.f32 %v886, %v914
    %s917 = sld [smem:[#allocation11 + $0x2c]]
    %v918 = vstv %s917
    %v919 = vmul.f32 %v918, %v817
    %v920 = vmul.f32 %v918, %v818
    %v921 = vadd.f32 %v891, %v919
    %v922 = vadd.f32 %v892, %v920
    %s923 = sld [smem:[#allocation11 + $0x45]]
    %v924 = vstv %s923
    %v925 = vmul.f32 %v924, %v817
    %v926 = vmul.f32 %v924, %v818
    %v927 = vadd.f32 %v897, %v925
    %v928 = vadd.f32 %v898, %v926
    %s929 = sld [smem:[#allocation11 + $0x5e]]
    %v930 = vstv %s929
    %v931 = vmul.f32 %v930, %v817
    %v932 = vmul.f32 %v930, %v818
    %v933 = vadd.f32 %v903, %v931
    %v934 = vadd.f32 %v904, %v932
    %s935 = sld [smem:[#allocation11 + $0x77]]
    %v936 = vstv %s935
    %v937 = vmul.f32 %v936, %v817
    %v938 = vmul.f32 %v936, %v818
    %v939 = vadd.f32 %v909, %v937
    %v940 = vadd.f32 %v910, %v938
    %s941 = sld [smem:[#allocation11 + $0x18]]
    %v942 = vstv %s941
    %v943 = vmul.f32 %v942, %v819
    %v944 = vmul.f32 %v942, %v820
    %v945 = vadd.f32 %v915, %v943
    %v946 = vadd.f32 %v916, %v944
    %s947 = sld [smem:[#allocation11 + $0x31]]
    %v948 = vstv %s947
    %v949 = vmul.f32 %v948, %v819
    %v950 = vmul.f32 %v948, %v820
    %v951 = vadd.f32 %v921, %v949
    %v952 = vadd.f32 %v922, %v950
    %s953 = sld [smem:[#allocation11 + $0x4a]]
    %v954 = vstv %s953
    %v955 = vmul.f32 %v954, %v819
    %v956 = vmul.f32 %v954, %v820
    %v957 = vadd.f32 %v927, %v955
    %v958 = vadd.f32 %v928, %v956
    %s959 = sld [smem:[#allocation11 + $0x63]]
    %v960 = vstv %s959
    %v961 = vmul.f32 %v960, %v819
    %v962 = vmul.f32 %v960, %v820
    %v963 = vadd.f32 %v933, %v961
    %v964 = vadd.f32 %v934, %v962
    %s965 = sld [smem:[#allocation11 + $0x7c]]
    %v966 = vstv %s965
    %v967 = vmul.f32 %v966, %v819
    %v968 = vmul.f32 %v966, %v820
    %v969 = vadd.f32 %v939, %v967
    %v970 = vadd.f32 %v940, %v968
    %s971 = sld [smem:[#allocation12]]
    %v972 = vstv %s971
    %v973 = vadd.f32 %v945, %v972
    %v974 = vadd.f32 %v946, %v972
    %s975 = sld [smem:[#allocation12 + $0x1]]
    %v976 = vstv %s975
    %v977 = vadd.f32 %v951, %v976
    %v978 = vadd.f32 %v952, %v976
    %s979 = sld [smem:[#allocation12 + $0x2]]
    %v980 = vstv %s979
    %v981 = vadd.f32 %v957, %v980
    %v982 = vadd.f32 %v958, %v980
    %s983 = sld [smem:[#allocation12 + $0x3]]
    %v984 = vstv %s983
    %v985 = vadd.f32 %v963, %v984
    %v986 = vadd.f32 %v964, %v984
    %s987 = sld [smem:[#allocation12 + $0x4]]
    %v988 = vstv %s987
    %v989 = vadd.f32 %v969, %v988
    %v990 = vadd.f32 %v970, %v988
    %s991 = sld [smem:[#allocation4]]
    %v992 = vstv %s991
    %v993 = vmul.f32 %v992, %v181
    %v994 = vmul.f32 %v992, %v182
    %s995 = sld [smem:[#allocation4 + $0x14]]
    %v996 = vstv %s995
    %v997 = vmul.f32 %v996, %v181
    %v998 = vmul.f32 %v996, %v182
    %s999 = sld [smem:[#allocation4 + $0x28]]
    %v1000 = vstv %s999
    %v1001 = vmul.f32 %v1000, %v181
    %v1002 = vmul.f32 %v1000, %v182
    %s1003 = sld [smem:[#allocation4 + $0x3c]]
    %v1004 = vstv %s1003
    %v1005 = vmul.f32 %v1004, %v181
    %v1006 = vmul.f32 %v1004, %v182
    %s1007 = sld [smem:[#allocation4 + $0x50]]
    %v1008 = vstv %s1007
    %v1009 = vmul.f32 %v1008, %v181
    %v1010 = vmul.f32 %v1008, %v182
    %s1011 = sld [smem:[#allocation4 + $0x4]]
    %v1012 = vstv %s1011
    %v1013 = vmul.f32 %v1012, %v183
    %v1014 = vmul.f32 %v1012, %v184
    %v1015 = vadd.f32 %v993, %v1013
    %v1016 = vadd.f32 %v994, %v1014
    %s1017 = sld [smem:[#allocation4 + $0x18]]
    %v1018 = vstv %s1017
    %v1019 = vmul.f32 %v1018, %v183
    %v1020 = vmul.f32 %v1018, %v184
    %v1021 = vadd.f32 %v997, %v1019
    %v1022 = vadd.f32 %v998, %v1020
    %s1023 = sld [smem:[#allocation4 + $0x2c]]
    %v1024 = vstv %s1023
    %v1025 = vmul.f32 %v1024, %v183
    %v1026 = vmul.f32 %v1024, %v184
    %v1027 = vadd.f32 %v1001, %v1025
    %v1028 = vadd.f32 %v1002, %v1026
    %s1029 = sld [smem:[#allocation4 + $0x40]]
    %v1030 = vstv %s1029
    %v1031 = vmul.f32 %v1030, %v183
    %v1032 = vmul.f32 %v1030, %v184
    %v1033 = vadd.f32 %v1005, %v1031
    %v1034 = vadd.f32 %v1006, %v1032
    %s1035 = sld [smem:[#allocation4 + $0x54]]
    %v1036 = vstv %s1035
    %v1037 = vmul.f32 %v1036, %v183
    %v1038 = vmul.f32 %v1036, %v184
    %v1039 = vadd.f32 %v1009, %v1037
    %v1040 = vadd.f32 %v1010, %v1038
    %s1041 = sld [smem:[#allocation4 + $0x8]]
    %v1042 = vstv %s1041
    %v1043 = vmul.f32 %v1042, %v185
    %v1044 = vmul.f32 %v1042, %v186
    %v1045 = vadd.f32 %v1015, %v1043
    %v1046 = vadd.f32 %v1016, %v1044
    %s1047 = sld [smem:[#allocation4 + $0x1c]]
    %v1048 = vstv %s1047
    %v1049 = vmul.f32 %v1048, %v185
    %v1050 = vmul.f32 %v1048, %v186
    %v1051 = vadd.f32 %v1021, %v1049
    %v1052 = vadd.f32 %v1022, %v1050
    %s1053 = sld [smem:[#allocation4 + $0x30]]
    %v1054 = vstv %s1053
    %v1055 = vmul.f32 %v1054, %v185
    %v1056 = vmul.f32 %v1054, %v186
    %v1057 = vadd.f32 %v1027, %v1055
    %v1058 = vadd.f32 %v1028, %v1056
    %s1059 = sld [smem:[#allocation4 + $0x44]]
    %v1060 = vstv %s1059
    %v1061 = vmul.f32 %v1060, %v185
    %v1062 = vmul.f32 %v1060, %v186
    %v1063 = vadd.f32 %v1033, %v1061
    %v1064 = vadd.f32 %v1034, %v1062
    %s1065 = sld [smem:[#allocation4 + $0x58]]
    %v1066 = vstv %s1065
    %v1067 = vmul.f32 %v1066, %v185
    %v1068 = vmul.f32 %v1066, %v186
    %v1069 = vadd.f32 %v1039, %v1067
    %v1070 = vadd.f32 %v1040, %v1068
    %s1071 = sld [smem:[#allocation4 + $0xc]]
    %v1072 = vstv %s1071
    %v1073 = vmul.f32 %v1072, %v187
    %v1074 = vmul.f32 %v1072, %v188
    %v1075 = vadd.f32 %v1045, %v1073
    %v1076 = vadd.f32 %v1046, %v1074
    %s1077 = sld [smem:[#allocation4 + $0x20]]
    %v1078 = vstv %s1077
    %v1079 = vmul.f32 %v1078, %v187
    %v1080 = vmul.f32 %v1078, %v188
    %v1081 = vadd.f32 %v1051, %v1079
    %v1082 = vadd.f32 %v1052, %v1080
    %s1083 = sld [smem:[#allocation4 + $0x34]]
    %v1084 = vstv %s1083
    %v1085 = vmul.f32 %v1084, %v187
    %v1086 = vmul.f32 %v1084, %v188
    %v1087 = vadd.f32 %v1057, %v1085
    %v1088 = vadd.f32 %v1058, %v1086
    %s1089 = sld [smem:[#allocation4 + $0x48]]
    %v1090 = vstv %s1089
    %v1091 = vmul.f32 %v1090, %v187
    %v1092 = vmul.f32 %v1090, %v188
    %v1093 = vadd.f32 %v1063, %v1091
    %v1094 = vadd.f32 %v1064, %v1092
    %s1095 = sld [smem:[#allocation4 + $0x5c]]
    %v1096 = vstv %s1095
    %v1097 = vmul.f32 %v1096, %v187
    %v1098 = vmul.f32 %v1096, %v188
    %v1099 = vadd.f32 %v1069, %v1097
    %v1100 = vadd.f32 %v1070, %v1098
    %s1101 = sld [smem:[#allocation4 + $0x10]]
    %v1102 = vstv %s1101
    %v1103 = vmul.f32 %v1102, %v189
    %v1104 = vmul.f32 %v1102, %v190
    %v1105 = vadd.f32 %v1075, %v1103
    %v1106 = vadd.f32 %v1076, %v1104
    %s1107 = sld [smem:[#allocation4 + $0x24]]
    %v1108 = vstv %s1107
    %v1109 = vmul.f32 %v1108, %v189
    %v1110 = vmul.f32 %v1108, %v190
    %v1111 = vadd.f32 %v1081, %v1109
    %v1112 = vadd.f32 %v1082, %v1110
    %s1113 = sld [smem:[#allocation4 + $0x38]]
    %v1114 = vstv %s1113
    %v1115 = vmul.f32 %v1114, %v189
    %v1116 = vmul.f32 %v1114, %v190
    %v1117 = vadd.f32 %v1087, %v1115
    %v1118 = vadd.f32 %v1088, %v1116
    %s1119 = sld [smem:[#allocation4 + $0x4c]]
    %v1120 = vstv %s1119
    %v1121 = vmul.f32 %v1120, %v189
    %v1122 = vmul.f32 %v1120, %v190
    %v1123 = vadd.f32 %v1093, %v1121
    %v1124 = vadd.f32 %v1094, %v1122
    %s1125 = sld [smem:[#allocation4 + $0x60]]
    %v1126 = vstv %s1125
    %v1127 = vmul.f32 %v1126, %v189
    %v1128 = vmul.f32 %v1126, %v190
    %v1129 = vadd.f32 %v1099, %v1127
    %v1130 = vadd.f32 %v1100, %v1128
    %s1131 = sld [smem:[#allocation4 + $0x1]]
    %v1132 = vstv %s1131
    %v1133 = vmul.f32 %v1132, %v181
    %v1134 = vmul.f32 %v1132, %v182
    %1137 = vrot.lane.b32.xlu0 %v1133, 126
    %v1138 = vpop.permute.xlu0 %1137
    %1139 = vrot.lane.b32.xlu0 %v1134, 126
    %v1140 = vpop.permute.xlu0 %1139
    %v1143 = vadd.f32 %v1105, %v1138
    %v1144 = vadd.f32 %v1106, %v1140
    %s1145 = sld [smem:[#allocation4 + $0x15]]
    %v1146 = vstv %s1145
    %v1147 = vmul.f32 %v1146, %v181
    %v1148 = vmul.f32 %v1146, %v182
    %1151 = vrot.lane.b32.xlu0 %v1147, 126
    %v1152 = vpop.permute.xlu0 %1151
    %1153 = vrot.lane.b32.xlu0 %v1148, 126
    %v1154 = vpop.permute.xlu0 %1153
    %v1157 = vadd.f32 %v1111, %v1152
    %v1158 = vadd.f32 %v1112, %v1154
    %s1159 = sld [smem:[#allocation4 + $0x29]]
    %v1160 = vstv %s1159
    %v1161 = vmul.f32 %v1160, %v181
    %v1162 = vmul.f32 %v1160, %v182
    %1165 = vrot.lane.b32.xlu0 %v1161, 126
    %v1166 = vpop.permute.xlu0 %1165
    %1167 = vrot.lane.b32.xlu0 %v1162, 126
    %v1168 = vpop.permute.xlu0 %1167
    %v1171 = vadd.f32 %v1117, %v1166
    %v1172 = vadd.f32 %v1118, %v1168
    %s1173 = sld [smem:[#allocation4 + $0x3d]]
    %v1174 = vstv %s1173
    %v1175 = vmul.f32 %v1174, %v181
    %v1176 = vmul.f32 %v1174, %v182
    %1179 = vrot.lane.b32.xlu0 %v1175, 126
    %v1180 = vpop.permute.xlu0 %1179
    %1181 = vrot.lane.b32.xlu0 %v1176, 126
    %v1182 = vpop.permute.xlu0 %1181
    %v1185 = vadd.f32 %v1123, %v1180
    %v1186 = vadd.f32 %v1124, %v1182
    %s1187 = sld [smem:[#allocation4 + $0x51]]
    %v1188 = vstv %s1187
    %v1189 = vmul.f32 %v1188, %v181
    %v1190 = vmul.f32 %v1188, %v182
    %1193 = vrot.lane.b32.xlu0 %v1189, 126
    %v1194 = vpop.permute.xlu0 %1193
    %1195 = vrot.lane.b32.xlu0 %v1190, 126
    %v1196 = vpop.permute.xlu0 %1195
    %v1199 = vadd.f32 %v1129, %v1194
    %v1200 = vadd.f32 %v1130, %v1196
    %s1201 = sld [smem:[#allocation4 + $0x5]]
    %v1202 = vstv %s1201
    %v1203 = vmul.f32 %v1202, %v183
    %v1204 = vmul.f32 %v1202, %v184
    %1207 = vrot.lane.b32.xlu0 %v1203, 126
    %v1208 = vpop.permute.xlu0 %1207
    %1209 = vrot.lane.b32.xlu0 %v1204, 126
    %v1210 = vpop.permute.xlu0 %1209
    %v1213 = vadd.f32 %v1143, %v1208
    %v1214 = vadd.f32 %v1144, %v1210
    %s1215 = sld [smem:[#allocation4 + $0x19]]
    %v1216 = vstv %s1215
    %v1217 = vmul.f32 %v1216, %v183
    %v1218 = vmul.f32 %v1216, %v184
    %1221 = vrot.lane.b32.xlu0 %v1217, 126
    %v1222 = vpop.permute.xlu0 %1221
    %1223 = vrot.lane.b32.xlu0 %v1218, 126
    %v1224 = vpop.permute.xlu0 %1223
    %v1227 = vadd.f32 %v1157, %v1222
    %v1228 = vadd.f32 %v1158, %v1224
    %s1229 = sld [smem:[#allocation4 + $0x2d]]
    %v1230 = vstv %s1229
    %v1231 = vmul.f32 %v1230, %v183
    %v1232 = vmul.f32 %v1230, %v184
    %1235 = vrot.lane.b32.xlu0 %v1231, 126
    %v1236 = vpop.permute.xlu0 %1235
    %1237 = vrot.lane.b32.xlu0 %v1232, 126
    %v1238 = vpop.permute.xlu0 %1237
    %v1241 = vadd.f32 %v1171, %v1236
    %v1242 = vadd.f32 %v1172, %v1238
    %s1243 = sld [smem:[#allocation4 + $0x41]]
    %v1244 = vstv %s1243
    %v1245 = vmul.f32 %v1244, %v183
    %v1246 = vmul.f32 %v1244, %v184
    %1249 = vrot.lane.b32.xlu0 %v1245, 126
    %v1250 = vpop.permute.xlu0 %1249
    %1251 = vrot.lane.b32.xlu0 %v1246, 126
    %v1252 = vpop.permute.xlu0 %1251
    %v1255 = vadd.f32 %v1185, %v1250
    %v1256 = vadd.f32 %v1186, %v1252
    %s1257 = sld [smem:[#allocation4 + $0x55]]
    %v1258 = vstv %s1257
    %v1259 = vmul.f32 %v1258, %v183
    %v1260 = vmul.f32 %v1258, %v184
    %1263 = vrot.lane.b32.xlu0 %v1259, 126
    %v1264 = vpop.permute.xlu0 %1263
    %1265 = vrot.lane.b32.xlu0 %v1260, 126
    %v1266 = vpop.permute.xlu0 %1265
    %v1269 = vadd.f32 %v1199, %v1264
    %v1270 = vadd.f32 %v1200, %v1266
    %s1271 = sld [smem:[#allocation4 + $0x9]]
    %v1272 = vstv %s1271
    %v1273 = vmul.f32 %v1272, %v185
    %v1274 = vmul.f32 %v1272, %v186
    %1277 = vrot.lane.b32.xlu0 %v1273, 126
    %v1278 = vpop.permute.xlu0 %1277
    %1279 = vrot.lane.b32.xlu0 %v1274, 126
    %v1280 = vpop.permute.xlu0 %1279
    %v1283 = vadd.f32 %v1213, %v1278
    %v1284 = vadd.f32 %v1214, %v1280
    %s1285 = sld [smem:[#allocation4 + $0x1d]]
    %v1286 = vstv %s1285
    %v1287 = vmul.f32 %v1286, %v185
    %v1288 = vmul.f32 %v1286, %v186
    %1291 = vrot.lane.b32.xlu0 %v1287, 126
    %v1292 = vpop.permute.xlu0 %1291
    %1293 = vrot.lane.b32.xlu0 %v1288, 126
    %v1294 = vpop.permute.xlu0 %1293
    %v1297 = vadd.f32 %v1227, %v1292
    %v1298 = vadd.f32 %v1228, %v1294
    %s1299 = sld [smem:[#allocation4 + $0x31]]
    %v1300 = vstv %s1299
    %v1301 = vmul.f32 %v1300, %v185
    %v1302 = vmul.f32 %v1300, %v186
    %1305 = vrot.lane.b32.xlu0 %v1301, 126
    %v1306 = vpop.permute.xlu0 %1305
    %1307 = vrot.lane.b32.xlu0 %v1302, 126
    %v1308 = vpop.permute.xlu0 %1307
    %v1311 = vadd.f32 %v1241, %v1306
    %v1312 = vadd.f32 %v1242, %v1308
    %s1313 = sld [smem:[#allocation4 + $0x45]]
    %v1314 = vstv %s1313
    %v1315 = vmul.f32 %v1314, %v185
    %v1316 = vmul.f32 %v1314, %v186
    %1319 = vrot.lane.b32.xlu0 %v1315, 126
    %v1320 = vpop.permute.xlu0 %1319
    %1321 = vrot.lane.b32.xlu0 %v1316, 126
    %v1322 = vpop.permute.xlu0 %1321
    %v1325 = vadd.f32 %v1255, %v1320
    %v1326 = vadd.f32 %v1256, %v1322
    %s1327 = sld [smem:[#allocation4 + $0x59]]
    %v1328 = vstv %s1327
    %v1329 = vmul.f32 %v1328, %v185
    %v1330 = vmul.f32 %v1328, %v186
    %1333 = vrot.lane.b32.xlu0 %v1329, 126
    %v1334 = vpop.permute.xlu0 %1333
    %1335 = vrot.lane.b32.xlu0 %v1330, 126
    %v1336 = vpop.permute.xlu0 %1335
    %v1339 = vadd.f32 %v1269, %v1334
    %v1340 = vadd.f32 %v1270, %v1336
    %s1341 = sld [smem:[#allocation4 + $0xd]]
    %v1342 = vstv %s1341
    %v1343 = vmul.f32 %v1342, %v187
    %v1344 = vmul.f32 %v1342, %v188
    %1347 = vrot.lane.b32.xlu0 %v1343, 126
    %v1348 = vpop.permute.xlu0 %1347
    %1349 = vrot.lane.b32.xlu0 %v1344, 126
    %v1350 = vpop.permute.xlu0 %1349
    %v1353 = vadd.f32 %v1283, %v1348
    %v1354 = vadd.f32 %v1284, %v1350
    %s1355 = sld [smem:[#allocation4 + $0x21]]
    %v1356 = vstv %s1355
    %v1357 = vmul.f32 %v1356, %v187
    %v1358 = vmul.f32 %v1356, %v188
    %1361 = vrot.lane.b32.xlu0 %v1357, 126
    %v1362 = vpop.permute.xlu0 %1361
    %1363 = vrot.lane.b32.xlu0 %v1358, 126
    %v1364 = vpop.permute.xlu0 %1363
    %v1367 = vadd.f32 %v1297, %v1362
    %v1368 = vadd.f32 %v1298, %v1364
    %s1369 = sld [smem:[#allocation4 + $0x35]]
    %v1370 = vstv %s1369
    %v1371 = vmul.f32 %v1370, %v187
    %v1372 = vmul.f32 %v1370, %v188
    %1375 = vrot.lane.b32.xlu0 %v1371, 126
    %v1376 = vpop.permute.xlu0 %1375
    %1377 = vrot.lane.b32.xlu0 %v1372, 126
    %v1378 = vpop.permute.xlu0 %1377
    %v1381 = vadd.f32 %v1311, %v1376
    %v1382 = vadd.f32 %v1312, %v1378
    %s1383 = sld [smem:[#allocation4 + $0x49]]
    %v1384 = vstv %s1383
    %v1385 = vmul.f32 %v1384, %v187
    %v1386 = vmul.f32 %v1384, %v188
    %1389 = vrot.lane.b32.xlu0 %v1385, 126
    %v1390 = vpop.permute.xlu0 %1389
    %1391 = vrot.lane.b32.xlu0 %v1386, 126
    %v1392 = vpop.permute.xlu0 %1391
    %v1395 = vadd.f32 %v1325, %v1390
    %v1396 = vadd.f32 %v1326, %v1392
    %s1397 = sld [smem:[#allocation4 + $0x5d]]
    %v1398 = vstv %s1397
    %v1399 = vmul.f32 %v1398, %v187
    %v1400 = vmul.f32 %v1398, %v188
    %1403 = vrot.lane.b32.xlu0 %v1399, 126
    %v1404 = vpop.permute.xlu0 %1403
    %1405 = vrot.lane.b32.xlu0 %v1400, 126
    %v1406 = vpop.permute.xlu0 %1405
    %v1409 = vadd.f32 %v1339, %v1404
    %v1410 = vadd.f32 %v1340, %v1406
    %s1411 = sld [smem:[#allocation4 + $0x11]]
    %v1412 = vstv %s1411
    %v1413 = vmul.f32 %v1412, %v189
    %v1414 = vmul.f32 %v1412, %v190
    %1417 = vrot.lane.b32.xlu0 %v1413, 126
    %v1418 = vpop.permute.xlu0 %1417
    %1419 = vrot.lane.b32.xlu0 %v1414, 126
    %v1420 = vpop.permute.xlu0 %1419
    %v1423 = vadd.f32 %v1353, %v1418
    %v1424 = vadd.f32 %v1354, %v1420
    %s1425 = sld [smem:[#allocation4 + $0x25]]
    %v1426 = vstv %s1425
    %v1427 = vmul.f32 %v1426, %v189
    %v1428 = vmul.f32 %v1426, %v190
    %1431 = vrot.lane.b32.xlu0 %v1427, 126
    %v1432 = vpop.permute.xlu0 %1431
    %1433 = vrot.lane.b32.xlu0 %v1428, 126
    %v1434 = vpop.permute.xlu0 %1433
    %v1437 = vadd.f32 %v1367, %v1432
    %v1438 = vadd.f32 %v1368, %v1434
    %s1439 = sld [smem:[#allocation4 + $0x39]]
    %v1440 = vstv %s1439
    %v1441 = vmul.f32 %v1440, %v189
    %v1442 = vmul.f32 %v1440, %v190
    %1445 = vrot.lane.b32.xlu0 %v1441, 126
    %v1446 = vpop.permute.xlu0 %1445
    %1447 = vrot.lane.b32.xlu0 %v1442, 126
    %v1448 = vpop.permute.xlu0 %1447
    %v1451 = vadd.f32 %v1381, %v1446
    %v1452 = vadd.f32 %v1382, %v1448
    %s1453 = sld [smem:[#allocation4 + $0x4d]]
    %v1454 = vstv %s1453
    %v1455 = vmul.f32 %v1454, %v189
    %v1456 = vmul.f32 %v1454, %v190
    %1459 = vrot.lane.b32.xlu0 %v1455, 126
    %v1460 = vpop.permute.xlu0 %1459
    %1461 = vrot.lane.b32.xlu0 %v1456, 126
    %v1462 = vpop.permute.xlu0 %1461
    %v1465 = vadd.f32 %v1395, %v1460
    %v1466 = vadd.f32 %v1396, %v1462
    %s1467 = sld [smem:[#allocation4 + $0x61]]
    %v1468 = vstv %s1467
    %v1469 = vmul.f32 %v1468, %v189
    %v1470 = vmul.f32 %v1468, %v190
    %1473 = vrot.lane.b32.xlu0 %v1469, 126
    %v1474 = vpop.permute.xlu0 %1473
    %1475 = vrot.lane.b32.xlu0 %v1470, 126
    %v1476 = vpop.permute.xlu0 %1475
    %v1479 = vadd.f32 %v1409, %v1474
    %v1480 = vadd.f32 %v1410, %v1476
    %s1481 = sld [smem:[#allocation4 + $0x2]]
    %v1482 = vstv %s1481
    %v1483 = vmul.f32 %v1482, %v491
    %v1484 = vmul.f32 %v1482, %v492
    %v1485 = vadd.f32 %v1423, %v1483
    %v1486 = vadd.f32 %v1424, %v1484
    %s1487 = sld [smem:[#allocation4 + $0x16]]
    %v1488 = vstv %s1487
    %v1489 = vmul.f32 %v1488, %v491
    %v1490 = vmul.f32 %v1488, %v492
    %v1491 = vadd.f32 %v1437, %v1489
    %v1492 = vadd.f32 %v1438, %v1490
    %s1493 = sld [smem:[#allocation4 + $0x2a]]
    %v1494 = vstv %s1493
    %v1495 = vmul.f32 %v1494, %v491
    %v1496 = vmul.f32 %v1494, %v492
    %v1497 = vadd.f32 %v1451, %v1495
    %v1498 = vadd.f32 %v1452, %v1496
    %s1499 = sld [smem:[#allocation4 + $0x3e]]
    %v1500 = vstv %s1499
    %v1501 = vmul.f32 %v1500, %v491
    %v1502 = vmul.f32 %v1500, %v492
    %v1503 = vadd.f32 %v1465, %v1501
    %v1504 = vadd.f32 %v1466, %v1502
    %s1505 = sld [smem:[#allocation4 + $0x52]]
    %v1506 = vstv %s1505
    %v1507 = vmul.f32 %v1506, %v491
    %v1508 = vmul.f32 %v1506, %v492
    %v1509 = vadd.f32 %v1479, %v1507
    %v1510 = vadd.f32 %v1480, %v1508
    %s1511 = sld [smem:[#allocation4 + $0x6]]
    %v1512 = vstv %s1511
    %v1513 = vmul.f32 %v1512, %v493
    %v1514 = vmul.f32 %v1512, %v494
    %v1515 = vadd.f32 %v1485, %v1513
    %v1516 = vadd.f32 %v1486, %v1514
    %s1517 = sld [smem:[#allocation4 + $0x1a]]
    %v1518 = vstv %s1517
    %v1519 = vmul.f32 %v1518, %v493
    %v1520 = vmul.f32 %v1518, %v494
    %v1521 = vadd.f32 %v1491, %v1519
    %v1522 = vadd.f32 %v1492, %v1520
    %s1523 = sld [smem:[#allocation4 + $0x2e]]
    %v1524 = vstv %s1523
    %v1525 = vmul.f32 %v1524, %v493
    %v1526 = vmul.f32 %v1524, %v494
    %v1527 = vadd.f32 %v1497, %v1525
    %v1528 = vadd.f32 %v1498, %v1526
    %s1529 = sld [smem:[#allocation4 + $0x42]]
    %v1530 = vstv %s1529
    %v1531 = vmul.f32 %v1530, %v493
    %v1532 = vmul.f32 %v1530, %v494
    %v1533 = vadd.f32 %v1503, %v1531
    %v1534 = vadd.f32 %v1504, %v1532
    %s1535 = sld [smem:[#allocation4 + $0x56]]
    %v1536 = vstv %s1535
    %v1537 = vmul.f32 %v1536, %v493
    %v1538 = vmul.f32 %v1536, %v494
    %v1539 = vadd.f32 %v1509, %v1537
    %v1540 = vadd.f32 %v1510, %v1538
    %s1541 = sld [smem:[#allocation4 + $0xa]]
    %v1542 = vstv %s1541
    %v1543 = vmul.f32 %v1542, %v495
    %v1544 = vmul.f32 %v1542, %v496
    %v1545 = vadd.f32 %v1515, %v1543
    %v1546 = vadd.f32 %v1516, %v1544
    %s1547 = sld [smem:[#allocation4 + $0x1e]]
    %v1548 = vstv %s1547
    %v1549 = vmul.f32 %v1548, %v495
    %v1550 = vmul.f32 %v1548, %v496
    %v1551 = vadd.f32 %v1521, %v1549
    %v1552 = vadd.f32 %v1522, %v1550
    %s1553 = sld [smem:[#allocation4 + $0x32]]
    %v1554 = vstv %s1553
    %v1555 = vmul.f32 %v1554, %v495
    %v1556 = vmul.f32 %v1554, %v496
    %v1557 = vadd.f32 %v1527, %v1555
    %v1558 = vadd.f32 %v1528, %v1556
    %s1559 = sld [smem:[#allocation4 + $0x46]]
    %v1560 = vstv %s1559
    %v1561 = vmul.f32 %v1560, %v495
    %v1562 = vmul.f32 %v1560, %v496
    %v1563 = vadd.f32 %v1533, %v1561
    %v1564 = vadd.f32 %v1534, %v1562
    %s1565 = sld [smem:[#allocation4 + $0x5a]]
    %v1566 = vstv %s1565
    %v1567 = vmul.f32 %v1566, %v495
    %v1568 = vmul.f32 %v1566, %v496
    %v1569 = vadd.f32 %v1539, %v1567
    %v1570 = vadd.f32 %v1540, %v1568
    %s1571 = sld [smem:[#allocation4 + $0xe]]
    %v1572 = vstv %s1571
    %v1573 = vmul.f32 %v1572, %v497
    %v1574 = vmul.f32 %v1572, %v498
    %v1575 = vadd.f32 %v1545, %v1573
    %v1576 = vadd.f32 %v1546, %v1574
    %s1577 = sld [smem:[#allocation4 + $0x22]]
    %v1578 = vstv %s1577
    %v1579 = vmul.f32 %v1578, %v497
    %v1580 = vmul.f32 %v1578, %v498
    %v1581 = vadd.f32 %v1551, %v1579
    %v1582 = vadd.f32 %v1552, %v1580
    %s1583 = sld [smem:[#allocation4 + $0x36]]
    %v1584 = vstv %s1583
    %v1585 = vmul.f32 %v1584, %v497
    %v1586 = vmul.f32 %v1584, %v498
    %v1587 = vadd.f32 %v1557, %v1585
    %v1588 = vadd.f32 %v1558, %v1586
    %s1589 = sld [smem:[#allocation4 + $0x4a]]
    %v1590 = vstv %s1589
    %v1591 = vmul.f32 %v1590, %v497
    %v1592 = vmul.f32 %v1590, %v498
    %v1593 = vadd.f32 %v1563, %v1591
    %v1594 = vadd.f32 %v1564, %v1592
    %s1595 = sld [smem:[#allocation4 + $0x5e]]
    %v1596 = vstv %s1595
    %v1597 = vmul.f32 %v1596, %v497
    %v1598 = vmul.f32 %v1596, %v498
    %v1599 = vadd.f32 %v1569, %v1597
    %v1600 = vadd.f32 %v1570, %v1598
    %s1601 = sld [smem:[#allocation4 + $0x12]]
    %v1602 = vstv %s1601
    %v1603 = vmul.f32 %v1602, %v499
    %v1604 = vmul.f32 %v1602, %v500
    %v1605 = vadd.f32 %v1575, %v1603
    %v1606 = vadd.f32 %v1576, %v1604
    %s1607 = sld [smem:[#allocation4 + $0x26]]
    %v1608 = vstv %s1607
    %v1609 = vmul.f32 %v1608, %v499
    %v1610 = vmul.f32 %v1608, %v500
    %v1611 = vadd.f32 %v1581, %v1609
    %v1612 = vadd.f32 %v1582, %v1610
    %s1613 = sld [smem:[#allocation4 + $0x3a]]
    %v1614 = vstv %s1613
    %v1615 = vmul.f32 %v1614, %v499
    %v1616 = vmul.f32 %v1614, %v500
    %v1617 = vadd.f32 %v1587, %v1615
    %v1618 = vadd.f32 %v1588, %v1616
    %s1619 = sld [smem:[#allocation4 + $0x4e]]
    %v1620 = vstv %s1619
    %v1621 = vmul.f32 %v1620, %v499
    %v1622 = vmul.f32 %v1620, %v500
    %v1623 = vadd.f32 %v1593, %v1621
    %v1624 = vadd.f32 %v1594, %v1622
    %s1625 = sld [smem:[#allocation4 + $0x62]]
    %v1626 = vstv %s1625
    %v1627 = vmul.f32 %v1626, %v499
    %v1628 = vmul.f32 %v1626, %v500
    %v1629 = vadd.f32 %v1599, %v1627
    %v1630 = vadd.f32 %v1600, %v1628
    %s1631 = sld [smem:[#allocation4 + $0x3]]
    %v1632 = vstv %s1631
    %v1633 = vmul.f32 %v1632, %v491
    %v1634 = vmul.f32 %v1632, %v492
    %1637 = vrot.lane.b32.xlu0 %v1633, 126
    %v1638 = vpop.permute.xlu0 %1637
    %1639 = vrot.lane.b32.xlu0 %v1634, 126
    %v1640 = vpop.permute.xlu0 %1639
    %v1643 = vadd.f32 %v1605, %v1638
    %v1644 = vadd.f32 %v1606, %v1640
    %s1645 = sld [smem:[#allocation4 + $0x17]]
    %v1646 = vstv %s1645
    %v1647 = vmul.f32 %v1646, %v491
    %v1648 = vmul.f32 %v1646, %v492
    %1651 = vrot.lane.b32.xlu0 %v1647, 126
    %v1652 = vpop.permute.xlu0 %1651
    %1653 = vrot.lane.b32.xlu0 %v1648, 126
    %v1654 = vpop.permute.xlu0 %1653
    %v1657 = vadd.f32 %v1611, %v1652
    %v1658 = vadd.f32 %v1612, %v1654
    %s1659 = sld [smem:[#allocation4 + $0x2b]]
    %v1660 = vstv %s1659
    %v1661 = vmul.f32 %v1660, %v491
    %v1662 = vmul.f32 %v1660, %v492
    %1665 = vrot.lane.b32.xlu0 %v1661, 126
    %v1666 = vpop.permute.xlu0 %1665
    %1667 = vrot.lane.b32.xlu0 %v1662, 126
    %v1668 = vpop.permute.xlu0 %1667
    %v1671 = vadd.f32 %v1617, %v1666
    %v1672 = vadd.f32 %v1618, %v1668
    %s1673 = sld [smem:[#allocation4 + $0x3f]]
    %v1674 = vstv %s1673
    %v1675 = vmul.f32 %v1674, %v491
    %v1676 = vmul.f32 %v1674, %v492
    %1679 = vrot.lane.b32.xlu0 %v1675, 126
    %v1680 = vpop.permute.xlu0 %1679
    %1681 = vrot.lane.b32.xlu0 %v1676, 126
    %v1682 = vpop.permute.xlu0 %1681
    %v1685 = vadd.f32 %v1623, %v1680
    %v1686 = vadd.f32 %v1624, %v1682
    %s1687 = sld [smem:[#allocation4 + $0x53]]
    %v1688 = vstv %s1687
    %v1689 = vmul.f32 %v1688, %v491
    %v1690 = vmul.f32 %v1688, %v492
    %1693 = vrot.lane.b32.xlu0 %v1689, 126
    %v1694 = vpop.permute.xlu0 %1693
    %1695 = vrot.lane.b32.xlu0 %v1690, 126
    %v1696 = vpop.permute.xlu0 %1695
    %v1699 = vadd.f32 %v1629, %v1694
    %v1700 = vadd.f32 %v1630, %v1696
    %s1701 = sld [smem:[#allocation4 + $0x7]]
    %v1702 = vstv %s1701
    %v1703 = vmul.f32 %v1702, %v493
    %v1704 = vmul.f32 %v1702, %v494
    %1707 = vrot.lane.b32.xlu0 %v1703, 126
    %v1708 = vpop.permute.xlu0 %1707
    %1709 = vrot.lane.b32.xlu0 %v1704, 126
    %v1710 = vpop.permute.xlu0 %1709
    %v1713 = vadd.f32 %v1643, %v1708
    %v1714 = vadd.f32 %v1644, %v1710
    %s1715 = sld [smem:[#allocation4 + $0x1b]]
    %v1716 = vstv %s1715
    %v1717 = vmul.f32 %v1716, %v493
    %v1718 = vmul.f32 %v1716, %v494
    %1721 = vrot.lane.b32.xlu0 %v1717, 126
    %v1722 = vpop.permute.xlu0 %1721
    %1723 = vrot.lane.b32.xlu0 %v1718, 126
    %v1724 = vpop.permute.xlu0 %1723
    %v1727 = vadd.f32 %v1657, %v1722
    %v1728 = vadd.f32 %v1658, %v1724
    %s1729 = sld [smem:[#allocation4 + $0x2f]]
    %v1730 = vstv %s1729
    %v1731 = vmul.f32 %v1730, %v493
    %v1732 = vmul.f32 %v1730, %v494
    %1735 = vrot.lane.b32.xlu0 %v1731, 126
    %v1736 = vpop.permute.xlu0 %1735
    %1737 = vrot.lane.b32.xlu0 %v1732, 126
    %v1738 = vpop.permute.xlu0 %1737
    %v1741 = vadd.f32 %v1671, %v1736
    %v1742 = vadd.f32 %v1672, %v1738
    %s1743 = sld [smem:[#allocation4 + $0x43]]
    %v1744 = vstv %s1743
    %v1745 = vmul.f32 %v1744, %v493
    %v1746 = vmul.f32 %v1744, %v494
    %1749 = vrot.lane.b32.xlu0 %v1745, 126
    %v1750 = vpop.permute.xlu0 %1749
    %1751 = vrot.lane.b32.xlu0 %v1746, 126
    %v1752 = vpop.permute.xlu0 %1751
    %v1755 = vadd.f32 %v1685, %v1750
    %v1756 = vadd.f32 %v1686, %v1752
    %s1757 = sld [smem:[#allocation4 + $0x57]]
    %v1758 = vstv %s1757
    %v1759 = vmul.f32 %v1758, %v493
    %v1760 = vmul.f32 %v1758, %v494
    %1763 = vrot.lane.b32.xlu0 %v1759, 126
    %v1764 = vpop.permute.xlu0 %1763
    %1765 = vrot.lane.b32.xlu0 %v1760, 126
    %v1766 = vpop.permute.xlu0 %1765
    %v1769 = vadd.f32 %v1699, %v1764
    %v1770 = vadd.f32 %v1700, %v1766
    %s1771 = sld [smem:[#allocation4 + $0xb]]
    %v1772 = vstv %s1771
    %v1773 = vmul.f32 %v1772, %v495
    %v1774 = vmul.f32 %v1772, %v496
    %1777 = vrot.lane.b32.xlu0 %v1773, 126
    %v1778 = vpop.permute.xlu0 %1777
    %1779 = vrot.lane.b32.xlu0 %v1774, 126
    %v1780 = vpop.permute.xlu0 %1779
    %v1783 = vadd.f32 %v1713, %v1778
    %v1784 = vadd.f32 %v1714, %v1780
    %s1785 = sld [smem:[#allocation4 + $0x1f]]
    %v1786 = vstv %s1785
    %v1787 = vmul.f32 %v1786, %v495
    %v1788 = vmul.f32 %v1786, %v496
    %1791 = vrot.lane.b32.xlu0 %v1787, 126
    %v1792 = vpop.permute.xlu0 %1791
    %1793 = vrot.lane.b32.xlu0 %v1788, 126
    %v1794 = vpop.permute.xlu0 %1793
    %v1797 = vadd.f32 %v1727, %v1792
    %v1798 = vadd.f32 %v1728, %v1794
    %s1799 = sld [smem:[#allocation4 + $0x33]]
    %v1800 = vstv %s1799
    %v1801 = vmul.f32 %v1800, %v495
    %v1802 = vmul.f32 %v1800, %v496
    %1805 = vrot.lane.b32.xlu0 %v1801, 126
    %v1806 = vpop.permute.xlu0 %1805
    %1807 = vrot.lane.b32.xlu0 %v1802, 126
    %v1808 = vpop.permute.xlu0 %1807
    %v1811 = vadd.f32 %v1741, %v1806
    %v1812 = vadd.f32 %v1742, %v1808
    %s1813 = sld [smem:[#allocation4 + $0x47]]
    %v1814 = vstv %s1813
    %v1815 = vmul.f32 %v1814, %v495
    %v1816 = vmul.f32 %v1814, %v496
    %1819 = vrot.lane.b32.xlu0 %v1815, 126
    %v1820 = vpop.permute.xlu0 %1819
    %1821 = vrot.lane.b32.xlu0 %v1816, 126
    %v1822 = vpop.permute.xlu0 %1821
    %v1825 = vadd.f32 %v1755, %v1820
    %v1826 = vadd.f32 %v1756, %v1822
    %s1827 = sld [smem:[#allocation4 + $0x5b]]
    %v1828 = vstv %s1827
    %v1829 = vmul.f32 %v1828, %v495
    %v1830 = vmul.f32 %v1828, %v496
    %1833 = vrot.lane.b32.xlu0 %v1829, 126
    %v1834 = vpop.permute.xlu0 %1833
    %1835 = vrot.lane.b32.xlu0 %v1830, 126
    %v1836 = vpop.permute.xlu0 %1835
    %v1839 = vadd.f32 %v1769, %v1834
    %v1840 = vadd.f32 %v1770, %v1836
    %s1841 = sld [smem:[#allocation4 + $0xf]]
    %v1842 = vstv %s1841
    %v1843 = vmul.f32 %v1842, %v497
    %v1844 = vmul.f32 %v1842, %v498
    %1847 = vrot.lane.b32.xlu0 %v1843, 126
    %v1848 = vpop.permute.xlu0 %1847
    %1849 = vrot.lane.b32.xlu0 %v1844, 126
    %v1850 = vpop.permute.xlu0 %1849
    %v1853 = vadd.f32 %v1783, %v1848
    %v1854 = vadd.f32 %v1784, %v1850
    %s1855 = sld [smem:[#allocation4 + $0x23]]
    %v1856 = vstv %s1855
    %v1857 = vmul.f32 %v1856, %v497
    %v1858 = vmul.f32 %v1856, %v498
    %1861 = vrot.lane.b32.xlu0 %v1857, 126
    %v1862 = vpop.permute.xlu0 %1861
    %1863 = vrot.lane.b32.xlu0 %v1858, 126
    %v1864 = vpop.permute.xlu0 %1863
    %v1867 = vadd.f32 %v1797, %v1862
    %v1868 = vadd.f32 %v1798, %v1864
    %s1869 = sld [smem:[#allocation4 + $0x37]]
    %v1870 = vstv %s1869
    %v1871 = vmul.f32 %v1870, %v497
    %v1872 = vmul.f32 %v1870, %v498
    %1875 = vrot.lane.b32.xlu0 %v1871, 126
    %v1876 = vpop.permute.xlu0 %1875
    %1877 = vrot.lane.b32.xlu0 %v1872, 126
    %v1878 = vpop.permute.xlu0 %1877
    %v1881 = vadd.f32 %v1811, %v1876
    %v1882 = vadd.f32 %v1812, %v1878
    %s1883 = sld [smem:[#allocation4 + $0x4b]]
    %v1884 = vstv %s1883
    %v1885 = vmul.f32 %v1884, %v497
    %v1886 = vmul.f32 %v1884, %v498
    %1889 = vrot.lane.b32.xlu0 %v1885, 126
    %v1890 = vpop.permute.xlu0 %1889
    %1891 = vrot.lane.b32.xlu0 %v1886, 126
    %v1892 = vpop.permute.xlu0 %1891
    %v1895 = vadd.f32 %v1825, %v1890
    %v1896 = vadd.f32 %v1826, %v1892
    %s1897 = sld [smem:[#allocation4 + $0x5f]]
    %v1898 = vstv %s1897
    %v1899 = vmul.f32 %v1898, %v497
    %v1900 = vmul.f32 %v1898, %v498
    %1903 = vrot.lane.b32.xlu0 %v1899, 126
    %v1904 = vpop.permute.xlu0 %1903
    %1905 = vrot.lane.b32.xlu0 %v1900, 126
    %v1906 = vpop.permute.xlu0 %1905
    %v1909 = vadd.f32 %v1839, %v1904
    %v1910 = vadd.f32 %v1840, %v1906
    %s1911 = sld [smem:[#allocation4 + $0x13]]
    %v1912 = vstv %s1911
    %v1913 = vmul.f32 %v1912, %v499
    %v1914 = vmul.f32 %v1912, %v500
    %1917 = vrot.lane.b32.xlu0 %v1913, 126
    %v1918 = vpop.permute.xlu0 %1917
    %1919 = vrot.lane.b32.xlu0 %v1914, 126
    %v1920 = vpop.permute.xlu0 %1919
    %v1923 = vadd.f32 %v1853, %v1918
    %v1924 = vadd.f32 %v1854, %v1920
    %s1925 = sld [smem:[#allocation4 + $0x27]]
    %v1926 = vstv %s1925
    %v1927 = vmul.f32 %v1926, %v499
    %v1928 = vmul.f32 %v1926, %v500
    %1931 = vrot.lane.b32.xlu0 %v1927, 126
    %v1932 = vpop.permute.xlu0 %1931
    %1933 = vrot.lane.b32.xlu0 %v1928, 126
    %v1934 = vpop.permute.xlu0 %1933
    %v1937 = vadd.f32 %v1867, %v1932
    %v1938 = vadd.f32 %v1868, %v1934
    %s1939 = sld [smem:[#allocation4 + $0x3b]]
    %v1940 = vstv %s1939
    %v1941 = vmul.f32 %v1940, %v499
    %v1942 = vmul.f32 %v1940, %v500
    %1945 = vrot.lane.b32.xlu0 %v1941, 126
    %v1946 = vpop.permute.xlu0 %1945
    %1947 = vrot.lane.b32.xlu0 %v1942, 126
    %v1948 = vpop.permute.xlu0 %1947
    %v1951 = vadd.f32 %v1881, %v1946
    %v1952 = vadd.f32 %v1882, %v1948
    %s1953 = sld [smem:[#allocation4 + $0x4f]]
    %v1954 = vstv %s1953
    %v1955 = vmul.f32 %v1954, %v499
    %v1956 = vmul.f32 %v1954, %v500
    %1959 = vrot.lane.b32.xlu0 %v1955, 126
    %v1960 = vpop.permute.xlu0 %1959
    %1961 = vrot.lane.b32.xlu0 %v1956, 126
    %v1962 = vpop.permute.xlu0 %1961
    %v1965 = vadd.f32 %v1895, %v1960
    %v1966 = vadd.f32 %v1896, %v1962
    %s1967 = sld [smem:[#allocation4 + $0x63]]
    %v1968 = vstv %s1967
    %v1969 = vmul.f32 %v1968, %v499
    %v1970 = vmul.f32 %v1968, %v500
    %1973 = vrot.lane.b32.xlu0 %v1969, 126
    %v1974 = vpop.permute.xlu0 %1973
    %1975 = vrot.lane.b32.xlu0 %v1970, 126
    %v1976 = vpop.permute.xlu0 %1975
    %v1979 = vadd.f32 %v1909, %v1974
    %v1980 = vadd.f32 %v1910, %v1976
    %s1981 = sld [smem:[#allocation6]]
    %v1982 = vstv %s1981
    %v1983 = vadd.f32 %v1923, %v1982
    %v1984 = vadd.f32 %v1924, %v1982
    %s1985 = sld [smem:[#allocation6 + $0x1]]
    %v1986 = vstv %s1985
    %v1987 = vadd.f32 %v1937, %v1986
    %v1988 = vadd.f32 %v1938, %v1986
    %s1989 = sld [smem:[#allocation6 + $0x2]]
    %v1990 = vstv %s1989
    %v1991 = vadd.f32 %v1951, %v1990
    %v1992 = vadd.f32 %v1952, %v1990
    %s1993 = sld [smem:[#allocation6 + $0x3]]
    %v1994 = vstv %s1993
    %v1995 = vadd.f32 %v1965, %v1994
    %v1996 = vadd.f32 %v1966, %v1994
    %s1997 = sld [smem:[#allocation6 + $0x4]]
    %v1998 = vstv %s1997
    %v1999 = vadd.f32 %v1979, %v1998
    %v2000 = vadd.f32 %v1980, %v1998
    %v2001 = vtanh.pop %v1983
    %v2002 = vtanh.pop %v1984
    %v2003 = vtanh.pop %v1987
    %v2004 = vtanh.pop %v1988
    %v2005 = vtanh.pop %v1991
    %v2006 = vtanh.pop %v1992
    %v2007 = vtanh.pop %v1995
    %v2008 = vtanh.pop %v1996
    %v2009 = vtanh.pop %v1999
    %v2010 = vtanh.pop %v2000
    %2021 = vrot.lane.b32.xlu0 %v2001, 2
    %v2022 = vpop.permute.xlu0 %2021
    %2023 = vrot.lane.b32.xlu0 %v2002, 2
    %v2024 = vpop.permute.xlu0 %2023
    %2025 = vrot.lane.b32.xlu0 %v2003, 2
    %v2026 = vpop.permute.xlu0 %2025
    %2027 = vrot.lane.b32.xlu0 %v2004, 2
    %v2028 = vpop.permute.xlu0 %2027
    %2029 = vrot.lane.b32.xlu0 %v2005, 2
    %v2030 = vpop.permute.xlu0 %2029
    %2031 = vrot.lane.b32.xlu0 %v2006, 2
    %v2032 = vpop.permute.xlu0 %2031
    %2033 = vrot.lane.b32.xlu0 %v2007, 2
    %v2034 = vpop.permute.xlu0 %2033
    %2035 = vrot.lane.b32.xlu0 %v2008, 2
    %v2036 = vpop.permute.xlu0 %2035
    %2037 = vrot.lane.b32.xlu0 %v2009, 2
    %v2038 = vpop.permute.xlu0 %2037
    %2039 = vrot.lane.b32.xlu0 %v2010, 2
    %v2040 = vpop.permute.xlu0 %2039
    %vm2051 = vcmask 130064
    %2052 = vst.msk [vmem:[#allocation3 + $0x2] sm:$0xff] %vm2051, %v2022
    %vm2053 = vcmask 125968
    %2054 = vst.msk [vmem:[#allocation3 + $0xa] sm:$0xf] %vm2053, %v2024
    %2055 = vst.msk [vmem:[#allocation3 + $0x12] sm:$0xff] %vm2051, %v2026
    %2056 = vst.msk [vmem:[#allocation3 + $0x1a] sm:$0xf] %vm2053, %v2028
    %2057 = vst.msk [vmem:[#allocation3 + $0x22] sm:$0xff] %vm2051, %v2030
    %2058 = vst.msk [vmem:[#allocation3 + $0x2a] sm:$0xf] %vm2053, %v2032
    %2059 = vst.msk [vmem:[#allocation3 + $0x32] sm:$0xff] %vm2051, %v2034
    %2060 = vst.msk [vmem:[#allocation3 + $0x3a] sm:$0xf] %vm2053, %v2036
    %2061 = vst.msk [vmem:[#allocation3 + $0x42] sm:$0xff] %vm2051, %v2038
    %2062 = vst.msk [vmem:[#allocation3 + $0x4a] sm:$0xf] %vm2053, %v2040
    %v2063 = vld [vmem:[#allocation3] sm:$0xff]
    %v2064 = vld [vmem:[#allocation3 + $0x8] sm:$0xf]
    %v2065 = vld [vmem:[#allocation3 + $0x10] sm:$0xff]
    %v2066 = vld [vmem:[#allocation3 + $0x18] sm:$0xf]
    %v2067 = vld [vmem:[#allocation3 + $0x20] sm:$0xff]
    %v2068 = vld [vmem:[#allocation3 + $0x28] sm:$0xf]
    %v2069 = vld [vmem:[#allocation3 + $0x30] sm:$0xff]
    %v2070 = vld [vmem:[#allocation3 + $0x38] sm:$0xf]
    %v2071 = vld [vmem:[#allocation3 + $0x40] sm:$0xff]
    %v2072 = vld [vmem:[#allocation3 + $0x48] sm:$0xf]
    %s2073 = sld [smem:[#allocation8]]
    %v2074 = vstv %s2073
    %v2075 = vmul.f32 %v2074, %v2063
    %v2076 = vmul.f32 %v2074, %v2064
    %s2077 = sld [smem:[#allocation8 + $0x14]]
    %v2078 = vstv %s2077
    %v2079 = vmul.f32 %v2078, %v2063
    %v2080 = vmul.f32 %v2078, %v2064
    %s2081 = sld [smem:[#allocation8 + $0x28]]
    %v2082 = vstv %s2081
    %v2083 = vmul.f32 %v2082, %v2063
    %v2084 = vmul.f32 %v2082, %v2064
    %s2085 = sld [smem:[#allocation8 + $0x3c]]
    %v2086 = vstv %s2085
    %v2087 = vmul.f32 %v2086, %v2063
    %v2088 = vmul.f32 %v2086, %v2064
    %s2089 = sld [smem:[#allocation8 + $0x50]]
    %v2090 = vstv %s2089
    %v2091 = vmul.f32 %v2090, %v2063
    %v2092 = vmul.f32 %v2090, %v2064
    %s2093 = sld [smem:[#allocation8 + $0x4]]
    %v2094 = vstv %s2093
    %v2095 = vmul.f32 %v2094, %v2065
    %v2096 = vmul.f32 %v2094, %v2066
    %v2097 = vadd.f32 %v2075, %v2095
    %v2098 = vadd.f32 %v2076, %v2096
    %s2099 = sld [smem:[#allocation8 + $0x18]]
    %v2100 = vstv %s2099
    %v2101 = vmul.f32 %v2100, %v2065
    %v2102 = vmul.f32 %v2100, %v2066
    %v2103 = vadd.f32 %v2079, %v2101
    %v2104 = vadd.f32 %v2080, %v2102
    %s2105 = sld [smem:[#allocation8 + $0x2c]]
    %v2106 = vstv %s2105
    %v2107 = vmul.f32 %v2106, %v2065
    %v2108 = vmul.f32 %v2106, %v2066
    %v2109 = vadd.f32 %v2083, %v2107
    %v2110 = vadd.f32 %v2084, %v2108
    %s2111 = sld [smem:[#allocation8 + $0x40]]
    %v2112 = vstv %s2111
    %v2113 = vmul.f32 %v2112, %v2065
    %v2114 = vmul.f32 %v2112, %v2066
    %v2115 = vadd.f32 %v2087, %v2113
    %v2116 = vadd.f32 %v2088, %v2114
    %s2117 = sld [smem:[#allocation8 + $0x54]]
    %v2118 = vstv %s2117
    %v2119 = vmul.f32 %v2118, %v2065
    %v2120 = vmul.f32 %v2118, %v2066
    %v2121 = vadd.f32 %v2091, %v2119
    %v2122 = vadd.f32 %v2092, %v2120
    %s2123 = sld [smem:[#allocation8 + $0x8]]
    %v2124 = vstv %s2123
    %v2125 = vmul.f32 %v2124, %v2067
    %v2126 = vmul.f32 %v2124, %v2068
    %v2127 = vadd.f32 %v2097, %v2125
    %v2128 = vadd.f32 %v2098, %v2126
    %s2129 = sld [smem:[#allocation8 + $0x1c]]
    %v2130 = vstv %s2129
    %v2131 = vmul.f32 %v2130, %v2067
    %v2132 = vmul.f32 %v2130, %v2068
    %v2133 = vadd.f32 %v2103, %v2131
    %v2134 = vadd.f32 %v2104, %v2132
    %s2135 = sld [smem:[#allocation8 + $0x30]]
    %v2136 = vstv %s2135
    %v2137 = vmul.f32 %v2136, %v2067
    %v2138 = vmul.f32 %v2136, %v2068
    %v2139 = vadd.f32 %v2109, %v2137
    %v2140 = vadd.f32 %v2110, %v2138
    %s2141 = sld [smem:[#allocation8 + $0x44]]
    %v2142 = vstv %s2141
    %v2143 = vmul.f32 %v2142, %v2067
    %v2144 = vmul.f32 %v2142, %v2068
    %v2145 = vadd.f32 %v2115, %v2143
    %v2146 = vadd.f32 %v2116, %v2144
    %s2147 = sld [smem:[#allocation8 + $0x58]]
    %v2148 = vstv %s2147
    %v2149 = vmul.f32 %v2148, %v2067
    %v2150 = vmul.f32 %v2148, %v2068
    %v2151 = vadd.f32 %v2121, %v2149
    %v2152 = vadd.f32 %v2122, %v2150
    %s2153 = sld [smem:[#allocation8 + $0xc]]
    %v2154 = vstv %s2153
    %v2155 = vmul.f32 %v2154, %v2069
    %v2156 = vmul.f32 %v2154, %v2070
    %v2157 = vadd.f32 %v2127, %v2155
    %v2158 = vadd.f32 %v2128, %v2156
    %s2159 = sld [smem:[#allocation8 + $0x20]]
    %v2160 = vstv %s2159
    %v2161 = vmul.f32 %v2160, %v2069
    %v2162 = vmul.f32 %v2160, %v2070
    %v2163 = vadd.f32 %v2133, %v2161
    %v2164 = vadd.f32 %v2134, %v2162
    %s2165 = sld [smem:[#allocation8 + $0x34]]
    %v2166 = vstv %s2165
    %v2167 = vmul.f32 %v2166, %v2069
    %v2168 = vmul.f32 %v2166, %v2070
    %v2169 = vadd.f32 %v2139, %v2167
    %v2170 = vadd.f32 %v2140, %v2168
    %s2171 = sld [smem:[#allocation8 + $0x48]]
    %v2172 = vstv %s2171
    %v2173 = vmul.f32 %v2172, %v2069
    %v2174 = vmul.f32 %v2172, %v2070
    %v2175 = vadd.f32 %v2145, %v2173
    %v2176 = vadd.f32 %v2146, %v2174
    %s2177 = sld [smem:[#allocation8 + $0x5c]]
    %v2178 = vstv %s2177
    %v2179 = vmul.f32 %v2178, %v2069
    %v2180 = vmul.f32 %v2178, %v2070
    %v2181 = vadd.f32 %v2151, %v2179
    %v2182 = vadd.f32 %v2152, %v2180
    %s2183 = sld [smem:[#allocation8 + $0x10]]
    %v2184 = vstv %s2183
    %v2185 = vmul.f32 %v2184, %v2071
    %v2186 = vmul.f32 %v2184, %v2072
    %v2187 = vadd.f32 %v2157, %v2185
    %v2188 = vadd.f32 %v2158, %v2186
    %s2189 = sld [smem:[#allocation8 + $0x24]]
    %v2190 = vstv %s2189
    %v2191 = vmul.f32 %v2190, %v2071
    %v2192 = vmul.f32 %v2190, %v2072
    %v2193 = vadd.f32 %v2163, %v2191
    %v2194 = vadd.f32 %v2164, %v2192
    %s2195 = sld [smem:[#allocation8 + $0x38]]
    %v2196 = vstv %s2195
    %v2197 = vmul.f32 %v2196, %v2071
    %v2198 = vmul.f32 %v2196, %v2072
    %v2199 = vadd.f32 %v2169, %v2197
    %v2200 = vadd.f32 %v2170, %v2198
    %s2201 = sld [smem:[#allocation8 + $0x4c]]
    %v2202 = vstv %s2201
    %v2203 = vmul.f32 %v2202, %v2071
    %v2204 = vmul.f32 %v2202, %v2072
    %v2205 = vadd.f32 %v2175, %v2203
    %v2206 = vadd.f32 %v2176, %v2204
    %s2207 = sld [smem:[#allocation8 + $0x60]]
    %v2208 = vstv %s2207
    %v2209 = vmul.f32 %v2208, %v2071
    %v2210 = vmul.f32 %v2208, %v2072
    %v2211 = vadd.f32 %v2181, %v2209
    %v2212 = vadd.f32 %v2182, %v2210
    %s2213 = sld [smem:[#allocation8 + $0x1]]
    %v2214 = vstv %s2213
    %v2215 = vmul.f32 %v2214, %v2063
    %v2216 = vmul.f32 %v2214, %v2064
    %2219 = vrot.lane.b32.xlu0 %v2215, 126
    %v2220 = vpop.permute.xlu0 %2219
    %2221 = vrot.lane.b32.xlu0 %v2216, 126
    %v2222 = vpop.permute.xlu0 %2221
    %v2225 = vadd.f32 %v2187, %v2220
    %v2226 = vadd.f32 %v2188, %v2222
    %s2227 = sld [smem:[#allocation8 + $0x15]]
    %v2228 = vstv %s2227
    %v2229 = vmul.f32 %v2228, %v2063
    %v2230 = vmul.f32 %v2228, %v2064
    %2233 = vrot.lane.b32.xlu0 %v2229, 126
    %v2234 = vpop.permute.xlu0 %2233
    %2235 = vrot.lane.b32.xlu0 %v2230, 126
    %v2236 = vpop.permute.xlu0 %2235
    %v2239 = vadd.f32 %v2193, %v2234
    %v2240 = vadd.f32 %v2194, %v2236
    %s2241 = sld [smem:[#allocation8 + $0x29]]
    %v2242 = vstv %s2241
    %v2243 = vmul.f32 %v2242, %v2063
    %v2244 = vmul.f32 %v2242, %v2064
    %2247 = vrot.lane.b32.xlu0 %v2243, 126
    %v2248 = vpop.permute.xlu0 %2247
    %2249 = vrot.lane.b32.xlu0 %v2244, 126
    %v2250 = vpop.permute.xlu0 %2249
    %v2253 = vadd.f32 %v2199, %v2248
    %v2254 = vadd.f32 %v2200, %v2250
    %s2255 = sld [smem:[#allocation8 + $0x3d]]
    %v2256 = vstv %s2255
    %v2257 = vmul.f32 %v2256, %v2063
    %v2258 = vmul.f32 %v2256, %v2064
    %2261 = vrot.lane.b32.xlu0 %v2257, 126
    %v2262 = vpop.permute.xlu0 %2261
    %2263 = vrot.lane.b32.xlu0 %v2258, 126
    %v2264 = vpop.permute.xlu0 %2263
    %v2267 = vadd.f32 %v2205, %v2262
    %v2268 = vadd.f32 %v2206, %v2264
    %s2269 = sld [smem:[#allocation8 + $0x51]]
    %v2270 = vstv %s2269
    %v2271 = vmul.f32 %v2270, %v2063
    %v2272 = vmul.f32 %v2270, %v2064
    %2275 = vrot.lane.b32.xlu0 %v2271, 126
    %v2276 = vpop.permute.xlu0 %2275
    %2277 = vrot.lane.b32.xlu0 %v2272, 126
    %v2278 = vpop.permute.xlu0 %2277
    %v2281 = vadd.f32 %v2211, %v2276
    %v2282 = vadd.f32 %v2212, %v2278
    %s2283 = sld [smem:[#allocation8 + $0x5]]
    %v2284 = vstv %s2283
    %v2285 = vmul.f32 %v2284, %v2065
    %v2286 = vmul.f32 %v2284, %v2066
    %2289 = vrot.lane.b32.xlu0 %v2285, 126
    %v2290 = vpop.permute.xlu0 %2289
    %2291 = vrot.lane.b32.xlu0 %v2286, 126
    %v2292 = vpop.permute.xlu0 %2291
    %v2295 = vadd.f32 %v2225, %v2290
    %v2296 = vadd.f32 %v2226, %v2292
    %s2297 = sld [smem:[#allocation8 + $0x19]]
    %v2298 = vstv %s2297
    %v2299 = vmul.f32 %v2298, %v2065
    %v2300 = vmul.f32 %v2298, %v2066
    %2303 = vrot.lane.b32.xlu0 %v2299, 126
    %v2304 = vpop.permute.xlu0 %2303
    %2305 = vrot.lane.b32.xlu0 %v2300, 126
    %v2306 = vpop.permute.xlu0 %2305
    %v2309 = vadd.f32 %v2239, %v2304
    %v2310 = vadd.f32 %v2240, %v2306
    %s2311 = sld [smem:[#allocation8 + $0x2d]]
    %v2312 = vstv %s2311
    %v2313 = vmul.f32 %v2312, %v2065
    %v2314 = vmul.f32 %v2312, %v2066
    %2317 = vrot.lane.b32.xlu0 %v2313, 126
    %v2318 = vpop.permute.xlu0 %2317
    %2319 = vrot.lane.b32.xlu0 %v2314, 126
    %v2320 = vpop.permute.xlu0 %2319
    %v2323 = vadd.f32 %v2253, %v2318
    %v2324 = vadd.f32 %v2254, %v2320
    %s2325 = sld [smem:[#allocation8 + $0x41]]
    %v2326 = vstv %s2325
    %v2327 = vmul.f32 %v2326, %v2065
    %v2328 = vmul.f32 %v2326, %v2066
    %2331 = vrot.lane.b32.xlu0 %v2327, 126
    %v2332 = vpop.permute.xlu0 %2331
    %2333 = vrot.lane.b32.xlu0 %v2328, 126
    %v2334 = vpop.permute.xlu0 %2333
    %v2337 = vadd.f32 %v2267, %v2332
    %v2338 = vadd.f32 %v2268, %v2334
    %s2339 = sld [smem:[#allocation8 + $0x55]]
    %v2340 = vstv %s2339
    %v2341 = vmul.f32 %v2340, %v2065
    %v2342 = vmul.f32 %v2340, %v2066
    %2345 = vrot.lane.b32.xlu0 %v2341, 126
    %v2346 = vpop.permute.xlu0 %2345
    %2347 = vrot.lane.b32.xlu0 %v2342, 126
    %v2348 = vpop.permute.xlu0 %2347
    %v2351 = vadd.f32 %v2281, %v2346
    %v2352 = vadd.f32 %v2282, %v2348
    %s2353 = sld [smem:[#allocation8 + $0x9]]
    %v2354 = vstv %s2353
    %v2355 = vmul.f32 %v2354, %v2067
    %v2356 = vmul.f32 %v2354, %v2068
    %2359 = vrot.lane.b32.xlu0 %v2355, 126
    %v2360 = vpop.permute.xlu0 %2359
    %2361 = vrot.lane.b32.xlu0 %v2356, 126
    %v2362 = vpop.permute.xlu0 %2361
    %v2365 = vadd.f32 %v2295, %v2360
    %v2366 = vadd.f32 %v2296, %v2362
    %s2367 = sld [smem:[#allocation8 + $0x1d]]
    %v2368 = vstv %s2367
    %v2369 = vmul.f32 %v2368, %v2067
    %v2370 = vmul.f32 %v2368, %v2068
    %2373 = vrot.lane.b32.xlu0 %v2369, 126
    %v2374 = vpop.permute.xlu0 %2373
    %2375 = vrot.lane.b32.xlu0 %v2370, 126
    %v2376 = vpop.permute.xlu0 %2375
    %v2379 = vadd.f32 %v2309, %v2374
    %v2380 = vadd.f32 %v2310, %v2376
    %s2381 = sld [smem:[#allocation8 + $0x31]]
    %v2382 = vstv %s2381
    %v2383 = vmul.f32 %v2382, %v2067
    %v2384 = vmul.f32 %v2382, %v2068
    %2387 = vrot.lane.b32.xlu0 %v2383, 126
    %v2388 = vpop.permute.xlu0 %2387
    %2389 = vrot.lane.b32.xlu0 %v2384, 126
    %v2390 = vpop.permute.xlu0 %2389
    %v2393 = vadd.f32 %v2323, %v2388
    %v2394 = vadd.f32 %v2324, %v2390
    %s2395 = sld [smem:[#allocation8 + $0x45]]
    %v2396 = vstv %s2395
    %v2397 = vmul.f32 %v2396, %v2067
    %v2398 = vmul.f32 %v2396, %v2068
    %2401 = vrot.lane.b32.xlu0 %v2397, 126
    %v2402 = vpop.permute.xlu0 %2401
    %2403 = vrot.lane.b32.xlu0 %v2398, 126
    %v2404 = vpop.permute.xlu0 %2403
    %v2407 = vadd.f32 %v2337, %v2402
    %v2408 = vadd.f32 %v2338, %v2404
    %s2409 = sld [smem:[#allocation8 + $0x59]]
    %v2410 = vstv %s2409
    %v2411 = vmul.f32 %v2410, %v2067
    %v2412 = vmul.f32 %v2410, %v2068
    %2415 = vrot.lane.b32.xlu0 %v2411, 126
    %v2416 = vpop.permute.xlu0 %2415
    %2417 = vrot.lane.b32.xlu0 %v2412, 126
    %v2418 = vpop.permute.xlu0 %2417
    %v2421 = vadd.f32 %v2351, %v2416
    %v2422 = vadd.f32 %v2352, %v2418
    %s2423 = sld [smem:[#allocation8 + $0xd]]
    %v2424 = vstv %s2423
    %v2425 = vmul.f32 %v2424, %v2069
    %v2426 = vmul.f32 %v2424, %v2070
    %2429 = vrot.lane.b32.xlu0 %v2425, 126
    %v2430 = vpop.permute.xlu0 %2429
    %2431 = vrot.lane.b32.xlu0 %v2426, 126
    %v2432 = vpop.permute.xlu0 %2431
    %v2435 = vadd.f32 %v2365, %v2430
    %v2436 = vadd.f32 %v2366, %v2432
    %s2437 = sld [smem:[#allocation8 + $0x21]]
    %v2438 = vstv %s2437
    %v2439 = vmul.f32 %v2438, %v2069
    %v2440 = vmul.f32 %v2438, %v2070
    %2443 = vrot.lane.b32.xlu0 %v2439, 126
    %v2444 = vpop.permute.xlu0 %2443
    %2445 = vrot.lane.b32.xlu0 %v2440, 126
    %v2446 = vpop.permute.xlu0 %2445
    %v2449 = vadd.f32 %v2379, %v2444
    %v2450 = vadd.f32 %v2380, %v2446
    %s2451 = sld [smem:[#allocation8 + $0x35]]
    %v2452 = vstv %s2451
    %v2453 = vmul.f32 %v2452, %v2069
    %v2454 = vmul.f32 %v2452, %v2070
    %2457 = vrot.lane.b32.xlu0 %v2453, 126
    %v2458 = vpop.permute.xlu0 %2457
    %2459 = vrot.lane.b32.xlu0 %v2454, 126
    %v2460 = vpop.permute.xlu0 %2459
    %v2463 = vadd.f32 %v2393, %v2458
    %v2464 = vadd.f32 %v2394, %v2460
    %s2465 = sld [smem:[#allocation8 + $0x49]]
    %v2466 = vstv %s2465
    %v2467 = vmul.f32 %v2466, %v2069
    %v2468 = vmul.f32 %v2466, %v2070
    %2471 = vrot.lane.b32.xlu0 %v2467, 126
    %v2472 = vpop.permute.xlu0 %2471
    %2473 = vrot.lane.b32.xlu0 %v2468, 126
    %v2474 = vpop.permute.xlu0 %2473
    %v2477 = vadd.f32 %v2407, %v2472
    %v2478 = vadd.f32 %v2408, %v2474
    %s2479 = sld [smem:[#allocation8 + $0x5d]]
    %v2480 = vstv %s2479
    %v2481 = vmul.f32 %v2480, %v2069
    %v2482 = vmul.f32 %v2480, %v2070
    %2485 = vrot.lane.b32.xlu0 %v2481, 126
    %v2486 = vpop.permute.xlu0 %2485
    %2487 = vrot.lane.b32.xlu0 %v2482, 126
    %v2488 = vpop.permute.xlu0 %2487
    %v2491 = vadd.f32 %v2421, %v2486
    %v2492 = vadd.f32 %v2422, %v2488
    %s2493 = sld [smem:[#allocation8 + $0x11]]
    %v2494 = vstv %s2493
    %v2495 = vmul.f32 %v2494, %v2071
    %v2496 = vmul.f32 %v2494, %v2072
    %2499 = vrot.lane.b32.xlu0 %v2495, 126
    %v2500 = vpop.permute.xlu0 %2499
    %2501 = vrot.lane.b32.xlu0 %v2496, 126
    %v2502 = vpop.permute.xlu0 %2501
    %v2505 = vadd.f32 %v2435, %v2500
    %v2506 = vadd.f32 %v2436, %v2502
    %s2507 = sld [smem:[#allocation8 + $0x25]]
    %v2508 = vstv %s2507
    %v2509 = vmul.f32 %v2508, %v2071
    %v2510 = vmul.f32 %v2508, %v2072
    %2513 = vrot.lane.b32.xlu0 %v2509, 126
    %v2514 = vpop.permute.xlu0 %2513
    %2515 = vrot.lane.b32.xlu0 %v2510, 126
    %v2516 = vpop.permute.xlu0 %2515
    %v2519 = vadd.f32 %v2449, %v2514
    %v2520 = vadd.f32 %v2450, %v2516
    %s2521 = sld [smem:[#allocation8 + $0x39]]
    %v2522 = vstv %s2521
    %v2523 = vmul.f32 %v2522, %v2071
    %v2524 = vmul.f32 %v2522, %v2072
    %2527 = vrot.lane.b32.xlu0 %v2523, 126
    %v2528 = vpop.permute.xlu0 %2527
    %2529 = vrot.lane.b32.xlu0 %v2524, 126
    %v2530 = vpop.permute.xlu0 %2529
    %v2533 = vadd.f32 %v2463, %v2528
    %v2534 = vadd.f32 %v2464, %v2530
    %s2535 = sld [smem:[#allocation8 + $0x4d]]
    %v2536 = vstv %s2535
    %v2537 = vmul.f32 %v2536, %v2071
    %v2538 = vmul.f32 %v2536, %v2072
    %2541 = vrot.lane.b32.xlu0 %v2537, 126
    %v2542 = vpop.permute.xlu0 %2541
    %2543 = vrot.lane.b32.xlu0 %v2538, 126
    %v2544 = vpop.permute.xlu0 %2543
    %v2547 = vadd.f32 %v2477, %v2542
    %v2548 = vadd.f32 %v2478, %v2544
    %s2549 = sld [smem:[#allocation8 + $0x61]]
    %v2550 = vstv %s2549
    %v2551 = vmul.f32 %v2550, %v2071
    %v2552 = vmul.f32 %v2550, %v2072
    %2555 = vrot.lane.b32.xlu0 %v2551, 126
    %v2556 = vpop.permute.xlu0 %2555
    %2557 = vrot.lane.b32.xlu0 %v2552, 126
    %v2558 = vpop.permute.xlu0 %2557
    %v2561 = vadd.f32 %v2491, %v2556
    %v2562 = vadd.f32 %v2492, %v2558
    %v2563 = vld [vmem:[#allocation3 + $0x2] sm:$0xff]
    %v2564 = vld [vmem:[#allocation3 + $0xa] sm:$0xf]
    %v2565 = vld [vmem:[#allocation3 + $0x12] sm:$0xff]
    %v2566 = vld [vmem:[#allocation3 + $0x1a] sm:$0xf]
    %v2567 = vld [vmem:[#allocation3 + $0x22] sm:$0xff]
    %v2568 = vld [vmem:[#allocation3 + $0x2a] sm:$0xf]
    %v2569 = vld [vmem:[#allocation3 + $0x32] sm:$0xff]
    %v2570 = vld [vmem:[#allocation3 + $0x3a] sm:$0xf]
    %v2571 = vld [vmem:[#allocation3 + $0x42] sm:$0xff]
    %v2572 = vld [vmem:[#allocation3 + $0x4a] sm:$0xf]
    %s2573 = sld [smem:[#allocation8 + $0x2]]
    %v2574 = vstv %s2573
    %v2575 = vmul.f32 %v2574, %v2563
    %v2576 = vmul.f32 %v2574, %v2564
    %v2577 = vadd.f32 %v2505, %v2575
    %v2578 = vadd.f32 %v2506, %v2576
    %s2579 = sld [smem:[#allocation8 + $0x16]]
    %v2580 = vstv %s2579
    %v2581 = vmul.f32 %v2580, %v2563
    %v2582 = vmul.f32 %v2580, %v2564
    %v2583 = vadd.f32 %v2519, %v2581
    %v2584 = vadd.f32 %v2520, %v2582
    %s2585 = sld [smem:[#allocation8 + $0x2a]]
    %v2586 = vstv %s2585
    %v2587 = vmul.f32 %v2586, %v2563
    %v2588 = vmul.f32 %v2586, %v2564
    %v2589 = vadd.f32 %v2533, %v2587
    %v2590 = vadd.f32 %v2534, %v2588
    %s2591 = sld [smem:[#allocation8 + $0x3e]]
    %v2592 = vstv %s2591
    %v2593 = vmul.f32 %v2592, %v2563
    %v2594 = vmul.f32 %v2592, %v2564
    %v2595 = vadd.f32 %v2547, %v2593
    %v2596 = vadd.f32 %v2548, %v2594
    %s2597 = sld [smem:[#allocation8 + $0x52]]
    %v2598 = vstv %s2597
    %v2599 = vmul.f32 %v2598, %v2563
    %v2600 = vmul.f32 %v2598, %v2564
    %v2601 = vadd.f32 %v2561, %v2599
    %v2602 = vadd.f32 %v2562, %v2600
    %s2603 = sld [smem:[#allocation8 + $0x6]]
    %v2604 = vstv %s2603
    %v2605 = vmul.f32 %v2604, %v2565
    %v2606 = vmul.f32 %v2604, %v2566
    %v2607 = vadd.f32 %v2577, %v2605
    %v2608 = vadd.f32 %v2578, %v2606
    %s2609 = sld [smem:[#allocation8 + $0x1a]]
    %v2610 = vstv %s2609
    %v2611 = vmul.f32 %v2610, %v2565
    %v2612 = vmul.f32 %v2610, %v2566
    %v2613 = vadd.f32 %v2583, %v2611
    %v2614 = vadd.f32 %v2584, %v2612
    %s2615 = sld [smem:[#allocation8 + $0x2e]]
    %v2616 = vstv %s2615
    %v2617 = vmul.f32 %v2616, %v2565
    %v2618 = vmul.f32 %v2616, %v2566
    %v2619 = vadd.f32 %v2589, %v2617
    %v2620 = vadd.f32 %v2590, %v2618
    %s2621 = sld [smem:[#allocation8 + $0x42]]
    %v2622 = vstv %s2621
    %v2623 = vmul.f32 %v2622, %v2565
    %v2624 = vmul.f32 %v2622, %v2566
    %v2625 = vadd.f32 %v2595, %v2623
    %v2626 = vadd.f32 %v2596, %v2624
    %s2627 = sld [smem:[#allocation8 + $0x56]]
    %v2628 = vstv %s2627
    %v2629 = vmul.f32 %v2628, %v2565
    %v2630 = vmul.f32 %v2628, %v2566
    %v2631 = vadd.f32 %v2601, %v2629
    %v2632 = vadd.f32 %v2602, %v2630
    %s2633 = sld [smem:[#allocation8 + $0xa]]
    %v2634 = vstv %s2633
    %v2635 = vmul.f32 %v2634, %v2567
    %v2636 = vmul.f32 %v2634, %v2568
    %v2637 = vadd.f32 %v2607, %v2635
    %v2638 = vadd.f32 %v2608, %v2636
    %s2639 = sld [smem:[#allocation8 + $0x1e]]
    %v2640 = vstv %s2639
    %v2641 = vmul.f32 %v2640, %v2567
    %v2642 = vmul.f32 %v2640, %v2568
    %v2643 = vadd.f32 %v2613, %v2641
    %v2644 = vadd.f32 %v2614, %v2642
    %s2645 = sld [smem:[#allocation8 + $0x32]]
    %v2646 = vstv %s2645
    %v2647 = vmul.f32 %v2646, %v2567
    %v2648 = vmul.f32 %v2646, %v2568
    %v2649 = vadd.f32 %v2619, %v2647
    %v2650 = vadd.f32 %v2620, %v2648
    %s2651 = sld [smem:[#allocation8 + $0x46]]
    %v2652 = vstv %s2651
    %v2653 = vmul.f32 %v2652, %v2567
    %v2654 = vmul.f32 %v2652, %v2568
    %v2655 = vadd.f32 %v2625, %v2653
    %v2656 = vadd.f32 %v2626, %v2654
    %s2657 = sld [smem:[#allocation8 + $0x5a]]
    %v2658 = vstv %s2657
    %v2659 = vmul.f32 %v2658, %v2567
    %v2660 = vmul.f32 %v2658, %v2568
    %v2661 = vadd.f32 %v2631, %v2659
    %v2662 = vadd.f32 %v2632, %v2660
    %s2663 = sld [smem:[#allocation8 + $0xe]]
    %v2664 = vstv %s2663
    %v2665 = vmul.f32 %v2664, %v2569
    %v2666 = vmul.f32 %v2664, %v2570
    %v2667 = vadd.f32 %v2637, %v2665
    %v2668 = vadd.f32 %v2638, %v2666
    %s2669 = sld [smem:[#allocation8 + $0x22]]
    %v2670 = vstv %s2669
    %v2671 = vmul.f32 %v2670, %v2569
    %v2672 = vmul.f32 %v2670, %v2570
    %v2673 = vadd.f32 %v2643, %v2671
    %v2674 = vadd.f32 %v2644, %v2672
    %s2675 = sld [smem:[#allocation8 + $0x36]]
    %v2676 = vstv %s2675
    %v2677 = vmul.f32 %v2676, %v2569
    %v2678 = vmul.f32 %v2676, %v2570
    %v2679 = vadd.f32 %v2649, %v2677
    %v2680 = vadd.f32 %v2650, %v2678
    %s2681 = sld [smem:[#allocation8 + $0x4a]]
    %v2682 = vstv %s2681
    %v2683 = vmul.f32 %v2682, %v2569
    %v2684 = vmul.f32 %v2682, %v2570
    %v2685 = vadd.f32 %v2655, %v2683
    %v2686 = vadd.f32 %v2656, %v2684
    %s2687 = sld [smem:[#allocation8 + $0x5e]]
    %v2688 = vstv %s2687
    %v2689 = vmul.f32 %v2688, %v2569
    %v2690 = vmul.f32 %v2688, %v2570
    %v2691 = vadd.f32 %v2661, %v2689
    %v2692 = vadd.f32 %v2662, %v2690
    %s2693 = sld [smem:[#allocation8 + $0x12]]
    %v2694 = vstv %s2693
    %v2695 = vmul.f32 %v2694, %v2571
    %v2696 = vmul.f32 %v2694, %v2572
    %v2697 = vadd.f32 %v2667, %v2695
    %v2698 = vadd.f32 %v2668, %v2696
    %s2699 = sld [smem:[#allocation8 + $0x26]]
    %v2700 = vstv %s2699
    %v2701 = vmul.f32 %v2700, %v2571
    %v2702 = vmul.f32 %v2700, %v2572
    %v2703 = vadd.f32 %v2673, %v2701
    %v2704 = vadd.f32 %v2674, %v2702
    %s2705 = sld [smem:[#allocation8 + $0x3a]]
    %v2706 = vstv %s2705
    %v2707 = vmul.f32 %v2706, %v2571
    %v2708 = vmul.f32 %v2706, %v2572
    %v2709 = vadd.f32 %v2679, %v2707
    %v2710 = vadd.f32 %v2680, %v2708
    %s2711 = sld [smem:[#allocation8 + $0x4e]]
    %v2712 = vstv %s2711
    %v2713 = vmul.f32 %v2712, %v2571
    %v2714 = vmul.f32 %v2712, %v2572
    %v2715 = vadd.f32 %v2685, %v2713
    %v2716 = vadd.f32 %v2686, %v2714
    %s2717 = sld [smem:[#allocation8 + $0x62]]
    %v2718 = vstv %s2717
    %v2719 = vmul.f32 %v2718, %v2571
    %v2720 = vmul.f32 %v2718, %v2572
    %v2721 = vadd.f32 %v2691, %v2719
    %v2722 = vadd.f32 %v2692, %v2720
    %s2723 = sld [smem:[#allocation8 + $0x3]]
    %v2724 = vstv %s2723
    %v2725 = vmul.f32 %v2724, %v2563
    %v2726 = vmul.f32 %v2724, %v2564
    %2729 = vrot.lane.b32.xlu0 %v2725, 126
    %v2730 = vpop.permute.xlu0 %2729
    %2731 = vrot.lane.b32.xlu0 %v2726, 126
    %v2732 = vpop.permute.xlu0 %2731
    %v2735 = vadd.f32 %v2697, %v2730
    %v2736 = vadd.f32 %v2698, %v2732
    %s2737 = sld [smem:[#allocation8 + $0x17]]
    %v2738 = vstv %s2737
    %v2739 = vmul.f32 %v2738, %v2563
    %v2740 = vmul.f32 %v2738, %v2564
    %2743 = vrot.lane.b32.xlu0 %v2739, 126
    %v2744 = vpop.permute.xlu0 %2743
    %2745 = vrot.lane.b32.xlu0 %v2740, 126
    %v2746 = vpop.permute.xlu0 %2745
    %v2749 = vadd.f32 %v2703, %v2744
    %v2750 = vadd.f32 %v2704, %v2746
    %s2751 = sld [smem:[#allocation8 + $0x2b]]
    %v2752 = vstv %s2751
    %v2753 = vmul.f32 %v2752, %v2563
    %v2754 = vmul.f32 %v2752, %v2564
    %2757 = vrot.lane.b32.xlu0 %v2753, 126
    %v2758 = vpop.permute.xlu0 %2757
    %2759 = vrot.lane.b32.xlu0 %v2754, 126
    %v2760 = vpop.permute.xlu0 %2759
    %v2763 = vadd.f32 %v2709, %v2758
    %v2764 = vadd.f32 %v2710, %v2760
    %s2765 = sld [smem:[#allocation8 + $0x3f]]
    %v2766 = vstv %s2765
    %v2767 = vmul.f32 %v2766, %v2563
    %v2768 = vmul.f32 %v2766, %v2564
    %2771 = vrot.lane.b32.xlu0 %v2767, 126
    %v2772 = vpop.permute.xlu0 %2771
    %2773 = vrot.lane.b32.xlu0 %v2768, 126
    %v2774 = vpop.permute.xlu0 %2773
    %v2777 = vadd.f32 %v2715, %v2772
    %v2778 = vadd.f32 %v2716, %v2774
    %s2779 = sld [smem:[#allocation8 + $0x53]]
    %v2780 = vstv %s2779
    %v2781 = vmul.f32 %v2780, %v2563
    %v2782 = vmul.f32 %v2780, %v2564
    %2785 = vrot.lane.b32.xlu0 %v2781, 126
    %v2786 = vpop.permute.xlu0 %2785
    %2787 = vrot.lane.b32.xlu0 %v2782, 126
    %v2788 = vpop.permute.xlu0 %2787
    %v2791 = vadd.f32 %v2721, %v2786
    %v2792 = vadd.f32 %v2722, %v2788
    %s2793 = sld [smem:[#allocation8 + $0x7]]
    %v2794 = vstv %s2793
    %v2795 = vmul.f32 %v2794, %v2565
    %v2796 = vmul.f32 %v2794, %v2566
    %2799 = vrot.lane.b32.xlu0 %v2795, 126
    %v2800 = vpop.permute.xlu0 %2799
    %2801 = vrot.lane.b32.xlu0 %v2796, 126
    %v2802 = vpop.permute.xlu0 %2801
    %v2805 = vadd.f32 %v2735, %v2800
    %v2806 = vadd.f32 %v2736, %v2802
    %s2807 = sld [smem:[#allocation8 + $0x1b]]
    %v2808 = vstv %s2807
    %v2809 = vmul.f32 %v2808, %v2565
    %v2810 = vmul.f32 %v2808, %v2566
    %2813 = vrot.lane.b32.xlu0 %v2809, 126
    %v2814 = vpop.permute.xlu0 %2813
    %2815 = vrot.lane.b32.xlu0 %v2810, 126
    %v2816 = vpop.permute.xlu0 %2815
    %v2819 = vadd.f32 %v2749, %v2814
    %v2820 = vadd.f32 %v2750, %v2816
    %s2821 = sld [smem:[#allocation8 + $0x2f]]
    %v2822 = vstv %s2821
    %v2823 = vmul.f32 %v2822, %v2565
    %v2824 = vmul.f32 %v2822, %v2566
    %2827 = vrot.lane.b32.xlu0 %v2823, 126
    %v2828 = vpop.permute.xlu0 %2827
    %2829 = vrot.lane.b32.xlu0 %v2824, 126
    %v2830 = vpop.permute.xlu0 %2829
    %v2833 = vadd.f32 %v2763, %v2828
    %v2834 = vadd.f32 %v2764, %v2830
    %s2835 = sld [smem:[#allocation8 + $0x43]]
    %v2836 = vstv %s2835
    %v2837 = vmul.f32 %v2836, %v2565
    %v2838 = vmul.f32 %v2836, %v2566
    %2841 = vrot.lane.b32.xlu0 %v2837, 126
    %v2842 = vpop.permute.xlu0 %2841
    %2843 = vrot.lane.b32.xlu0 %v2838, 126
    %v2844 = vpop.permute.xlu0 %2843
    %v2847 = vadd.f32 %v2777, %v2842
    %v2848 = vadd.f32 %v2778, %v2844
    %s2849 = sld [smem:[#allocation8 + $0x57]]
    %v2850 = vstv %s2849
    %v2851 = vmul.f32 %v2850, %v2565
    %v2852 = vmul.f32 %v2850, %v2566
    %2855 = vrot.lane.b32.xlu0 %v2851, 126
    %v2856 = vpop.permute.xlu0 %2855
    %2857 = vrot.lane.b32.xlu0 %v2852, 126
    %v2858 = vpop.permute.xlu0 %2857
    %v2861 = vadd.f32 %v2791, %v2856
    %v2862 = vadd.f32 %v2792, %v2858
    %s2863 = sld [smem:[#allocation8 + $0xb]]
    %v2864 = vstv %s2863
    %v2865 = vmul.f32 %v2864, %v2567
    %v2866 = vmul.f32 %v2864, %v2568
    %2869 = vrot.lane.b32.xlu0 %v2865, 126
    %v2870 = vpop.permute.xlu0 %2869
    %2871 = vrot.lane.b32.xlu0 %v2866, 126
    %v2872 = vpop.permute.xlu0 %2871
    %v2875 = vadd.f32 %v2805, %v2870
    %v2876 = vadd.f32 %v2806, %v2872
    %s2877 = sld [smem:[#allocation8 + $0x1f]]
    %v2878 = vstv %s2877
    %v2879 = vmul.f32 %v2878, %v2567
    %v2880 = vmul.f32 %v2878, %v2568
    %2883 = vrot.lane.b32.xlu0 %v2879, 126
    %v2884 = vpop.permute.xlu0 %2883
    %2885 = vrot.lane.b32.xlu0 %v2880, 126
    %v2886 = vpop.permute.xlu0 %2885
    %v2889 = vadd.f32 %v2819, %v2884
    %v2890 = vadd.f32 %v2820, %v2886
    %s2891 = sld [smem:[#allocation8 + $0x33]]
    %v2892 = vstv %s2891
    %v2893 = vmul.f32 %v2892, %v2567
    %v2894 = vmul.f32 %v2892, %v2568
    %2897 = vrot.lane.b32.xlu0 %v2893, 126
    %v2898 = vpop.permute.xlu0 %2897
    %2899 = vrot.lane.b32.xlu0 %v2894, 126
    %v2900 = vpop.permute.xlu0 %2899
    %v2903 = vadd.f32 %v2833, %v2898
    %v2904 = vadd.f32 %v2834, %v2900
    %s2905 = sld [smem:[#allocation8 + $0x47]]
    %v2906 = vstv %s2905
    %v2907 = vmul.f32 %v2906, %v2567
    %v2908 = vmul.f32 %v2906, %v2568
    %2911 = vrot.lane.b32.xlu0 %v2907, 126
    %v2912 = vpop.permute.xlu0 %2911
    %2913 = vrot.lane.b32.xlu0 %v2908, 126
    %v2914 = vpop.permute.xlu0 %2913
    %v2917 = vadd.f32 %v2847, %v2912
    %v2918 = vadd.f32 %v2848, %v2914
    %s2919 = sld [smem:[#allocation8 + $0x5b]]
    %v2920 = vstv %s2919
    %v2921 = vmul.f32 %v2920, %v2567
    %v2922 = vmul.f32 %v2920, %v2568
    %2925 = vrot.lane.b32.xlu0 %v2921, 126
    %v2926 = vpop.permute.xlu0 %2925
    %2927 = vrot.lane.b32.xlu0 %v2922, 126
    %v2928 = vpop.permute.xlu0 %2927
    %v2931 = vadd.f32 %v2861, %v2926
    %v2932 = vadd.f32 %v2862, %v2928
    %s2933 = sld [smem:[#allocation8 + $0xf]]
    %v2934 = vstv %s2933
    %v2935 = vmul.f32 %v2934, %v2569
    %v2936 = vmul.f32 %v2934, %v2570
    %2939 = vrot.lane.b32.xlu0 %v2935, 126
    %v2940 = vpop.permute.xlu0 %2939
    %2941 = vrot.lane.b32.xlu0 %v2936, 126
    %v2942 = vpop.permute.xlu0 %2941
    %v2945 = vadd.f32 %v2875, %v2940
    %v2946 = vadd.f32 %v2876, %v2942
    %s2947 = sld [smem:[#allocation8 + $0x23]]
    %v2948 = vstv %s2947
    %v2949 = vmul.f32 %v2948, %v2569
    %v2950 = vmul.f32 %v2948, %v2570
    %2953 = vrot.lane.b32.xlu0 %v2949, 126
    %v2954 = vpop.permute.xlu0 %2953
    %2955 = vrot.lane.b32.xlu0 %v2950, 126
    %v2956 = vpop.permute.xlu0 %2955
    %v2959 = vadd.f32 %v2889, %v2954
    %v2960 = vadd.f32 %v2890, %v2956
    %s2961 = sld [smem:[#allocation8 + $0x37]]
    %v2962 = vstv %s2961
    %v2963 = vmul.f32 %v2962, %v2569
    %v2964 = vmul.f32 %v2962, %v2570
    %2967 = vrot.lane.b32.xlu0 %v2963, 126
    %v2968 = vpop.permute.xlu0 %2967
    %2969 = vrot.lane.b32.xlu0 %v2964, 126
    %v2970 = vpop.permute.xlu0 %2969
    %v2973 = vadd.f32 %v2903, %v2968
    %v2974 = vadd.f32 %v2904, %v2970
    %s2975 = sld [smem:[#allocation8 + $0x4b]]
    %v2976 = vstv %s2975
    %v2977 = vmul.f32 %v2976, %v2569
    %v2978 = vmul.f32 %v2976, %v2570
    %2981 = vrot.lane.b32.xlu0 %v2977, 126
    %v2982 = vpop.permute.xlu0 %2981
    %2983 = vrot.lane.b32.xlu0 %v2978, 126
    %v2984 = vpop.permute.xlu0 %2983
    %v2987 = vadd.f32 %v2917, %v2982
    %v2988 = vadd.f32 %v2918, %v2984
    %s2989 = sld [smem:[#allocation8 + $0x5f]]
    %v2990 = vstv %s2989
    %v2991 = vmul.f32 %v2990, %v2569
    %v2992 = vmul.f32 %v2990, %v2570
    %2995 = vrot.lane.b32.xlu0 %v2991, 126
    %v2996 = vpop.permute.xlu0 %2995
    %2997 = vrot.lane.b32.xlu0 %v2992, 126
    %v2998 = vpop.permute.xlu0 %2997
    %v3001 = vadd.f32 %v2931, %v2996
    %v3002 = vadd.f32 %v2932, %v2998
    %s3003 = sld [smem:[#allocation8 + $0x13]]
    %v3004 = vstv %s3003
    %v3005 = vmul.f32 %v3004, %v2571
    %v3006 = vmul.f32 %v3004, %v2572
    %3009 = vrot.lane.b32.xlu0 %v3005, 126
    %v3010 = vpop.permute.xlu0 %3009
    %3011 = vrot.lane.b32.xlu0 %v3006, 126
    %v3012 = vpop.permute.xlu0 %3011
    %v3015 = vadd.f32 %v2945, %v3010
    %v3016 = vadd.f32 %v2946, %v3012
    %s3017 = sld [smem:[#allocation8 + $0x27]]
    %v3018 = vstv %s3017
    %v3019 = vmul.f32 %v3018, %v2571
    %v3020 = vmul.f32 %v3018, %v2572
    %3023 = vrot.lane.b32.xlu0 %v3019, 126
    %v3024 = vpop.permute.xlu0 %3023
    %3025 = vrot.lane.b32.xlu0 %v3020, 126
    %v3026 = vpop.permute.xlu0 %3025
    %v3029 = vadd.f32 %v2959, %v3024
    %v3030 = vadd.f32 %v2960, %v3026
    %s3031 = sld [smem:[#allocation8 + $0x3b]]
    %v3032 = vstv %s3031
    %v3033 = vmul.f32 %v3032, %v2571
    %v3034 = vmul.f32 %v3032, %v2572
    %3037 = vrot.lane.b32.xlu0 %v3033, 126
    %v3038 = vpop.permute.xlu0 %3037
    %3039 = vrot.lane.b32.xlu0 %v3034, 126
    %v3040 = vpop.permute.xlu0 %3039
    %v3043 = vadd.f32 %v2973, %v3038
    %v3044 = vadd.f32 %v2974, %v3040
    %s3045 = sld [smem:[#allocation8 + $0x4f]]
    %v3046 = vstv %s3045
    %v3047 = vmul.f32 %v3046, %v2571
    %v3048 = vmul.f32 %v3046, %v2572
    %3051 = vrot.lane.b32.xlu0 %v3047, 126
    %v3052 = vpop.permute.xlu0 %3051
    %3053 = vrot.lane.b32.xlu0 %v3048, 126
    %v3054 = vpop.permute.xlu0 %3053
    %v3057 = vadd.f32 %v2987, %v3052
    %v3058 = vadd.f32 %v2988, %v3054
    %s3059 = sld [smem:[#allocation8 + $0x63]]
    %v3060 = vstv %s3059
    %v3061 = vmul.f32 %v3060, %v2571
    %v3062 = vmul.f32 %v3060, %v2572
    %3065 = vrot.lane.b32.xlu0 %v3061, 126
    %v3066 = vpop.permute.xlu0 %3065
    %3067 = vrot.lane.b32.xlu0 %v3062, 126
    %v3068 = vpop.permute.xlu0 %3067
    %v3071 = vadd.f32 %v3001, %v3066
    %v3072 = vadd.f32 %v3002, %v3068
    %s3073 = sld [smem:[#allocation9]]
    %v3074 = vstv %s3073
    %v3075 = vadd.f32 %v3015, %v3074
    %v3076 = vadd.f32 %v3016, %v3074
    %s3077 = sld [smem:[#allocation9 + $0x1]]
    %v3078 = vstv %s3077
    %v3079 = vadd.f32 %v3029, %v3078
    %v3080 = vadd.f32 %v3030, %v3078
    %s3081 = sld [smem:[#allocation9 + $0x2]]
    %v3082 = vstv %s3081
    %v3083 = vadd.f32 %v3043, %v3082
    %v3084 = vadd.f32 %v3044, %v3082
    %s3085 = sld [smem:[#allocation9 + $0x3]]
    %v3086 = vstv %s3085
    %v3087 = vadd.f32 %v3057, %v3086
    %v3088 = vadd.f32 %v3058, %v3086
    %s3089 = sld [smem:[#allocation9 + $0x4]]
    %v3090 = vstv %s3089
    %v3091 = vadd.f32 %v3071, %v3090
    %v3092 = vadd.f32 %v3072, %v3090
    %v3093 = vtanh.pop %v3075
    %v3094 = vtanh.pop %v3076
    %v3095 = vtanh.pop %v3079
    %v3096 = vtanh.pop %v3080
    %v3097 = vtanh.pop %v3083
    %v3098 = vtanh.pop %v3084
    %v3099 = vtanh.pop %v3087
    %v3100 = vtanh.pop %v3088
    %v3101 = vtanh.pop %v3091
    %v3102 = vtanh.pop %v3092
    %v3103 = vadd.f32 %v3093, %v973
    %v3104 = vadd.f32 %v3094, %v974
    %v3105 = vadd.f32 %v3095, %v977
    %v3106 = vadd.f32 %v3096, %v978
    %v3107 = vadd.f32 %v3097, %v981
    %v3108 = vadd.f32 %v3098, %v982
    %v3109 = vadd.f32 %v3099, %v985
    %v3110 = vadd.f32 %v3100, %v986
    %v3111 = vadd.f32 %v3101, %v989
    %v3112 = vadd.f32 %v3102, %v990
    %v3113 = vmax.f32 %v3103, 0.0
    %v3114 = vmax.f32 %v3104, 0.0
    %v3115 = vmax.f32 %v3105, 0.0
    %v3116 = vmax.f32 %v3106, 0.0
    %v3117 = vmax.f32 %v3107, 0.0
    %v3118 = vmax.f32 %v3108, 0.0
    %v3119 = vmax.f32 %v3109, 0.0
    %v3120 = vmax.f32 %v3110, 0.0
    %v3121 = vmax.f32 %v3111, 0.0
    %v3122 = vmax.f32 %v3112, 0.0
    %3123 = vst.msk [vmem:[%s7] sm:$0xff] %vm97, %v3113
    %vm3124 = vcmask 125952
    %3125 = vst.msk [vmem:[%s7 + $0x8] sm:$0xf] %vm3124, %v3114
    %3126 = vst.msk [vmem:[%s7 + $0x10] sm:$0xff] %vm97, %v3115
    %3127 = vst.msk [vmem:[%s7 + $0x18] sm:$0xf] %vm3124, %v3116
    %3128 = vst.msk [vmem:[%s7 + $0x20] sm:$0xff] %vm97, %v3117
    %3129 = vst.msk [vmem:[%s7 + $0x28] sm:$0xf] %vm3124, %v3118
    %3130 = vst.msk [vmem:[%s7 + $0x30] sm:$0xff] %vm97, %v3119
    %3131 = vst.msk [vmem:[%s7 + $0x38] sm:$0xf] %vm3124, %v3120
    %3132 = vst.msk [vmem:[%s7 + $0x40] sm:$0xff] %vm97, %v3121
    %3133 = vst.msk [vmem:[%s7 + $0x48] sm:$0xf] %vm3124, %v3122
    %s3134 = scalar_lea.vmem %s0, 80
    %v3135 = vld [vmem:[%s3134] sm:$0xff]
    %v3136 = vld [vmem:[%s3134 + $0x8] sm:$0xf]
    %v3137 = vld [vmem:[%s3134 + $0x10] sm:$0xff]
    %v3138 = vld [vmem:[%s3134 + $0x18] sm:$0xf]
    %v3139 = vld [vmem:[%s3134 + $0x20] sm:$0xff]
    %v3140 = vld [vmem:[%s3134 + $0x28] sm:$0xf]
    %v3141 = vld [vmem:[%s3134 + $0x30] sm:$0xff]
    %v3142 = vld [vmem:[%s3134 + $0x38] sm:$0xf]
    %v3143 = vld [vmem:[%s3134 + $0x40] sm:$0xff]
    %v3144 = vld [vmem:[%s3134 + $0x48] sm:$0xf]
    %3155 = vrot.lane.b32.xlu0 %v3135, 2
    %v3156 = vpop.permute.xlu0 %3155
    %3157 = vrot.lane.b32.xlu0 %v3136, 2
    %v3158 = vpop.permute.xlu0 %3157
    %3159 = vrot.lane.b32.xlu0 %v3137, 2
    %v3160 = vpop.permute.xlu0 %3159
    %3161 = vrot.lane.b32.xlu0 %v3138, 2
    %v3162 = vpop.permute.xlu0 %3161
    %3163 = vrot.lane.b32.xlu0 %v3139, 2
    %v3164 = vpop.permute.xlu0 %3163
    %3165 = vrot.lane.b32.xlu0 %v3140, 2
    %v3166 = vpop.permute.xlu0 %3165
    %3167 = vrot.lane.b32.xlu0 %v3141, 2
    %v3168 = vpop.permute.xlu0 %3167
    %3169 = vrot.lane.b32.xlu0 %v3142, 2
    %v3170 = vpop.permute.xlu0 %3169
    %3171 = vrot.lane.b32.xlu0 %v3143, 2
    %v3172 = vpop.permute.xlu0 %3171
    %3173 = vrot.lane.b32.xlu0 %v3144, 2
    %v3174 = vpop.permute.xlu0 %3173
    %3185 = vst.msk [vmem:[#allocation2 + $0x2] sm:$0xff] %vm169, %v3156
    %3186 = vst.msk [vmem:[#allocation2 + $0xa] sm:$0xf] %vm171, %v3158
    %3187 = vst.msk [vmem:[#allocation2 + $0x12] sm:$0xff] %vm169, %v3160
    %3188 = vst.msk [vmem:[#allocation2 + $0x1a] sm:$0xf] %vm171, %v3162
    %3189 = vst.msk [vmem:[#allocation2 + $0x22] sm:$0xff] %vm169, %v3164
    %3190 = vst.msk [vmem:[#allocation2 + $0x2a] sm:$0xf] %vm171, %v3166
    %3191 = vst.msk [vmem:[#allocation2 + $0x32] sm:$0xff] %vm169, %v3168
    %3192 = vst.msk [vmem:[#allocation2 + $0x3a] sm:$0xf] %vm171, %v3170
    %3193 = vst.msk [vmem:[#allocation2 + $0x42] sm:$0xff] %vm169, %v3172
    %3194 = vst.msk [vmem:[#allocation2 + $0x4a] sm:$0xf] %vm171, %v3174
    %v3195 = vld [vmem:[#allocation2] sm:$0xff]
    %v3196 = vld [vmem:[#allocation2 + $0x8] sm:$0xf]
    %v3197 = vld [vmem:[#allocation2 + $0x10] sm:$0xff]
    %v3198 = vld [vmem:[#allocation2 + $0x18] sm:$0xf]
    %v3199 = vld [vmem:[#allocation2 + $0x20] sm:$0xff]
    %v3200 = vld [vmem:[#allocation2 + $0x28] sm:$0xf]
    %v3201 = vld [vmem:[#allocation2 + $0x30] sm:$0xff]
    %v3202 = vld [vmem:[#allocation2 + $0x38] sm:$0xf]
    %v3203 = vld [vmem:[#allocation2 + $0x40] sm:$0xff]
    %v3204 = vld [vmem:[#allocation2 + $0x48] sm:$0xf]
    %s3205 = sld [smem:[#allocation11]]
    %v3206 = vstv %s3205
    %v3207 = vmul.f32 %v3206, %v3195
    %v3208 = vmul.f32 %v3206, %v3196
    %s3209 = sld [smem:[#allocation11 + $0x19]]
    %v3210 = vstv %s3209
    %v3211 = vmul.f32 %v3210, %v3195
    %v3212 = vmul.f32 %v3210, %v3196
    %s3213 = sld [smem:[#allocation11 + $0x32]]
    %v3214 = vstv %s3213
    %v3215 = vmul.f32 %v3214, %v3195
    %v3216 = vmul.f32 %v3214, %v3196
    %s3217 = sld [smem:[#allocation11 + $0x4b]]
    %v3218 = vstv %s3217
    %v3219 = vmul.f32 %v3218, %v3195
    %v3220 = vmul.f32 %v3218, %v3196
    %s3221 = sld [smem:[#allocation11 + $0x64]]
    %v3222 = vstv %s3221
    %v3223 = vmul.f32 %v3222, %v3195
    %v3224 = vmul.f32 %v3222, %v3196
    %s3225 = sld [smem:[#allocation11 + $0x5]]
    %v3226 = vstv %s3225
    %v3227 = vmul.f32 %v3226, %v3197
    %v3228 = vmul.f32 %v3226, %v3198
    %v3229 = vadd.f32 %v3207, %v3227
    %v3230 = vadd.f32 %v3208, %v3228
    %s3231 = sld [smem:[#allocation11 + $0x1e]]
    %v3232 = vstv %s3231
    %v3233 = vmul.f32 %v3232, %v3197
    %v3234 = vmul.f32 %v3232, %v3198
    %v3235 = vadd.f32 %v3211, %v3233
    %v3236 = vadd.f32 %v3212, %v3234
    %s3237 = sld [smem:[#allocation11 + $0x37]]
    %v3238 = vstv %s3237
    %v3239 = vmul.f32 %v3238, %v3197
    %v3240 = vmul.f32 %v3238, %v3198
    %v3241 = vadd.f32 %v3215, %v3239
    %v3242 = vadd.f32 %v3216, %v3240
    %s3243 = sld [smem:[#allocation11 + $0x50]]
    %v3244 = vstv %s3243
    %v3245 = vmul.f32 %v3244, %v3197
    %v3246 = vmul.f32 %v3244, %v3198
    %v3247 = vadd.f32 %v3219, %v3245
    %v3248 = vadd.f32 %v3220, %v3246
    %s3249 = sld [smem:[#allocation11 + $0x69]]
    %v3250 = vstv %s3249
    %v3251 = vmul.f32 %v3250, %v3197
    %v3252 = vmul.f32 %v3250, %v3198
    %v3253 = vadd.f32 %v3223, %v3251
    %v3254 = vadd.f32 %v3224, %v3252
    %s3255 = sld [smem:[#allocation11 + $0xa]]
    %v3256 = vstv %s3255
    %v3257 = vmul.f32 %v3256, %v3199
    %v3258 = vmul.f32 %v3256, %v3200
    %v3259 = vadd.f32 %v3229, %v3257
    %v3260 = vadd.f32 %v3230, %v3258
    %s3261 = sld [smem:[#allocation11 + $0x23]]
    %v3262 = vstv %s3261
    %v3263 = vmul.f32 %v3262, %v3199
    %v3264 = vmul.f32 %v3262, %v3200
    %v3265 = vadd.f32 %v3235, %v3263
    %v3266 = vadd.f32 %v3236, %v3264
    %s3267 = sld [smem:[#allocation11 + $0x3c]]
    %v3268 = vstv %s3267
    %v3269 = vmul.f32 %v3268, %v3199
    %v3270 = vmul.f32 %v3268, %v3200
    %v3271 = vadd.f32 %v3241, %v3269
    %v3272 = vadd.f32 %v3242, %v3270
    %s3273 = sld [smem:[#allocation11 + $0x55]]
    %v3274 = vstv %s3273
    %v3275 = vmul.f32 %v3274, %v3199
    %v3276 = vmul.f32 %v3274, %v3200
    %v3277 = vadd.f32 %v3247, %v3275
    %v3278 = vadd.f32 %v3248, %v3276
    %s3279 = sld [smem:[#allocation11 + $0x6e]]
    %v3280 = vstv %s3279
    %v3281 = vmul.f32 %v3280, %v3199
    %v3282 = vmul.f32 %v3280, %v3200
    %v3283 = vadd.f32 %v3253, %v3281
    %v3284 = vadd.f32 %v3254, %v3282
    %s3285 = sld [smem:[#allocation11 + $0xf]]
    %v3286 = vstv %s3285
    %v3287 = vmul.f32 %v3286, %v3201
    %v3288 = vmul.f32 %v3286, %v3202
    %v3289 = vadd.f32 %v3259, %v3287
    %v3290 = vadd.f32 %v3260, %v3288
    %s3291 = sld [smem:[#allocation11 + $0x28]]
    %v3292 = vstv %s3291
    %v3293 = vmul.f32 %v3292, %v3201
    %v3294 = vmul.f32 %v3292, %v3202
    %v3295 = vadd.f32 %v3265, %v3293
    %v3296 = vadd.f32 %v3266, %v3294
    %s3297 = sld [smem:[#allocation11 + $0x41]]
    %v3298 = vstv %s3297
    %v3299 = vmul.f32 %v3298, %v3201
    %v3300 = vmul.f32 %v3298, %v3202
    %v3301 = vadd.f32 %v3271, %v3299
    %v3302 = vadd.f32 %v3272, %v3300
    %s3303 = sld [smem:[#allocation11 + $0x5a]]
    %v3304 = vstv %s3303
    %v3305 = vmul.f32 %v3304, %v3201
    %v3306 = vmul.f32 %v3304, %v3202
    %v3307 = vadd.f32 %v3277, %v3305
    %v3308 = vadd.f32 %v3278, %v3306
    %s3309 = sld [smem:[#allocation11 + $0x73]]
    %v3310 = vstv %s3309
    %v3311 = vmul.f32 %v3310, %v3201
    %v3312 = vmul.f32 %v3310, %v3202
    %v3313 = vadd.f32 %v3283, %v3311
    %v3314 = vadd.f32 %v3284, %v3312
    %s3315 = sld [smem:[#allocation11 + $0x14]]
    %v3316 = vstv %s3315
    %v3317 = vmul.f32 %v3316, %v3203
    %v3318 = vmul.f32 %v3316, %v3204
    %v3319 = vadd.f32 %v3289, %v3317
    %v3320 = vadd.f32 %v3290, %v3318
    %s3321 = sld [smem:[#allocation11 + $0x2d]]
    %v3322 = vstv %s3321
    %v3323 = vmul.f32 %v3322, %v3203
    %v3324 = vmul.f32 %v3322, %v3204
    %v3325 = vadd.f32 %v3295, %v3323
    %v3326 = vadd.f32 %v3296, %v3324
    %s3327 = sld [smem:[#allocation11 + $0x46]]
    %v3328 = vstv %s3327
    %v3329 = vmul.f32 %v3328, %v3203
    %v3330 = vmul.f32 %v3328, %v3204
    %v3331 = vadd.f32 %v3301, %v3329
    %v3332 = vadd.f32 %v3302, %v3330
    %s3333 = sld [smem:[#allocation11 + $0x5f]]
    %v3334 = vstv %s3333
    %v3335 = vmul.f32 %v3334, %v3203
    %v3336 = vmul.f32 %v3334, %v3204
    %v3337 = vadd.f32 %v3307, %v3335
    %v3338 = vadd.f32 %v3308, %v3336
    %s3339 = sld [smem:[#allocation11 + $0x78]]
    %v3340 = vstv %s3339
    %v3341 = vmul.f32 %v3340, %v3203
    %v3342 = vmul.f32 %v3340, %v3204
    %v3343 = vadd.f32 %v3313, %v3341
    %v3344 = vadd.f32 %v3314, %v3342
    %v3345 = vld [vmem:[#allocation2 + $0x1] sm:$0xff]
    %v3346 = vld [vmem:[#allocation2 + $0x9] sm:$0xf]
    %v3347 = vld [vmem:[#allocation2 + $0x11] sm:$0xff]
    %v3348 = vld [vmem:[#allocation2 + $0x19] sm:$0xf]
    %v3349 = vld [vmem:[#allocation2 + $0x21] sm:$0xff]
    %v3350 = vld [vmem:[#allocation2 + $0x29] sm:$0xf]
    %v3351 = vld [vmem:[#allocation2 + $0x31] sm:$0xff]
    %v3352 = vld [vmem:[#allocation2 + $0x39] sm:$0xf]
    %v3353 = vld [vmem:[#allocation2 + $0x41] sm:$0xff]
    %v3354 = vld [vmem:[#allocation2 + $0x49] sm:$0xf]
    %s3355 = sld [smem:[#allocation11 + $0x1]]
    %v3356 = vstv %s3355
    %v3357 = vmul.f32 %v3356, %v3345
    %v3358 = vmul.f32 %v3356, %v3346
    %v3359 = vadd.f32 %v3319, %v3357
    %v3360 = vadd.f32 %v3320, %v3358
    %s3361 = sld [smem:[#allocation11 + $0x1a]]
    %v3362 = vstv %s3361
    %v3363 = vmul.f32 %v3362, %v3345
    %v3364 = vmul.f32 %v3362, %v3346
    %v3365 = vadd.f32 %v3325, %v3363
    %v3366 = vadd.f32 %v3326, %v3364
    %s3367 = sld [smem:[#allocation11 + $0x33]]
    %v3368 = vstv %s3367
    %v3369 = vmul.f32 %v3368, %v3345
    %v3370 = vmul.f32 %v3368, %v3346
    %v3371 = vadd.f32 %v3331, %v3369
    %v3372 = vadd.f32 %v3332, %v3370
    %s3373 = sld [smem:[#allocation11 + $0x4c]]
    %v3374 = vstv %s3373
    %v3375 = vmul.f32 %v3374, %v3345
    %v3376 = vmul.f32 %v3374, %v3346
    %v3377 = vadd.f32 %v3337, %v3375
    %v3378 = vadd.f32 %v3338, %v3376
    %s3379 = sld [smem:[#allocation11 + $0x65]]
    %v3380 = vstv %s3379
    %v3381 = vmul.f32 %v3380, %v3345
    %v3382 = vmul.f32 %v3380, %v3346
    %v3383 = vadd.f32 %v3343, %v3381
    %v3384 = vadd.f32 %v3344, %v3382
    %s3385 = sld [smem:[#allocation11 + $0x6]]
    %v3386 = vstv %s3385
    %v3387 = vmul.f32 %v3386, %v3347
    %v3388 = vmul.f32 %v3386, %v3348
    %v3389 = vadd.f32 %v3359, %v3387
    %v3390 = vadd.f32 %v3360, %v3388
    %s3391 = sld [smem:[#allocation11 + $0x1f]]
    %v3392 = vstv %s3391
    %v3393 = vmul.f32 %v3392, %v3347
    %v3394 = vmul.f32 %v3392, %v3348
    %v3395 = vadd.f32 %v3365, %v3393
    %v3396 = vadd.f32 %v3366, %v3394
    %s3397 = sld [smem:[#allocation11 + $0x38]]
    %v3398 = vstv %s3397
    %v3399 = vmul.f32 %v3398, %v3347
    %v3400 = vmul.f32 %v3398, %v3348
    %v3401 = vadd.f32 %v3371, %v3399
    %v3402 = vadd.f32 %v3372, %v3400
    %s3403 = sld [smem:[#allocation11 + $0x51]]
    %v3404 = vstv %s3403
    %v3405 = vmul.f32 %v3404, %v3347
    %v3406 = vmul.f32 %v3404, %v3348
    %v3407 = vadd.f32 %v3377, %v3405
    %v3408 = vadd.f32 %v3378, %v3406
    %s3409 = sld [smem:[#allocation11 + $0x6a]]
    %v3410 = vstv %s3409
    %v3411 = vmul.f32 %v3410, %v3347
    %v3412 = vmul.f32 %v3410, %v3348
    %v3413 = vadd.f32 %v3383, %v3411
    %v3414 = vadd.f32 %v3384, %v3412
    %s3415 = sld [smem:[#allocation11 + $0xb]]
    %v3416 = vstv %s3415
    %v3417 = vmul.f32 %v3416, %v3349
    %v3418 = vmul.f32 %v3416, %v3350
    %v3419 = vadd.f32 %v3389, %v3417
    %v3420 = vadd.f32 %v3390, %v3418
    %s3421 = sld [smem:[#allocation11 + $0x24]]
    %v3422 = vstv %s3421
    %v3423 = vmul.f32 %v3422, %v3349
    %v3424 = vmul.f32 %v3422, %v3350
    %v3425 = vadd.f32 %v3395, %v3423
    %v3426 = vadd.f32 %v3396, %v3424
    %s3427 = sld [smem:[#allocation11 + $0x3d]]
    %v3428 = vstv %s3427
    %v3429 = vmul.f32 %v3428, %v3349
    %v3430 = vmul.f32 %v3428, %v3350
    %v3431 = vadd.f32 %v3401, %v3429
    %v3432 = vadd.f32 %v3402, %v3430
    %s3433 = sld [smem:[#allocation11 + $0x56]]
    %v3434 = vstv %s3433
    %v3435 = vmul.f32 %v3434, %v3349
    %v3436 = vmul.f32 %v3434, %v3350
    %v3437 = vadd.f32 %v3407, %v3435
    %v3438 = vadd.f32 %v3408, %v3436
    %s3439 = sld [smem:[#allocation11 + $0x6f]]
    %v3440 = vstv %s3439
    %v3441 = vmul.f32 %v3440, %v3349
    %v3442 = vmul.f32 %v3440, %v3350
    %v3443 = vadd.f32 %v3413, %v3441
    %v3444 = vadd.f32 %v3414, %v3442
    %s3445 = sld [smem:[#allocation11 + $0x10]]
    %v3446 = vstv %s3445
    %v3447 = vmul.f32 %v3446, %v3351
    %v3448 = vmul.f32 %v3446, %v3352
    %v3449 = vadd.f32 %v3419, %v3447
    %v3450 = vadd.f32 %v3420, %v3448
    %s3451 = sld [smem:[#allocation11 + $0x29]]
    %v3452 = vstv %s3451
    %v3453 = vmul.f32 %v3452, %v3351
    %v3454 = vmul.f32 %v3452, %v3352
    %v3455 = vadd.f32 %v3425, %v3453
    %v3456 = vadd.f32 %v3426, %v3454
    %s3457 = sld [smem:[#allocation11 + $0x42]]
    %v3458 = vstv %s3457
    %v3459 = vmul.f32 %v3458, %v3351
    %v3460 = vmul.f32 %v3458, %v3352
    %v3461 = vadd.f32 %v3431, %v3459
    %v3462 = vadd.f32 %v3432, %v3460
    %s3463 = sld [smem:[#allocation11 + $0x5b]]
    %v3464 = vstv %s3463
    %v3465 = vmul.f32 %v3464, %v3351
    %v3466 = vmul.f32 %v3464, %v3352
    %v3467 = vadd.f32 %v3437, %v3465
    %v3468 = vadd.f32 %v3438, %v3466
    %s3469 = sld [smem:[#allocation11 + $0x74]]
    %v3470 = vstv %s3469
    %v3471 = vmul.f32 %v3470, %v3351
    %v3472 = vmul.f32 %v3470, %v3352
    %v3473 = vadd.f32 %v3443, %v3471
    %v3474 = vadd.f32 %v3444, %v3472
    %s3475 = sld [smem:[#allocation11 + $0x15]]
    %v3476 = vstv %s3475
    %v3477 = vmul.f32 %v3476, %v3353
    %v3478 = vmul.f32 %v3476, %v3354
    %v3479 = vadd.f32 %v3449, %v3477
    %v3480 = vadd.f32 %v3450, %v3478
    %s3481 = sld [smem:[#allocation11 + $0x2e]]
    %v3482 = vstv %s3481
    %v3483 = vmul.f32 %v3482, %v3353
    %v3484 = vmul.f32 %v3482, %v3354
    %v3485 = vadd.f32 %v3455, %v3483
    %v3486 = vadd.f32 %v3456, %v3484
    %s3487 = sld [smem:[#allocation11 + $0x47]]
    %v3488 = vstv %s3487
    %v3489 = vmul.f32 %v3488, %v3353
    %v3490 = vmul.f32 %v3488, %v3354
    %v3491 = vadd.f32 %v3461, %v3489
    %v3492 = vadd.f32 %v3462, %v3490
    %s3493 = sld [smem:[#allocation11 + $0x60]]
    %v3494 = vstv %s3493
    %v3495 = vmul.f32 %v3494, %v3353
    %v3496 = vmul.f32 %v3494, %v3354
    %v3497 = vadd.f32 %v3467, %v3495
    %v3498 = vadd.f32 %v3468, %v3496
    %s3499 = sld [smem:[#allocation11 + $0x79]]
    %v3500 = vstv %s3499
    %v3501 = vmul.f32 %v3500, %v3353
    %v3502 = vmul.f32 %v3500, %v3354
    %v3503 = vadd.f32 %v3473, %v3501
    %v3504 = vadd.f32 %v3474, %v3502
    %v3505 = vld [vmem:[#allocation2 + $0x2] sm:$0xff]
    %v3506 = vld [vmem:[#allocation2 + $0xa] sm:$0xf]
    %v3507 = vld [vmem:[#allocation2 + $0x12] sm:$0xff]
    %v3508 = vld [vmem:[#allocation2 + $0x1a] sm:$0xf]
    %v3509 = vld [vmem:[#allocation2 + $0x22] sm:$0xff]
    %v3510 = vld [vmem:[#allocation2 + $0x2a] sm:$0xf]
    %v3511 = vld [vmem:[#allocation2 + $0x32] sm:$0xff]
    %v3512 = vld [vmem:[#allocation2 + $0x3a] sm:$0xf]
    %v3513 = vld [vmem:[#allocation2 + $0x42] sm:$0xff]
    %v3514 = vld [vmem:[#allocation2 + $0x4a] sm:$0xf]
    %s3515 = sld [smem:[#allocation11 + $0x2]]
    %v3516 = vstv %s3515
    %v3517 = vmul.f32 %v3516, %v3505
    %v3518 = vmul.f32 %v3516, %v3506
    %v3519 = vadd.f32 %v3479, %v3517
    %v3520 = vadd.f32 %v3480, %v3518
    %s3521 = sld [smem:[#allocation11 + $0x1b]]
    %v3522 = vstv %s3521
    %v3523 = vmul.f32 %v3522, %v3505
    %v3524 = vmul.f32 %v3522, %v3506
    %v3525 = vadd.f32 %v3485, %v3523
    %v3526 = vadd.f32 %v3486, %v3524
    %s3527 = sld [smem:[#allocation11 + $0x34]]
    %v3528 = vstv %s3527
    %v3529 = vmul.f32 %v3528, %v3505
    %v3530 = vmul.f32 %v3528, %v3506
    %v3531 = vadd.f32 %v3491, %v3529
    %v3532 = vadd.f32 %v3492, %v3530
    %s3533 = sld [smem:[#allocation11 + $0x4d]]
    %v3534 = vstv %s3533
    %v3535 = vmul.f32 %v3534, %v3505
    %v3536 = vmul.f32 %v3534, %v3506
    %v3537 = vadd.f32 %v3497, %v3535
    %v3538 = vadd.f32 %v3498, %v3536
    %s3539 = sld [smem:[#allocation11 + $0x66]]
    %v3540 = vstv %s3539
    %v3541 = vmul.f32 %v3540, %v3505
    %v3542 = vmul.f32 %v3540, %v3506
    %v3543 = vadd.f32 %v3503, %v3541
    %v3544 = vadd.f32 %v3504, %v3542
    %s3545 = sld [smem:[#allocation11 + $0x7]]
    %v3546 = vstv %s3545
    %v3547 = vmul.f32 %v3546, %v3507
    %v3548 = vmul.f32 %v3546, %v3508
    %v3549 = vadd.f32 %v3519, %v3547
    %v3550 = vadd.f32 %v3520, %v3548
    %s3551 = sld [smem:[#allocation11 + $0x20]]
    %v3552 = vstv %s3551
    %v3553 = vmul.f32 %v3552, %v3507
    %v3554 = vmul.f32 %v3552, %v3508
    %v3555 = vadd.f32 %v3525, %v3553
    %v3556 = vadd.f32 %v3526, %v3554
    %s3557 = sld [smem:[#allocation11 + $0x39]]
    %v3558 = vstv %s3557
    %v3559 = vmul.f32 %v3558, %v3507
    %v3560 = vmul.f32 %v3558, %v3508
    %v3561 = vadd.f32 %v3531, %v3559
    %v3562 = vadd.f32 %v3532, %v3560
    %s3563 = sld [smem:[#allocation11 + $0x52]]
    %v3564 = vstv %s3563
    %v3565 = vmul.f32 %v3564, %v3507
    %v3566 = vmul.f32 %v3564, %v3508
    %v3567 = vadd.f32 %v3537, %v3565
    %v3568 = vadd.f32 %v3538, %v3566
    %s3569 = sld [smem:[#allocation11 + $0x6b]]
    %v3570 = vstv %s3569
    %v3571 = vmul.f32 %v3570, %v3507
    %v3572 = vmul.f32 %v3570, %v3508
    %v3573 = vadd.f32 %v3543, %v3571
    %v3574 = vadd.f32 %v3544, %v3572
    %s3575 = sld [smem:[#allocation11 + $0xc]]
    %v3576 = vstv %s3575
    %v3577 = vmul.f32 %v3576, %v3509
    %v3578 = vmul.f32 %v3576, %v3510
    %v3579 = vadd.f32 %v3549, %v3577
    %v3580 = vadd.f32 %v3550, %v3578
    %s3581 = sld [smem:[#allocation11 + $0x25]]
    %v3582 = vstv %s3581
    %v3583 = vmul.f32 %v3582, %v3509
    %v3584 = vmul.f32 %v3582, %v3510
    %v3585 = vadd.f32 %v3555, %v3583
    %v3586 = vadd.f32 %v3556, %v3584
    %s3587 = sld [smem:[#allocation11 + $0x3e]]
    %v3588 = vstv %s3587
    %v3589 = vmul.f32 %v3588, %v3509
    %v3590 = vmul.f32 %v3588, %v3510
    %v3591 = vadd.f32 %v3561, %v3589
    %v3592 = vadd.f32 %v3562, %v3590
    %s3593 = sld [smem:[#allocation11 + $0x57]]
    %v3594 = vstv %s3593
    %v3595 = vmul.f32 %v3594, %v3509
    %v3596 = vmul.f32 %v3594, %v3510
    %v3597 = vadd.f32 %v3567, %v3595
    %v3598 = vadd.f32 %v3568, %v3596
    %s3599 = sld [smem:[#allocation11 + $0x70]]
    %v3600 = vstv %s3599
    %v3601 = vmul.f32 %v3600, %v3509
    %v3602 = vmul.f32 %v3600, %v3510
    %v3603 = vadd.f32 %v3573, %v3601
    %v3604 = vadd.f32 %v3574, %v3602
    %s3605 = sld [smem:[#allocation11 + $0x11]]
    %v3606 = vstv %s3605
    %v3607 = vmul.f32 %v3606, %v3511
    %v3608 = vmul.f32 %v3606, %v3512
    %v3609 = vadd.f32 %v3579, %v3607
    %v3610 = vadd.f32 %v3580, %v3608
    %s3611 = sld [smem:[#allocation11 + $0x2a]]
    %v3612 = vstv %s3611
    %v3613 = vmul.f32 %v3612, %v3511
    %v3614 = vmul.f32 %v3612, %v3512
    %v3615 = vadd.f32 %v3585, %v3613
    %v3616 = vadd.f32 %v3586, %v3614
    %s3617 = sld [smem:[#allocation11 + $0x43]]
    %v3618 = vstv %s3617
    %v3619 = vmul.f32 %v3618, %v3511
    %v3620 = vmul.f32 %v3618, %v3512
    %v3621 = vadd.f32 %v3591, %v3619
    %v3622 = vadd.f32 %v3592, %v3620
    %s3623 = sld [smem:[#allocation11 + $0x5c]]
    %v3624 = vstv %s3623
    %v3625 = vmul.f32 %v3624, %v3511
    %v3626 = vmul.f32 %v3624, %v3512
    %v3627 = vadd.f32 %v3597, %v3625
    %v3628 = vadd.f32 %v3598, %v3626
    %s3629 = sld [smem:[#allocation11 + $0x75]]
    %v3630 = vstv %s3629
    %v3631 = vmul.f32 %v3630, %v3511
    %v3632 = vmul.f32 %v3630, %v3512
    %v3633 = vadd.f32 %v3603, %v3631
    %v3634 = vadd.f32 %v3604, %v3632
    %s3635 = sld [smem:[#allocation11 + $0x16]]
    %v3636 = vstv %s3635
    %v3637 = vmul.f32 %v3636, %v3513
    %v3638 = vmul.f32 %v3636, %v3514
    %v3639 = vadd.f32 %v3609, %v3637
    %v3640 = vadd.f32 %v3610, %v3638
    %s3641 = sld [smem:[#allocation11 + $0x2f]]
    %v3642 = vstv %s3641
    %v3643 = vmul.f32 %v3642, %v3513
    %v3644 = vmul.f32 %v3642, %v3514
    %v3645 = vadd.f32 %v3615, %v3643
    %v3646 = vadd.f32 %v3616, %v3644
    %s3647 = sld [smem:[#allocation11 + $0x48]]
    %v3648 = vstv %s3647
    %v3649 = vmul.f32 %v3648, %v3513
    %v3650 = vmul.f32 %v3648, %v3514
    %v3651 = vadd.f32 %v3621, %v3649
    %v3652 = vadd.f32 %v3622, %v3650
    %s3653 = sld [smem:[#allocation11 + $0x61]]
    %v3654 = vstv %s3653
    %v3655 = vmul.f32 %v3654, %v3513
    %v3656 = vmul.f32 %v3654, %v3514
    %v3657 = vadd.f32 %v3627, %v3655
    %v3658 = vadd.f32 %v3628, %v3656
    %s3659 = sld [smem:[#allocation11 + $0x7a]]
    %v3660 = vstv %s3659
    %v3661 = vmul.f32 %v3660, %v3513
    %v3662 = vmul.f32 %v3660, %v3514
    %v3663 = vadd.f32 %v3633, %v3661
    %v3664 = vadd.f32 %v3634, %v3662
    %v3665 = vld [vmem:[#allocation2 + $0x3] sm:$0xff]
    %v3666 = vld [vmem:[#allocation2 + $0xb] sm:$0xf]
    %v3667 = vld [vmem:[#allocation2 + $0x13] sm:$0xff]
    %v3668 = vld [vmem:[#allocation2 + $0x1b] sm:$0xf]
    %v3669 = vld [vmem:[#allocation2 + $0x23] sm:$0xff]
    %v3670 = vld [vmem:[#allocation2 + $0x2b] sm:$0xf]
    %v3671 = vld [vmem:[#allocation2 + $0x33] sm:$0xff]
    %v3672 = vld [vmem:[#allocation2 + $0x3b] sm:$0xf]
    %v3673 = vld [vmem:[#allocation2 + $0x43] sm:$0xff]
    %v3674 = vld [vmem:[#allocation2 + $0x4b] sm:$0xf]
    %s3675 = sld [smem:[#allocation11 + $0x3]]
    %v3676 = vstv %s3675
    %v3677 = vmul.f32 %v3676, %v3665
    %v3678 = vmul.f32 %v3676, %v3666
    %v3679 = vadd.f32 %v3639, %v3677
    %v3680 = vadd.f32 %v3640, %v3678
    %s3681 = sld [smem:[#allocation11 + $0x1c]]
    %v3682 = vstv %s3681
    %v3683 = vmul.f32 %v3682, %v3665
    %v3684 = vmul.f32 %v3682, %v3666
    %v3685 = vadd.f32 %v3645, %v3683
    %v3686 = vadd.f32 %v3646, %v3684
    %s3687 = sld [smem:[#allocation11 + $0x35]]
    %v3688 = vstv %s3687
    %v3689 = vmul.f32 %v3688, %v3665
    %v3690 = vmul.f32 %v3688, %v3666
    %v3691 = vadd.f32 %v3651, %v3689
    %v3692 = vadd.f32 %v3652, %v3690
    %s3693 = sld [smem:[#allocation11 + $0x4e]]
    %v3694 = vstv %s3693
    %v3695 = vmul.f32 %v3694, %v3665
    %v3696 = vmul.f32 %v3694, %v3666
    %v3697 = vadd.f32 %v3657, %v3695
    %v3698 = vadd.f32 %v3658, %v3696
    %s3699 = sld [smem:[#allocation11 + $0x67]]
    %v3700 = vstv %s3699
    %v3701 = vmul.f32 %v3700, %v3665
    %v3702 = vmul.f32 %v3700, %v3666
    %v3703 = vadd.f32 %v3663, %v3701
    %v3704 = vadd.f32 %v3664, %v3702
    %s3705 = sld [smem:[#allocation11 + $0x8]]
    %v3706 = vstv %s3705
    %v3707 = vmul.f32 %v3706, %v3667
    %v3708 = vmul.f32 %v3706, %v3668
    %v3709 = vadd.f32 %v3679, %v3707
    %v3710 = vadd.f32 %v3680, %v3708
    %s3711 = sld [smem:[#allocation11 + $0x21]]
    %v3712 = vstv %s3711
    %v3713 = vmul.f32 %v3712, %v3667
    %v3714 = vmul.f32 %v3712, %v3668
    %v3715 = vadd.f32 %v3685, %v3713
    %v3716 = vadd.f32 %v3686, %v3714
    %s3717 = sld [smem:[#allocation11 + $0x3a]]
    %v3718 = vstv %s3717
    %v3719 = vmul.f32 %v3718, %v3667
    %v3720 = vmul.f32 %v3718, %v3668
    %v3721 = vadd.f32 %v3691, %v3719
    %v3722 = vadd.f32 %v3692, %v3720
    %s3723 = sld [smem:[#allocation11 + $0x53]]
    %v3724 = vstv %s3723
    %v3725 = vmul.f32 %v3724, %v3667
    %v3726 = vmul.f32 %v3724, %v3668
    %v3727 = vadd.f32 %v3697, %v3725
    %v3728 = vadd.f32 %v3698, %v3726
    %s3729 = sld [smem:[#allocation11 + $0x6c]]
    %v3730 = vstv %s3729
    %v3731 = vmul.f32 %v3730, %v3667
    %v3732 = vmul.f32 %v3730, %v3668
    %v3733 = vadd.f32 %v3703, %v3731
    %v3734 = vadd.f32 %v3704, %v3732
    %s3735 = sld [smem:[#allocation11 + $0xd]]
    %v3736 = vstv %s3735
    %v3737 = vmul.f32 %v3736, %v3669
    %v3738 = vmul.f32 %v3736, %v3670
    %v3739 = vadd.f32 %v3709, %v3737
    %v3740 = vadd.f32 %v3710, %v3738
    %s3741 = sld [smem:[#allocation11 + $0x26]]
    %v3742 = vstv %s3741
    %v3743 = vmul.f32 %v3742, %v3669
    %v3744 = vmul.f32 %v3742, %v3670
    %v3745 = vadd.f32 %v3715, %v3743
    %v3746 = vadd.f32 %v3716, %v3744
    %s3747 = sld [smem:[#allocation11 + $0x3f]]
    %v3748 = vstv %s3747
    %v3749 = vmul.f32 %v3748, %v3669
    %v3750 = vmul.f32 %v3748, %v3670
    %v3751 = vadd.f32 %v3721, %v3749
    %v3752 = vadd.f32 %v3722, %v3750
    %s3753 = sld [smem:[#allocation11 + $0x58]]
    %v3754 = vstv %s3753
    %v3755 = vmul.f32 %v3754, %v3669
    %v3756 = vmul.f32 %v3754, %v3670
    %v3757 = vadd.f32 %v3727, %v3755
    %v3758 = vadd.f32 %v3728, %v3756
    %s3759 = sld [smem:[#allocation11 + $0x71]]
    %v3760 = vstv %s3759
    %v3761 = vmul.f32 %v3760, %v3669
    %v3762 = vmul.f32 %v3760, %v3670
    %v3763 = vadd.f32 %v3733, %v3761
    %v3764 = vadd.f32 %v3734, %v3762
    %s3765 = sld [smem:[#allocation11 + $0x12]]
    %v3766 = vstv %s3765
    %v3767 = vmul.f32 %v3766, %v3671
    %v3768 = vmul.f32 %v3766, %v3672
    %v3769 = vadd.f32 %v3739, %v3767
    %v3770 = vadd.f32 %v3740, %v3768
    %s3771 = sld [smem:[#allocation11 + $0x2b]]
    %v3772 = vstv %s3771
    %v3773 = vmul.f32 %v3772, %v3671
    %v3774 = vmul.f32 %v3772, %v3672
    %v3775 = vadd.f32 %v3745, %v3773
    %v3776 = vadd.f32 %v3746, %v3774
    %s3777 = sld [smem:[#allocation11 + $0x44]]
    %v3778 = vstv %s3777
    %v3779 = vmul.f32 %v3778, %v3671
    %v3780 = vmul.f32 %v3778, %v3672
    %v3781 = vadd.f32 %v3751, %v3779
    %v3782 = vadd.f32 %v3752, %v3780
    %s3783 = sld [smem:[#allocation11 + $0x5d]]
    %v3784 = vstv %s3783
    %v3785 = vmul.f32 %v3784, %v3671
    %v3786 = vmul.f32 %v3784, %v3672
    %v3787 = vadd.f32 %v3757, %v3785
    %v3788 = vadd.f32 %v3758, %v3786
    %s3789 = sld [smem:[#allocation11 + $0x76]]
    %v3790 = vstv %s3789
    %v3791 = vmul.f32 %v3790, %v3671
    %v3792 = vmul.f32 %v3790, %v3672
    %v3793 = vadd.f32 %v3763, %v3791
    %v3794 = vadd.f32 %v3764, %v3792
    %s3795 = sld [smem:[#allocation11 + $0x17]]
    %v3796 = vstv %s3795
    %v3797 = vmul.f32 %v3796, %v3673
    %v3798 = vmul.f32 %v3796, %v3674
    %v3799 = vadd.f32 %v3769, %v3797
    %v3800 = vadd.f32 %v3770, %v3798
    %s3801 = sld [smem:[#allocation11 + $0x30]]
    %v3802 = vstv %s3801
    %v3803 = vmul.f32 %v3802, %v3673
    %v3804 = vmul.f32 %v3802, %v3674
    %v3805 = vadd.f32 %v3775, %v3803
    %v3806 = vadd.f32 %v3776, %v3804
    %s3807 = sld [smem:[#allocation11 + $0x49]]
    %v3808 = vstv %s3807
    %v3809 = vmul.f32 %v3808, %v3673
    %v3810 = vmul.f32 %v3808, %v3674
    %v3811 = vadd.f32 %v3781, %v3809
    %v3812 = vadd.f32 %v3782, %v3810
    %s3813 = sld [smem:[#allocation11 + $0x62]]
    %v3814 = vstv %s3813
    %v3815 = vmul.f32 %v3814, %v3673
    %v3816 = vmul.f32 %v3814, %v3674
    %v3817 = vadd.f32 %v3787, %v3815
    %v3818 = vadd.f32 %v3788, %v3816
    %s3819 = sld [smem:[#allocation11 + $0x7b]]
    %v3820 = vstv %s3819
    %v3821 = vmul.f32 %v3820, %v3673
    %v3822 = vmul.f32 %v3820, %v3674
    %v3823 = vadd.f32 %v3793, %v3821
    %v3824 = vadd.f32 %v3794, %v3822
    %v3825 = vld [vmem:[#allocation2 + $0x4] sm:$0xff]
    %v3826 = vld [vmem:[#allocation2 + $0xc] sm:$0xf]
    %v3827 = vld [vmem:[#allocation2 + $0x14] sm:$0xff]
    %v3828 = vld [vmem:[#allocation2 + $0x1c] sm:$0xf]
    %v3829 = vld [vmem:[#allocation2 + $0x24] sm:$0xff]
    %v3830 = vld [vmem:[#allocation2 + $0x2c] sm:$0xf]
    %v3831 = vld [vmem:[#allocation2 + $0x34] sm:$0xff]
    %v3832 = vld [vmem:[#allocation2 + $0x3c] sm:$0xf]
    %v3833 = vld [vmem:[#allocation2 + $0x44] sm:$0xff]
    %v3834 = vld [vmem:[#allocation2 + $0x4c] sm:$0xf]
    %s3835 = sld [smem:[#allocation11 + $0x4]]
    %v3836 = vstv %s3835
    %v3837 = vmul.f32 %v3836, %v3825
    %v3838 = vmul.f32 %v3836, %v3826
    %v3839 = vadd.f32 %v3799, %v3837
    %v3840 = vadd.f32 %v3800, %v3838
    %s3841 = sld [smem:[#allocation11 + $0x1d]]
    %v3842 = vstv %s3841
    %v3843 = vmul.f32 %v3842, %v3825
    %v3844 = vmul.f32 %v3842, %v3826
    %v3845 = vadd.f32 %v3805, %v3843
    %v3846 = vadd.f32 %v3806, %v3844
    %s3847 = sld [smem:[#allocation11 + $0x36]]
    %v3848 = vstv %s3847
    %v3849 = vmul.f32 %v3848, %v3825
    %v3850 = vmul.f32 %v3848, %v3826
    %v3851 = vadd.f32 %v3811, %v3849
    %v3852 = vadd.f32 %v3812, %v3850
    %s3853 = sld [smem:[#allocation11 + $0x4f]]
    %v3854 = vstv %s3853
    %v3855 = vmul.f32 %v3854, %v3825
    %v3856 = vmul.f32 %v3854, %v3826
    %v3857 = vadd.f32 %v3817, %v3855
    %v3858 = vadd.f32 %v3818, %v3856
    %s3859 = sld [smem:[#allocation11 + $0x68]]
    %v3860 = vstv %s3859
    %v3861 = vmul.f32 %v3860, %v3825
    %v3862 = vmul.f32 %v3860, %v3826
    %v3863 = vadd.f32 %v3823, %v3861
    %v3864 = vadd.f32 %v3824, %v3862
    %s3865 = sld [smem:[#allocation11 + $0x9]]
    %v3866 = vstv %s3865
    %v3867 = vmul.f32 %v3866, %v3827
    %v3868 = vmul.f32 %v3866, %v3828
    %v3869 = vadd.f32 %v3839, %v3867
    %v3870 = vadd.f32 %v3840, %v3868
    %s3871 = sld [smem:[#allocation11 + $0x22]]
    %v3872 = vstv %s3871
    %v3873 = vmul.f32 %v3872, %v3827
    %v3874 = vmul.f32 %v3872, %v3828
    %v3875 = vadd.f32 %v3845, %v3873
    %v3876 = vadd.f32 %v3846, %v3874
    %s3877 = sld [smem:[#allocation11 + $0x3b]]
    %v3878 = vstv %s3877
    %v3879 = vmul.f32 %v3878, %v3827
    %v3880 = vmul.f32 %v3878, %v3828
    %v3881 = vadd.f32 %v3851, %v3879
    %v3882 = vadd.f32 %v3852, %v3880
    %s3883 = sld [smem:[#allocation11 + $0x54]]
    %v3884 = vstv %s3883
    %v3885 = vmul.f32 %v3884, %v3827
    %v3886 = vmul.f32 %v3884, %v3828
    %v3887 = vadd.f32 %v3857, %v3885
    %v3888 = vadd.f32 %v3858, %v3886
    %s3889 = sld [smem:[#allocation11 + $0x6d]]
    %v3890 = vstv %s3889
    %v3891 = vmul.f32 %v3890, %v3827
    %v3892 = vmul.f32 %v3890, %v3828
    %v3893 = vadd.f32 %v3863, %v3891
    %v3894 = vadd.f32 %v3864, %v3892
    %s3895 = sld [smem:[#allocation11 + $0xe]]
    %v3896 = vstv %s3895
    %v3897 = vmul.f32 %v3896, %v3829
    %v3898 = vmul.f32 %v3896, %v3830
    %v3899 = vadd.f32 %v3869, %v3897
    %v3900 = vadd.f32 %v3870, %v3898
    %s3901 = sld [smem:[#allocation11 + $0x27]]
    %v3902 = vstv %s3901
    %v3903 = vmul.f32 %v3902, %v3829
    %v3904 = vmul.f32 %v3902, %v3830
    %v3905 = vadd.f32 %v3875, %v3903
    %v3906 = vadd.f32 %v3876, %v3904
    %s3907 = sld [smem:[#allocation11 + $0x40]]
    %v3908 = vstv %s3907
    %v3909 = vmul.f32 %v3908, %v3829
    %v3910 = vmul.f32 %v3908, %v3830
    %v3911 = vadd.f32 %v3881, %v3909
    %v3912 = vadd.f32 %v3882, %v3910
    %s3913 = sld [smem:[#allocation11 + $0x59]]
    %v3914 = vstv %s3913
    %v3915 = vmul.f32 %v3914, %v3829
    %v3916 = vmul.f32 %v3914, %v3830
    %v3917 = vadd.f32 %v3887, %v3915
    %v3918 = vadd.f32 %v3888, %v3916
    %s3919 = sld [smem:[#allocation11 + $0x72]]
    %v3920 = vstv %s3919
    %v3921 = vmul.f32 %v3920, %v3829
    %v3922 = vmul.f32 %v3920, %v3830
    %v3923 = vadd.f32 %v3893, %v3921
    %v3924 = vadd.f32 %v3894, %v3922
    %s3925 = sld [smem:[#allocation11 + $0x13]]
    %v3926 = vstv %s3925
    %v3927 = vmul.f32 %v3926, %v3831
    %v3928 = vmul.f32 %v3926, %v3832
    %v3929 = vadd.f32 %v3899, %v3927
    %v3930 = vadd.f32 %v3900, %v3928
    %s3931 = sld [smem:[#allocation11 + $0x2c]]
    %v3932 = vstv %s3931
    %v3933 = vmul.f32 %v3932, %v3831
    %v3934 = vmul.f32 %v3932, %v3832
    %v3935 = vadd.f32 %v3905, %v3933
    %v3936 = vadd.f32 %v3906, %v3934
    %s3937 = sld [smem:[#allocation11 + $0x45]]
    %v3938 = vstv %s3937
    %v3939 = vmul.f32 %v3938, %v3831
    %v3940 = vmul.f32 %v3938, %v3832
    %v3941 = vadd.f32 %v3911, %v3939
    %v3942 = vadd.f32 %v3912, %v3940
    %s3943 = sld [smem:[#allocation11 + $0x5e]]
    %v3944 = vstv %s3943
    %v3945 = vmul.f32 %v3944, %v3831
    %v3946 = vmul.f32 %v3944, %v3832
    %v3947 = vadd.f32 %v3917, %v3945
    %v3948 = vadd.f32 %v3918, %v3946
    %s3949 = sld [smem:[#allocation11 + $0x77]]
    %v3950 = vstv %s3949
    %v3951 = vmul.f32 %v3950, %v3831
    %v3952 = vmul.f32 %v3950, %v3832
    %v3953 = vadd.f32 %v3923, %v3951
    %v3954 = vadd.f32 %v3924, %v3952
    %s3955 = sld [smem:[#allocation11 + $0x18]]
    %v3956 = vstv %s3955
    %v3957 = vmul.f32 %v3956, %v3833
    %v3958 = vmul.f32 %v3956, %v3834
    %v3959 = vadd.f32 %v3929, %v3957
    %v3960 = vadd.f32 %v3930, %v3958
    %s3961 = sld [smem:[#allocation11 + $0x31]]
    %v3962 = vstv %s3961
    %v3963 = vmul.f32 %v3962, %v3833
    %v3964 = vmul.f32 %v3962, %v3834
    %v3965 = vadd.f32 %v3935, %v3963
    %v3966 = vadd.f32 %v3936, %v3964
    %s3967 = sld [smem:[#allocation11 + $0x4a]]
    %v3968 = vstv %s3967
    %v3969 = vmul.f32 %v3968, %v3833
    %v3970 = vmul.f32 %v3968, %v3834
    %v3971 = vadd.f32 %v3941, %v3969
    %v3972 = vadd.f32 %v3942, %v3970
    %s3973 = sld [smem:[#allocation11 + $0x63]]
    %v3974 = vstv %s3973
    %v3975 = vmul.f32 %v3974, %v3833
    %v3976 = vmul.f32 %v3974, %v3834
    %v3977 = vadd.f32 %v3947, %v3975
    %v3978 = vadd.f32 %v3948, %v3976
    %s3979 = sld [smem:[#allocation11 + $0x7c]]
    %v3980 = vstv %s3979
    %v3981 = vmul.f32 %v3980, %v3833
    %v3982 = vmul.f32 %v3980, %v3834
    %v3983 = vadd.f32 %v3953, %v3981
    %v3984 = vadd.f32 %v3954, %v3982
    %s3985 = sld [smem:[#allocation12]]
    %v3986 = vstv %s3985
    %v3987 = vadd.f32 %v3959, %v3986
    %v3988 = vadd.f32 %v3960, %v3986
    %s3989 = sld [smem:[#allocation12 + $0x1]]
    %v3990 = vstv %s3989
    %v3991 = vadd.f32 %v3965, %v3990
    %v3992 = vadd.f32 %v3966, %v3990
    %s3993 = sld [smem:[#allocation12 + $0x2]]
    %v3994 = vstv %s3993
    %v3995 = vadd.f32 %v3971, %v3994
    %v3996 = vadd.f32 %v3972, %v3994
    %s3997 = sld [smem:[#allocation12 + $0x3]]
    %v3998 = vstv %s3997
    %v3999 = vadd.f32 %v3977, %v3998
    %v4000 = vadd.f32 %v3978, %v3998
    %s4001 = sld [smem:[#allocation12 + $0x4]]
    %v4002 = vstv %s4001
    %v4003 = vadd.f32 %v3983, %v4002
    %v4004 = vadd.f32 %v3984, %v4002
    %s4005 = sld [smem:[#allocation4]]
    %v4006 = vstv %s4005
    %v4007 = vmul.f32 %v4006, %v3195
    %v4008 = vmul.f32 %v4006, %v3196
    %s4009 = sld [smem:[#allocation4 + $0x14]]
    %v4010 = vstv %s4009
    %v4011 = vmul.f32 %v4010, %v3195
    %v4012 = vmul.f32 %v4010, %v3196
    %s4013 = sld [smem:[#allocation4 + $0x28]]
    %v4014 = vstv %s4013
    %v4015 = vmul.f32 %v4014, %v3195
    %v4016 = vmul.f32 %v4014, %v3196
    %s4017 = sld [smem:[#allocation4 + $0x3c]]
    %v4018 = vstv %s4017
    %v4019 = vmul.f32 %v4018, %v3195
    %v4020 = vmul.f32 %v4018, %v3196
    %s4021 = sld [smem:[#allocation4 + $0x50]]
    %v4022 = vstv %s4021
    %v4023 = vmul.f32 %v4022, %v3195
    %v4024 = vmul.f32 %v4022, %v3196
    %s4025 = sld [smem:[#allocation4 + $0x4]]
    %v4026 = vstv %s4025
    %v4027 = vmul.f32 %v4026, %v3197
    %v4028 = vmul.f32 %v4026, %v3198
    %v4029 = vadd.f32 %v4007, %v4027
    %v4030 = vadd.f32 %v4008, %v4028
    %s4031 = sld [smem:[#allocation4 + $0x18]]
    %v4032 = vstv %s4031
    %v4033 = vmul.f32 %v4032, %v3197
    %v4034 = vmul.f32 %v4032, %v3198
    %v4035 = vadd.f32 %v4011, %v4033
    %v4036 = vadd.f32 %v4012, %v4034
    %s4037 = sld [smem:[#allocation4 + $0x2c]]
    %v4038 = vstv %s4037
    %v4039 = vmul.f32 %v4038, %v3197
    %v4040 = vmul.f32 %v4038, %v3198
    %v4041 = vadd.f32 %v4015, %v4039
    %v4042 = vadd.f32 %v4016, %v4040
    %s4043 = sld [smem:[#allocation4 + $0x40]]
    %v4044 = vstv %s4043
    %v4045 = vmul.f32 %v4044, %v3197
    %v4046 = vmul.f32 %v4044, %v3198
    %v4047 = vadd.f32 %v4019, %v4045
    %v4048 = vadd.f32 %v4020, %v4046
    %s4049 = sld [smem:[#allocation4 + $0x54]]
    %v4050 = vstv %s4049
    %v4051 = vmul.f32 %v4050, %v3197
    %v4052 = vmul.f32 %v4050, %v3198
    %v4053 = vadd.f32 %v4023, %v4051
    %v4054 = vadd.f32 %v4024, %v4052
    %s4055 = sld [smem:[#allocation4 + $0x8]]
    %v4056 = vstv %s4055
    %v4057 = vmul.f32 %v4056, %v3199
    %v4058 = vmul.f32 %v4056, %v3200
    %v4059 = vadd.f32 %v4029, %v4057
    %v4060 = vadd.f32 %v4030, %v4058
    %s4061 = sld [smem:[#allocation4 + $0x1c]]
    %v4062 = vstv %s4061
    %v4063 = vmul.f32 %v4062, %v3199
    %v4064 = vmul.f32 %v4062, %v3200
    %v4065 = vadd.f32 %v4035, %v4063
    %v4066 = vadd.f32 %v4036, %v4064
    %s4067 = sld [smem:[#allocation4 + $0x30]]
    %v4068 = vstv %s4067
    %v4069 = vmul.f32 %v4068, %v3199
    %v4070 = vmul.f32 %v4068, %v3200
    %v4071 = vadd.f32 %v4041, %v4069
    %v4072 = vadd.f32 %v4042, %v4070
    %s4073 = sld [smem:[#allocation4 + $0x44]]
    %v4074 = vstv %s4073
    %v4075 = vmul.f32 %v4074, %v3199
    %v4076 = vmul.f32 %v4074, %v3200
    %v4077 = vadd.f32 %v4047, %v4075
    %v4078 = vadd.f32 %v4048, %v4076
    %s4079 = sld [smem:[#allocation4 + $0x58]]
    %v4080 = vstv %s4079
    %v4081 = vmul.f32 %v4080, %v3199
    %v4082 = vmul.f32 %v4080, %v3200
    %v4083 = vadd.f32 %v4053, %v4081
    %v4084 = vadd.f32 %v4054, %v4082
    %s4085 = sld [smem:[#allocation4 + $0xc]]
    %v4086 = vstv %s4085
    %v4087 = vmul.f32 %v4086, %v3201
    %v4088 = vmul.f32 %v4086, %v3202
    %v4089 = vadd.f32 %v4059, %v4087
    %v4090 = vadd.f32 %v4060, %v4088
    %s4091 = sld [smem:[#allocation4 + $0x20]]
    %v4092 = vstv %s4091
    %v4093 = vmul.f32 %v4092, %v3201
    %v4094 = vmul.f32 %v4092, %v3202
    %v4095 = vadd.f32 %v4065, %v4093
    %v4096 = vadd.f32 %v4066, %v4094
    %s4097 = sld [smem:[#allocation4 + $0x34]]
    %v4098 = vstv %s4097
    %v4099 = vmul.f32 %v4098, %v3201
    %v4100 = vmul.f32 %v4098, %v3202
    %v4101 = vadd.f32 %v4071, %v4099
    %v4102 = vadd.f32 %v4072, %v4100
    %s4103 = sld [smem:[#allocation4 + $0x48]]
    %v4104 = vstv %s4103
    %v4105 = vmul.f32 %v4104, %v3201
    %v4106 = vmul.f32 %v4104, %v3202
    %v4107 = vadd.f32 %v4077, %v4105
    %v4108 = vadd.f32 %v4078, %v4106
    %s4109 = sld [smem:[#allocation4 + $0x5c]]
    %v4110 = vstv %s4109
    %v4111 = vmul.f32 %v4110, %v3201
    %v4112 = vmul.f32 %v4110, %v3202
    %v4113 = vadd.f32 %v4083, %v4111
    %v4114 = vadd.f32 %v4084, %v4112
    %s4115 = sld [smem:[#allocation4 + $0x10]]
    %v4116 = vstv %s4115
    %v4117 = vmul.f32 %v4116, %v3203
    %v4118 = vmul.f32 %v4116, %v3204
    %v4119 = vadd.f32 %v4089, %v4117
    %v4120 = vadd.f32 %v4090, %v4118
    %s4121 = sld [smem:[#allocation4 + $0x24]]
    %v4122 = vstv %s4121
    %v4123 = vmul.f32 %v4122, %v3203
    %v4124 = vmul.f32 %v4122, %v3204
    %v4125 = vadd.f32 %v4095, %v4123
    %v4126 = vadd.f32 %v4096, %v4124
    %s4127 = sld [smem:[#allocation4 + $0x38]]
    %v4128 = vstv %s4127
    %v4129 = vmul.f32 %v4128, %v3203
    %v4130 = vmul.f32 %v4128, %v3204
    %v4131 = vadd.f32 %v4101, %v4129
    %v4132 = vadd.f32 %v4102, %v4130
    %s4133 = sld [smem:[#allocation4 + $0x4c]]
    %v4134 = vstv %s4133
    %v4135 = vmul.f32 %v4134, %v3203
    %v4136 = vmul.f32 %v4134, %v3204
    %v4137 = vadd.f32 %v4107, %v4135
    %v4138 = vadd.f32 %v4108, %v4136
    %s4139 = sld [smem:[#allocation4 + $0x60]]
    %v4140 = vstv %s4139
    %v4141 = vmul.f32 %v4140, %v3203
    %v4142 = vmul.f32 %v4140, %v3204
    %v4143 = vadd.f32 %v4113, %v4141
    %v4144 = vadd.f32 %v4114, %v4142
    %s4145 = sld [smem:[#allocation4 + $0x1]]
    %v4146 = vstv %s4145
    %v4147 = vmul.f32 %v4146, %v3195
    %v4148 = vmul.f32 %v4146, %v3196
    %4151 = vrot.lane.b32.xlu0 %v4147, 126
    %v4152 = vpop.permute.xlu0 %4151
    %4153 = vrot.lane.b32.xlu0 %v4148, 126
    %v4154 = vpop.permute.xlu0 %4153
    %v4157 = vadd.f32 %v4119, %v4152
    %v4158 = vadd.f32 %v4120, %v4154
    %s4159 = sld [smem:[#allocation4 + $0x15]]
    %v4160 = vstv %s4159
    %v4161 = vmul.f32 %v4160, %v3195
    %v4162 = vmul.f32 %v4160, %v3196
    %4165 = vrot.lane.b32.xlu0 %v4161, 126
    %v4166 = vpop.permute.xlu0 %4165
    %4167 = vrot.lane.b32.xlu0 %v4162, 126
    %v4168 = vpop.permute.xlu0 %4167
    %v4171 = vadd.f32 %v4125, %v4166
    %v4172 = vadd.f32 %v4126, %v4168
    %s4173 = sld [smem:[#allocation4 + $0x29]]
    %v4174 = vstv %s4173
    %v4175 = vmul.f32 %v4174, %v3195
    %v4176 = vmul.f32 %v4174, %v3196
    %4179 = vrot.lane.b32.xlu0 %v4175, 126
    %v4180 = vpop.permute.xlu0 %4179
    %4181 = vrot.lane.b32.xlu0 %v4176, 126
    %v4182 = vpop.permute.xlu0 %4181
    %v4185 = vadd.f32 %v4131, %v4180
    %v4186 = vadd.f32 %v4132, %v4182
    %s4187 = sld [smem:[#allocation4 + $0x3d]]
    %v4188 = vstv %s4187
    %v4189 = vmul.f32 %v4188, %v3195
    %v4190 = vmul.f32 %v4188, %v3196
    %4193 = vrot.lane.b32.xlu0 %v4189, 126
    %v4194 = vpop.permute.xlu0 %4193
    %4195 = vrot.lane.b32.xlu0 %v4190, 126
    %v4196 = vpop.permute.xlu0 %4195
    %v4199 = vadd.f32 %v4137, %v4194
    %v4200 = vadd.f32 %v4138, %v4196
    %s4201 = sld [smem:[#allocation4 + $0x51]]
    %v4202 = vstv %s4201
    %v4203 = vmul.f32 %v4202, %v3195
    %v4204 = vmul.f32 %v4202, %v3196
    %4207 = vrot.lane.b32.xlu0 %v4203, 126
    %v4208 = vpop.permute.xlu0 %4207
    %4209 = vrot.lane.b32.xlu0 %v4204, 126
    %v4210 = vpop.permute.xlu0 %4209
    %v4213 = vadd.f32 %v4143, %v4208
    %v4214 = vadd.f32 %v4144, %v4210
    %s4215 = sld [smem:[#allocation4 + $0x5]]
    %v4216 = vstv %s4215
    %v4217 = vmul.f32 %v4216, %v3197
    %v4218 = vmul.f32 %v4216, %v3198
    %4221 = vrot.lane.b32.xlu0 %v4217, 126
    %v4222 = vpop.permute.xlu0 %4221
    %4223 = vrot.lane.b32.xlu0 %v4218, 126
    %v4224 = vpop.permute.xlu0 %4223
    %v4227 = vadd.f32 %v4157, %v4222
    %v4228 = vadd.f32 %v4158, %v4224
    %s4229 = sld [smem:[#allocation4 + $0x19]]
    %v4230 = vstv %s4229
    %v4231 = vmul.f32 %v4230, %v3197
    %v4232 = vmul.f32 %v4230, %v3198
    %4235 = vrot.lane.b32.xlu0 %v4231, 126
    %v4236 = vpop.permute.xlu0 %4235
    %4237 = vrot.lane.b32.xlu0 %v4232, 126
    %v4238 = vpop.permute.xlu0 %4237
    %v4241 = vadd.f32 %v4171, %v4236
    %v4242 = vadd.f32 %v4172, %v4238
    %s4243 = sld [smem:[#allocation4 + $0x2d]]
    %v4244 = vstv %s4243
    %v4245 = vmul.f32 %v4244, %v3197
    %v4246 = vmul.f32 %v4244, %v3198
    %4249 = vrot.lane.b32.xlu0 %v4245, 126
    %v4250 = vpop.permute.xlu0 %4249
    %4251 = vrot.lane.b32.xlu0 %v4246, 126
    %v4252 = vpop.permute.xlu0 %4251
    %v4255 = vadd.f32 %v4185, %v4250
    %v4256 = vadd.f32 %v4186, %v4252
    %s4257 = sld [smem:[#allocation4 + $0x41]]
    %v4258 = vstv %s4257
    %v4259 = vmul.f32 %v4258, %v3197
    %v4260 = vmul.f32 %v4258, %v3198
    %4263 = vrot.lane.b32.xlu0 %v4259, 126
    %v4264 = vpop.permute.xlu0 %4263
    %4265 = vrot.lane.b32.xlu0 %v4260, 126
    %v4266 = vpop.permute.xlu0 %4265
    %v4269 = vadd.f32 %v4199, %v4264
    %v4270 = vadd.f32 %v4200, %v4266
    %s4271 = sld [smem:[#allocation4 + $0x55]]
    %v4272 = vstv %s4271
    %v4273 = vmul.f32 %v4272, %v3197
    %v4274 = vmul.f32 %v4272, %v3198
    %4277 = vrot.lane.b32.xlu0 %v4273, 126
    %v4278 = vpop.permute.xlu0 %4277
    %4279 = vrot.lane.b32.xlu0 %v4274, 126
    %v4280 = vpop.permute.xlu0 %4279
    %v4283 = vadd.f32 %v4213, %v4278
    %v4284 = vadd.f32 %v4214, %v4280
    %s4285 = sld [smem:[#allocation4 + $0x9]]
    %v4286 = vstv %s4285
    %v4287 = vmul.f32 %v4286, %v3199
    %v4288 = vmul.f32 %v4286, %v3200
    %4291 = vrot.lane.b32.xlu0 %v4287, 126
    %v4292 = vpop.permute.xlu0 %4291
    %4293 = vrot.lane.b32.xlu0 %v4288, 126
    %v4294 = vpop.permute.xlu0 %4293
    %v4297 = vadd.f32 %v4227, %v4292
    %v4298 = vadd.f32 %v4228, %v4294
    %s4299 = sld [smem:[#allocation4 + $0x1d]]
    %v4300 = vstv %s4299
    %v4301 = vmul.f32 %v4300, %v3199
    %v4302 = vmul.f32 %v4300, %v3200
    %4305 = vrot.lane.b32.xlu0 %v4301, 126
    %v4306 = vpop.permute.xlu0 %4305
    %4307 = vrot.lane.b32.xlu0 %v4302, 126
    %v4308 = vpop.permute.xlu0 %4307
    %v4311 = vadd.f32 %v4241, %v4306
    %v4312 = vadd.f32 %v4242, %v4308
    %s4313 = sld [smem:[#allocation4 + $0x31]]
    %v4314 = vstv %s4313
    %v4315 = vmul.f32 %v4314, %v3199
    %v4316 = vmul.f32 %v4314, %v3200
    %4319 = vrot.lane.b32.xlu0 %v4315, 126
    %v4320 = vpop.permute.xlu0 %4319
    %4321 = vrot.lane.b32.xlu0 %v4316, 126
    %v4322 = vpop.permute.xlu0 %4321
    %v4325 = vadd.f32 %v4255, %v4320
    %v4326 = vadd.f32 %v4256, %v4322
    %s4327 = sld [smem:[#allocation4 + $0x45]]
    %v4328 = vstv %s4327
    %v4329 = vmul.f32 %v4328, %v3199
    %v4330 = vmul.f32 %v4328, %v3200
    %4333 = vrot.lane.b32.xlu0 %v4329, 126
    %v4334 = vpop.permute.xlu0 %4333
    %4335 = vrot.lane.b32.xlu0 %v4330, 126
    %v4336 = vpop.permute.xlu0 %4335
    %v4339 = vadd.f32 %v4269, %v4334
    %v4340 = vadd.f32 %v4270, %v4336
    %s4341 = sld [smem:[#allocation4 + $0x59]]
    %v4342 = vstv %s4341
    %v4343 = vmul.f32 %v4342, %v3199
    %v4344 = vmul.f32 %v4342, %v3200
    %4347 = vrot.lane.b32.xlu0 %v4343, 126
    %v4348 = vpop.permute.xlu0 %4347
    %4349 = vrot.lane.b32.xlu0 %v4344, 126
    %v4350 = vpop.permute.xlu0 %4349
    %v4353 = vadd.f32 %v4283, %v4348
    %v4354 = vadd.f32 %v4284, %v4350
    %s4355 = sld [smem:[#allocation4 + $0xd]]
    %v4356 = vstv %s4355
    %v4357 = vmul.f32 %v4356, %v3201
    %v4358 = vmul.f32 %v4356, %v3202
    %4361 = vrot.lane.b32.xlu0 %v4357, 126
    %v4362 = vpop.permute.xlu0 %4361
    %4363 = vrot.lane.b32.xlu0 %v4358, 126
    %v4364 = vpop.permute.xlu0 %4363
    %v4367 = vadd.f32 %v4297, %v4362
    %v4368 = vadd.f32 %v4298, %v4364
    %s4369 = sld [smem:[#allocation4 + $0x21]]
    %v4370 = vstv %s4369
    %v4371 = vmul.f32 %v4370, %v3201
    %v4372 = vmul.f32 %v4370, %v3202
    %4375 = vrot.lane.b32.xlu0 %v4371, 126
    %v4376 = vpop.permute.xlu0 %4375
    %4377 = vrot.lane.b32.xlu0 %v4372, 126
    %v4378 = vpop.permute.xlu0 %4377
    %v4381 = vadd.f32 %v4311, %v4376
    %v4382 = vadd.f32 %v4312, %v4378
    %s4383 = sld [smem:[#allocation4 + $0x35]]
    %v4384 = vstv %s4383
    %v4385 = vmul.f32 %v4384, %v3201
    %v4386 = vmul.f32 %v4384, %v3202
    %4389 = vrot.lane.b32.xlu0 %v4385, 126
    %v4390 = vpop.permute.xlu0 %4389
    %4391 = vrot.lane.b32.xlu0 %v4386, 126
    %v4392 = vpop.permute.xlu0 %4391
    %v4395 = vadd.f32 %v4325, %v4390
    %v4396 = vadd.f32 %v4326, %v4392
    %s4397 = sld [smem:[#allocation4 + $0x49]]
    %v4398 = vstv %s4397
    %v4399 = vmul.f32 %v4398, %v3201
    %v4400 = vmul.f32 %v4398, %v3202
    %4403 = vrot.lane.b32.xlu0 %v4399, 126
    %v4404 = vpop.permute.xlu0 %4403
    %4405 = vrot.lane.b32.xlu0 %v4400, 126
    %v4406 = vpop.permute.xlu0 %4405
    %v4409 = vadd.f32 %v4339, %v4404
    %v4410 = vadd.f32 %v4340, %v4406
    %s4411 = sld [smem:[#allocation4 + $0x5d]]
    %v4412 = vstv %s4411
    %v4413 = vmul.f32 %v4412, %v3201
    %v4414 = vmul.f32 %v4412, %v3202
    %4417 = vrot.lane.b32.xlu0 %v4413, 126
    %v4418 = vpop.permute.xlu0 %4417
    %4419 = vrot.lane.b32.xlu0 %v4414, 126
    %v4420 = vpop.permute.xlu0 %4419
    %v4423 = vadd.f32 %v4353, %v4418
    %v4424 = vadd.f32 %v4354, %v4420
    %s4425 = sld [smem:[#allocation4 + $0x11]]
    %v4426 = vstv %s4425
    %v4427 = vmul.f32 %v4426, %v3203
    %v4428 = vmul.f32 %v4426, %v3204
    %4431 = vrot.lane.b32.xlu0 %v4427, 126
    %v4432 = vpop.permute.xlu0 %4431
    %4433 = vrot.lane.b32.xlu0 %v4428, 126
    %v4434 = vpop.permute.xlu0 %4433
    %v4437 = vadd.f32 %v4367, %v4432
    %v4438 = vadd.f32 %v4368, %v4434
    %s4439 = sld [smem:[#allocation4 + $0x25]]
    %v4440 = vstv %s4439
    %v4441 = vmul.f32 %v4440, %v3203
    %v4442 = vmul.f32 %v4440, %v3204
    %4445 = vrot.lane.b32.xlu0 %v4441, 126
    %v4446 = vpop.permute.xlu0 %4445
    %4447 = vrot.lane.b32.xlu0 %v4442, 126
    %v4448 = vpop.permute.xlu0 %4447
    %v4451 = vadd.f32 %v4381, %v4446
    %v4452 = vadd.f32 %v4382, %v4448
    %s4453 = sld [smem:[#allocation4 + $0x39]]
    %v4454 = vstv %s4453
    %v4455 = vmul.f32 %v4454, %v3203
    %v4456 = vmul.f32 %v4454, %v3204
    %4459 = vrot.lane.b32.xlu0 %v4455, 126
    %v4460 = vpop.permute.xlu0 %4459
    %4461 = vrot.lane.b32.xlu0 %v4456, 126
    %v4462 = vpop.permute.xlu0 %4461
    %v4465 = vadd.f32 %v4395, %v4460
    %v4466 = vadd.f32 %v4396, %v4462
    %s4467 = sld [smem:[#allocation4 + $0x4d]]
    %v4468 = vstv %s4467
    %v4469 = vmul.f32 %v4468, %v3203
    %v4470 = vmul.f32 %v4468, %v3204
    %4473 = vrot.lane.b32.xlu0 %v4469, 126
    %v4474 = vpop.permute.xlu0 %4473
    %4475 = vrot.lane.b32.xlu0 %v4470, 126
    %v4476 = vpop.permute.xlu0 %4475
    %v4479 = vadd.f32 %v4409, %v4474
    %v4480 = vadd.f32 %v4410, %v4476
    %s4481 = sld [smem:[#allocation4 + $0x61]]
    %v4482 = vstv %s4481
    %v4483 = vmul.f32 %v4482, %v3203
    %v4484 = vmul.f32 %v4482, %v3204
    %4487 = vrot.lane.b32.xlu0 %v4483, 126
    %v4488 = vpop.permute.xlu0 %4487
    %4489 = vrot.lane.b32.xlu0 %v4484, 126
    %v4490 = vpop.permute.xlu0 %4489
    %v4493 = vadd.f32 %v4423, %v4488
    %v4494 = vadd.f32 %v4424, %v4490
    %s4495 = sld [smem:[#allocation4 + $0x2]]
    %v4496 = vstv %s4495
    %v4497 = vmul.f32 %v4496, %v3505
    %v4498 = vmul.f32 %v4496, %v3506
    %v4499 = vadd.f32 %v4437, %v4497
    %v4500 = vadd.f32 %v4438, %v4498
    %s4501 = sld [smem:[#allocation4 + $0x16]]
    %v4502 = vstv %s4501
    %v4503 = vmul.f32 %v4502, %v3505
    %v4504 = vmul.f32 %v4502, %v3506
    %v4505 = vadd.f32 %v4451, %v4503
    %v4506 = vadd.f32 %v4452, %v4504
    %s4507 = sld [smem:[#allocation4 + $0x2a]]
    %v4508 = vstv %s4507
    %v4509 = vmul.f32 %v4508, %v3505
    %v4510 = vmul.f32 %v4508, %v3506
    %v4511 = vadd.f32 %v4465, %v4509
    %v4512 = vadd.f32 %v4466, %v4510
    %s4513 = sld [smem:[#allocation4 + $0x3e]]
    %v4514 = vstv %s4513
    %v4515 = vmul.f32 %v4514, %v3505
    %v4516 = vmul.f32 %v4514, %v3506
    %v4517 = vadd.f32 %v4479, %v4515
    %v4518 = vadd.f32 %v4480, %v4516
    %s4519 = sld [smem:[#allocation4 + $0x52]]
    %v4520 = vstv %s4519
    %v4521 = vmul.f32 %v4520, %v3505
    %v4522 = vmul.f32 %v4520, %v3506
    %v4523 = vadd.f32 %v4493, %v4521
    %v4524 = vadd.f32 %v4494, %v4522
    %s4525 = sld [smem:[#allocation4 + $0x6]]
    %v4526 = vstv %s4525
    %v4527 = vmul.f32 %v4526, %v3507
    %v4528 = vmul.f32 %v4526, %v3508
    %v4529 = vadd.f32 %v4499, %v4527
    %v4530 = vadd.f32 %v4500, %v4528
    %s4531 = sld [smem:[#allocation4 + $0x1a]]
    %v4532 = vstv %s4531
    %v4533 = vmul.f32 %v4532, %v3507
    %v4534 = vmul.f32 %v4532, %v3508
    %v4535 = vadd.f32 %v4505, %v4533
    %v4536 = vadd.f32 %v4506, %v4534
    %s4537 = sld [smem:[#allocation4 + $0x2e]]
    %v4538 = vstv %s4537
    %v4539 = vmul.f32 %v4538, %v3507
    %v4540 = vmul.f32 %v4538, %v3508
    %v4541 = vadd.f32 %v4511, %v4539
    %v4542 = vadd.f32 %v4512, %v4540
    %s4543 = sld [smem:[#allocation4 + $0x42]]
    %v4544 = vstv %s4543
    %v4545 = vmul.f32 %v4544, %v3507
    %v4546 = vmul.f32 %v4544, %v3508
    %v4547 = vadd.f32 %v4517, %v4545
    %v4548 = vadd.f32 %v4518, %v4546
    %s4549 = sld [smem:[#allocation4 + $0x56]]
    %v4550 = vstv %s4549
    %v4551 = vmul.f32 %v4550, %v3507
    %v4552 = vmul.f32 %v4550, %v3508
    %v4553 = vadd.f32 %v4523, %v4551
    %v4554 = vadd.f32 %v4524, %v4552
    %s4555 = sld [smem:[#allocation4 + $0xa]]
    %v4556 = vstv %s4555
    %v4557 = vmul.f32 %v4556, %v3509
    %v4558 = vmul.f32 %v4556, %v3510
    %v4559 = vadd.f32 %v4529, %v4557
    %v4560 = vadd.f32 %v4530, %v4558
    %s4561 = sld [smem:[#allocation4 + $0x1e]]
    %v4562 = vstv %s4561
    %v4563 = vmul.f32 %v4562, %v3509
    %v4564 = vmul.f32 %v4562, %v3510
    %v4565 = vadd.f32 %v4535, %v4563
    %v4566 = vadd.f32 %v4536, %v4564
    %s4567 = sld [smem:[#allocation4 + $0x32]]
    %v4568 = vstv %s4567
    %v4569 = vmul.f32 %v4568, %v3509
    %v4570 = vmul.f32 %v4568, %v3510
    %v4571 = vadd.f32 %v4541, %v4569
    %v4572 = vadd.f32 %v4542, %v4570
    %s4573 = sld [smem:[#allocation4 + $0x46]]
    %v4574 = vstv %s4573
    %v4575 = vmul.f32 %v4574, %v3509
    %v4576 = vmul.f32 %v4574, %v3510
    %v4577 = vadd.f32 %v4547, %v4575
    %v4578 = vadd.f32 %v4548, %v4576
    %s4579 = sld [smem:[#allocation4 + $0x5a]]
    %v4580 = vstv %s4579
    %v4581 = vmul.f32 %v4580, %v3509
    %v4582 = vmul.f32 %v4580, %v3510
    %v4583 = vadd.f32 %v4553, %v4581
    %v4584 = vadd.f32 %v4554, %v4582
    %s4585 = sld [smem:[#allocation4 + $0xe]]
    %v4586 = vstv %s4585
    %v4587 = vmul.f32 %v4586, %v3511
    %v4588 = vmul.f32 %v4586, %v3512
    %v4589 = vadd.f32 %v4559, %v4587
    %v4590 = vadd.f32 %v4560, %v4588
    %s4591 = sld [smem:[#allocation4 + $0x22]]
    %v4592 = vstv %s4591
    %v4593 = vmul.f32 %v4592, %v3511
    %v4594 = vmul.f32 %v4592, %v3512
    %v4595 = vadd.f32 %v4565, %v4593
    %v4596 = vadd.f32 %v4566, %v4594
    %s4597 = sld [smem:[#allocation4 + $0x36]]
    %v4598 = vstv %s4597
    %v4599 = vmul.f32 %v4598, %v3511
    %v4600 = vmul.f32 %v4598, %v3512
    %v4601 = vadd.f32 %v4571, %v4599
    %v4602 = vadd.f32 %v4572, %v4600
    %s4603 = sld [smem:[#allocation4 + $0x4a]]
    %v4604 = vstv %s4603
    %v4605 = vmul.f32 %v4604, %v3511
    %v4606 = vmul.f32 %v4604, %v3512
    %v4607 = vadd.f32 %v4577, %v4605
    %v4608 = vadd.f32 %v4578, %v4606
    %s4609 = sld [smem:[#allocation4 + $0x5e]]
    %v4610 = vstv %s4609
    %v4611 = vmul.f32 %v4610, %v3511
    %v4612 = vmul.f32 %v4610, %v3512
    %v4613 = vadd.f32 %v4583, %v4611
    %v4614 = vadd.f32 %v4584, %v4612
    %s4615 = sld [smem:[#allocation4 + $0x12]]
    %v4616 = vstv %s4615
    %v4617 = vmul.f32 %v4616, %v3513
    %v4618 = vmul.f32 %v4616, %v3514
    %v4619 = vadd.f32 %v4589, %v4617
    %v4620 = vadd.f32 %v4590, %v4618
    %s4621 = sld [smem:[#allocation4 + $0x26]]
    %v4622 = vstv %s4621
    %v4623 = vmul.f32 %v4622, %v3513
    %v4624 = vmul.f32 %v4622, %v3514
    %v4625 = vadd.f32 %v4595, %v4623
    %v4626 = vadd.f32 %v4596, %v4624
    %s4627 = sld [smem:[#allocation4 + $0x3a]]
    %v4628 = vstv %s4627
    %v4629 = vmul.f32 %v4628, %v3513
    %v4630 = vmul.f32 %v4628, %v3514
    %v4631 = vadd.f32 %v4601, %v4629
    %v4632 = vadd.f32 %v4602, %v4630
    %s4633 = sld [smem:[#allocation4 + $0x4e]]
    %v4634 = vstv %s4633
    %v4635 = vmul.f32 %v4634, %v3513
    %v4636 = vmul.f32 %v4634, %v3514
    %v4637 = vadd.f32 %v4607, %v4635
    %v4638 = vadd.f32 %v4608, %v4636
    %s4639 = sld [smem:[#allocation4 + $0x62]]
    %v4640 = vstv %s4639
    %v4641 = vmul.f32 %v4640, %v3513
    %v4642 = vmul.f32 %v4640, %v3514
    %v4643 = vadd.f32 %v4613, %v4641
    %v4644 = vadd.f32 %v4614, %v4642
    %s4645 = sld [smem:[#allocation4 + $0x3]]
    %v4646 = vstv %s4645
    %v4647 = vmul.f32 %v4646, %v3505
    %v4648 = vmul.f32 %v4646, %v3506
    %4651 = vrot.lane.b32.xlu0 %v4647, 126
    %v4652 = vpop.permute.xlu0 %4651
    %4653 = vrot.lane.b32.xlu0 %v4648, 126
    %v4654 = vpop.permute.xlu0 %4653
    %v4657 = vadd.f32 %v4619, %v4652
    %v4658 = vadd.f32 %v4620, %v4654
    %s4659 = sld [smem:[#allocation4 + $0x17]]
    %v4660 = vstv %s4659
    %v4661 = vmul.f32 %v4660, %v3505
    %v4662 = vmul.f32 %v4660, %v3506
    %4665 = vrot.lane.b32.xlu0 %v4661, 126
    %v4666 = vpop.permute.xlu0 %4665
    %4667 = vrot.lane.b32.xlu0 %v4662, 126
    %v4668 = vpop.permute.xlu0 %4667
    %v4671 = vadd.f32 %v4625, %v4666
    %v4672 = vadd.f32 %v4626, %v4668
    %s4673 = sld [smem:[#allocation4 + $0x2b]]
    %v4674 = vstv %s4673
    %v4675 = vmul.f32 %v4674, %v3505
    %v4676 = vmul.f32 %v4674, %v3506
    %4679 = vrot.lane.b32.xlu0 %v4675, 126
    %v4680 = vpop.permute.xlu0 %4679
    %4681 = vrot.lane.b32.xlu0 %v4676, 126
    %v4682 = vpop.permute.xlu0 %4681
    %v4685 = vadd.f32 %v4631, %v4680
    %v4686 = vadd.f32 %v4632, %v4682
    %s4687 = sld [smem:[#allocation4 + $0x3f]]
    %v4688 = vstv %s4687
    %v4689 = vmul.f32 %v4688, %v3505
    %v4690 = vmul.f32 %v4688, %v3506
    %4693 = vrot.lane.b32.xlu0 %v4689, 126
    %v4694 = vpop.permute.xlu0 %4693
    %4695 = vrot.lane.b32.xlu0 %v4690, 126
    %v4696 = vpop.permute.xlu0 %4695
    %v4699 = vadd.f32 %v4637, %v4694
    %v4700 = vadd.f32 %v4638, %v4696
    %s4701 = sld [smem:[#allocation4 + $0x53]]
    %v4702 = vstv %s4701
    %v4703 = vmul.f32 %v4702, %v3505
    %v4704 = vmul.f32 %v4702, %v3506
    %4707 = vrot.lane.b32.xlu0 %v4703, 126
    %v4708 = vpop.permute.xlu0 %4707
    %4709 = vrot.lane.b32.xlu0 %v4704, 126
    %v4710 = vpop.permute.xlu0 %4709
    %v4713 = vadd.f32 %v4643, %v4708
    %v4714 = vadd.f32 %v4644, %v4710
    %s4715 = sld [smem:[#allocation4 + $0x7]]
    %v4716 = vstv %s4715
    %v4717 = vmul.f32 %v4716, %v3507
    %v4718 = vmul.f32 %v4716, %v3508
    %4721 = vrot.lane.b32.xlu0 %v4717, 126
    %v4722 = vpop.permute.xlu0 %4721
    %4723 = vrot.lane.b32.xlu0 %v4718, 126
    %v4724 = vpop.permute.xlu0 %4723
    %v4727 = vadd.f32 %v4657, %v4722
    %v4728 = vadd.f32 %v4658, %v4724
    %s4729 = sld [smem:[#allocation4 + $0x1b]]
    %v4730 = vstv %s4729
    %v4731 = vmul.f32 %v4730, %v3507
    %v4732 = vmul.f32 %v4730, %v3508
    %4735 = vrot.lane.b32.xlu0 %v4731, 126
    %v4736 = vpop.permute.xlu0 %4735
    %4737 = vrot.lane.b32.xlu0 %v4732, 126
    %v4738 = vpop.permute.xlu0 %4737
    %v4741 = vadd.f32 %v4671, %v4736
    %v4742 = vadd.f32 %v4672, %v4738
    %s4743 = sld [smem:[#allocation4 + $0x2f]]
    %v4744 = vstv %s4743
    %v4745 = vmul.f32 %v4744, %v3507
    %v4746 = vmul.f32 %v4744, %v3508
    %4749 = vrot.lane.b32.xlu0 %v4745, 126
    %v4750 = vpop.permute.xlu0 %4749
    %4751 = vrot.lane.b32.xlu0 %v4746, 126
    %v4752 = vpop.permute.xlu0 %4751
    %v4755 = vadd.f32 %v4685, %v4750
    %v4756 = vadd.f32 %v4686, %v4752
    %s4757 = sld [smem:[#allocation4 + $0x43]]
    %v4758 = vstv %s4757
    %v4759 = vmul.f32 %v4758, %v3507
    %v4760 = vmul.f32 %v4758, %v3508
    %4763 = vrot.lane.b32.xlu0 %v4759, 126
    %v4764 = vpop.permute.xlu0 %4763
    %4765 = vrot.lane.b32.xlu0 %v4760, 126
    %v4766 = vpop.permute.xlu0 %4765
    %v4769 = vadd.f32 %v4699, %v4764
    %v4770 = vadd.f32 %v4700, %v4766
    %s4771 = sld [smem:[#allocation4 + $0x57]]
    %v4772 = vstv %s4771
    %v4773 = vmul.f32 %v4772, %v3507
    %v4774 = vmul.f32 %v4772, %v3508
    %4777 = vrot.lane.b32.xlu0 %v4773, 126
    %v4778 = vpop.permute.xlu0 %4777
    %4779 = vrot.lane.b32.xlu0 %v4774, 126
    %v4780 = vpop.permute.xlu0 %4779
    %v4783 = vadd.f32 %v4713, %v4778
    %v4784 = vadd.f32 %v4714, %v4780
    %s4785 = sld [smem:[#allocation4 + $0xb]]
    %v4786 = vstv %s4785
    %v4787 = vmul.f32 %v4786, %v3509
    %v4788 = vmul.f32 %v4786, %v3510
    %4791 = vrot.lane.b32.xlu0 %v4787, 126
    %v4792 = vpop.permute.xlu0 %4791
    %4793 = vrot.lane.b32.xlu0 %v4788, 126
    %v4794 = vpop.permute.xlu0 %4793
    %v4797 = vadd.f32 %v4727, %v4792
    %v4798 = vadd.f32 %v4728, %v4794
    %s4799 = sld [smem:[#allocation4 + $0x1f]]
    %v4800 = vstv %s4799
    %v4801 = vmul.f32 %v4800, %v3509
    %v4802 = vmul.f32 %v4800, %v3510
    %4805 = vrot.lane.b32.xlu0 %v4801, 126
    %v4806 = vpop.permute.xlu0 %4805
    %4807 = vrot.lane.b32.xlu0 %v4802, 126
    %v4808 = vpop.permute.xlu0 %4807
    %v4811 = vadd.f32 %v4741, %v4806
    %v4812 = vadd.f32 %v4742, %v4808
    %s4813 = sld [smem:[#allocation4 + $0x33]]
    %v4814 = vstv %s4813
    %v4815 = vmul.f32 %v4814, %v3509
    %v4816 = vmul.f32 %v4814, %v3510
    %4819 = vrot.lane.b32.xlu0 %v4815, 126
    %v4820 = vpop.permute.xlu0 %4819
    %4821 = vrot.lane.b32.xlu0 %v4816, 126
    %v4822 = vpop.permute.xlu0 %4821
    %v4825 = vadd.f32 %v4755, %v4820
    %v4826 = vadd.f32 %v4756, %v4822
    %s4827 = sld [smem:[#allocation4 + $0x47]]
    %v4828 = vstv %s4827
    %v4829 = vmul.f32 %v4828, %v3509
    %v4830 = vmul.f32 %v4828, %v3510
    %4833 = vrot.lane.b32.xlu0 %v4829, 126
    %v4834 = vpop.permute.xlu0 %4833
    %4835 = vrot.lane.b32.xlu0 %v4830, 126
    %v4836 = vpop.permute.xlu0 %4835
    %v4839 = vadd.f32 %v4769, %v4834
    %v4840 = vadd.f32 %v4770, %v4836
    %s4841 = sld [smem:[#allocation4 + $0x5b]]
    %v4842 = vstv %s4841
    %v4843 = vmul.f32 %v4842, %v3509
    %v4844 = vmul.f32 %v4842, %v3510
    %4847 = vrot.lane.b32.xlu0 %v4843, 126
    %v4848 = vpop.permute.xlu0 %4847
    %4849 = vrot.lane.b32.xlu0 %v4844, 126
    %v4850 = vpop.permute.xlu0 %4849
    %v4853 = vadd.f32 %v4783, %v4848
    %v4854 = vadd.f32 %v4784, %v4850
    %s4855 = sld [smem:[#allocation4 + $0xf]]
    %v4856 = vstv %s4855
    %v4857 = vmul.f32 %v4856, %v3511
    %v4858 = vmul.f32 %v4856, %v3512
    %4861 = vrot.lane.b32.xlu0 %v4857, 126
    %v4862 = vpop.permute.xlu0 %4861
    %4863 = vrot.lane.b32.xlu0 %v4858, 126
    %v4864 = vpop.permute.xlu0 %4863
    %v4867 = vadd.f32 %v4797, %v4862
    %v4868 = vadd.f32 %v4798, %v4864
    %s4869 = sld [smem:[#allocation4 + $0x23]]
    %v4870 = vstv %s4869
    %v4871 = vmul.f32 %v4870, %v3511
    %v4872 = vmul.f32 %v4870, %v3512
    %4875 = vrot.lane.b32.xlu0 %v4871, 126
    %v4876 = vpop.permute.xlu0 %4875
    %4877 = vrot.lane.b32.xlu0 %v4872, 126
    %v4878 = vpop.permute.xlu0 %4877
    %v4881 = vadd.f32 %v4811, %v4876
    %v4882 = vadd.f32 %v4812, %v4878
    %s4883 = sld [smem:[#allocation4 + $0x37]]
    %v4884 = vstv %s4883
    %v4885 = vmul.f32 %v4884, %v3511
    %v4886 = vmul.f32 %v4884, %v3512
    %4889 = vrot.lane.b32.xlu0 %v4885, 126
    %v4890 = vpop.permute.xlu0 %4889
    %4891 = vrot.lane.b32.xlu0 %v4886, 126
    %v4892 = vpop.permute.xlu0 %4891
    %v4895 = vadd.f32 %v4825, %v4890
    %v4896 = vadd.f32 %v4826, %v4892
    %s4897 = sld [smem:[#allocation4 + $0x4b]]
    %v4898 = vstv %s4897
    %v4899 = vmul.f32 %v4898, %v3511
    %v4900 = vmul.f32 %v4898, %v3512
    %4903 = vrot.lane.b32.xlu0 %v4899, 126
    %v4904 = vpop.permute.xlu0 %4903
    %4905 = vrot.lane.b32.xlu0 %v4900, 126
    %v4906 = vpop.permute.xlu0 %4905
    %v4909 = vadd.f32 %v4839, %v4904
    %v4910 = vadd.f32 %v4840, %v4906
    %s4911 = sld [smem:[#allocation4 + $0x5f]]
    %v4912 = vstv %s4911
    %v4913 = vmul.f32 %v4912, %v3511
    %v4914 = vmul.f32 %v4912, %v3512
    %4917 = vrot.lane.b32.xlu0 %v4913, 126
    %v4918 = vpop.permute.xlu0 %4917
    %4919 = vrot.lane.b32.xlu0 %v4914, 126
    %v4920 = vpop.permute.xlu0 %4919
    %v4923 = vadd.f32 %v4853, %v4918
    %v4924 = vadd.f32 %v4854, %v4920
    %s4925 = sld [smem:[#allocation4 + $0x13]]
    %v4926 = vstv %s4925
    %v4927 = vmul.f32 %v4926, %v3513
    %v4928 = vmul.f32 %v4926, %v3514
    %4931 = vrot.lane.b32.xlu0 %v4927, 126
    %v4932 = vpop.permute.xlu0 %4931
    %4933 = vrot.lane.b32.xlu0 %v4928, 126
    %v4934 = vpop.permute.xlu0 %4933
    %v4937 = vadd.f32 %v4867, %v4932
    %v4938 = vadd.f32 %v4868, %v4934
    %s4939 = sld [smem:[#allocation4 + $0x27]]
    %v4940 = vstv %s4939
    %v4941 = vmul.f32 %v4940, %v3513
    %v4942 = vmul.f32 %v4940, %v3514
    %4945 = vrot.lane.b32.xlu0 %v4941, 126
    %v4946 = vpop.permute.xlu0 %4945
    %4947 = vrot.lane.b32.xlu0 %v4942, 126
    %v4948 = vpop.permute.xlu0 %4947
    %v4951 = vadd.f32 %v4881, %v4946
    %v4952 = vadd.f32 %v4882, %v4948
    %s4953 = sld [smem:[#allocation4 + $0x3b]]
    %v4954 = vstv %s4953
    %v4955 = vmul.f32 %v4954, %v3513
    %v4956 = vmul.f32 %v4954, %v3514
    %4959 = vrot.lane.b32.xlu0 %v4955, 126
    %v4960 = vpop.permute.xlu0 %4959
    %4961 = vrot.lane.b32.xlu0 %v4956, 126
    %v4962 = vpop.permute.xlu0 %4961
    %v4965 = vadd.f32 %v4895, %v4960
    %v4966 = vadd.f32 %v4896, %v4962
    %s4967 = sld [smem:[#allocation4 + $0x4f]]
    %v4968 = vstv %s4967
    %v4969 = vmul.f32 %v4968, %v3513
    %v4970 = vmul.f32 %v4968, %v3514
    %4973 = vrot.lane.b32.xlu0 %v4969, 126
    %v4974 = vpop.permute.xlu0 %4973
    %4975 = vrot.lane.b32.xlu0 %v4970, 126
    %v4976 = vpop.permute.xlu0 %4975
    %v4979 = vadd.f32 %v4909, %v4974
    %v4980 = vadd.f32 %v4910, %v4976
    %s4981 = sld [smem:[#allocation4 + $0x63]]
    %v4982 = vstv %s4981
    %v4983 = vmul.f32 %v4982, %v3513
    %v4984 = vmul.f32 %v4982, %v3514
    %4987 = vrot.lane.b32.xlu0 %v4983, 126
    %v4988 = vpop.permute.xlu0 %4987
    %4989 = vrot.lane.b32.xlu0 %v4984, 126
    %v4990 = vpop.permute.xlu0 %4989
    %v4993 = vadd.f32 %v4923, %v4988
    %v4994 = vadd.f32 %v4924, %v4990
    %s4995 = sld [smem:[#allocation6]]
    %v4996 = vstv %s4995
    %v4997 = vadd.f32 %v4937, %v4996
    %v4998 = vadd.f32 %v4938, %v4996
    %s4999 = sld [smem:[#allocation6 + $0x1]]
    %v5000 = vstv %s4999
    %v5001 = vadd.f32 %v4951, %v5000
    %v5002 = vadd.f32 %v4952, %v5000
    %s5003 = sld [smem:[#allocation6 + $0x2]]
    %v5004 = vstv %s5003
    %v5005 = vadd.f32 %v4965, %v5004
    %v5006 = vadd.f32 %v4966, %v5004
    %s5007 = sld [smem:[#allocation6 + $0x3]]
    %v5008 = vstv %s5007
    %v5009 = vadd.f32 %v4979, %v5008
    %v5010 = vadd.f32 %v4980, %v5008
    %s5011 = sld [smem:[#allocation6 + $0x4]]
    %v5012 = vstv %s5011
    %v5013 = vadd.f32 %v4993, %v5012
    %v5014 = vadd.f32 %v4994, %v5012
    %v5015 = vtanh.pop %v4997
    %v5016 = vtanh.pop %v4998
    %v5017 = vtanh.pop %v5001
    %v5018 = vtanh.pop %v5002
    %v5019 = vtanh.pop %v5005
    %v5020 = vtanh.pop %v5006
    %v5021 = vtanh.pop %v5009
    %v5022 = vtanh.pop %v5010
    %v5023 = vtanh.pop %v5013
    %v5024 = vtanh.pop %v5014
    %5035 = vrot.lane.b32.xlu0 %v5015, 2
    %v5036 = vpop.permute.xlu0 %5035
    %5037 = vrot.lane.b32.xlu0 %v5016, 2
    %v5038 = vpop.permute.xlu0 %5037
    %5039 = vrot.lane.b32.xlu0 %v5017, 2
    %v5040 = vpop.permute.xlu0 %5039
    %5041 = vrot.lane.b32.xlu0 %v5018, 2
    %v5042 = vpop.permute.xlu0 %5041
    %5043 = vrot.lane.b32.xlu0 %v5019, 2
    %v5044 = vpop.permute.xlu0 %5043
    %5045 = vrot.lane.b32.xlu0 %v5020, 2
    %v5046 = vpop.permute.xlu0 %5045
    %5047 = vrot.lane.b32.xlu0 %v5021, 2
    %v5048 = vpop.permute.xlu0 %5047
    %5049 = vrot.lane.b32.xlu0 %v5022, 2
    %v5050 = vpop.permute.xlu0 %5049
    %5051 = vrot.lane.b32.xlu0 %v5023, 2
    %v5052 = vpop.permute.xlu0 %5051
    %5053 = vrot.lane.b32.xlu0 %v5024, 2
    %v5054 = vpop.permute.xlu0 %5053
    %5065 = vst.msk [vmem:[#allocation3 + $0x2] sm:$0xff] %vm2051, %v5036
    %5066 = vst.msk [vmem:[#allocation3 + $0xa] sm:$0xf] %vm2053, %v5038
    %5067 = vst.msk [vmem:[#allocation3 + $0x12] sm:$0xff] %vm2051, %v5040
    %5068 = vst.msk [vmem:[#allocation3 + $0x1a] sm:$0xf] %vm2053, %v5042
    %5069 = vst.msk [vmem:[#allocation3 + $0x22] sm:$0xff] %vm2051, %v5044
    %5070 = vst.msk [vmem:[#allocation3 + $0x2a] sm:$0xf] %vm2053, %v5046
    %5071 = vst.msk [vmem:[#allocation3 + $0x32] sm:$0xff] %vm2051, %v5048
    %5072 = vst.msk [vmem:[#allocation3 + $0x3a] sm:$0xf] %vm2053, %v5050
    %5073 = vst.msk [vmem:[#allocation3 + $0x42] sm:$0xff] %vm2051, %v5052
    %5074 = vst.msk [vmem:[#allocation3 + $0x4a] sm:$0xf] %vm2053, %v5054
    %v5075 = vld [vmem:[#allocation3] sm:$0xff]
    %v5076 = vld [vmem:[#allocation3 + $0x8] sm:$0xf]
    %v5077 = vld [vmem:[#allocation3 + $0x10] sm:$0xff]
    %v5078 = vld [vmem:[#allocation3 + $0x18] sm:$0xf]
    %v5079 = vld [vmem:[#allocation3 + $0x20] sm:$0xff]
    %v5080 = vld [vmem:[#allocation3 + $0x28] sm:$0xf]
    %v5081 = vld [vmem:[#allocation3 + $0x30] sm:$0xff]
    %v5082 = vld [vmem:[#allocation3 + $0x38] sm:$0xf]
    %v5083 = vld [vmem:[#allocation3 + $0x40] sm:$0xff]
    %v5084 = vld [vmem:[#allocation3 + $0x48] sm:$0xf]
    %s5085 = sld [smem:[#allocation8]]
    %v5086 = vstv %s5085
    %v5087 = vmul.f32 %v5086, %v5075
    %v5088 = vmul.f32 %v5086, %v5076
    %s5089 = sld [smem:[#allocation8 + $0x14]]
    %v5090 = vstv %s5089
    %v5091 = vmul.f32 %v5090, %v5075
    %v5092 = vmul.f32 %v5090, %v5076
    %s5093 = sld [smem:[#allocation8 + $0x28]]
    %v5094 = vstv %s5093
    %v5095 = vmul.f32 %v5094, %v5075
    %v5096 = vmul.f32 %v5094, %v5076
    %s5097 = sld [smem:[#allocation8 + $0x3c]]
    %v5098 = vstv %s5097
    %v5099 = vmul.f32 %v5098, %v5075
    %v5100 = vmul.f32 %v5098, %v5076
    %s5101 = sld [smem:[#allocation8 + $0x50]]
    %v5102 = vstv %s5101
    %v5103 = vmul.f32 %v5102, %v5075
    %v5104 = vmul.f32 %v5102, %v5076
    %s5105 = sld [smem:[#allocation8 + $0x4]]
    %v5106 = vstv %s5105
    %v5107 = vmul.f32 %v5106, %v5077
    %v5108 = vmul.f32 %v5106, %v5078
    %v5109 = vadd.f32 %v5087, %v5107
    %v5110 = vadd.f32 %v5088, %v5108
    %s5111 = sld [smem:[#allocation8 + $0x18]]
    %v5112 = vstv %s5111
    %v5113 = vmul.f32 %v5112, %v5077
    %v5114 = vmul.f32 %v5112, %v5078
    %v5115 = vadd.f32 %v5091, %v5113
    %v5116 = vadd.f32 %v5092, %v5114
    %s5117 = sld [smem:[#allocation8 + $0x2c]]
    %v5118 = vstv %s5117
    %v5119 = vmul.f32 %v5118, %v5077
    %v5120 = vmul.f32 %v5118, %v5078
    %v5121 = vadd.f32 %v5095, %v5119
    %v5122 = vadd.f32 %v5096, %v5120
    %s5123 = sld [smem:[#allocation8 + $0x40]]
    %v5124 = vstv %s5123
    %v5125 = vmul.f32 %v5124, %v5077
    %v5126 = vmul.f32 %v5124, %v5078
    %v5127 = vadd.f32 %v5099, %v5125
    %v5128 = vadd.f32 %v5100, %v5126
    %s5129 = sld [smem:[#allocation8 + $0x54]]
    %v5130 = vstv %s5129
    %v5131 = vmul.f32 %v5130, %v5077
    %v5132 = vmul.f32 %v5130, %v5078
    %v5133 = vadd.f32 %v5103, %v5131
    %v5134 = vadd.f32 %v5104, %v5132
    %s5135 = sld [smem:[#allocation8 + $0x8]]
    %v5136 = vstv %s5135
    %v5137 = vmul.f32 %v5136, %v5079
    %v5138 = vmul.f32 %v5136, %v5080
    %v5139 = vadd.f32 %v5109, %v5137
    %v5140 = vadd.f32 %v5110, %v5138
    %s5141 = sld [smem:[#allocation8 + $0x1c]]
    %v5142 = vstv %s5141
    %v5143 = vmul.f32 %v5142, %v5079
    %v5144 = vmul.f32 %v5142, %v5080
    %v5145 = vadd.f32 %v5115, %v5143
    %v5146 = vadd.f32 %v5116, %v5144
    %s5147 = sld [smem:[#allocation8 + $0x30]]
    %v5148 = vstv %s5147
    %v5149 = vmul.f32 %v5148, %v5079
    %v5150 = vmul.f32 %v5148, %v5080
    %v5151 = vadd.f32 %v5121, %v5149
    %v5152 = vadd.f32 %v5122, %v5150
    %s5153 = sld [smem:[#allocation8 + $0x44]]
    %v5154 = vstv %s5153
    %v5155 = vmul.f32 %v5154, %v5079
    %v5156 = vmul.f32 %v5154, %v5080
    %v5157 = vadd.f32 %v5127, %v5155
    %v5158 = vadd.f32 %v5128, %v5156
    %s5159 = sld [smem:[#allocation8 + $0x58]]
    %v5160 = vstv %s5159
    %v5161 = vmul.f32 %v5160, %v5079
    %v5162 = vmul.f32 %v5160, %v5080
    %v5163 = vadd.f32 %v5133, %v5161
    %v5164 = vadd.f32 %v5134, %v5162
    %s5165 = sld [smem:[#allocation8 + $0xc]]
    %v5166 = vstv %s5165
    %v5167 = vmul.f32 %v5166, %v5081
    %v5168 = vmul.f32 %v5166, %v5082
    %v5169 = vadd.f32 %v5139, %v5167
    %v5170 = vadd.f32 %v5140, %v5168
    %s5171 = sld [smem:[#allocation8 + $0x20]]
    %v5172 = vstv %s5171
    %v5173 = vmul.f32 %v5172, %v5081
    %v5174 = vmul.f32 %v5172, %v5082
    %v5175 = vadd.f32 %v5145, %v5173
    %v5176 = vadd.f32 %v5146, %v5174
    %s5177 = sld [smem:[#allocation8 + $0x34]]
    %v5178 = vstv %s5177
    %v5179 = vmul.f32 %v5178, %v5081
    %v5180 = vmul.f32 %v5178, %v5082
    %v5181 = vadd.f32 %v5151, %v5179
    %v5182 = vadd.f32 %v5152, %v5180
    %s5183 = sld [smem:[#allocation8 + $0x48]]
    %v5184 = vstv %s5183
    %v5185 = vmul.f32 %v5184, %v5081
    %v5186 = vmul.f32 %v5184, %v5082
    %v5187 = vadd.f32 %v5157, %v5185
    %v5188 = vadd.f32 %v5158, %v5186
    %s5189 = sld [smem:[#allocation8 + $0x5c]]
    %v5190 = vstv %s5189
    %v5191 = vmul.f32 %v5190, %v5081
    %v5192 = vmul.f32 %v5190, %v5082
    %v5193 = vadd.f32 %v5163, %v5191
    %v5194 = vadd.f32 %v5164, %v5192
    %s5195 = sld [smem:[#allocation8 + $0x10]]
    %v5196 = vstv %s5195
    %v5197 = vmul.f32 %v5196, %v5083
    %v5198 = vmul.f32 %v5196, %v5084
    %v5199 = vadd.f32 %v5169, %v5197
    %v5200 = vadd.f32 %v5170, %v5198
    %s5201 = sld [smem:[#allocation8 + $0x24]]
    %v5202 = vstv %s5201
    %v5203 = vmul.f32 %v5202, %v5083
    %v5204 = vmul.f32 %v5202, %v5084
    %v5205 = vadd.f32 %v5175, %v5203
    %v5206 = vadd.f32 %v5176, %v5204
    %s5207 = sld [smem:[#allocation8 + $0x38]]
    %v5208 = vstv %s5207
    %v5209 = vmul.f32 %v5208, %v5083
    %v5210 = vmul.f32 %v5208, %v5084
    %v5211 = vadd.f32 %v5181, %v5209
    %v5212 = vadd.f32 %v5182, %v5210
    %s5213 = sld [smem:[#allocation8 + $0x4c]]
    %v5214 = vstv %s5213
    %v5215 = vmul.f32 %v5214, %v5083
    %v5216 = vmul.f32 %v5214, %v5084
    %v5217 = vadd.f32 %v5187, %v5215
    %v5218 = vadd.f32 %v5188, %v5216
    %s5219 = sld [smem:[#allocation8 + $0x60]]
    %v5220 = vstv %s5219
    %v5221 = vmul.f32 %v5220, %v5083
    %v5222 = vmul.f32 %v5220, %v5084
    %v5223 = vadd.f32 %v5193, %v5221
    %v5224 = vadd.f32 %v5194, %v5222
    %s5225 = sld [smem:[#allocation8 + $0x1]]
    %v5226 = vstv %s5225
    %v5227 = vmul.f32 %v5226, %v5075
    %v5228 = vmul.f32 %v5226, %v5076
    %5231 = vrot.lane.b32.xlu0 %v5227, 126
    %v5232 = vpop.permute.xlu0 %5231
    %5233 = vrot.lane.b32.xlu0 %v5228, 126
    %v5234 = vpop.permute.xlu0 %5233
    %v5237 = vadd.f32 %v5199, %v5232
    %v5238 = vadd.f32 %v5200, %v5234
    %s5239 = sld [smem:[#allocation8 + $0x15]]
    %v5240 = vstv %s5239
    %v5241 = vmul.f32 %v5240, %v5075
    %v5242 = vmul.f32 %v5240, %v5076
    %5245 = vrot.lane.b32.xlu0 %v5241, 126
    %v5246 = vpop.permute.xlu0 %5245
    %5247 = vrot.lane.b32.xlu0 %v5242, 126
    %v5248 = vpop.permute.xlu0 %5247
    %v5251 = vadd.f32 %v5205, %v5246
    %v5252 = vadd.f32 %v5206, %v5248
    %s5253 = sld [smem:[#allocation8 + $0x29]]
    %v5254 = vstv %s5253
    %v5255 = vmul.f32 %v5254, %v5075
    %v5256 = vmul.f32 %v5254, %v5076
    %5259 = vrot.lane.b32.xlu0 %v5255, 126
    %v5260 = vpop.permute.xlu0 %5259
    %5261 = vrot.lane.b32.xlu0 %v5256, 126
    %v5262 = vpop.permute.xlu0 %5261
    %v5265 = vadd.f32 %v5211, %v5260
    %v5266 = vadd.f32 %v5212, %v5262
    %s5267 = sld [smem:[#allocation8 + $0x3d]]
    %v5268 = vstv %s5267
    %v5269 = vmul.f32 %v5268, %v5075
    %v5270 = vmul.f32 %v5268, %v5076
    %5273 = vrot.lane.b32.xlu0 %v5269, 126
    %v5274 = vpop.permute.xlu0 %5273
    %5275 = vrot.lane.b32.xlu0 %v5270, 126
    %v5276 = vpop.permute.xlu0 %5275
    %v5279 = vadd.f32 %v5217, %v5274
    %v5280 = vadd.f32 %v5218, %v5276
    %s5281 = sld [smem:[#allocation8 + $0x51]]
    %v5282 = vstv %s5281
    %v5283 = vmul.f32 %v5282, %v5075
    %v5284 = vmul.f32 %v5282, %v5076
    %5287 = vrot.lane.b32.xlu0 %v5283, 126
    %v5288 = vpop.permute.xlu0 %5287
    %5289 = vrot.lane.b32.xlu0 %v5284, 126
    %v5290 = vpop.permute.xlu0 %5289
    %v5293 = vadd.f32 %v5223, %v5288
    %v5294 = vadd.f32 %v5224, %v5290
    %s5295 = sld [smem:[#allocation8 + $0x5]]
    %v5296 = vstv %s5295
    %v5297 = vmul.f32 %v5296, %v5077
    %v5298 = vmul.f32 %v5296, %v5078
    %5301 = vrot.lane.b32.xlu0 %v5297, 126
    %v5302 = vpop.permute.xlu0 %5301
    %5303 = vrot.lane.b32.xlu0 %v5298, 126
    %v5304 = vpop.permute.xlu0 %5303
    %v5307 = vadd.f32 %v5237, %v5302
    %v5308 = vadd.f32 %v5238, %v5304
    %s5309 = sld [smem:[#allocation8 + $0x19]]
    %v5310 = vstv %s5309
    %v5311 = vmul.f32 %v5310, %v5077
    %v5312 = vmul.f32 %v5310, %v5078
    %5315 = vrot.lane.b32.xlu0 %v5311, 126
    %v5316 = vpop.permute.xlu0 %5315
    %5317 = vrot.lane.b32.xlu0 %v5312, 126
    %v5318 = vpop.permute.xlu0 %5317
    %v5321 = vadd.f32 %v5251, %v5316
    %v5322 = vadd.f32 %v5252, %v5318
    %s5323 = sld [smem:[#allocation8 + $0x2d]]
    %v5324 = vstv %s5323
    %v5325 = vmul.f32 %v5324, %v5077
    %v5326 = vmul.f32 %v5324, %v5078
    %5329 = vrot.lane.b32.xlu0 %v5325, 126
    %v5330 = vpop.permute.xlu0 %5329
    %5331 = vrot.lane.b32.xlu0 %v5326, 126
    %v5332 = vpop.permute.xlu0 %5331
    %v5335 = vadd.f32 %v5265, %v5330
    %v5336 = vadd.f32 %v5266, %v5332
    %s5337 = sld [smem:[#allocation8 + $0x41]]
    %v5338 = vstv %s5337
    %v5339 = vmul.f32 %v5338, %v5077
    %v5340 = vmul.f32 %v5338, %v5078
    %5343 = vrot.lane.b32.xlu0 %v5339, 126
    %v5344 = vpop.permute.xlu0 %5343
    %5345 = vrot.lane.b32.xlu0 %v5340, 126
    %v5346 = vpop.permute.xlu0 %5345
    %v5349 = vadd.f32 %v5279, %v5344
    %v5350 = vadd.f32 %v5280, %v5346
    %s5351 = sld [smem:[#allocation8 + $0x55]]
    %v5352 = vstv %s5351
    %v5353 = vmul.f32 %v5352, %v5077
    %v5354 = vmul.f32 %v5352, %v5078
    %5357 = vrot.lane.b32.xlu0 %v5353, 126
    %v5358 = vpop.permute.xlu0 %5357
    %5359 = vrot.lane.b32.xlu0 %v5354, 126
    %v5360 = vpop.permute.xlu0 %5359
    %v5363 = vadd.f32 %v5293, %v5358
    %v5364 = vadd.f32 %v5294, %v5360
    %s5365 = sld [smem:[#allocation8 + $0x9]]
    %v5366 = vstv %s5365
    %v5367 = vmul.f32 %v5366, %v5079
    %v5368 = vmul.f32 %v5366, %v5080
    %5371 = vrot.lane.b32.xlu0 %v5367, 126
    %v5372 = vpop.permute.xlu0 %5371
    %5373 = vrot.lane.b32.xlu0 %v5368, 126
    %v5374 = vpop.permute.xlu0 %5373
    %v5377 = vadd.f32 %v5307, %v5372
    %v5378 = vadd.f32 %v5308, %v5374
    %s5379 = sld [smem:[#allocation8 + $0x1d]]
    %v5380 = vstv %s5379
    %v5381 = vmul.f32 %v5380, %v5079
    %v5382 = vmul.f32 %v5380, %v5080
    %5385 = vrot.lane.b32.xlu0 %v5381, 126
    %v5386 = vpop.permute.xlu0 %5385
    %5387 = vrot.lane.b32.xlu0 %v5382, 126
    %v5388 = vpop.permute.xlu0 %5387
    %v5391 = vadd.f32 %v5321, %v5386
    %v5392 = vadd.f32 %v5322, %v5388
    %s5393 = sld [smem:[#allocation8 + $0x31]]
    %v5394 = vstv %s5393
    %v5395 = vmul.f32 %v5394, %v5079
    %v5396 = vmul.f32 %v5394, %v5080
    %5399 = vrot.lane.b32.xlu0 %v5395, 126
    %v5400 = vpop.permute.xlu0 %5399
    %5401 = vrot.lane.b32.xlu0 %v5396, 126
    %v5402 = vpop.permute.xlu0 %5401
    %v5405 = vadd.f32 %v5335, %v5400
    %v5406 = vadd.f32 %v5336, %v5402
    %s5407 = sld [smem:[#allocation8 + $0x45]]
    %v5408 = vstv %s5407
    %v5409 = vmul.f32 %v5408, %v5079
    %v5410 = vmul.f32 %v5408, %v5080
    %5413 = vrot.lane.b32.xlu0 %v5409, 126
    %v5414 = vpop.permute.xlu0 %5413
    %5415 = vrot.lane.b32.xlu0 %v5410, 126
    %v5416 = vpop.permute.xlu0 %5415
    %v5419 = vadd.f32 %v5349, %v5414
    %v5420 = vadd.f32 %v5350, %v5416
    %s5421 = sld [smem:[#allocation8 + $0x59]]
    %v5422 = vstv %s5421
    %v5423 = vmul.f32 %v5422, %v5079
    %v5424 = vmul.f32 %v5422, %v5080
    %5427 = vrot.lane.b32.xlu0 %v5423, 126
    %v5428 = vpop.permute.xlu0 %5427
    %5429 = vrot.lane.b32.xlu0 %v5424, 126
    %v5430 = vpop.permute.xlu0 %5429
    %v5433 = vadd.f32 %v5363, %v5428
    %v5434 = vadd.f32 %v5364, %v5430
    %s5435 = sld [smem:[#allocation8 + $0xd]]
    %v5436 = vstv %s5435
    %v5437 = vmul.f32 %v5436, %v5081
    %v5438 = vmul.f32 %v5436, %v5082
    %5441 = vrot.lane.b32.xlu0 %v5437, 126
    %v5442 = vpop.permute.xlu0 %5441
    %5443 = vrot.lane.b32.xlu0 %v5438, 126
    %v5444 = vpop.permute.xlu0 %5443
    %v5447 = vadd.f32 %v5377, %v5442
    %v5448 = vadd.f32 %v5378, %v5444
    %s5449 = sld [smem:[#allocation8 + $0x21]]
    %v5450 = vstv %s5449
    %v5451 = vmul.f32 %v5450, %v5081
    %v5452 = vmul.f32 %v5450, %v5082
    %5455 = vrot.lane.b32.xlu0 %v5451, 126
    %v5456 = vpop.permute.xlu0 %5455
    %5457 = vrot.lane.b32.xlu0 %v5452, 126
    %v5458 = vpop.permute.xlu0 %5457
    %v5461 = vadd.f32 %v5391, %v5456
    %v5462 = vadd.f32 %v5392, %v5458
    %s5463 = sld [smem:[#allocation8 + $0x35]]
    %v5464 = vstv %s5463
    %v5465 = vmul.f32 %v5464, %v5081
    %v5466 = vmul.f32 %v5464, %v5082
    %5469 = vrot.lane.b32.xlu0 %v5465, 126
    %v5470 = vpop.permute.xlu0 %5469
    %5471 = vrot.lane.b32.xlu0 %v5466, 126
    %v5472 = vpop.permute.xlu0 %5471
    %v5475 = vadd.f32 %v5405, %v5470
    %v5476 = vadd.f32 %v5406, %v5472
    %s5477 = sld [smem:[#allocation8 + $0x49]]
    %v5478 = vstv %s5477
    %v5479 = vmul.f32 %v5478, %v5081
    %v5480 = vmul.f32 %v5478, %v5082
    %5483 = vrot.lane.b32.xlu0 %v5479, 126
    %v5484 = vpop.permute.xlu0 %5483
    %5485 = vrot.lane.b32.xlu0 %v5480, 126
    %v5486 = vpop.permute.xlu0 %5485
    %v5489 = vadd.f32 %v5419, %v5484
    %v5490 = vadd.f32 %v5420, %v5486
    %s5491 = sld [smem:[#allocation8 + $0x5d]]
    %v5492 = vstv %s5491
    %v5493 = vmul.f32 %v5492, %v5081
    %v5494 = vmul.f32 %v5492, %v5082
    %5497 = vrot.lane.b32.xlu0 %v5493, 126
    %v5498 = vpop.permute.xlu0 %5497
    %5499 = vrot.lane.b32.xlu0 %v5494, 126
    %v5500 = vpop.permute.xlu0 %5499
    %v5503 = vadd.f32 %v5433, %v5498
    %v5504 = vadd.f32 %v5434, %v5500
    %s5505 = sld [smem:[#allocation8 + $0x11]]
    %v5506 = vstv %s5505
    %v5507 = vmul.f32 %v5506, %v5083
    %v5508 = vmul.f32 %v5506, %v5084
    %5511 = vrot.lane.b32.xlu0 %v5507, 126
    %v5512 = vpop.permute.xlu0 %5511
    %5513 = vrot.lane.b32.xlu0 %v5508, 126
    %v5514 = vpop.permute.xlu0 %5513
    %v5517 = vadd.f32 %v5447, %v5512
    %v5518 = vadd.f32 %v5448, %v5514
    %s5519 = sld [smem:[#allocation8 + $0x25]]
    %v5520 = vstv %s5519
    %v5521 = vmul.f32 %v5520, %v5083
    %v5522 = vmul.f32 %v5520, %v5084
    %5525 = vrot.lane.b32.xlu0 %v5521, 126
    %v5526 = vpop.permute.xlu0 %5525
    %5527 = vrot.lane.b32.xlu0 %v5522, 126
    %v5528 = vpop.permute.xlu0 %5527
    %v5531 = vadd.f32 %v5461, %v5526
    %v5532 = vadd.f32 %v5462, %v5528
    %s5533 = sld [smem:[#allocation8 + $0x39]]
    %v5534 = vstv %s5533
    %v5535 = vmul.f32 %v5534, %v5083
    %v5536 = vmul.f32 %v5534, %v5084
    %5539 = vrot.lane.b32.xlu0 %v5535, 126
    %v5540 = vpop.permute.xlu0 %5539
    %5541 = vrot.lane.b32.xlu0 %v5536, 126
    %v5542 = vpop.permute.xlu0 %5541
    %v5545 = vadd.f32 %v5475, %v5540
    %v5546 = vadd.f32 %v5476, %v5542
    %s5547 = sld [smem:[#allocation8 + $0x4d]]
    %v5548 = vstv %s5547
    %v5549 = vmul.f32 %v5548, %v5083
    %v5550 = vmul.f32 %v5548, %v5084
    %5553 = vrot.lane.b32.xlu0 %v5549, 126
    %v5554 = vpop.permute.xlu0 %5553
    %5555 = vrot.lane.b32.xlu0 %v5550, 126
    %v5556 = vpop.permute.xlu0 %5555
    %v5559 = vadd.f32 %v5489, %v5554
    %v5560 = vadd.f32 %v5490, %v5556
    %s5561 = sld [smem:[#allocation8 + $0x61]]
    %v5562 = vstv %s5561
    %v5563 = vmul.f32 %v5562, %v5083
    %v5564 = vmul.f32 %v5562, %v5084
    %5567 = vrot.lane.b32.xlu0 %v5563, 126
    %v5568 = vpop.permute.xlu0 %5567
    %5569 = vrot.lane.b32.xlu0 %v5564, 126
    %v5570 = vpop.permute.xlu0 %5569
    %v5573 = vadd.f32 %v5503, %v5568
    %v5574 = vadd.f32 %v5504, %v5570
    %v5575 = vld [vmem:[#allocation3 + $0x2] sm:$0xff]
    %v5576 = vld [vmem:[#allocation3 + $0xa] sm:$0xf]
    %v5577 = vld [vmem:[#allocation3 + $0x12] sm:$0xff]
    %v5578 = vld [vmem:[#allocation3 + $0x1a] sm:$0xf]
    %v5579 = vld [vmem:[#allocation3 + $0x22] sm:$0xff]
    %v5580 = vld [vmem:[#allocation3 + $0x2a] sm:$0xf]
    %v5581 = vld [vmem:[#allocation3 + $0x32] sm:$0xff]
    %v5582 = vld [vmem:[#allocation3 + $0x3a] sm:$0xf]
    %v5583 = vld [vmem:[#allocation3 + $0x42] sm:$0xff]
    %v5584 = vld [vmem:[#allocation3 + $0x4a] sm:$0xf]
    %s5585 = sld [smem:[#allocation8 + $0x2]]
    %v5586 = vstv %s5585
    %v5587 = vmul.f32 %v5586, %v5575
    %v5588 = vmul.f32 %v5586, %v5576
    %v5589 = vadd.f32 %v5517, %v5587
    %v5590 = vadd.f32 %v5518, %v5588
    %s5591 = sld [smem:[#allocation8 + $0x16]]
    %v5592 = vstv %s5591
    %v5593 = vmul.f32 %v5592, %v5575
    %v5594 = vmul.f32 %v5592, %v5576
    %v5595 = vadd.f32 %v5531, %v5593
    %v5596 = vadd.f32 %v5532, %v5594
    %s5597 = sld [smem:[#allocation8 + $0x2a]]
    %v5598 = vstv %s5597
    %v5599 = vmul.f32 %v5598, %v5575
    %v5600 = vmul.f32 %v5598, %v5576
    %v5601 = vadd.f32 %v5545, %v5599
    %v5602 = vadd.f32 %v5546, %v5600
    %s5603 = sld [smem:[#allocation8 + $0x3e]]
    %v5604 = vstv %s5603
    %v5605 = vmul.f32 %v5604, %v5575
    %v5606 = vmul.f32 %v5604, %v5576
    %v5607 = vadd.f32 %v5559, %v5605
    %v5608 = vadd.f32 %v5560, %v5606
    %s5609 = sld [smem:[#allocation8 + $0x52]]
    %v5610 = vstv %s5609
    %v5611 = vmul.f32 %v5610, %v5575
    %v5612 = vmul.f32 %v5610, %v5576
    %v5613 = vadd.f32 %v5573, %v5611
    %v5614 = vadd.f32 %v5574, %v5612
    %s5615 = sld [smem:[#allocation8 + $0x6]]
    %v5616 = vstv %s5615
    %v5617 = vmul.f32 %v5616, %v5577
    %v5618 = vmul.f32 %v5616, %v5578
    %v5619 = vadd.f32 %v5589, %v5617
    %v5620 = vadd.f32 %v5590, %v5618
    %s5621 = sld [smem:[#allocation8 + $0x1a]]
    %v5622 = vstv %s5621
    %v5623 = vmul.f32 %v5622, %v5577
    %v5624 = vmul.f32 %v5622, %v5578
    %v5625 = vadd.f32 %v5595, %v5623
    %v5626 = vadd.f32 %v5596, %v5624
    %s5627 = sld [smem:[#allocation8 + $0x2e]]
    %v5628 = vstv %s5627
    %v5629 = vmul.f32 %v5628, %v5577
    %v5630 = vmul.f32 %v5628, %v5578
    %v5631 = vadd.f32 %v5601, %v5629
    %v5632 = vadd.f32 %v5602, %v5630
    %s5633 = sld [smem:[#allocation8 + $0x42]]
    %v5634 = vstv %s5633
    %v5635 = vmul.f32 %v5634, %v5577
    %v5636 = vmul.f32 %v5634, %v5578
    %v5637 = vadd.f32 %v5607, %v5635
    %v5638 = vadd.f32 %v5608, %v5636
    %s5639 = sld [smem:[#allocation8 + $0x56]]
    %v5640 = vstv %s5639
    %v5641 = vmul.f32 %v5640, %v5577
    %v5642 = vmul.f32 %v5640, %v5578
    %v5643 = vadd.f32 %v5613, %v5641
    %v5644 = vadd.f32 %v5614, %v5642
    %s5645 = sld [smem:[#allocation8 + $0xa]]
    %v5646 = vstv %s5645
    %v5647 = vmul.f32 %v5646, %v5579
    %v5648 = vmul.f32 %v5646, %v5580
    %v5649 = vadd.f32 %v5619, %v5647
    %v5650 = vadd.f32 %v5620, %v5648
    %s5651 = sld [smem:[#allocation8 + $0x1e]]
    %v5652 = vstv %s5651
    %v5653 = vmul.f32 %v5652, %v5579
    %v5654 = vmul.f32 %v5652, %v5580
    %v5655 = vadd.f32 %v5625, %v5653
    %v5656 = vadd.f32 %v5626, %v5654
    %s5657 = sld [smem:[#allocation8 + $0x32]]
    %v5658 = vstv %s5657
    %v5659 = vmul.f32 %v5658, %v5579
    %v5660 = vmul.f32 %v5658, %v5580
    %v5661 = vadd.f32 %v5631, %v5659
    %v5662 = vadd.f32 %v5632, %v5660
    %s5663 = sld [smem:[#allocation8 + $0x46]]
    %v5664 = vstv %s5663
    %v5665 = vmul.f32 %v5664, %v5579
    %v5666 = vmul.f32 %v5664, %v5580
    %v5667 = vadd.f32 %v5637, %v5665
    %v5668 = vadd.f32 %v5638, %v5666
    %s5669 = sld [smem:[#allocation8 + $0x5a]]
    %v5670 = vstv %s5669
    %v5671 = vmul.f32 %v5670, %v5579
    %v5672 = vmul.f32 %v5670, %v5580
    %v5673 = vadd.f32 %v5643, %v5671
    %v5674 = vadd.f32 %v5644, %v5672
    %s5675 = sld [smem:[#allocation8 + $0xe]]
    %v5676 = vstv %s5675
    %v5677 = vmul.f32 %v5676, %v5581
    %v5678 = vmul.f32 %v5676, %v5582
    %v5679 = vadd.f32 %v5649, %v5677
    %v5680 = vadd.f32 %v5650, %v5678
    %s5681 = sld [smem:[#allocation8 + $0x22]]
    %v5682 = vstv %s5681
    %v5683 = vmul.f32 %v5682, %v5581
    %v5684 = vmul.f32 %v5682, %v5582
    %v5685 = vadd.f32 %v5655, %v5683
    %v5686 = vadd.f32 %v5656, %v5684
    %s5687 = sld [smem:[#allocation8 + $0x36]]
    %v5688 = vstv %s5687
    %v5689 = vmul.f32 %v5688, %v5581
    %v5690 = vmul.f32 %v5688, %v5582
    %v5691 = vadd.f32 %v5661, %v5689
    %v5692 = vadd.f32 %v5662, %v5690
    %s5693 = sld [smem:[#allocation8 + $0x4a]]
    %v5694 = vstv %s5693
    %v5695 = vmul.f32 %v5694, %v5581
    %v5696 = vmul.f32 %v5694, %v5582
    %v5697 = vadd.f32 %v5667, %v5695
    %v5698 = vadd.f32 %v5668, %v5696
    %s5699 = sld [smem:[#allocation8 + $0x5e]]
    %v5700 = vstv %s5699
    %v5701 = vmul.f32 %v5700, %v5581
    %v5702 = vmul.f32 %v5700, %v5582
    %v5703 = vadd.f32 %v5673, %v5701
    %v5704 = vadd.f32 %v5674, %v5702
    %s5705 = sld [smem:[#allocation8 + $0x12]]
    %v5706 = vstv %s5705
    %v5707 = vmul.f32 %v5706, %v5583
    %v5708 = vmul.f32 %v5706, %v5584
    %v5709 = vadd.f32 %v5679, %v5707
    %v5710 = vadd.f32 %v5680, %v5708
    %s5711 = sld [smem:[#allocation8 + $0x26]]
    %v5712 = vstv %s5711
    %v5713 = vmul.f32 %v5712, %v5583
    %v5714 = vmul.f32 %v5712, %v5584
    %v5715 = vadd.f32 %v5685, %v5713
    %v5716 = vadd.f32 %v5686, %v5714
    %s5717 = sld [smem:[#allocation8 + $0x3a]]
    %v5718 = vstv %s5717
    %v5719 = vmul.f32 %v5718, %v5583
    %v5720 = vmul.f32 %v5718, %v5584
    %v5721 = vadd.f32 %v5691, %v5719
    %v5722 = vadd.f32 %v5692, %v5720
    %s5723 = sld [smem:[#allocation8 + $0x4e]]
    %v5724 = vstv %s5723
    %v5725 = vmul.f32 %v5724, %v5583
    %v5726 = vmul.f32 %v5724, %v5584
    %v5727 = vadd.f32 %v5697, %v5725
    %v5728 = vadd.f32 %v5698, %v5726
    %s5729 = sld [smem:[#allocation8 + $0x62]]
    %v5730 = vstv %s5729
    %v5731 = vmul.f32 %v5730, %v5583
    %v5732 = vmul.f32 %v5730, %v5584
    %v5733 = vadd.f32 %v5703, %v5731
    %v5734 = vadd.f32 %v5704, %v5732
    %s5735 = sld [smem:[#allocation8 + $0x3]]
    %v5736 = vstv %s5735
    %v5737 = vmul.f32 %v5736, %v5575
    %v5738 = vmul.f32 %v5736, %v5576
    %5741 = vrot.lane.b32.xlu0 %v5737, 126
    %v5742 = vpop.permute.xlu0 %5741
    %5743 = vrot.lane.b32.xlu0 %v5738, 126
    %v5744 = vpop.permute.xlu0 %5743
    %v5747 = vadd.f32 %v5709, %v5742
    %v5748 = vadd.f32 %v5710, %v5744
    %s5749 = sld [smem:[#allocation8 + $0x17]]
    %v5750 = vstv %s5749
    %v5751 = vmul.f32 %v5750, %v5575
    %v5752 = vmul.f32 %v5750, %v5576
    %5755 = vrot.lane.b32.xlu0 %v5751, 126
    %v5756 = vpop.permute.xlu0 %5755
    %5757 = vrot.lane.b32.xlu0 %v5752, 126
    %v5758 = vpop.permute.xlu0 %5757
    %v5761 = vadd.f32 %v5715, %v5756
    %v5762 = vadd.f32 %v5716, %v5758
    %s5763 = sld [smem:[#allocation8 + $0x2b]]
    %v5764 = vstv %s5763
    %v5765 = vmul.f32 %v5764, %v5575
    %v5766 = vmul.f32 %v5764, %v5576
    %5769 = vrot.lane.b32.xlu0 %v5765, 126
    %v5770 = vpop.permute.xlu0 %5769
    %5771 = vrot.lane.b32.xlu0 %v5766, 126
    %v5772 = vpop.permute.xlu0 %5771
    %v5775 = vadd.f32 %v5721, %v5770
    %v5776 = vadd.f32 %v5722, %v5772
    %s5777 = sld [smem:[#allocation8 + $0x3f]]
    %v5778 = vstv %s5777
    %v5779 = vmul.f32 %v5778, %v5575
    %v5780 = vmul.f32 %v5778, %v5576
    %5783 = vrot.lane.b32.xlu0 %v5779, 126
    %v5784 = vpop.permute.xlu0 %5783
    %5785 = vrot.lane.b32.xlu0 %v5780, 126
    %v5786 = vpop.permute.xlu0 %5785
    %v5789 = vadd.f32 %v5727, %v5784
    %v5790 = vadd.f32 %v5728, %v5786
    %s5791 = sld [smem:[#allocation8 + $0x53]]
    %v5792 = vstv %s5791
    %v5793 = vmul.f32 %v5792, %v5575
    %v5794 = vmul.f32 %v5792, %v5576
    %5797 = vrot.lane.b32.xlu0 %v5793, 126
    %v5798 = vpop.permute.xlu0 %5797
    %5799 = vrot.lane.b32.xlu0 %v5794, 126
    %v5800 = vpop.permute.xlu0 %5799
    %v5803 = vadd.f32 %v5733, %v5798
    %v5804 = vadd.f32 %v5734, %v5800
    %s5805 = sld [smem:[#allocation8 + $0x7]]
    %v5806 = vstv %s5805
    %v5807 = vmul.f32 %v5806, %v5577
    %v5808 = vmul.f32 %v5806, %v5578
    %5811 = vrot.lane.b32.xlu0 %v5807, 126
    %v5812 = vpop.permute.xlu0 %5811
    %5813 = vrot.lane.b32.xlu0 %v5808, 126
    %v5814 = vpop.permute.xlu0 %5813
    %v5817 = vadd.f32 %v5747, %v5812
    %v5818 = vadd.f32 %v5748, %v5814
    %s5819 = sld [smem:[#allocation8 + $0x1b]]
    %v5820 = vstv %s5819
    %v5821 = vmul.f32 %v5820, %v5577
    %v5822 = vmul.f32 %v5820, %v5578
    %5825 = vrot.lane.b32.xlu0 %v5821, 126
    %v5826 = vpop.permute.xlu0 %5825
    %5827 = vrot.lane.b32.xlu0 %v5822, 126
    %v5828 = vpop.permute.xlu0 %5827
    %v5831 = vadd.f32 %v5761, %v5826
    %v5832 = vadd.f32 %v5762, %v5828
    %s5833 = sld [smem:[#allocation8 + $0x2f]]
    %v5834 = vstv %s5833
    %v5835 = vmul.f32 %v5834, %v5577
    %v5836 = vmul.f32 %v5834, %v5578
    %5839 = vrot.lane.b32.xlu0 %v5835, 126
    %v5840 = vpop.permute.xlu0 %5839
    %5841 = vrot.lane.b32.xlu0 %v5836, 126
    %v5842 = vpop.permute.xlu0 %5841
    %v5845 = vadd.f32 %v5775, %v5840
    %v5846 = vadd.f32 %v5776, %v5842
    %s5847 = sld [smem:[#allocation8 + $0x43]]
    %v5848 = vstv %s5847
    %v5849 = vmul.f32 %v5848, %v5577
    %v5850 = vmul.f32 %v5848, %v5578
    %5853 = vrot.lane.b32.xlu0 %v5849, 126
    %v5854 = vpop.permute.xlu0 %5853
    %5855 = vrot.lane.b32.xlu0 %v5850, 126
    %v5856 = vpop.permute.xlu0 %5855
    %v5859 = vadd.f32 %v5789, %v5854
    %v5860 = vadd.f32 %v5790, %v5856
    %s5861 = sld [smem:[#allocation8 + $0x57]]
    %v5862 = vstv %s5861
    %v5863 = vmul.f32 %v5862, %v5577
    %v5864 = vmul.f32 %v5862, %v5578
    %5867 = vrot.lane.b32.xlu0 %v5863, 126
    %v5868 = vpop.permute.xlu0 %5867
    %5869 = vrot.lane.b32.xlu0 %v5864, 126
    %v5870 = vpop.permute.xlu0 %5869
    %v5873 = vadd.f32 %v5803, %v5868
    %v5874 = vadd.f32 %v5804, %v5870
    %s5875 = sld [smem:[#allocation8 + $0xb]]
    %v5876 = vstv %s5875
    %v5877 = vmul.f32 %v5876, %v5579
    %v5878 = vmul.f32 %v5876, %v5580
    %5881 = vrot.lane.b32.xlu0 %v5877, 126
    %v5882 = vpop.permute.xlu0 %5881
    %5883 = vrot.lane.b32.xlu0 %v5878, 126
    %v5884 = vpop.permute.xlu0 %5883
    %v5887 = vadd.f32 %v5817, %v5882
    %v5888 = vadd.f32 %v5818, %v5884
    %s5889 = sld [smem:[#allocation8 + $0x1f]]
    %v5890 = vstv %s5889
    %v5891 = vmul.f32 %v5890, %v5579
    %v5892 = vmul.f32 %v5890, %v5580
    %5895 = vrot.lane.b32.xlu0 %v5891, 126
    %v5896 = vpop.permute.xlu0 %5895
    %5897 = vrot.lane.b32.xlu0 %v5892, 126
    %v5898 = vpop.permute.xlu0 %5897
    %v5901 = vadd.f32 %v5831, %v5896
    %v5902 = vadd.f32 %v5832, %v5898
    %s5903 = sld [smem:[#allocation8 + $0x33]]
    %v5904 = vstv %s5903
    %v5905 = vmul.f32 %v5904, %v5579
    %v5906 = vmul.f32 %v5904, %v5580
    %5909 = vrot.lane.b32.xlu0 %v5905, 126
    %v5910 = vpop.permute.xlu0 %5909
    %5911 = vrot.lane.b32.xlu0 %v5906, 126
    %v5912 = vpop.permute.xlu0 %5911
    %v5915 = vadd.f32 %v5845, %v5910
    %v5916 = vadd.f32 %v5846, %v5912
    %s5917 = sld [smem:[#allocation8 + $0x47]]
    %v5918 = vstv %s5917
    %v5919 = vmul.f32 %v5918, %v5579
    %v5920 = vmul.f32 %v5918, %v5580
    %5923 = vrot.lane.b32.xlu0 %v5919, 126
    %v5924 = vpop.permute.xlu0 %5923
    %5925 = vrot.lane.b32.xlu0 %v5920, 126
    %v5926 = vpop.permute.xlu0 %5925
    %v5929 = vadd.f32 %v5859, %v5924
    %v5930 = vadd.f32 %v5860, %v5926
    %s5931 = sld [smem:[#allocation8 + $0x5b]]
    %v5932 = vstv %s5931
    %v5933 = vmul.f32 %v5932, %v5579
    %v5934 = vmul.f32 %v5932, %v5580
    %5937 = vrot.lane.b32.xlu0 %v5933, 126
    %v5938 = vpop.permute.xlu0 %5937
    %5939 = vrot.lane.b32.xlu0 %v5934, 126
    %v5940 = vpop.permute.xlu0 %5939
    %v5943 = vadd.f32 %v5873, %v5938
    %v5944 = vadd.f32 %v5874, %v5940
    %s5945 = sld [smem:[#allocation8 + $0xf]]
    %v5946 = vstv %s5945
    %v5947 = vmul.f32 %v5946, %v5581
    %v5948 = vmul.f32 %v5946, %v5582
    %5951 = vrot.lane.b32.xlu0 %v5947, 126
    %v5952 = vpop.permute.xlu0 %5951
    %5953 = vrot.lane.b32.xlu0 %v5948, 126
    %v5954 = vpop.permute.xlu0 %5953
    %v5957 = vadd.f32 %v5887, %v5952
    %v5958 = vadd.f32 %v5888, %v5954
    %s5959 = sld [smem:[#allocation8 + $0x23]]
    %v5960 = vstv %s5959
    %v5961 = vmul.f32 %v5960, %v5581
    %v5962 = vmul.f32 %v5960, %v5582
    %5965 = vrot.lane.b32.xlu0 %v5961, 126
    %v5966 = vpop.permute.xlu0 %5965
    %5967 = vrot.lane.b32.xlu0 %v5962, 126
    %v5968 = vpop.permute.xlu0 %5967
    %v5971 = vadd.f32 %v5901, %v5966
    %v5972 = vadd.f32 %v5902, %v5968
    %s5973 = sld [smem:[#allocation8 + $0x37]]
    %v5974 = vstv %s5973
    %v5975 = vmul.f32 %v5974, %v5581
    %v5976 = vmul.f32 %v5974, %v5582
    %5979 = vrot.lane.b32.xlu0 %v5975, 126
    %v5980 = vpop.permute.xlu0 %5979
    %5981 = vrot.lane.b32.xlu0 %v5976, 126
    %v5982 = vpop.permute.xlu0 %5981
    %v5985 = vadd.f32 %v5915, %v5980
    %v5986 = vadd.f32 %v5916, %v5982
    %s5987 = sld [smem:[#allocation8 + $0x4b]]
    %v5988 = vstv %s5987
    %v5989 = vmul.f32 %v5988, %v5581
    %v5990 = vmul.f32 %v5988, %v5582
    %5993 = vrot.lane.b32.xlu0 %v5989, 126
    %v5994 = vpop.permute.xlu0 %5993
    %5995 = vrot.lane.b32.xlu0 %v5990, 126
    %v5996 = vpop.permute.xlu0 %5995
    %v5999 = vadd.f32 %v5929, %v5994
    %v6000 = vadd.f32 %v5930, %v5996
    %s6001 = sld [smem:[#allocation8 + $0x5f]]
    %v6002 = vstv %s6001
    %v6003 = vmul.f32 %v6002, %v5581
    %v6004 = vmul.f32 %v6002, %v5582
    %6007 = vrot.lane.b32.xlu0 %v6003, 126
    %v6008 = vpop.permute.xlu0 %6007
    %6009 = vrot.lane.b32.xlu0 %v6004, 126
    %v6010 = vpop.permute.xlu0 %6009
    %v6013 = vadd.f32 %v5943, %v6008
    %v6014 = vadd.f32 %v5944, %v6010
    %s6015 = sld [smem:[#allocation8 + $0x13]]
    %v6016 = vstv %s6015
    %v6017 = vmul.f32 %v6016, %v5583
    %v6018 = vmul.f32 %v6016, %v5584
    %6021 = vrot.lane.b32.xlu0 %v6017, 126
    %v6022 = vpop.permute.xlu0 %6021
    %6023 = vrot.lane.b32.xlu0 %v6018, 126
    %v6024 = vpop.permute.xlu0 %6023
    %v6027 = vadd.f32 %v5957, %v6022
    %v6028 = vadd.f32 %v5958, %v6024
    %s6029 = sld [smem:[#allocation8 + $0x27]]
    %v6030 = vstv %s6029
    %v6031 = vmul.f32 %v6030, %v5583
    %v6032 = vmul.f32 %v6030, %v5584
    %6035 = vrot.lane.b32.xlu0 %v6031, 126
    %v6036 = vpop.permute.xlu0 %6035
    %6037 = vrot.lane.b32.xlu0 %v6032, 126
    %v6038 = vpop.permute.xlu0 %6037
    %v6041 = vadd.f32 %v5971, %v6036
    %v6042 = vadd.f32 %v5972, %v6038
    %s6043 = sld [smem:[#allocation8 + $0x3b]]
    %v6044 = vstv %s6043
    %v6045 = vmul.f32 %v6044, %v5583
    %v6046 = vmul.f32 %v6044, %v5584
    %6049 = vrot.lane.b32.xlu0 %v6045, 126
    %v6050 = vpop.permute.xlu0 %6049
    %6051 = vrot.lane.b32.xlu0 %v6046, 126
    %v6052 = vpop.permute.xlu0 %6051
    %v6055 = vadd.f32 %v5985, %v6050
    %v6056 = vadd.f32 %v5986, %v6052
    %s6057 = sld [smem:[#allocation8 + $0x4f]]
    %v6058 = vstv %s6057
    %v6059 = vmul.f32 %v6058, %v5583
    %v6060 = vmul.f32 %v6058, %v5584
    %6063 = vrot.lane.b32.xlu0 %v6059, 126
    %v6064 = vpop.permute.xlu0 %6063
    %6065 = vrot.lane.b32.xlu0 %v6060, 126
    %v6066 = vpop.permute.xlu0 %6065
    %v6069 = vadd.f32 %v5999, %v6064
    %v6070 = vadd.f32 %v6000, %v6066
    %s6071 = sld [smem:[#allocation8 + $0x63]]
    %v6072 = vstv %s6071
    %v6073 = vmul.f32 %v6072, %v5583
    %v6074 = vmul.f32 %v6072, %v5584
    %6077 = vrot.lane.b32.xlu0 %v6073, 126
    %v6078 = vpop.permute.xlu0 %6077
    %6079 = vrot.lane.b32.xlu0 %v6074, 126
    %v6080 = vpop.permute.xlu0 %6079
    %v6083 = vadd.f32 %v6013, %v6078
    %v6084 = vadd.f32 %v6014, %v6080
    %s6085 = sld [smem:[#allocation9]]
    %v6086 = vstv %s6085
    %v6087 = vadd.f32 %v6027, %v6086
    %v6088 = vadd.f32 %v6028, %v6086
    %s6089 = sld [smem:[#allocation9 + $0x1]]
    %v6090 = vstv %s6089
    %v6091 = vadd.f32 %v6041, %v6090
    %v6092 = vadd.f32 %v6042, %v6090
    %s6093 = sld [smem:[#allocation9 + $0x2]]
    %v6094 = vstv %s6093
    %v6095 = vadd.f32 %v6055, %v6094
    %v6096 = vadd.f32 %v6056, %v6094
    %s6097 = sld [smem:[#allocation9 + $0x3]]
    %v6098 = vstv %s6097
    %v6099 = vadd.f32 %v6069, %v6098
    %v6100 = vadd.f32 %v6070, %v6098
    %s6101 = sld [smem:[#allocation9 + $0x4]]
    %v6102 = vstv %s6101
    %v6103 = vadd.f32 %v6083, %v6102
    %v6104 = vadd.f32 %v6084, %v6102
    %v6105 = vtanh.pop %v6087
    %v6106 = vtanh.pop %v6088
    %v6107 = vtanh.pop %v6091
    %v6108 = vtanh.pop %v6092
    %v6109 = vtanh.pop %v6095
    %v6110 = vtanh.pop %v6096
    %v6111 = vtanh.pop %v6099
    %v6112 = vtanh.pop %v6100
    %v6113 = vtanh.pop %v6103
    %v6114 = vtanh.pop %v6104
    %v6115 = vadd.f32 %v6105, %v3987
    %v6116 = vadd.f32 %v6106, %v3988
    %v6117 = vadd.f32 %v6107, %v3991
    %v6118 = vadd.f32 %v6108, %v3992
    %v6119 = vadd.f32 %v6109, %v3995
    %v6120 = vadd.f32 %v6110, %v3996
    %v6121 = vadd.f32 %v6111, %v3999
    %v6122 = vadd.f32 %v6112, %v4000
    %v6123 = vadd.f32 %v6113, %v4003
    %v6124 = vadd.f32 %v6114, %v4004
    %v6125 = vmax.f32 %v6115, 0.0
    %v6126 = vmax.f32 %v6116, 0.0
    %v6127 = vmax.f32 %v6117, 0.0
    %v6128 = vmax.f32 %v6118, 0.0
    %v6129 = vmax.f32 %v6119, 0.0
    %v6130 = vmax.f32 %v6120, 0.0
    %v6131 = vmax.f32 %v6121, 0.0
    %v6132 = vmax.f32 %v6122, 0.0
    %v6133 = vmax.f32 %v6123, 0.0
    %v6134 = vmax.f32 %v6124, 0.0
    %s6135 = scalar_lea.vmem %s7, 80
    %6136 = vst.msk [vmem:[%s6135] sm:$0xff] %vm97, %v6125
    %6137 = vst.msk [vmem:[%s6135 + $0x8] sm:$0xf] %vm3124, %v6126
    %6138 = vst.msk [vmem:[%s6135 + $0x10] sm:$0xff] %vm97, %v6127
    %6139 = vst.msk [vmem:[%s6135 + $0x18] sm:$0xf] %vm3124, %v6128
    %6140 = vst.msk [vmem:[%s6135 + $0x20] sm:$0xff] %vm97, %v6129
    %6141 = vst.msk [vmem:[%s6135 + $0x28] sm:$0xf] %vm3124, %v6130
    %6142 = vst.msk [vmem:[%s6135 + $0x30] sm:$0xff] %vm97, %v6131
    %6143 = vst.msk [vmem:[%s6135 + $0x38] sm:$0xf] %vm3124, %v6132
    %6144 = vst.msk [vmem:[%s6135 + $0x40] sm:$0xff] %vm97, %v6133
    %6145 = vst.msk [vmem:[%s6135 + $0x48] sm:$0xf] %vm3124, %v6134
    // Predicated region
    $region54: #{temporal_block_forward.1} parent=1 // pred_check
      _
    $region55: #{temporal_block_forward.1} parent=1 // pred_check_branch
      %6147 = sbr.rel (0) target = $region57
    $region56: #{temporal_block_forward.1} parent=1 // pred_region
      _
    $region57: #{temporal_block_forward.1} parent=1 // pred_fallthru
      _
    // Predicated region
    $region58: #{temporal_block_forward.1} parent=1 // pred_check
      _
    $region59: #{temporal_block_forward.1} parent=1 // pred_check_branch
      %6149 = sbr.rel (0) target = $region61
    $region60: #{temporal_block_forward.1} parent=1 // pred_region
      _
    $region61: #{temporal_block_forward.1} parent=1 // pred_fallthru
      _
    %6150 = vsyncpa [#allocation5], 1
    %6151 = vsyncpa [#allocation7], 1
    %6152 = vsyncpa [#allocation10], 1
    %6153 = vsyncpa [#allocation13], 1

</llo_original>
